<compile_context>
chip_gen: v6e
topology: v6e:2x2x1
jax: 0.10.0
libtpu: 0.0.40
codegen_flags: <defaults>
</compile_context>

<pallas_src>
import functools

import jax
import jax.numpy as jnp
from jax import lax
from jax.experimental import pallas as pl
from jax.experimental.pallas import tpu as pltpu


# ----------------------------------------------------------------------------
# Fused kernel: synthetic DenseCL encoder + MoCo global CE + DenseCL dense CE.
#
# Grid: (nsplit, n_k_tiles).  Each "split" owns nb query images and their nb
# key images (patch block is resident across the K axis).  At k==0 the encoder
# runs and the positive logits / normalized queries are stashed in VMEM
# scratch; every k step does one queue tile of the online LSE for both heads;
# at the last k step the per-split partial loss is written (lane-dense block).
# ----------------------------------------------------------------------------
def _dense_loss_kernel(p_ref, wp_ref, bp_ref, wg1_ref, bg1_ref, wg2_ref, bg2_ref,
                       wd1_ref, bd1_ref, wd2_ref, bd2_ref, queue_ref, queue2_ref,
                       out_ref,
                       qn_sc, qg_sc, posg_sc, mg_sc, lg_sc, posd_sc, md_sc, ld_sc,
                       *, nb, s, inv_t, w_g, w_d):
    kstep = pl.program_id(1)
    nk = pl.num_programs(1)

    # ---------------- encoder + positive logits (once per split) -------------
    @pl.when(kstep == 0)
    def _encode():
        x = p_ref[...]                                                 # bf16 [2*nb*s, Din]

        # backbone: patch-embedding "conv" (stride=patch) as one MXU matmul + ReLU
        feat = jnp.maximum(
            jnp.dot(x, wp_ref[...], preferred_element_type=jnp.float32)
            + bp_ref[...], 0.0)                                        # f32 [2*nb*s, Cb]

        # global head: spatial avg-pool -> fc -> relu -> fc
        pooled = jnp.mean(feat.reshape(2 * nb, s, -1), axis=1)         # [2*nb, Cb]
        h1 = jnp.maximum(
            jnp.dot(pooled.astype(jnp.bfloat16), wg1_ref[...],
                    preferred_element_type=jnp.float32) + bg1_ref[...], 0.0)
        emb = jnp.dot(h1.astype(jnp.bfloat16), wg2_ref[...],
                      preferred_element_type=jnp.float32) + bg2_ref[...]  # [2*nb, dim]

        # dense head: per-location 1x1-conv MLP
        d1 = jnp.maximum(
            jnp.dot(feat.astype(jnp.bfloat16), wd1_ref[...],
                    preferred_element_type=jnp.float32) + bd1_ref[...], 0.0)
        gproj = jnp.dot(d1.astype(jnp.bfloat16), wd2_ref[...],
                        preferred_element_type=jnp.float32) + bd2_ref[...]  # [2*nb*s, dim]

        def l2norm(v):
            ss = jnp.sum(v * v, axis=-1, keepdims=True)
            return v * lax.rsqrt(jnp.maximum(ss, 1e-24))               # rsqrt -> EUP slot

        # ---- global MoCo positive (column-0 logit) ----
        embn = l2norm(emb)                                             # [2*nb, dim]
        qn, kn = embn[:nb], embn[nb:]
        pos_g = jnp.sum(qn * kn, axis=-1, keepdims=True) * inv_t       # [nb, 1]

        # ---- DenseCL dense positive: backbone-sim argmax match + gather ----
        fb = l2norm(feat)                                              # [2*nb*s, Cb]
        gn = l2norm(gproj)                                             # [2*nb*s, dim]
        qb = fb[: nb * s].reshape(nb, s, -1)
        kb = fb[nb * s:].reshape(nb, s, -1)
        qg = gn[: nb * s]                                              # [nb*s, dim]
        kg = gn[nb * s:].reshape(nb, s, -1)                            # [nb, s, dim]

        # similarity + first-occurrence argmax (torch .max semantics) stays f32
        # so the match indices keep parity with the reference.
        sim = jnp.einsum('nsc,ntc->nst', qb, kb,
                         preferred_element_type=jnp.float32)           # [nb, s, s]
        col = lax.broadcasted_iota(jnp.int32, sim.shape, 2)
        rowmax = jnp.max(sim, axis=2, keepdims=True)
        first_idx = jnp.min(jnp.where(sim >= rowmax, col, s), axis=2, keepdims=True)
        onehot = (col == first_idx).astype(jnp.bfloat16)               # exact 0/1 in bf16

        # gather(k_grid, ind) as a one-hot matmul — bf16 operands, f32 accum.
        gathered = jnp.einsum('nst,ntd->nsd', onehot, kg.astype(jnp.bfloat16),
                              preferred_element_type=jnp.float32).reshape(nb * s, -1)
        pos_d = jnp.sum(qg * gathered, axis=-1, keepdims=True) * inv_t  # [nb*s, 1]

        # stash for the K loop (queries cast to bf16 once, not per tile)
        qn_sc[...] = qn.astype(jnp.bfloat16)
        qg_sc[...] = qg.astype(jnp.bfloat16)
        posg_sc[...] = pos_g
        posd_sc[...] = pos_d
        # online-LSE state seeded with the positive logit (no -inf init needed)
        mg_sc[...] = pos_g
        lg_sc[...] = jnp.ones_like(pos_g)
        md_sc[...] = pos_d
        ld_sc[...] = jnp.ones_like(pos_d)

    # ---------------- one negative-queue tile of the online LSE --------------
    def lse_update(q_bf, queue_tile, m_sc, l_sc):
        # 1/T applied after the f32 accumulation (no extra bf16 rounding).
        logits = inv_t * jnp.dot(q_bf, queue_tile,
                                 preferred_element_type=jnp.float32)   # [rows, Kt]
        m_new = jnp.maximum(m_sc[...], jnp.max(logits, axis=-1, keepdims=True))
        l_sc[...] = (l_sc[...] * jnp.exp(m_sc[...] - m_new)
                     + jnp.sum(jnp.exp(logits - m_new), axis=-1, keepdims=True))
        m_sc[...] = m_new

    lse_update(qn_sc[...], queue_ref[...], mg_sc, lg_sc)    # global head
    lse_update(qg_sc[...], queue2_ref[...], md_sc, ld_sc)   # dense head

    # ---------------- finalize: per-split partial loss ------------------------
    @pl.when(kstep == nk - 1)
    def _finalize():
        lse_g = mg_sc[...] + jnp.log(lg_sc[...])
        lse_d = md_sc[...] + jnp.log(ld_sc[...])
        loss_g = jnp.sum(lse_g - posg_sc[...])               # sum over this split's rows
        loss_d = jnp.sum(lse_d - posd_sc[...])
        partial = w_g * loss_g + w_d * loss_d                # already /N and /(N*S) weighted
        out_ref[...] = jnp.full(out_ref.shape, partial, dtype=out_ref.dtype)


def _pick_k_tile(k, max_kt):
    kt = min(k, max_kt)
    kt -= kt % 128
    while kt >= 128 and (k % kt != 0):
        kt -= 128
    return kt if kt >= 128 else k


def fused_dense_loss(patches, params, queue_bf, queue2_bf, *, nsplit, nb, s,
                     inv_t, n_total, k_tile):
    din = patches.shape[1]
    cb = params["w_patch"].shape[1]
    hidden = params["w_g1"].shape[1]
    dim = params["w_g2"].shape[1]
    kq = queue_bf.shape[1]
    nk = kq // k_tile
    rows = 2 * nb * s

    args = (patches,
            params["w_patch"], params["b_patch"],
            params["w_g1"], params["b_g1"],
            params["w_g2"], params["b_g2"],
            params["w_d1"], params["b_d1"],
            params["w_d2"], params["b_d2"],
            queue_bf, queue2_bf)

    full2d = lambda shape: pl.BlockSpec(shape, lambda i, k: (0, 0))

    # advisory cost estimate (dominant terms: encoder matmuls + queue matmuls)
    flops = 2 * (2 * n_total * s * din * cb
                 + 2 * n_total * cb * hidden + 2 * n_total * hidden * dim
                 + 2 * n_total * s * cb * hidden + 2 * n_total * s * hidden * dim
                 + n_total * s * s * cb + n_total * s * s * dim
                 + n_total * dim * kq + n_total * s * dim * kq)
    transcendentals = (n_total + n_total * s) * (kq + 8)
    bytes_accessed = (sum(int(a.size) * a.dtype.itemsize for a in args)
                      + nsplit * 8 * 128 * 4)

    out = pl.pallas_call(
        functools.partial(_dense_loss_kernel, nb=nb, s=s, inv_t=inv_t,
                          w_g=0.5 / n_total, w_d=0.5 / (n_total * s)),
        out_shape=jax.ShapeDtypeStruct((nsplit * 8, 128), jnp.float32),
        grid=(nsplit, nk),
        in_specs=[
            pl.BlockSpec((rows, din), lambda i, k: (i, 0)),      # split's q+k patches
            full2d((din, cb)), full2d((1, cb)),
            full2d((cb, hidden)), full2d((1, hidden)),
            full2d((hidden, dim)), full2d((1, dim)),
            full2d((cb, hidden)), full2d((1, hidden)),
            full2d((hidden, dim)), full2d((1, dim)),
            pl.BlockSpec((dim, k_tile), lambda i, k: (0, k)),    # global queue tile
            pl.BlockSpec((dim, k_tile), lambda i, k: (0, k)),    # dense queue tile
        ],
        out_specs=pl.BlockSpec((8, 128), lambda i, k: (i, 0)),   # lane-dense partial
        scratch_shapes=[
            pltpu.VMEM((nb, dim), jnp.bfloat16),        # normalized global queries
            pltpu.VMEM((nb * s, dim), jnp.bfloat16),    # normalized dense queries
            pltpu.VMEM((nb, 1), jnp.float32),           # pos_g (scaled)
            pltpu.VMEM((nb, 1), jnp.float32),           # running max, global
            pltpu.VMEM((nb, 1), jnp.float32),           # running sum-exp, global
            pltpu.VMEM((nb * s, 1), jnp.float32),       # pos_d (scaled)
            pltpu.VMEM((nb * s, 1), jnp.float32),       # running max, dense
            pltpu.VMEM((nb * s, 1), jnp.float32),       # running sum-exp, dense
        ],
        compiler_params=pltpu.CompilerParams(
            dimension_semantics=("parallel", "arbitrary"),
            vmem_limit_bytes=32 * 1024 * 1024),
        cost_estimate=pl.CostEstimate(flops=int(flops),
                                      transcendentals=int(transcendentals),
                                      bytes_accessed=int(bytes_accessed)),
    )(*args)
    # every (8,128) block holds the same per-split partial; pick one per split.
    return jnp.sum(out[0::8, 0])


# ----------------------------------------------------------------------------
# Host-side plumbing.
# ----------------------------------------------------------------------------
def _patchify(x, patch):
    # NCHW -> [N, S, C*patch*patch]  (im2col for a stride=patch "conv")
    n, c, h, w = x.shape
    hp, wp = h // patch, w // patch
    x = x.reshape(n, c, hp, patch, wp, patch)
    x = x.transpose(0, 2, 4, 1, 3, 5)
    return x.reshape(n, hp * wp, c * patch * patch), hp * wp


def prepare_dense_params(params):
    """Cast weights to bf16 ONCE (outside the jitted forward); keep biases f32 rows."""
    out = {}
    for k, v in params.items():
        if k.startswith("w_"):
            out[k] = v.astype(jnp.bfloat16)
        else:
            out[k] = v.reshape(1, -1).astype(jnp.float32)
    return out


def dense_loss_forward(y_hat, y, params, queue_bf, queue2_bf, *,
                       temperature, patch, k_tile_max=4096):
    # TODO(synk): momentum key-encoder update, shuffle-BN and queue
    # dequeue/enqueue are training-time side effects with no impact on the loss.
    n = y_hat.shape[0]
    nsplit = 2 if n % 2 == 0 else 1     # 2-way "parallel" batch split (v7x: 2 TCs)
    nb = n // nsplit

    qp, s = _patchify(y_hat, patch)                                   # [n, S, Din]
    kp, _ = _patchify(y, patch)
    din = qp.shape[-1]
    # Per-split packing [split, (nb query imgs ; nb key imgs), S, Din] so one
    # grid-row block holds exactly that split's query and key patch stream.
    pk = jnp.concatenate([qp.reshape(nsplit, nb, s, din),
                          kp.reshape(nsplit, nb, s, din)], axis=1)
    patches = pk.reshape(nsplit * 2 * nb * s, din).astype(jnp.bfloat16)

    # TODO(synk): at large batch, additionally row-tile the dense rows (extra
    # grid axis) and re-derive tiles for v7x's 64 MiB VMEM; optionally fp8
    # queues on v7x's bf16xfp8 MXU mode.
    k_tile = _pick_k_tile(queue_bf.shape[1], k_tile_max)
    return fused_dense_loss(patches, params, queue_bf, queue2_bf,
                            nsplit=nsplit, nb=nb, s=s,
                            inv_t=1.0 / temperature, n_total=n, k_tile=k_tile)


if __name__ == "__main__":
    key = jax.random.PRNGKey(0)
    N, C_in, H, W = 2, 4, 16, 16
    patch = 4
    S = (H // patch) * (W // patch)            # 16 spatial locations
    Din = C_in * patch * patch                 # 64
    C_b, hidden, dim, K = 128, 128, 128, 8192  # backbone ch, mlp hidden, MoCo dim, queue
    temperature = 0.2                          # MoCo(..., T=0.2, ...)

    ks = jax.random.split(key, 10)
    params = {
        "w_patch": 0.1 * jax.random.normal(ks[0], (Din, C_b), jnp.float32),
        "b_patch": jnp.zeros((C_b,), jnp.float32),
        "w_g1": 0.1 * jax.random.normal(ks[1], (C_b, hidden), jnp.float32),
        "b_g1": jnp.zeros((hidden,), jnp.float32),
        "w_g2": 0.1 * jax.random.normal(ks[2], (hidden, dim), jnp.float32),
        "b_g2": jnp.zeros((dim,), jnp.float32),
        "w_d1": 0.1 * jax.random.normal(ks[3], (C_b, hidden), jnp.float32),
        "b_d1": jnp.zeros((hidden,), jnp.float32),
        "w_d2": 0.1 * jax.random.normal(ks[4], (hidden, dim), jnp.float32),
        "b_d2": jnp.zeros((dim,), jnp.float32),
    }
    # MoCo negative queues store L2-normalized keys; cast to bf16 once here.
    queue = jax.random.normal(ks[5], (dim, K), jnp.float32)
    queue = queue / jnp.maximum(jnp.linalg.norm(queue, axis=0, keepdims=True), 1e-12)
    queue2 = jax.random.normal(ks[6], (dim, K), jnp.float32)
    queue2 = queue2 / jnp.maximum(jnp.linalg.norm(queue2, axis=0, keepdims=True), 1e-12)

    params_dev = prepare_dense_params(params)
    queue_bf = queue.astype(jnp.bfloat16)
    queue2_bf = queue2.astype(jnp.bfloat16)

    y_hat = jax.random.normal(ks[7], (N, C_in, H, W), jnp.float32)
    y = jax.random.normal(ks[8], (N, C_in, H, W), jnp.float32)

    fwd = jax.jit(functools.partial(dense_loss_forward,
                                    temperature=temperature, patch=patch))
    loss = fwd(y_hat, y, params_dev, queue_bf, queue2_bf)
    jax.block_until_ready(loss)
    assert bool(jnp.isfinite(loss))
    print("KERNEL_OK")
</pallas_src>

<mosaic_0001>
module attributes {stable_mosaic.version = 11 : i64} {
  func.func @_dense_loss_kernel(%arg0: i32, %arg1: i32, %arg2: memref<32x64xbf16, #tpu.memory_space<vmem>>, %arg3: memref<64x128xbf16, #tpu.memory_space<vmem>>, %arg4: memref<1x128xf32, #tpu.memory_space<vmem>>, %arg5: memref<128x128xbf16, #tpu.memory_space<vmem>>, %arg6: memref<1x128xf32, #tpu.memory_space<vmem>>, %arg7: memref<128x128xbf16, #tpu.memory_space<vmem>>, %arg8: memref<1x128xf32, #tpu.memory_space<vmem>>, %arg9: memref<128x128xbf16, #tpu.memory_space<vmem>>, %arg10: memref<1x128xf32, #tpu.memory_space<vmem>>, %arg11: memref<128x128xbf16, #tpu.memory_space<vmem>>, %arg12: memref<1x128xf32, #tpu.memory_space<vmem>>, %arg13: memref<128x4096xbf16, #tpu.memory_space<vmem>>, %arg14: memref<128x4096xbf16, #tpu.memory_space<vmem>>, %arg15: memref<8x128xf32, #tpu.memory_space<vmem>>, %arg16: memref<1x128xbf16, #tpu.memory_space<vmem>>, %arg17: memref<16x128xbf16, #tpu.memory_space<vmem>>, %arg18: memref<1x1xf32, #tpu.memory_space<vmem>>, %arg19: memref<1x1xf32, #tpu.memory_space<vmem>>, %arg20: memref<1x1xf32, #tpu.memory_space<vmem>>, %arg21: memref<16x1xf32, #tpu.memory_space<vmem>>, %arg22: memref<16x1xf32, #tpu.memory_space<vmem>>, %arg23: memref<16x1xf32, #tpu.memory_space<vmem>>) attributes {dimension_semantics = [#tpu.dimension_semantics<parallel>, #tpu.dimension_semantics<arbitrary>], iteration_bounds = array<i64: 2, 2>, scalar_prefetch = 0 : i64, scratch_operands = 8 : i64, tpu.core_type = #tpu.core_type<tc>, window_params = [{transform_indices = @transform_0, window_bounds = array<i64: 32, 64>}, {pipeline_mode = #tpu.pipeline_mode<synchronous>, transform_indices = @transform_1, window_bounds = array<i64: 64, 128>}, {pipeline_mode = #tpu.pipeline_mode<synchronous>, transform_indices = @transform_2, window_bounds = array<i64: 1, 128>}, {pipeline_mode = #tpu.pipeline_mode<synchronous>, transform_indices = @transform_3, window_bounds = array<i64: 128, 128>}, {pipeline_mode = #tpu.pipeline_mode<synchronous>, transform_indices = @transform_4, window_bounds = array<i64: 1, 128>}, {pipeline_mode = #tpu.pipeline_mode<synchronous>, transform_indices = @transform_5, window_bounds = array<i64: 128, 128>}, {pipeline_mode = #tpu.pipeline_mode<synchronous>, transform_indices = @transform_6, window_bounds = array<i64: 1, 128>}, {pipeline_mode = #tpu.pipeline_mode<synchronous>, transform_indices = @transform_7, window_bounds = array<i64: 128, 128>}, {pipeline_mode = #tpu.pipeline_mode<synchronous>, transform_indices = @transform_8, window_bounds = array<i64: 1, 128>}, {pipeline_mode = #tpu.pipeline_mode<synchronous>, transform_indices = @transform_9, window_bounds = array<i64: 128, 128>}, {pipeline_mode = #tpu.pipeline_mode<synchronous>, transform_indices = @transform_10, window_bounds = array<i64: 1, 128>}, {transform_indices = @transform_11, window_bounds = array<i64: 128, 4096>}, {transform_indices = @transform_12, window_bounds = array<i64: 128, 4096>}, {transform_indices = @transform_13, window_bounds = array<i64: 8, 128>}]} {
    %c0_i32 = arith.constant 0 : i32
    %0 = arith.cmpi eq, %arg1, %c0_i32 : i32
    %1 = arith.extui %0 : i1 to i32
    %c0_i32_0 = arith.constant 0 : i32
    %2 = arith.cmpi ne, %1, %c0_i32_0 : i32
    scf.if %2 {
      %c0_36 = arith.constant 0 : index
      %c0_37 = arith.constant 0 : index
      %50 = vector.load %arg2[%c0_36, %c0_37] : memref<32x64xbf16, #tpu.memory_space<vmem>>, vector<32x64xbf16>
      %c0_38 = arith.constant 0 : index
      %c0_39 = arith.constant 0 : index
      %51 = vector.load %arg3[%c0_38, %c0_39] : memref<64x128xbf16, #tpu.memory_space<vmem>>, vector<64x128xbf16>
      %cst_40 = arith.constant dense<0.000000e+00> : vector<32x128xf32>
      %52 = tpu.matmul %50, %51, %cst_40 {dimension_numbers = #tpu.dot_dimension_numbers<[1], [0], [0], [1], [0, 0, 1, 1], [], []>} : vector<32x64xbf16>, vector<64x128xbf16>, vector<32x128xf32> -> vector<32x128xf32>
      %c0_41 = arith.constant 0 : index
      %c0_42 = arith.constant 0 : index
      %53 = vector.load %arg4[%c0_41, %c0_42] : memref<1x128xf32, #tpu.memory_space<vmem>>, vector<1x128xf32>
      %54 = vector.broadcast %53 : vector<1x128xf32> to vector<32x128xf32>
      %55 = arith.addf %52, %54 : vector<32x128xf32>
      %cst_43 = arith.constant 0.000000e+00 : f32
      %56 = vector.broadcast %cst_43 : f32 to vector<32x128xf32>
      %57 = arith.maximumf %55, %56 : vector<32x128xf32>
      %58 = vector.shape_cast %57 : vector<32x128xf32> to vector<2x16x128xf32>
      %cst_44 = arith.constant dense<0.000000e+00> : vector<2x128xf32>
      %59 = vector.multi_reduction <add>, %58, %cst_44 [1] : vector<2x16x128xf32> to vector<2x128xf32>
      %cst_45 = arith.constant 1.600000e+01 : f32
      %60 = vector.broadcast %cst_45 : f32 to vector<2x128xf32>
      %61 = arith.divf %59, %60 : vector<2x128xf32>
      %62 = arith.truncf %61 : vector<2x128xf32> to vector<2x128xbf16>
      %c0_46 = arith.constant 0 : index
      %c0_47 = arith.constant 0 : index
      %63 = vector.load %arg5[%c0_46, %c0_47] : memref<128x128xbf16, #tpu.memory_space<vmem>>, vector<128x128xbf16>
      %cst_48 = arith.constant dense<0.000000e+00> : vector<2x128xf32>
      %64 = tpu.matmul %62, %63, %cst_48 {dimension_numbers = #tpu.dot_dimension_numbers<[1], [0], [0], [1], [0, 0, 1, 1], [], []>} : vector<2x128xbf16>, vector<128x128xbf16>, vector<2x128xf32> -> vector<2x128xf32>
      %c0_49 = arith.constant 0 : index
      %c0_50 = arith.constant 0 : index
      %65 = vector.load %arg6[%c0_49, %c0_50] : memref<1x128xf32, #tpu.memory_space<vmem>>, vector<1x128xf32>
      %66 = vector.broadcast %65 : vector<1x128xf32> to vector<2x128xf32>
      %67 = arith.addf %64, %66 : vector<2x128xf32>
      %cst_51 = arith.constant 0.000000e+00 : f32
      %68 = vector.broadcast %cst_51 : f32 to vector<2x128xf32>
      %69 = arith.maximumf %67, %68 : vector<2x128xf32>
      %70 = arith.truncf %69 : vector<2x128xf32> to vector<2x128xbf16>
      %c0_52 = arith.constant 0 : index
      %c0_53 = arith.constant 0 : index
      %71 = vector.load %arg7[%c0_52, %c0_53] : memref<128x128xbf16, #tpu.memory_space<vmem>>, vector<128x128xbf16>
      %cst_54 = arith.constant dense<0.000000e+00> : vector<2x128xf32>
      %72 = tpu.matmul %70, %71, %cst_54 {dimension_numbers = #tpu.dot_dimension_numbers<[1], [0], [0], [1], [0, 0, 1, 1], [], []>} : vector<2x128xbf16>, vector<128x128xbf16>, vector<2x128xf32> -> vector<2x128xf32>
      %c0_55 = arith.constant 0 : index
      %c0_56 = arith.constant 0 : index
      %73 = vector.load %arg8[%c0_55, %c0_56] : memref<1x128xf32, #tpu.memory_space<vmem>>, vector<1x128xf32>
      %74 = vector.broadcast %73 : vector<1x128xf32> to vector<2x128xf32>
      %75 = arith.addf %72, %74 : vector<2x128xf32>
      %76 = arith.truncf %57 : vector<32x128xf32> to vector<32x128xbf16>
      %c0_57 = arith.constant 0 : index
      %c0_58 = arith.constant 0 : index
      %77 = vector.load %arg9[%c0_57, %c0_58] : memref<128x128xbf16, #tpu.memory_space<vmem>>, vector<128x128xbf16>
      %cst_59 = arith.constant dense<0.000000e+00> : vector<32x128xf32>
      %78 = tpu.matmul %76, %77, %cst_59 {dimension_numbers = #tpu.dot_dimension_numbers<[1], [0], [0], [1], [0, 0, 1, 1], [], []>} : vector<32x128xbf16>, vector<128x128xbf16>, vector<32x128xf32> -> vector<32x128xf32>
      %c0_60 = arith.constant 0 : index
      %c0_61 = arith.constant 0 : index
      %79 = vector.load %arg10[%c0_60, %c0_61] : memref<1x128xf32, #tpu.memory_space<vmem>>, vector<1x128xf32>
      %80 = vector.broadcast %79 : vector<1x128xf32> to vector<32x128xf32>
      %81 = arith.addf %78, %80 : vector<32x128xf32>
      %cst_62 = arith.constant 0.000000e+00 : f32
      %82 = vector.broadcast %cst_62 : f32 to vector<32x128xf32>
      %83 = arith.maximumf %81, %82 : vector<32x128xf32>
      %84 = arith.truncf %83 : vector<32x128xf32> to vector<32x128xbf16>
      %c0_63 = arith.constant 0 : index
      %c0_64 = arith.constant 0 : index
      %85 = vector.load %arg11[%c0_63, %c0_64] : memref<128x128xbf16, #tpu.memory_space<vmem>>, vector<128x128xbf16>
      %cst_65 = arith.constant dense<0.000000e+00> : vector<32x128xf32>
      %86 = tpu.matmul %84, %85, %cst_65 {dimension_numbers = #tpu.dot_dimension_numbers<[1], [0], [0], [1], [0, 0, 1, 1], [], []>} : vector<32x128xbf16>, vector<128x128xbf16>, vector<32x128xf32> -> vector<32x128xf32>
      %c0_66 = arith.constant 0 : index
      %c0_67 = arith.constant 0 : index
      %87 = vector.load %arg12[%c0_66, %c0_67] : memref<1x128xf32, #tpu.memory_space<vmem>>, vector<1x128xf32>
      %88 = vector.broadcast %87 : vector<1x128xf32> to vector<32x128xf32>
      %89 = arith.addf %86, %88 : vector<32x128xf32>
      %90 = arith.mulf %75, %75 : vector<2x128xf32>
      %cst_68 = arith.constant dense<0.000000e+00> : vector<2xf32>
      %91 = vector.multi_reduction <add>, %90, %cst_68 [1] : vector<2x128xf32> to vector<2xf32>
      %92 = vector.shape_cast %91 : vector<2xf32> to vector<2x1xf32>
      %cst_69 = arith.constant 1.000000e-24 : f32
      %93 = vector.broadcast %cst_69 : f32 to vector<2x1xf32>
      %94 = arith.maximumf %92, %93 : vector<2x1xf32>
      %95 = math.rsqrt %94 : vector<2x1xf32>
      %96 = vector.broadcast %95 : vector<2x1xf32> to vector<2x128xf32>
      %97 = arith.mulf %75, %96 : vector<2x128xf32>
      %98 = vector.extract_strided_slice %97 {offsets = [0, 0], sizes = [1, 128], strides = [1, 1]} : vector<2x128xf32> to vector<1x128xf32>
      %99 = vector.extract_strided_slice %97 {offsets = [1, 0], sizes = [1, 128], strides = [1, 1]} : vector<2x128xf32> to vector<1x128xf32>
      %100 = arith.mulf %98, %99 : vector<1x128xf32>
      %cst_70 = arith.constant dense<0.000000e+00> : vector<1xf32>
      %101 = vector.multi_reduction <add>, %100, %cst_70 [1] : vector<1x128xf32> to vector<1xf32>
      %102 = vector.shape_cast %101 : vector<1xf32> to vector<1x1xf32>
      %cst_71 = arith.constant 5.000000e+00 : f32
      %103 = vector.broadcast %cst_71 : f32 to vector<1x1xf32>
      %104 = arith.mulf %102, %103 : vector<1x1xf32>
      %105 = arith.mulf %57, %57 : vector<32x128xf32>
      %cst_72 = arith.constant dense<0.000000e+00> : vector<32xf32>
      %106 = vector.multi_reduction <add>, %105, %cst_72 [1] : vector<32x128xf32> to vector<32xf32>
      %107 = vector.shape_cast %106 : vector<32xf32> to vector<32x1xf32>
      %cst_73 = arith.constant 1.000000e-24 : f32
      %108 = vector.broadcast %cst_73 : f32 to vector<32x1xf32>
      %109 = arith.maximumf %107, %108 : vector<32x1xf32>
      %110 = math.rsqrt %109 : vector<32x1xf32>
      %111 = vector.broadcast %110 : vector<32x1xf32> to vector<32x128xf32>
      %112 = arith.mulf %57, %111 : vector<32x128xf32>
      %113 = arith.mulf %89, %89 : vector<32x128xf32>
      %cst_74 = arith.constant dense<0.000000e+00> : vector<32xf32>
      %114 = vector.multi_reduction <add>, %113, %cst_74 [1] : vector<32x128xf32> to vector<32xf32>
      %115 = vector.shape_cast %114 : vector<32xf32> to vector<32x1xf32>
      %cst_75 = arith.constant 1.000000e-24 : f32
      %116 = vector.broadcast %cst_75 : f32 to vector<32x1xf32>
      %117 = arith.maximumf %115, %116 : vector<32x1xf32>
      %118 = math.rsqrt %117 : vector<32x1xf32>
      %119 = vector.broadcast %118 : vector<32x1xf32> to vector<32x128xf32>
      %120 = arith.mulf %89, %119 : vector<32x128xf32>
      %121 = vector.extract_strided_slice %112 {offsets = [0, 0], sizes = [16, 128], strides = [1, 1]} : vector<32x128xf32> to vector<16x128xf32>
      %122 = vector.shape_cast %121 : vector<16x128xf32> to vector<1x16x128xf32>
      %123 = vector.extract_strided_slice %112 {offsets = [16, 0], sizes = [16, 128], strides = [1, 1]} : vector<32x128xf32> to vector<16x128xf32>
      %124 = vector.shape_cast %123 : vector<16x128xf32> to vector<1x16x128xf32>
      %125 = vector.extract_strided_slice %120 {offsets = [0, 0], sizes = [16, 128], strides = [1, 1]} : vector<32x128xf32> to vector<16x128xf32>
      %126 = vector.extract_strided_slice %120 {offsets = [16, 0], sizes = [16, 128], strides = [1, 1]} : vector<32x128xf32> to vector<16x128xf32>
      %127 = vector.shape_cast %126 : vector<16x128xf32> to vector<1x16x128xf32>
      "tpu.trace_start"() <{level = 10 : i32, message = "nsc,ntc->nst"}> : () -> ()
      %cst_76 = arith.constant dense<0.000000e+00> : vector<1x16x16xf32>
      %128 = tpu.matmul %122, %124, %cst_76 {dimension_numbers = #tpu.dot_dimension_numbers<[2], [2], [1], [1], [0, 0, 0, 1, 1, 1], [0], [0]>} : vector<1x16x128xf32>, vector<1x16x128xf32>, vector<1x16x16xf32> -> vector<1x16x16xf32>
      "tpu.trace_stop"() : () -> ()
      %129 = tpu.iota {dimensions = array<i32: 2>} : vector<1x16x16xi32>
      %cst_77 = arith.constant dense<0xFF800000> : vector<1x16xf32>
      %130 = vector.multi_reduction <maximumf>, %128, %cst_77 [2] : vector<1x16x16xf32> to vector<1x16xf32>
      %131 = vector.shape_cast %130 : vector<1x16xf32> to vector<1x16x1xf32>
      %132 = vector.broadcast %131 : vector<1x16x1xf32> to vector<1x16x16xf32>
      %133 = arith.cmpf oge, %128, %132 : vector<1x16x16xf32>
      %c16_i32 = arith.constant 16 : i32
      %134 = vector.broadcast %c16_i32 : i32 to vector<1x16x16xi32>
      %135 = arith.select %133, %129, %134 : vector<1x16x16xi1>, vector<1x16x16xi32>
      %cst_78 = arith.constant dense<2147483647> : vector<1x16xi32>
      %136 = vector.multi_reduction <minsi>, %135, %cst_78 [2] : vector<1x16x16xi32> to vector<1x16xi32>
      %137 = vector.shape_cast %136 : vector<1x16xi32> to vector<1x16x1xi32>
      %138 = vector.broadcast %137 : vector<1x16x1xi32> to vector<1x16x16xi32>
      %139 = arith.cmpi eq, %129, %138 : vector<1x16x16xi32>
      %140 = arith.extui %139 : vector<1x16x16xi1> to vector<1x16x16xi32>
      %141 = arith.sitofp %140 : vector<1x16x16xi32> to vector<1x16x16xf32>
      %142 = arith.truncf %141 : vector<1x16x16xf32> to vector<1x16x16xbf16>
      %143 = arith.truncf %127 : vector<1x16x128xf32> to vector<1x16x128xbf16>
      "tpu.trace_start"() <{level = 10 : i32, message = "nst,ntd->nsd"}> : () -> ()
      %cst_79 = arith.constant dense<0.000000e+00> : vector<1x16x128xf32>
      %144 = tpu.matmul %142, %143, %cst_79 {dimension_numbers = #tpu.dot_dimension_numbers<[2], [1], [1], [2], [0, 0, 0, 1, 1, 2], [0], [0]>} : vector<1x16x16xbf16>, vector<1x16x128xbf16>, vector<1x16x128xf32> -> vector<1x16x128xf32>
      "tpu.trace_stop"() : () -> ()
      %145 = vector.shape_cast %144 : vector<1x16x128xf32> to vector<16x128xf32>
      %146 = arith.mulf %125, %145 : vector<16x128xf32>
      %cst_80 = arith.constant dense<0.000000e+00> : vector<16xf32>
      %147 = vector.multi_reduction <add>, %146, %cst_80 [1] : vector<16x128xf32> to vector<16xf32>
      %148 = vector.shape_cast %147 : vector<16xf32> to vector<16x1xf32>
      %cst_81 = arith.constant 5.000000e+00 : f32
      %149 = vector.broadcast %cst_81 : f32 to vector<16x1xf32>
      %150 = arith.mulf %148, %149 : vector<16x1xf32>
      %151 = arith.truncf %98 : vector<1x128xf32> to vector<1x128xbf16>
      %c0_82 = arith.constant 0 : index
      %c0_83 = arith.constant 0 : index
      %152 = vector.load %arg16[%c0_82, %c0_83] : memref<1x128xbf16, #tpu.memory_space<vmem>>, vector<1x128xbf16>
      tpu.vector_store %arg16[%c0_82, %c0_83], %151 {strides = array<i32>} : memref<1x128xbf16, #tpu.memory_space<vmem>>, vector<1x128xbf16>,
      %153 = arith.truncf %125 : vector<16x128xf32> to vector<16x128xbf16>
      %c0_84 = arith.constant 0 : index
      %c0_85 = arith.constant 0 : index
      %154 = vector.load %arg17[%c0_84, %c0_85] : memref<16x128xbf16, #tpu.memory_space<vmem>>, vector<16x128xbf16>
      tpu.vector_store %arg17[%c0_84, %c0_85], %153 {strides = array<i32>} : memref<16x128xbf16, #tpu.memory_space<vmem>>, vector<16x128xbf16>,
      %c0_86 = arith.constant 0 : index
      %c0_87 = arith.constant 0 : index
      %155 = vector.load %arg18[%c0_86, %c0_87] : memref<1x1xf32, #tpu.memory_space<vmem>>, vector<1x1xf32>
      tpu.vector_store %arg18[%c0_86, %c0_87], %104 {strides = array<i32>} : memref<1x1xf32, #tpu.memory_space<vmem>>, vector<1x1xf32>,
      %c0_88 = arith.constant 0 : index
      %c0_89 = arith.constant 0 : index
      %156 = vector.load %arg21[%c0_88, %c0_89] : memref<16x1xf32, #tpu.memory_space<vmem>>, vector<16x1xf32>
      tpu.vector_store %arg21[%c0_88, %c0_89], %150 {strides = array<i32>} : memref<16x1xf32, #tpu.memory_space<vmem>>, vector<16x1xf32>,
      %c0_90 = arith.constant 0 : index
      %c0_91 = arith.constant 0 : index
      %157 = vector.load %arg19[%c0_90, %c0_91] : memref<1x1xf32, #tpu.memory_space<vmem>>, vector<1x1xf32>
      tpu.vector_store %arg19[%c0_90, %c0_91], %104 {strides = array<i32>} : memref<1x1xf32, #tpu.memory_space<vmem>>, vector<1x1xf32>,
      %cst_92 = arith.constant 1.000000e+00 : f32
      %158 = vector.broadcast %cst_92 : f32 to vector<1x1xf32>
      %c0_93 = arith.constant 0 : index
      %c0_94 = arith.constant 0 : index
      %159 = vector.load %arg20[%c0_93, %c0_94] : memref<1x1xf32, #tpu.memory_space<vmem>>, vector<1x1xf32>
      tpu.vector_store %arg20[%c0_93, %c0_94], %158 {strides = array<i32>} : memref<1x1xf32, #tpu.memory_space<vmem>>, vector<1x1xf32>,
      %c0_95 = arith.constant 0 : index
      %c0_96 = arith.constant 0 : index
      %160 = vector.load %arg22[%c0_95, %c0_96] : memref<16x1xf32, #tpu.memory_space<vmem>>, vector<16x1xf32>
      tpu.vector_store %arg22[%c0_95, %c0_96], %150 {strides = array<i32>} : memref<16x1xf32, #tpu.memory_space<vmem>>, vector<16x1xf32>,
      %cst_97 = arith.constant 1.000000e+00 : f32
      %161 = vector.broadcast %cst_97 : f32 to vector<16x1xf32>
      %c0_98 = arith.constant 0 : index
      %c0_99 = arith.constant 0 : index
      %162 = vector.load %arg23[%c0_98, %c0_99] : memref<16x1xf32, #tpu.memory_space<vmem>>, vector<16x1xf32>
      tpu.vector_store %arg23[%c0_98, %c0_99], %161 {strides = array<i32>} : memref<16x1xf32, #tpu.memory_space<vmem>>, vector<16x1xf32>,
    } else {
    }
    %c0 = arith.constant 0 : index
    %c0_1 = arith.constant 0 : index
    %3 = vector.load %arg16[%c0, %c0_1] : memref<1x128xbf16, #tpu.memory_space<vmem>>, vector<1x128xbf16>
    %c0_2 = arith.constant 0 : index
    %c0_3 = arith.constant 0 : index
    %4 = vector.load %arg13[%c0_2, %c0_3] : memref<128x4096xbf16, #tpu.memory_space<vmem>>, vector<128x4096xbf16>
    %cst = arith.constant dense<0.000000e+00> : vector<1x4096xf32>
    %5 = tpu.matmul %3, %4, %cst {dimension_numbers = #tpu.dot_dimension_numbers<[1], [0], [0], [1], [0, 0, 1, 1], [], []>} : vector<1x128xbf16>, vector<128x4096xbf16>, vector<1x4096xf32> -> vector<1x4096xf32>
    %cst_4 = arith.constant 5.000000e+00 : f32
    %6 = vector.broadcast %cst_4 : f32 to vector<1x4096xf32>
    %7 = arith.mulf %6, %5 : vector<1x4096xf32>
    %c0_5 = arith.constant 0 : index
    %c0_6 = arith.constant 0 : index
    %8 = vector.load %arg19[%c0_5, %c0_6] : memref<1x1xf32, #tpu.memory_space<vmem>>, vector<1x1xf32>
    %cst_7 = arith.constant dense<0xFF800000> : vector<1xf32>
    %9 = vector.multi_reduction <maximumf>, %7, %cst_7 [1] : vector<1x4096xf32> to vector<1xf32>
    %10 = vector.shape_cast %9 : vector<1xf32> to vector<1x1xf32>
    %11 = arith.maximumf %8, %10 : vector<1x1xf32>
    %c0_8 = arith.constant 0 : index
    %c0_9 = arith.constant 0 : index
    %12 = vector.load %arg20[%c0_8, %c0_9] : memref<1x1xf32, #tpu.memory_space<vmem>>, vector<1x1xf32>
    %c0_10 = arith.constant 0 : index
    %c0_11 = arith.constant 0 : index
    %13 = vector.load %arg19[%c0_10, %c0_11] : memref<1x1xf32, #tpu.memory_space<vmem>>, vector<1x1xf32>
    %14 = arith.subf %13, %11 : vector<1x1xf32>
    %15 = math.exp %14 : vector<1x1xf32>
    %16 = arith.mulf %12, %15 : vector<1x1xf32>
    %17 = vector.broadcast %11 : vector<1x1xf32> to vector<1x4096xf32>
    %18 = arith.subf %7, %17 : vector<1x4096xf32>
    %19 = math.exp %18 : vector<1x4096xf32>
    %cst_12 = arith.constant dense<0.000000e+00> : vector<1xf32>
    %20 = vector.multi_reduction <add>, %19, %cst_12 [1] : vector<1x4096xf32> to vector<1xf32>
    %21 = vector.shape_cast %20 : vector<1xf32> to vector<1x1xf32>
    %22 = arith.addf %16, %21 : vector<1x1xf32>
    %c0_13 = arith.constant 0 : index
    %c0_14 = arith.constant 0 : index
    %23 = vector.load %arg20[%c0_13, %c0_14] : memref<1x1xf32, #tpu.memory_space<vmem>>, vector<1x1xf32>
    tpu.vector_store %arg20[%c0_13, %c0_14], %22 {strides = array<i32>} : memref<1x1xf32, #tpu.memory_space<vmem>>, vector<1x1xf32>,
    %c0_15 = arith.constant 0 : index
    %c0_16 = arith.constant 0 : index
    %24 = vector.load %arg19[%c0_15, %c0_16] : memref<1x1xf32, #tpu.memory_space<vmem>>, vector<1x1xf32>
    tpu.vector_store %arg19[%c0_15, %c0_16], %11 {strides = array<i32>} : memref<1x1xf32, #tpu.memory_space<vmem>>, vector<1x1xf32>,
    %c0_17 = arith.constant 0 : index
    %c0_18 = arith.constant 0 : index
    %25 = vector.load %arg17[%c0_17, %c0_18] : memref<16x128xbf16, #tpu.memory_space<vmem>>, vector<16x128xbf16>
    %c0_19 = arith.constant 0 : index
    %c0_20 = arith.constant 0 : index
    %26 = vector.load %arg14[%c0_19, %c0_20] : memref<128x4096xbf16, #tpu.memory_space<vmem>>, vector<128x4096xbf16>
    %cst_21 = arith.constant dense<0.000000e+00> : vector<16x4096xf32>
    %27 = tpu.matmul %25, %26, %cst_21 {dimension_numbers = #tpu.dot_dimension_numbers<[1], [0], [0], [1], [0, 0, 1, 1], [], []>} : vector<16x128xbf16>, vector<128x4096xbf16>, vector<16x4096xf32> -> vector<16x4096xf32>
    %cst_22 = arith.constant 5.000000e+00 : f32
    %28 = vector.broadcast %cst_22 : f32 to vector<16x4096xf32>
    %29 = arith.mulf %28, %27 : vector<16x4096xf32>
    %c0_23 = arith.constant 0 : index
    %c0_24 = arith.constant 0 : index
    %30 = vector.load %arg22[%c0_23, %c0_24] : memref<16x1xf32, #tpu.memory_space<vmem>>, vector<16x1xf32>
    %cst_25 = arith.constant dense<0xFF800000> : vector<16xf32>
    %31 = vector.multi_reduction <maximumf>, %29, %cst_25 [1] : vector<16x4096xf32> to vector<16xf32>
    %32 = vector.shape_cast %31 : vector<16xf32> to vector<16x1xf32>
    %33 = arith.maximumf %30, %32 : vector<16x1xf32>
    %c0_26 = arith.constant 0 : index
    %c0_27 = arith.constant 0 : index
    %34 = vector.load %arg23[%c0_26, %c0_27] : memref<16x1xf32, #tpu.memory_space<vmem>>, vector<16x1xf32>
    %c0_28 = arith.constant 0 : index
    %c0_29 = arith.constant 0 : index
    %35 = vector.load %arg22[%c0_28, %c0_29] : memref<16x1xf32, #tpu.memory_space<vmem>>, vector<16x1xf32>
    %36 = arith.subf %35, %33 : vector<16x1xf32>
    %37 = math.exp %36 : vector<16x1xf32>
    %38 = arith.mulf %34, %37 : vector<16x1xf32>
    %39 = vector.broadcast %33 : vector<16x1xf32> to vector<16x4096xf32>
    %40 = arith.subf %29, %39 : vector<16x4096xf32>
    %41 = math.exp %40 : vector<16x4096xf32>
    %cst_30 = arith.constant dense<0.000000e+00> : vector<16xf32>
    %42 = vector.multi_reduction <add>, %41, %cst_30 [1] : vector<16x4096xf32> to vector<16xf32>
    %43 = vector.shape_cast %42 : vector<16xf32> to vector<16x1xf32>
    %44 = arith.addf %38, %43 : vector<16x1xf32>
    %c0_31 = arith.constant 0 : index
    %c0_32 = arith.constant 0 : index
    %45 = vector.load %arg23[%c0_31, %c0_32] : memref<16x1xf32, #tpu.memory_space<vmem>>, vector<16x1xf32>
    tpu.vector_store %arg23[%c0_31, %c0_32], %44 {strides = array<i32>} : memref<16x1xf32, #tpu.memory_space<vmem>>, vector<16x1xf32>,
    %c0_33 = arith.constant 0 : index
    %c0_34 = arith.constant 0 : index
    %46 = vector.load %arg22[%c0_33, %c0_34] : memref<16x1xf32, #tpu.memory_space<vmem>>, vector<16x1xf32>
    tpu.vector_store %arg22[%c0_33, %c0_34], %33 {strides = array<i32>} : memref<16x1xf32, #tpu.memory_space<vmem>>, vector<16x1xf32>,
    %c1_i32 = arith.constant 1 : i32
    %47 = arith.cmpi eq, %arg1, %c1_i32 : i32
    %48 = arith.extui %47 : i1 to i32
    %c0_i32_35 = arith.constant 0 : i32
    %49 = arith.cmpi ne, %48, %c0_i32_35 : i32
    scf.if %49 {
      %c0_36 = arith.constant 0 : index
      %c0_37 = arith.constant 0 : index
      %50 = vector.load %arg19[%c0_36, %c0_37] : memref<1x1xf32, #tpu.memory_space<vmem>>, vector<1x1xf32>
      %c0_38 = arith.constant 0 : index
      %c0_39 = arith.constant 0 : index
      %51 = vector.load %arg20[%c0_38, %c0_39] : memref<1x1xf32, #tpu.memory_space<vmem>>, vector<1x1xf32>
      %52 = math.log %51 : vector<1x1xf32>
      %53 = arith.addf %50, %52 : vector<1x1xf32>
      %c0_40 = arith.constant 0 : index
      %c0_41 = arith.constant 0 : index
      %54 = vector.load %arg22[%c0_40, %c0_41] : memref<16x1xf32, #tpu.memory_space<vmem>>, vector<16x1xf32>
      %c0_42 = arith.constant 0 : index
      %c0_43 = arith.constant 0 : index
      %55 = vector.load %arg23[%c0_42, %c0_43] : memref<16x1xf32, #tpu.memory_space<vmem>>, vector<16x1xf32>
      %56 = math.log %55 : vector<16x1xf32>
      %57 = arith.addf %54, %56 : vector<16x1xf32>
      %c0_44 = arith.constant 0 : index
      %c0_45 = arith.constant 0 : index
      %58 = vector.load %arg18[%c0_44, %c0_45] : memref<1x1xf32, #tpu.memory_space<vmem>>, vector<1x1xf32>
      %59 = arith.subf %53, %58 : vector<1x1xf32>
      %60 = vector.shape_cast %59 : vector<1x1xf32> to vector<1x1x1xf32>
      %cst_46 = arith.constant dense<0.000000e+00> : vector<1xf32>
      %61 = vector.multi_reduction <add>, %60, %cst_46 [1, 2] : vector<1x1x1xf32> to vector<1xf32>
      %62 = vector.shape_cast %61 : vector<1xf32> to vector<1x1x1xf32>
      %63 = vector.extract %62[0, 0, 0] : f32 from vector<1x1x1xf32>
      %c0_47 = arith.constant 0 : index
      %c0_48 = arith.constant 0 : index
      %64 = vector.load %arg21[%c0_47, %c0_48] : memref<16x1xf32, #tpu.memory_space<vmem>>, vector<16x1xf32>
      %65 = arith.subf %57, %64 : vector<16x1xf32>
      %66 = vector.shape_cast %65 : vector<16x1xf32> to vector<1x16x1xf32>
      %cst_49 = arith.constant dense<0.000000e+00> : vector<1xf32>
      %67 = vector.multi_reduction <add>, %66, %cst_49 [1, 2] : vector<1x16x1xf32> to vector<1xf32>
      %68 = vector.shape_cast %67 : vector<1xf32> to vector<1x1x1xf32>
      %69 = vector.extract %68[0, 0, 0] : f32 from vector<1x1x1xf32>
      %cst_50 = arith.constant 2.500000e-01 : f32
      %70 = arith.mulf %cst_50, %63 : f32
      %cst_51 = arith.constant 1.562500e-02 : f32
      %71 = arith.mulf %cst_51, %69 : f32
      %72 = arith.addf %70, %71 : f32
      %73 = vector.broadcast %72 : f32 to vector<8x128xf32>
      %c0_52 = arith.constant 0 : index
      %c0_53 = arith.constant 0 : index
      %74 = vector.load %arg15[%c0_52, %c0_53] : memref<8x128xf32, #tpu.memory_space<vmem>>, vector<8x128xf32>
      tpu.vector_store %arg15[%c0_52, %c0_53], %73 {strides = array<i32>} : memref<8x128xf32, #tpu.memory_space<vmem>>, vector<8x128xf32>,
    } else {
    }
    return
  }
  func.func @transform_0(%arg0: i32, %arg1: i32) -> (i32, i32) {
    %c0_i32 = arith.constant 0 : i32
    %c0_i32_0 = arith.constant 0 : i32
    return %arg0, %c0_i32 : i32, i32
  }
  func.func @transform_1(%arg0: i32, %arg1: i32) -> (i32, i32) {
    %c0_i32 = arith.constant 0 : i32
    %c0_i32_0 = arith.constant 0 : i32
    %c0_i32_1 = arith.constant 0 : i32
    return %c0_i32, %c0_i32_0 : i32, i32
  }
  func.func @transform_2(%arg0: i32, %arg1: i32) -> (i32, i32) {
    %c0_i32 = arith.constant 0 : i32
    %c0_i32_0 = arith.constant 0 : i32
    %c0_i32_1 = arith.constant 0 : i32
    return %c0_i32, %c0_i32_0 : i32, i32
  }
  func.func @transform_3(%arg0: i32, %arg1: i32) -> (i32, i32) {
    %c0_i32 = arith.constant 0 : i32
    %c0_i32_0 = arith.constant 0 : i32
    %c0_i32_1 = arith.constant 0 : i32
    return %c0_i32, %c0_i32_0 : i32, i32
  }
  func.func @transform_4(%arg0: i32, %arg1: i32) -> (i32, i32) {
    %c0_i32 = arith.constant 0 : i32
    %c0_i32_0 = arith.constant 0 : i32
    %c0_i32_1 = arith.constant 0 : i32
    return %c0_i32, %c0_i32_0 : i32, i32
  }
  func.func @transform_5(%arg0: i32, %arg1: i32) -> (i32, i32) {
    %c0_i32 = arith.constant 0 : i32
    %c0_i32_0 = arith.constant 0 : i32
    %c0_i32_1 = arith.constant 0 : i32
    return %c0_i32, %c0_i32_0 : i32, i32
  }
  func.func @transform_6(%arg0: i32, %arg1: i32) -> (i32, i32) {
    %c0_i32 = arith.constant 0 : i32
    %c0_i32_0 = arith.constant 0 : i32
    %c0_i32_1 = arith.constant 0 : i32
    return %c0_i32, %c0_i32_0 : i32, i32
  }
  func.func @transform_7(%arg0: i32, %arg1: i32) -> (i32, i32) {
    %c0_i32 = arith.constant 0 : i32
    %c0_i32_0 = arith.constant 0 : i32
    %c0_i32_1 = arith.constant 0 : i32
    return %c0_i32, %c0_i32_0 : i32, i32
  }
  func.func @transform_8(%arg0: i32, %arg1: i32) -> (i32, i32) {
    %c0_i32 = arith.constant 0 : i32
    %c0_i32_0 = arith.constant 0 : i32
    %c0_i32_1 = arith.constant 0 : i32
    return %c0_i32, %c0_i32_0 : i32, i32
  }
  func.func @transform_9(%arg0: i32, %arg1: i32) -> (i32, i32) {
    %c0_i32 = arith.constant 0 : i32
    %c0_i32_0 = arith.constant 0 : i32
    %c0_i32_1 = arith.constant 0 : i32
    return %c0_i32, %c0_i32_0 : i32, i32
  }
  func.func @transform_10(%arg0: i32, %arg1: i32) -> (i32, i32) {
    %c0_i32 = arith.constant 0 : i32
    %c0_i32_0 = arith.constant 0 : i32
    %c0_i32_1 = arith.constant 0 : i32
    return %c0_i32, %c0_i32_0 : i32, i32
  }
  func.func @transform_11(%arg0: i32, %arg1: i32) -> (i32, i32) {
    %c0_i32 = arith.constant 0 : i32
    %c0_i32_0 = arith.constant 0 : i32
    return %c0_i32, %arg1 : i32, i32
  }
  func.func @transform_12(%arg0: i32, %arg1: i32) -> (i32, i32) {
    %c0_i32 = arith.constant 0 : i32
    %c0_i32_0 = arith.constant 0 : i32
    return %c0_i32, %arg1 : i32, i32
  }
  func.func @transform_13(%arg0: i32, %arg1: i32) -> (i32, i32) {
    %c0_i32 = arith.constant 0 : i32
    %c0_i32_0 = arith.constant 0 : i32
    return %arg0, %c0_i32 : i32, i32
  }
}

</mosaic_0001>

<llo_original>
// kernel: dense_loss_forward.1
$region0: #{dense_loss_forward.1}
  #allocation0 [shape = 'u32[]', space=smem, size = 0x4, offset = 0x4, fixed_abs, tag = 'smem constant byte address 0x4 - core index']
  #allocation1 [shape = 'u32[144,128]{1,0:T(1,128)}', space=vmem, size = 0x12000, scoped, tag = 'internal scratch']
  #allocation2 [shape = 'bf16[1,128]{1,0:T(2,128)(2,1)}', space=vmem, size = 0x200, scoped, tag = 'scratch operand']
  #allocation3 [shape = 'bf16[16,128]{1,0:T(8,128)(2,1)}', space=vmem, size = 0x1000, scoped, tag = 'scratch operand']
  #allocation4 [shape = 'f32[1,1]{1,0:T(1,128)}', space=vmem, size = 0x200, scoped, tag = 'scratch operand']
  #allocation5 [shape = 'f32[1,1]{1,0:T(1,128)}', space=vmem, size = 0x200, scoped, tag = 'scratch operand']
  #allocation6 [shape = 'f32[1,1]{1,0:T(1,128)}', space=vmem, size = 0x200, scoped, tag = 'scratch operand']
  #allocation7 [shape = 'f32[16,1]{1,0:T(8,128)}', space=vmem, size = 0x2000, scoped, tag = 'scratch operand']
  #allocation8 [shape = 'f32[16,1]{1,0:T(8,128)}', space=vmem, size = 0x2000, scoped, tag = 'scratch operand']
  #allocation9 [shape = 'f32[16,1]{1,0:T(8,128)}', space=vmem, size = 0x2000, scoped, tag = 'scratch operand']
  %s0 = inlined_call_operand.vmem [shape: bf16[64,64], index: 0, kind: input, shape index: {}]
  %s1 = inlined_call_operand.hbm [shape: bf16[64,128], index: 1, kind: input, shape index: {}]
  %s2 = inlined_call_operand.hbm [shape: f32[1,128], index: 2, kind: input, shape index: {}]
  %s3 = inlined_call_operand.hbm [shape: bf16[128,128], index: 3, kind: input, shape index: {}]
  %s4 = inlined_call_operand.hbm [shape: f32[1,128], index: 4, kind: input, shape index: {}]
  %s5 = inlined_call_operand.hbm [shape: bf16[128,128], index: 5, kind: input, shape index: {}]
  %s6 = inlined_call_operand.hbm [shape: f32[1,128], index: 6, kind: input, shape index: {}]
  %s7 = inlined_call_operand.hbm [shape: bf16[128,128], index: 7, kind: input, shape index: {}]
  %s8 = inlined_call_operand.hbm [shape: f32[1,128], index: 8, kind: input, shape index: {}]
  %s9 = inlined_call_operand.hbm [shape: bf16[128,128], index: 9, kind: input, shape index: {}]
  %s10 = inlined_call_operand.hbm [shape: f32[1,128], index: 10, kind: input, shape index: {}]
  %s11 = inlined_call_operand.hbm [shape: bf16[128,8192], index: 11, kind: input, shape index: {}]
  %s12 = inlined_call_operand.hbm [shape: bf16[128,8192], index: 12, kind: input, shape index: {}]
  %s13 = inlined_call_operand.vmem [shape: f32[16,128], index: 13, kind: output, shape index: {}]
  %s14 = sld [smem:[#allocation0]]
  $region141: #{dense_loss_forward.1} parent=0
    _
  %s16 = ssub.s32 1, %s14
  %s17 = scalar_select 0, %s16, %s14
  $region1: #{dense_loss_forward.1} parent=0
    #allocation10 [shape = 'u8[16384]{0}', space=vmem, size = 0x4000, scoped, tag = 'input window, operand 1, single buffered']
    #allocation11 [shape = 's32[2]{0}', space=sflag, size = 0x8, scoped, tag = 'scoped memory for dense_loss_forward.1']
    #allocation12 [shape = 'u8[512]{0}', space=vmem, size = 0x400, scoped, tag = 'input window, operand 2, single buffered']
    #allocation13 [shape = 's32[1]{0}', space=sflag, size = 0x4, scoped, tag = 'scoped memory for dense_loss_forward.1']
    #allocation14 [shape = 'u8[32768]{0}', space=vmem, size = 0x8000, scoped, tag = 'input window, operand 3, single buffered']
    #allocation15 [shape = 'u8[512]{0}', space=vmem, size = 0x400, scoped, tag = 'input window, operand 4, single buffered']
    #allocation16 [shape = 's32[1]{0}', space=sflag, size = 0x4, scoped, tag = 'scoped memory for dense_loss_forward.1']
    #allocation17 [shape = 'u8[32768]{0}', space=vmem, size = 0x8000, scoped, tag = 'input window, operand 5, single buffered']
    #allocation18 [shape = 'u8[512]{0}', space=vmem, size = 0x400, scoped, tag = 'input window, operand 6, single buffered']
    #allocation19 [shape = 's32[1]{0}', space=sflag, size = 0x4, scoped, tag = 'scoped memory for dense_loss_forward.1']
    #allocation20 [shape = 'u8[32768]{0}', space=vmem, size = 0x8000, scoped, tag = 'input window, operand 7, single buffered']
    #allocation21 [shape = 'u8[512]{0}', space=vmem, size = 0x400, scoped, tag = 'input window, operand 8, single buffered']
    #allocation22 [shape = 's32[1]{0}', space=sflag, size = 0x4, scoped, tag = 'scoped memory for dense_loss_forward.1']
    #allocation23 [shape = 'u8[32768]{0}', space=vmem, size = 0x8000, scoped, tag = 'input window, operand 9, single buffered']
    #allocation24 [shape = 'u8[512]{0}', space=vmem, size = 0x400, scoped, tag = 'input window, operand 10, single buffered']
    #allocation25 [shape = 's32[1]{0}', space=sflag, size = 0x4, scoped, tag = 'scoped memory for dense_loss_forward.1']
    #allocation26 [shape = 'u8[2097152]{0}', space=vmem, size = 0x200000, scoped, tag = 'input window, operand 11']
    #allocation27 [shape = 'u8[2097152]{0}', space=vmem, size = 0x200000, scoped, tag = 'input window, operand 12']
    %18 = vsyncpa [#allocation11], 0
    %19 = vsyncpa [#allocation13], 0
    %20 = vsyncpa [#allocation16], 0
    %21 = vsyncpa [#allocation19], 0
    %22 = vsyncpa [#allocation22], 0
    %23 = vsyncpa [#allocation25], 0
    loop: start=0, step=1, limit=6
    $region2: #{dense_loss_forward.1} parent=1 // loop_pre_header
      _
    $region3: #{dense_loss_forward.1} parent=1 // loop_header
      %s25 = sphi 0, %s29
      %p26 = scmp.ge.s32.totalorder %s25, 6
      %s32 = sphi 0, %s44
      %s33 = sphi 0, %s40
      %s34 = sphi 0, %s32
      %s35 = sphi 0, %s33
      %s36 = sphi 0, %s34
      %s37 = sphi 0, %s35
      %s47 = sphi 0, %s49
      %s50 = sphi 0, %s47
      %s51 = sphi 0, %s50
      %s67 = sphi 0, %s51
      %s71 = sphi 0, %s71
      %s73 = sphi 0, %s71
      %s74 = sphi 0, %s73
      %s88 = sphi 0, %s74
      %s92 = sphi 0, %s92
      %s94 = sphi 0, %s92
      %s95 = sphi 0, %s94
      %s109 = sphi 0, %s95
      %s113 = sphi 0, %s113
      %s115 = sphi 0, %s113
      %s116 = sphi 0, %s115
      %s130 = sphi 0, %s116
      %s134 = sphi 0, %s134
      %s136 = sphi 0, %s134
      %s137 = sphi 0, %s136
      %s151 = sphi 0, %s137
      %s155 = sphi 0, %s155
      %s157 = sphi 0, %s155
      %s158 = sphi 0, %s157
      %s172 = sphi 0, %s158
      %s176 = sphi 0, %s176
      %s178 = sphi 0, %s176
      %s179 = sphi 0, %s178
      %s193 = sphi 0, %s179
      %s197 = sphi 0, %s197
      %s199 = sphi 0, %s197
      %s200 = sphi 0, %s199
      %s214 = sphi 0, %s200
      %s218 = sphi 0, %s218
      %s220 = sphi 0, %s218
      %s221 = sphi 0, %s220
      %s235 = sphi 0, %s221
      %s239 = sphi 0, %s239
      %s241 = sphi 0, %s239
      %s242 = sphi 0, %s241
      %s256 = sphi 0, %s242
      %s260 = sphi 0, %s260
      %s262 = sphi 0, %s260
      %s263 = sphi 0, %s262
      %s277 = sphi 0, %s263
      %s283 = sphi 0, %s285
      %s286 = sphi 0, %s283
      %s287 = sphi 0, %s286
      %s303 = sphi 0, %s287
      %s309 = sphi 0, %s311
      %s312 = sphi 0, %s309
      %s313 = sphi 0, %s312
      %s329 = sphi 0, %s313
      %s335 = sphi 0, %s337
      %s338 = sphi 0, %s335
      %s339 = sphi 0, %s338
      %s355 = sphi 0, %s339
    $region4: #{dense_loss_forward.1} parent=1 // loop_header_branch
      %28 = sbr.rel (%p26) target = $region8
    $region5: #{dense_loss_forward.1} parent=1 // loop_body
      %s30 = ssub.s32 %s25, 1
      %s31 = ssub.s32 %s25, 2
      %s38 = sadd.s32 1, %s33
      %p39 = scmp.ge.s32.totalorder %s38, 2
      %s40 = scalar_select %p39, 0, %s38
      %s41 = sadd.s32 1, %s32
      %s42 = scalar_select %p39, %s41, %s32
      %p43 = scmp.ge.s32.totalorder %s42, 2
      %s44 = scalar_select %p43, 0, %s42
      %s45 = ssub.s32 %s32, %s44
      %p46 = scmp.eq.s32.totalorder %s45, 0
      %s48 = sadd.s32 %s47, 1
      %s49 = scalar_select %p46, %s47, %s48
      %p52 = pneg %p46
      %p53 = scmp.eq.s32.totalorder %s25, 3
      %p54 = por %p52, %p53
      %p55 = scmp.ne.s32.totalorder %s47, %s50
      %p56 = scmp.eq.s32.totalorder %s25, 0
      %p57 = por %p55, %p56
      %p58 = scmp.ne.s32.totalorder %s47, %s50
      %p59 = scmp.eq.s32.totalorder %s30, 3
      %p60 = por %p58, %p59
      %p61 = scmp.ne.s32.totalorder %s50, %s51
      %p62 = scmp.eq.s32.totalorder %s30, 0
      %p63 = por %p61, %p62
      %p64 = scmp.ne.s32.totalorder %s50, %s51
      %p65 = scmp.eq.s32.totalorder %s31, 3
      %p66 = por %p64, %p65
      %p68 = scmp.ne.s32.totalorder %s51, %s67
      %p69 = scmp.eq.s32.totalorder %s31, 0
      %p70 = por %p68, %p69
      %s72 = sadd.s32 %s71, 1
      %p75 = scmp.eq.s32.totalorder %s25, 3
      %p76 = scmp.ne.s32.totalorder %s71, %s73
      %p77 = scmp.eq.s32.totalorder %s25, 0
      %p78 = por %p76, %p77
      %p79 = scmp.ne.s32.totalorder %s71, %s73
      %p80 = scmp.eq.s32.totalorder %s30, 3
      %p81 = por %p79, %p80
      %p82 = scmp.ne.s32.totalorder %s73, %s74
      %p83 = scmp.eq.s32.totalorder %s30, 0
      %p84 = por %p82, %p83
      %p85 = scmp.ne.s32.totalorder %s73, %s74
      %p86 = scmp.eq.s32.totalorder %s31, 3
      %p87 = por %p85, %p86
      %p89 = scmp.ne.s32.totalorder %s74, %s88
      %p90 = scmp.eq.s32.totalorder %s31, 0
      %p91 = por %p89, %p90
      %s93 = sadd.s32 %s92, 1
      %p96 = scmp.eq.s32.totalorder %s25, 3
      %p97 = scmp.ne.s32.totalorder %s92, %s94
      %p98 = scmp.eq.s32.totalorder %s25, 0
      %p99 = por %p97, %p98
      %p100 = scmp.ne.s32.totalorder %s92, %s94
      %p101 = scmp.eq.s32.totalorder %s30, 3
      %p102 = por %p100, %p101
      %p103 = scmp.ne.s32.totalorder %s94, %s95
      %p104 = scmp.eq.s32.totalorder %s30, 0
      %p105 = por %p103, %p104
      %p106 = scmp.ne.s32.totalorder %s94, %s95
      %p107 = scmp.eq.s32.totalorder %s31, 3
      %p108 = por %p106, %p107
      %p110 = scmp.ne.s32.totalorder %s95, %s109
      %p111 = scmp.eq.s32.totalorder %s31, 0
      %p112 = por %p110, %p111
      %s114 = sadd.s32 %s113, 1
      %p117 = scmp.eq.s32.totalorder %s25, 3
      %p118 = scmp.ne.s32.totalorder %s113, %s115
      %p119 = scmp.eq.s32.totalorder %s25, 0
      %p120 = por %p118, %p119
      %p121 = scmp.ne.s32.totalorder %s113, %s115
      %p122 = scmp.eq.s32.totalorder %s30, 3
      %p123 = por %p121, %p122
      %p124 = scmp.ne.s32.totalorder %s115, %s116
      %p125 = scmp.eq.s32.totalorder %s30, 0
      %p126 = por %p124, %p125
      %p127 = scmp.ne.s32.totalorder %s115, %s116
      %p128 = scmp.eq.s32.totalorder %s31, 3
      %p129 = por %p127, %p128
      %p131 = scmp.ne.s32.totalorder %s116, %s130
      %p132 = scmp.eq.s32.totalorder %s31, 0
      %p133 = por %p131, %p132
      %s135 = sadd.s32 %s134, 1
      %p138 = scmp.eq.s32.totalorder %s25, 3
      %p139 = scmp.ne.s32.totalorder %s134, %s136
      %p140 = scmp.eq.s32.totalorder %s25, 0
      %p141 = por %p139, %p140
      %p142 = scmp.ne.s32.totalorder %s134, %s136
      %p143 = scmp.eq.s32.totalorder %s30, 3
      %p144 = por %p142, %p143
      %p145 = scmp.ne.s32.totalorder %s136, %s137
      %p146 = scmp.eq.s32.totalorder %s30, 0
      %p147 = por %p145, %p146
      %p148 = scmp.ne.s32.totalorder %s136, %s137
      %p149 = scmp.eq.s32.totalorder %s31, 3
      %p150 = por %p148, %p149
      %p152 = scmp.ne.s32.totalorder %s137, %s151
      %p153 = scmp.eq.s32.totalorder %s31, 0
      %p154 = por %p152, %p153
      %s156 = sadd.s32 %s155, 1
      %p159 = scmp.eq.s32.totalorder %s25, 3
      %p160 = scmp.ne.s32.totalorder %s155, %s157
      %p161 = scmp.eq.s32.totalorder %s25, 0
      %p162 = por %p160, %p161
      %p163 = scmp.ne.s32.totalorder %s155, %s157
      %p164 = scmp.eq.s32.totalorder %s30, 3
      %p165 = por %p163, %p164
      %p166 = scmp.ne.s32.totalorder %s157, %s158
      %p167 = scmp.eq.s32.totalorder %s30, 0
      %p168 = por %p166, %p167
      %p169 = scmp.ne.s32.totalorder %s157, %s158
      %p170 = scmp.eq.s32.totalorder %s31, 3
      %p171 = por %p169, %p170
      %p173 = scmp.ne.s32.totalorder %s158, %s172
      %p174 = scmp.eq.s32.totalorder %s31, 0
      %p175 = por %p173, %p174
      %s177 = sadd.s32 %s176, 1
      %p180 = scmp.eq.s32.totalorder %s25, 3
      %p181 = scmp.ne.s32.totalorder %s176, %s178
      %p182 = scmp.eq.s32.totalorder %s25, 0
      %p183 = por %p181, %p182
      %p184 = scmp.ne.s32.totalorder %s176, %s178
      %p185 = scmp.eq.s32.totalorder %s30, 3
      %p186 = por %p184, %p185
      %p187 = scmp.ne.s32.totalorder %s178, %s179
      %p188 = scmp.eq.s32.totalorder %s30, 0
      %p189 = por %p187, %p188
      %p190 = scmp.ne.s32.totalorder %s178, %s179
      %p191 = scmp.eq.s32.totalorder %s31, 3
      %p192 = por %p190, %p191
      %p194 = scmp.ne.s32.totalorder %s179, %s193
      %p195 = scmp.eq.s32.totalorder %s31, 0
      %p196 = por %p194, %p195
      %s198 = sadd.s32 %s197, 1
      %p201 = scmp.eq.s32.totalorder %s25, 3
      %p202 = scmp.ne.s32.totalorder %s197, %s199
      %p203 = scmp.eq.s32.totalorder %s25, 0
      %p204 = por %p202, %p203
      %p205 = scmp.ne.s32.totalorder %s197, %s199
      %p206 = scmp.eq.s32.totalorder %s30, 3
      %p207 = por %p205, %p206
      %p208 = scmp.ne.s32.totalorder %s199, %s200
      %p209 = scmp.eq.s32.totalorder %s30, 0
      %p210 = por %p208, %p209
      %p211 = scmp.ne.s32.totalorder %s199, %s200
      %p212 = scmp.eq.s32.totalorder %s31, 3
      %p213 = por %p211, %p212
      %p215 = scmp.ne.s32.totalorder %s200, %s214
      %p216 = scmp.eq.s32.totalorder %s31, 0
      %p217 = por %p215, %p216
      %s219 = sadd.s32 %s218, 1
      %p222 = scmp.eq.s32.totalorder %s25, 3
      %p223 = scmp.ne.s32.totalorder %s218, %s220
      %p224 = scmp.eq.s32.totalorder %s25, 0
      %p225 = por %p223, %p224
      %p226 = scmp.ne.s32.totalorder %s218, %s220
      %p227 = scmp.eq.s32.totalorder %s30, 3
      %p228 = por %p226, %p227
      %p229 = scmp.ne.s32.totalorder %s220, %s221
      %p230 = scmp.eq.s32.totalorder %s30, 0
      %p231 = por %p229, %p230
      %p232 = scmp.ne.s32.totalorder %s220, %s221
      %p233 = scmp.eq.s32.totalorder %s31, 3
      %p234 = por %p232, %p233
      %p236 = scmp.ne.s32.totalorder %s221, %s235
      %p237 = scmp.eq.s32.totalorder %s31, 0
      %p238 = por %p236, %p237
      %s240 = sadd.s32 %s239, 1
      %p243 = scmp.eq.s32.totalorder %s25, 3
      %p244 = scmp.ne.s32.totalorder %s239, %s241
      %p245 = scmp.eq.s32.totalorder %s25, 0
      %p246 = por %p244, %p245
      %p247 = scmp.ne.s32.totalorder %s239, %s241
      %p248 = scmp.eq.s32.totalorder %s30, 3
      %p249 = por %p247, %p248
      %p250 = scmp.ne.s32.totalorder %s241, %s242
      %p251 = scmp.eq.s32.totalorder %s30, 0
      %p252 = por %p250, %p251
      %p253 = scmp.ne.s32.totalorder %s241, %s242
      %p254 = scmp.eq.s32.totalorder %s31, 3
      %p255 = por %p253, %p254
      %p257 = scmp.ne.s32.totalorder %s242, %s256
      %p258 = scmp.eq.s32.totalorder %s31, 0
      %p259 = por %p257, %p258
      %s261 = sadd.s32 %s260, 1
      %p264 = scmp.eq.s32.totalorder %s25, 3
      %p265 = scmp.ne.s32.totalorder %s260, %s262
      %p266 = scmp.eq.s32.totalorder %s25, 0
      %p267 = por %p265, %p266
      %p268 = scmp.ne.s32.totalorder %s260, %s262
      %p269 = scmp.eq.s32.totalorder %s30, 3
      %p270 = por %p268, %p269
      %p271 = scmp.ne.s32.totalorder %s262, %s263
      %p272 = scmp.eq.s32.totalorder %s30, 0
      %p273 = por %p271, %p272
      %p274 = scmp.ne.s32.totalorder %s262, %s263
      %p275 = scmp.eq.s32.totalorder %s31, 3
      %p276 = por %p274, %p275
      %p278 = scmp.ne.s32.totalorder %s263, %s277
      %p279 = scmp.eq.s32.totalorder %s31, 0
      %p280 = por %p278, %p279
      %s281 = ssub.s32 %s33, %s40
      %p282 = scmp.eq.s32.totalorder %s281, 0
      %s284 = sadd.s32 %s283, 1
      %s285 = scalar_select %p282, %s283, %s284
      %p288 = pneg %p282
      %p289 = scmp.eq.s32.totalorder %s25, 3
      %p290 = por %p288, %p289
      %p291 = scmp.ne.s32.totalorder %s283, %s286
      %p292 = scmp.eq.s32.totalorder %s25, 0
      %p293 = por %p291, %p292
      %p294 = scmp.ne.s32.totalorder %s283, %s286
      %p295 = scmp.eq.s32.totalorder %s30, 3
      %p296 = por %p294, %p295
      %p297 = scmp.ne.s32.totalorder %s286, %s287
      %p298 = scmp.eq.s32.totalorder %s30, 0
      %p299 = por %p297, %p298
      %p300 = scmp.ne.s32.totalorder %s286, %s287
      %p301 = scmp.eq.s32.totalorder %s31, 3
      %p302 = por %p300, %p301
      %p304 = scmp.ne.s32.totalorder %s287, %s303
      %p305 = scmp.eq.s32.totalorder %s31, 0
      %p306 = por %p304, %p305
      %s307 = ssub.s32 %s33, %s40
      %p308 = scmp.eq.s32.totalorder %s307, 0
      %s310 = sadd.s32 %s309, 1
      %s311 = scalar_select %p308, %s309, %s310
      %p314 = pneg %p308
      %p315 = scmp.eq.s32.totalorder %s25, 3
      %p316 = por %p314, %p315
      %p317 = scmp.ne.s32.totalorder %s309, %s312
      %p318 = scmp.eq.s32.totalorder %s25, 0
      %p319 = por %p317, %p318
      %p320 = scmp.ne.s32.totalorder %s309, %s312
      %p321 = scmp.eq.s32.totalorder %s30, 3
      %p322 = por %p320, %p321
      %p323 = scmp.ne.s32.totalorder %s312, %s313
      %p324 = scmp.eq.s32.totalorder %s30, 0
      %p325 = por %p323, %p324
      %p326 = scmp.ne.s32.totalorder %s312, %s313
      %p327 = scmp.eq.s32.totalorder %s31, 3
      %p328 = por %p326, %p327
      %p330 = scmp.ne.s32.totalorder %s313, %s329
      %p331 = scmp.eq.s32.totalorder %s31, 0
      %p332 = por %p330, %p331
      %s333 = ssub.s32 %s32, %s44
      %p334 = scmp.eq.s32.totalorder %s333, 0
      %s336 = sadd.s32 %s335, 1
      %s337 = scalar_select %p334, %s335, %s336
      %p340 = pneg %p334
      %p341 = scmp.eq.s32.totalorder %s25, 3
      %p342 = por %p340, %p341
      %p343 = scmp.ne.s32.totalorder %s335, %s338
      %p344 = scmp.eq.s32.totalorder %s25, 0
      %p345 = por %p343, %p344
      %p346 = scmp.ne.s32.totalorder %s335, %s338
      %p347 = scmp.eq.s32.totalorder %s30, 3
      %p348 = por %p346, %p347
      %p349 = scmp.ne.s32.totalorder %s338, %s339
      %p350 = scmp.eq.s32.totalorder %s30, 0
      %p351 = por %p349, %p350
      %p352 = scmp.ne.s32.totalorder %s338, %s339
      %p353 = scmp.eq.s32.totalorder %s31, 3
      %p354 = por %p352, %p353
      %p356 = scmp.ne.s32.totalorder %s339, %s355
      %p357 = scmp.eq.s32.totalorder %s31, 0
      %p358 = por %p356, %p357
      %p359 = scmp.le.s32.totalorder 1, %s25
      %p360 = scmp.lt.s32.totalorder %s25, 5
      %p361 = pnand %p359, %p360
      %p362 = pneg %p361
      // Predicated region
      $region9: #{dense_loss_forward.1} parent=5 // pred_check
        _
      $region10: #{dense_loss_forward.1} parent=5 // pred_check_branch
        %364 = sbr.rel (%p361) target = $region12
      $region11: #{dense_loss_forward.1} parent=5 // pred_region
        %s365 = ssub.s32 %s25, 1
        // Predicated region
        $region13: #{dense_loss_forward.1} parent=11 // pred_check
          %p366 = pneg %p84
        $region14: #{dense_loss_forward.1} parent=11 // pred_check_branch
          %368 = sbr.rel (%p366) target = $region16
        $region15: #{dense_loss_forward.1} parent=11 // pred_region
          %s370 = ssub.s32 512, 512
          %371 = vsyncadd [#allocation11], %s370
          %s372 = sshll.u32 [#allocation10], 4
          %s373 = int_to_ptr.vmem [resolvable:$true] %s372
          %378 = dma.hbm_to_vmem [thread:$0]  %s1, 512, %s373, [#allocation11], 64, 64, 4
        $region16: #{dense_loss_forward.1} parent=11 // pred_fallthru
          _
        // Predicated region
        $region17: #{dense_loss_forward.1} parent=11 // pred_check
          %p379 = pneg %p105
        $region18: #{dense_loss_forward.1} parent=11 // pred_check_branch
          %381 = sbr.rel (%p379) target = $region20
        $region19: #{dense_loss_forward.1} parent=11 // pred_region
          %s383 = ssub.s32 16, 16
          %384 = vsyncadd [#allocation13], %s383
          %s386 = sshll.u32 [#allocation12], 4
          %s387 = int_to_ptr.vmem [resolvable:$true] %s386
          %389 = dma.hbm_to_vmem [thread:$0]  %s2, 16, %s387, [#allocation13]
        $region20: #{dense_loss_forward.1} parent=11 // pred_fallthru
          _
        // Predicated region
        $region21: #{dense_loss_forward.1} parent=11 // pred_check
          %p390 = pneg %p126
        $region22: #{dense_loss_forward.1} parent=11 // pred_check_branch
          %392 = sbr.rel (%p390) target = $region24
        $region23: #{dense_loss_forward.1} parent=11 // pred_region
          %s394 = ssub.s32 1024, 1024
          %395 = vsyncadd [#allocation13], %s394
          %s396 = sshll.u32 [#allocation14], 4
          %s397 = int_to_ptr.vmem [resolvable:$true] %s396
          %402 = dma.hbm_to_vmem [thread:$0]  %s3, 1024, %s397, [#allocation13], 64, 64, 4
        $region24: #{dense_loss_forward.1} parent=11 // pred_fallthru
          _
        // Predicated region
        $region25: #{dense_loss_forward.1} parent=11 // pred_check
          %p403 = pneg %p147
        $region26: #{dense_loss_forward.1} parent=11 // pred_check_branch
          %405 = sbr.rel (%p403) target = $region28
        $region27: #{dense_loss_forward.1} parent=11 // pred_region
          %s407 = ssub.s32 16, 16
          %408 = vsyncadd [#allocation16], %s407
          %s410 = sshll.u32 [#allocation15], 4
          %s411 = int_to_ptr.vmem [resolvable:$true] %s410
          %413 = dma.hbm_to_vmem [thread:$0]  %s4, 16, %s411, [#allocation16]
        $region28: #{dense_loss_forward.1} parent=11 // pred_fallthru
          _
        // Predicated region
        $region29: #{dense_loss_forward.1} parent=11 // pred_check
          %p414 = pneg %p168
        $region30: #{dense_loss_forward.1} parent=11 // pred_check_branch
          %416 = sbr.rel (%p414) target = $region32
        $region31: #{dense_loss_forward.1} parent=11 // pred_region
          %s418 = ssub.s32 1024, 1024
          %419 = vsyncadd [#allocation16], %s418
          %s420 = sshll.u32 [#allocation17], 4
          %s421 = int_to_ptr.vmem [resolvable:$true] %s420
          %426 = dma.hbm_to_vmem [thread:$0]  %s5, 1024, %s421, [#allocation16], 64, 64, 4
        $region32: #{dense_loss_forward.1} parent=11 // pred_fallthru
          _
        // Predicated region
        $region33: #{dense_loss_forward.1} parent=11 // pred_check
          %p427 = pneg %p189
        $region34: #{dense_loss_forward.1} parent=11 // pred_check_branch
          %429 = sbr.rel (%p427) target = $region36
        $region35: #{dense_loss_forward.1} parent=11 // pred_region
          %s431 = ssub.s32 16, 16
          %432 = vsyncadd [#allocation19], %s431
          %s434 = sshll.u32 [#allocation18], 4
          %s435 = int_to_ptr.vmem [resolvable:$true] %s434
          %437 = dma.hbm_to_vmem [thread:$0]  %s6, 16, %s435, [#allocation19]
        $region36: #{dense_loss_forward.1} parent=11 // pred_fallthru
          _
        // Predicated region
        $region37: #{dense_loss_forward.1} parent=11 // pred_check
          %p438 = pneg %p210
        $region38: #{dense_loss_forward.1} parent=11 // pred_check_branch
          %440 = sbr.rel (%p438) target = $region40
        $region39: #{dense_loss_forward.1} parent=11 // pred_region
          %s442 = ssub.s32 1024, 1024
          %443 = vsyncadd [#allocation19], %s442
          %s444 = sshll.u32 [#allocation20], 4
          %s445 = int_to_ptr.vmem [resolvable:$true] %s444
          %450 = dma.hbm_to_vmem [thread:$0]  %s7, 1024, %s445, [#allocation19], 64, 64, 4
        $region40: #{dense_loss_forward.1} parent=11 // pred_fallthru
          _
        // Predicated region
        $region41: #{dense_loss_forward.1} parent=11 // pred_check
          %p451 = pneg %p231
        $region42: #{dense_loss_forward.1} parent=11 // pred_check_branch
          %453 = sbr.rel (%p451) target = $region44
        $region43: #{dense_loss_forward.1} parent=11 // pred_region
          %s455 = ssub.s32 16, 16
          %456 = vsyncadd [#allocation22], %s455
          %s458 = sshll.u32 [#allocation21], 4
          %s459 = int_to_ptr.vmem [resolvable:$true] %s458
          %461 = dma.hbm_to_vmem [thread:$0]  %s8, 16, %s459, [#allocation22]
        $region44: #{dense_loss_forward.1} parent=11 // pred_fallthru
          _
        // Predicated region
        $region45: #{dense_loss_forward.1} parent=11 // pred_check
          %p462 = pneg %p252
        $region46: #{dense_loss_forward.1} parent=11 // pred_check_branch
          %464 = sbr.rel (%p462) target = $region48
        $region47: #{dense_loss_forward.1} parent=11 // pred_region
          %s466 = ssub.s32 1024, 1024
          %467 = vsyncadd [#allocation22], %s466
          %s468 = sshll.u32 [#allocation23], 4
          %s469 = int_to_ptr.vmem [resolvable:$true] %s468
          %474 = dma.hbm_to_vmem [thread:$0]  %s9, 1024, %s469, [#allocation22], 64, 64, 4
        $region48: #{dense_loss_forward.1} parent=11 // pred_fallthru
          _
        // Predicated region
        $region49: #{dense_loss_forward.1} parent=11 // pred_check
          %p475 = pneg %p273
        $region50: #{dense_loss_forward.1} parent=11 // pred_check_branch
          %477 = sbr.rel (%p475) target = $region52
        $region51: #{dense_loss_forward.1} parent=11 // pred_region
          %s479 = ssub.s32 16, 16
          %480 = vsyncadd [#allocation25], %s479
          %s482 = sshll.u32 [#allocation24], 4
          %s483 = int_to_ptr.vmem [resolvable:$true] %s482
          %485 = dma.hbm_to_vmem [thread:$0]  %s10, 16, %s483, [#allocation25]
        $region52: #{dense_loss_forward.1} parent=11 // pred_fallthru
          _
      $region12: #{dense_loss_forward.1} parent=5 // pred_fallthru
        _
      %p486 = scmp.lt.s32.totalorder %s25, 4
      // Predicated region
      $region53: #{dense_loss_forward.1} parent=5 // pred_check
        %p487 = pneg %p486
      $region54: #{dense_loss_forward.1} parent=5 // pred_check_branch
        %489 = sbr.rel (%p487) target = $region56
      $region55: #{dense_loss_forward.1} parent=5 // pred_region
        // Predicated region
        $region57: #{dense_loss_forward.1} parent=55 // pred_check
          %p490 = pneg %p57
        $region58: #{dense_loss_forward.1} parent=55 // pred_check_branch
          %492 = sbr.rel (%p490) target = $region60
        $region59: #{dense_loss_forward.1} parent=55 // pred_region
          %s493 = smul.u32 4, %s32
          %p494 = scmp.lt.s32.totalorder %s493, 7
          %s495 = scalar_select %p494, %s493, 7
          %s496 = smul.addr %s495, 4
          %s497 = scalar_lea.vmem %s0, %s496
          %s498 = smul.u32 4, %s32
        $region60: #{dense_loss_forward.1} parent=55 // pred_fallthru
          _
        // Predicated region
        $region61: #{dense_loss_forward.1} parent=55 // pred_check
          %p499 = pneg %p293
        $region62: #{dense_loss_forward.1} parent=55 // pred_check_branch
          %501 = sbr.rel (%p499) target = $region64
        $region63: #{dense_loss_forward.1} parent=55 // pred_region
          %s502 = sand.u32 %s25, 1
          %s503 = scalar_lea.sflag [#allocation11], %s502
          %s504 = sand.u32 %s283, 1
          %s505 = smul.addr %s504, 2048
          %s506 = scalar_lea.vmem [#allocation26], %s505
          %s507 = smul.u32 32, %s33
          %s509 = ssub.s32 32768, 32768
          %510 = vsyncadd %s503, %s509
          %s511 = smul.addr %s507, 64
          %s512 = scalar_lea.hbm %s11, %s511
          %s513 = sshll.u32 %s506, 4
          %s514 = int_to_ptr.vmem [resolvable:$true] %s513
          %519 = dma.hbm_to_vmem [thread:$0]  %s512, 32768, %s514, %s503, 4096, 2048, 128
        $region64: #{dense_loss_forward.1} parent=55 // pred_fallthru
          _
        // Predicated region
        $region65: #{dense_loss_forward.1} parent=55 // pred_check
          %p520 = pneg %p319
        $region66: #{dense_loss_forward.1} parent=55 // pred_check_branch
          %522 = sbr.rel (%p520) target = $region68
        $region67: #{dense_loss_forward.1} parent=55 // pred_region
          %s523 = sand.u32 %s25, 1
          %s524 = scalar_lea.sflag [#allocation11], %s523
          %s525 = sand.u32 %s309, 1
          %s526 = smul.addr %s525, 2048
          %s527 = scalar_lea.vmem [#allocation27], %s526
          %s528 = smul.u32 32, %s33
          %s530 = ssub.s32 32768, 32768
          %531 = vsyncadd %s524, %s530
          %s532 = smul.addr %s528, 64
          %s533 = scalar_lea.hbm %s12, %s532
          %s534 = sshll.u32 %s527, 4
          %s535 = int_to_ptr.vmem [resolvable:$true] %s534
          %540 = dma.hbm_to_vmem [thread:$0]  %s533, 32768, %s535, %s524, 4096, 2048, 128
        $region68: #{dense_loss_forward.1} parent=55 // pred_fallthru
          _
      $region56: #{dense_loss_forward.1} parent=5 // pred_fallthru
        _
      %p541 = scmp.le.s32.totalorder 1, %s25
      %p542 = scmp.lt.s32.totalorder %s25, 5
      %p543 = pnand %p541, %p542
      %p544 = pneg %p543
      // Predicated region
      $region69: #{dense_loss_forward.1} parent=5 // pred_check
        _
      $region70: #{dense_loss_forward.1} parent=5 // pred_check_branch
        %546 = sbr.rel (%p543) target = $region72
      $region71: #{dense_loss_forward.1} parent=5 // pred_region
        %s547 = ssub.s32 %s25, 1
        // Predicated region
        $region73: #{dense_loss_forward.1} parent=71 // pred_check
          %p548 = pneg %p84
        $region74: #{dense_loss_forward.1} parent=71 // pred_check_branch
          %550 = sbr.rel (%p548) target = $region76
        $region75: #{dense_loss_forward.1} parent=71 // pred_region
          %551 = dma.done [#allocation11], 512
        $region76: #{dense_loss_forward.1} parent=71 // pred_fallthru
          _
        // Predicated region
        $region77: #{dense_loss_forward.1} parent=71 // pred_check
          %p552 = pneg %p105
        $region78: #{dense_loss_forward.1} parent=71 // pred_check_branch
          %554 = sbr.rel (%p552) target = $region80
        $region79: #{dense_loss_forward.1} parent=71 // pred_region
          %555 = dma.done [#allocation13], 16
        $region80: #{dense_loss_forward.1} parent=71 // pred_fallthru
          _
        // Predicated region
        $region81: #{dense_loss_forward.1} parent=71 // pred_check
          %p556 = pneg %p126
        $region82: #{dense_loss_forward.1} parent=71 // pred_check_branch
          %558 = sbr.rel (%p556) target = $region84
        $region83: #{dense_loss_forward.1} parent=71 // pred_region
          %559 = dma.done [#allocation13], 1024
        $region84: #{dense_loss_forward.1} parent=71 // pred_fallthru
          _
        // Predicated region
        $region85: #{dense_loss_forward.1} parent=71 // pred_check
          %p560 = pneg %p147
        $region86: #{dense_loss_forward.1} parent=71 // pred_check_branch
          %562 = sbr.rel (%p560) target = $region88
        $region87: #{dense_loss_forward.1} parent=71 // pred_region
          %563 = dma.done [#allocation16], 16
        $region88: #{dense_loss_forward.1} parent=71 // pred_fallthru
          _
        // Predicated region
        $region89: #{dense_loss_forward.1} parent=71 // pred_check
          %p564 = pneg %p168
        $region90: #{dense_loss_forward.1} parent=71 // pred_check_branch
          %566 = sbr.rel (%p564) target = $region92
        $region91: #{dense_loss_forward.1} parent=71 // pred_region
          %567 = dma.done [#allocation16], 1024
        $region92: #{dense_loss_forward.1} parent=71 // pred_fallthru
          _
        // Predicated region
        $region93: #{dense_loss_forward.1} parent=71 // pred_check
          %p568 = pneg %p189
        $region94: #{dense_loss_forward.1} parent=71 // pred_check_branch
          %570 = sbr.rel (%p568) target = $region96
        $region95: #{dense_loss_forward.1} parent=71 // pred_region
          %571 = dma.done [#allocation19], 16
        $region96: #{dense_loss_forward.1} parent=71 // pred_fallthru
          _
        // Predicated region
        $region97: #{dense_loss_forward.1} parent=71 // pred_check
          %p572 = pneg %p210
        $region98: #{dense_loss_forward.1} parent=71 // pred_check_branch
          %574 = sbr.rel (%p572) target = $region100
        $region99: #{dense_loss_forward.1} parent=71 // pred_region
          %575 = dma.done [#allocation19], 1024
        $region100: #{dense_loss_forward.1} parent=71 // pred_fallthru
          _
        // Predicated region
        $region101: #{dense_loss_forward.1} parent=71 // pred_check
          %p576 = pneg %p231
        $region102: #{dense_loss_forward.1} parent=71 // pred_check_branch
          %578 = sbr.rel (%p576) target = $region104
        $region103: #{dense_loss_forward.1} parent=71 // pred_region
          %579 = dma.done [#allocation22], 16
        $region104: #{dense_loss_forward.1} parent=71 // pred_fallthru
          _
        // Predicated region
        $region105: #{dense_loss_forward.1} parent=71 // pred_check
          %p580 = pneg %p252
        $region106: #{dense_loss_forward.1} parent=71 // pred_check_branch
          %582 = sbr.rel (%p580) target = $region108
        $region107: #{dense_loss_forward.1} parent=71 // pred_region
          %583 = dma.done [#allocation22], 1024
        $region108: #{dense_loss_forward.1} parent=71 // pred_fallthru
          _
        // Predicated region
        $region109: #{dense_loss_forward.1} parent=71 // pred_check
          %p584 = pneg %p273
        $region110: #{dense_loss_forward.1} parent=71 // pred_check_branch
          %586 = sbr.rel (%p584) target = $region112
        $region111: #{dense_loss_forward.1} parent=71 // pred_region
          %587 = dma.done [#allocation25], 16
        $region112: #{dense_loss_forward.1} parent=71 // pred_fallthru
          _
        %s588 = sand.u32 %s30, 1
        %s589 = scalar_lea.sflag [#allocation11], %s588
        %s590 = sand.u32 %s286, 1
        %s591 = smul.addr %s590, 2048
        %s592 = scalar_lea.vmem [#allocation26], %s591
        // Predicated region
        $region113: #{dense_loss_forward.1} parent=71 // pred_check
          %p593 = pneg %p299
        $region114: #{dense_loss_forward.1} parent=71 // pred_check_branch
          %595 = sbr.rel (%p593) target = $region116
        $region115: #{dense_loss_forward.1} parent=71 // pred_region
          %596 = dma.done %s589, 32768
        $region116: #{dense_loss_forward.1} parent=71 // pred_fallthru
          _
        %s597 = sand.u32 %s30, 1
        %s598 = scalar_lea.sflag [#allocation11], %s597
        %s599 = sand.u32 %s312, 1
        %s600 = smul.addr %s599, 2048
        %s601 = scalar_lea.vmem [#allocation27], %s600
        // Predicated region
        $region117: #{dense_loss_forward.1} parent=71 // pred_check
          %p602 = pneg %p325
        $region118: #{dense_loss_forward.1} parent=71 // pred_check_branch
          %604 = sbr.rel (%p602) target = $region120
        $region119: #{dense_loss_forward.1} parent=71 // pred_region
          %605 = dma.done %s598, 32768
        $region120: #{dense_loss_forward.1} parent=71 // pred_fallthru
          _
        %s606 = smul.u32 4, %s34
        %p607 = scmp.lt.s32.totalorder %s606, 7
        %s608 = scalar_select %p607, %s606, 7
        %s609 = smul.addr %s608, 4
        %s610 = scalar_lea.vmem %s0, %s609
        %p611 = pneg %p63
        %p612 = pneg %p60
        %p613 = pneg %p84
        %p614 = pneg %p81
        %p615 = pneg %p105
        %p616 = pneg %p102
        %p617 = pneg %p126
        %p618 = pneg %p123
        %p619 = pneg %p147
        %p620 = pneg %p144
        %p621 = pneg %p168
        %p622 = pneg %p165
        %p623 = pneg %p189
        %p624 = pneg %p186
        %p625 = pneg %p210
        %p626 = pneg %p207
        %p627 = pneg %p231
        %p628 = pneg %p228
        %p629 = pneg %p252
        %p630 = pneg %p249
        %p631 = pneg %p273
        %p632 = pneg %p270
        %s633 = sand.u32 %s30, 1
        %s634 = scalar_lea.sflag [#allocation11], %s633
        %s635 = sand.u32 %s286, 1
        %s636 = smul.addr %s635, 2048
        %s637 = scalar_lea.vmem [#allocation26], %s636
        %p638 = pneg %p299
        %p639 = pneg %p296
        %s640 = sand.u32 %s30, 1
        %s641 = scalar_lea.sflag [#allocation11], %s640
        %s642 = sand.u32 %s312, 1
        %s643 = smul.addr %s642, 2048
        %s644 = scalar_lea.vmem [#allocation27], %s643
        %p645 = pneg %p325
        %p646 = pneg %p322
        %p647 = pneg %p351
        %p648 = pneg %p348
        %p649 = scmp.lt.s32.totalorder %s34, 1
        %s650 = scalar_select %p649, %s34, 1
        %s651 = smul.addr %s650, 8
        %s652 = scalar_lea.vmem %s13, %s651
        %s653 = smul.u32 4, %s34
        %p654 = scmp.lt.s32.totalorder %s653, 7
        %s655 = scalar_select %p654, %s653, 7
        %s656 = smul.addr %s655, 4
        %s657 = scalar_lea.vmem %s0, %s656
        %s658 = smul.u32 4, %s34
        %s659 = smul.u32 32, %s35
        %s660 = smul.u32 32, %s35
        %p661 = scmp.lt.s32.totalorder %s34, 1
        %s662 = scalar_select %p661, %s34, 1
        %s663 = smul.addr %s662, 8
        %s664 = scalar_lea.vmem %s13, %s663
        %p666 = scmp.eq.s32.totalorder %s35, 0
        // Predicated region
        $region121: #{dense_loss_forward.1} parent=71 // pred_check
          %p667 = pneg %p666
        $region122: #{dense_loss_forward.1} parent=71 // pred_check_branch
          %669 = sbr.rel (%p667) target = $region124
        $region123: #{dense_loss_forward.1} parent=71 // pred_region
          %v670 = vld [vmem:[%s657] sm:$0xf]
          %v671 = vld [vmem:[%s657 + $0x4] sm:$0xf]
          %v672 = vld [vmem:[%s657 + $0x8] sm:$0xf]
          %v673 = vld [vmem:[%s657 + $0xc] sm:$0xf]
          %v674 = vld [vmem:[#allocation10] sm:$0xf]
          %v675 = vld [vmem:[#allocation10 + $0x4] sm:$0xf]
          %v676 = vld [vmem:[#allocation10 + $0x8] sm:$0xf]
          %v677 = vld [vmem:[#allocation10 + $0xc] sm:$0xf]
          %v678 = vld [vmem:[#allocation10 + $0x10] sm:$0xf]
          %v679 = vld [vmem:[#allocation10 + $0x14] sm:$0xf]
          %v680 = vld [vmem:[#allocation10 + $0x18] sm:$0xf]
          %v681 = vld [vmem:[#allocation10 + $0x1c] sm:$0xf]
          %v682 = vld [vmem:[#allocation12] sm:$0x1]
          %v684 = vlaneseq
          %v685 = vshrl.u32 %v684, 7
          %v686 = vsub.s32 0, %v685
          %v687 = vrot.slane %v682, %v686
          %v693 = vunpack.c.l.b16 %v670
          %v694 = vunpack.c.l.b16 %v671
          %v695 = vunpack.c.l.b16 %v672
          %v696 = vunpack.c.l.b16 %v673
          %v697 = vpack.c.b16 %v694, %v693
          %v698 = vpack.c.b16 %v696, %v695
          %v707 = vunpack.c.l.b16 %v674
          %v708 = vunpack.c.l.b16 %v675
          %v709 = vunpack.c.l.b16 %v676
          %v710 = vunpack.c.l.b16 %v677
          %v711 = vunpack.c.l.b16 %v678
          %v712 = vunpack.c.l.b16 %v679
          %v713 = vunpack.c.l.b16 %v680
          %v714 = vunpack.c.l.b16 %v681
          %v715 = vpack.c.b16 %v708, %v707
          %v716 = vpack.c.b16 %v710, %v709
          %v717 = vpack.c.b16 %v712, %v711
          %v718 = vpack.c.b16 %v714, %v713
          %vm723 = vcmask 523264
          %v725 = vsel %vm723, %v697, 0
          %v728 = vsel %vm723, %v698, 0
          %730 = vmatprep.subr.bf16.mxu0 0
          %731 = vmatpush1.bf16.msra.mxu0 0
          %732 = vmatprep.subr.bf16.mxu0 0
          %733 = vmatpush1.bf16.msra.mxu0 0
          %734 = vmatprep.subr.bf16.mxu0 0
          %735 = vmatpush1.bf16.msra.mxu0 0
          %736 = vmatprep.subr.bf16.mxu0 0
          %737 = vmatpush1.bf16.msra.mxu0 0
          %738 = vmatprep.subr.bf16.mxu0 0
          %739 = vmatpush1.bf16.msra.mxu0 %v718
          %740 = vmatprep.subr.bf16.mxu0 0
          %741 = vmatpush1.bf16.msra.mxu0 %v717
          %742 = vmatprep.subr.bf16.mxu0 0
          %743 = vmatpush1.bf16.msra.mxu0 %v716
          %744 = vmatprep.subr.bf16.mxu0 0
          %745 = vmatpush1.bf16.msra.mxu0 %v715
          %746 = vmatprep.subr.bf16.mxu0 0
          %747 = vmatpush2.bf16.msra.mxu0 0
          %748 = vmatprep.subr.bf16.mxu0 0
          %749 = vmatpush2.bf16.msra.mxu0 0
          %750 = vmatprep.subr.bf16.mxu0 0
          %751 = vmatpush2.bf16.msra.mxu0 0
          %752 = vmatprep.subr.bf16.mxu0 0
          %753 = vmatpush2.bf16.msra.mxu0 0
          %754 = vmatprep.subr.bf16.mxu0 0
          %755 = vmatpush2.bf16.msra.mxu0 0
          %756 = vmatprep.subr.bf16.mxu0 0
          %757 = vmatpush2.bf16.msra.mxu0 0
          %758 = vmatprep.subr.bf16.mxu0 0
          %759 = vmatpush2.bf16.msra.mxu0 0
          %760 = vmatprep.subr.bf16.mxu0 0
          %761 = vmatpush2.bf16.msra.mxu0 0
          %762 = vmatprep.mubr.bf16.mxu0 0
          %763 = vmatmul.mubr.bf16.gmra.mxu0 %v725
          %v764 = vpop.f32.mrf.mxu0
          %v765 = vadd.f32 %v687, %v764
          %v766 = vpop.f32.mrf.mxu0
          %v767 = vpop.f32.mrf.mxu0
          %v768 = vadd.f32 %v687, %v767
          %v769 = vpop.f32.mrf.mxu0
          %770 = vmatprep.mubr.bf16.mxu0 0
          %771 = vmatmul.mubr.bf16.gmra.mxu0 %v728
          %v772 = vpop.f32.mrf.mxu0
          %v773 = vadd.f32 %v687, %v772
          %v774 = vpop.f32.mrf.mxu0
          %v775 = vpop.f32.mrf.mxu0
          %v776 = vadd.f32 %v687, %v775
          %v777 = vpop.f32.mrf.mxu0
          %778 = vdwg.mxu0
          %v779 = vmax.f32 %v765, 0.0
          %v780 = vmax.f32 %v768, 0.0
          %v781 = vmax.f32 %v773, 0.0
          %v782 = vmax.f32 %v776, 0.0
          %v783 = vadd.f32 %v779, %v780
          %v784 = vrot.slane %v783, 4
          %v785 = vadd.f32 %v783, %v784
          %v786 = vrot.slane %v785, 2
          %v787 = vadd.f32 %v785, %v786
          %v788 = vrot.slane %v787, 1
          %v789 = vadd.f32 %v787, %v788
          %v790 = vadd.f32 %v781, %v782
          %v791 = vrot.slane %v790, 4
          %v792 = vadd.f32 %v790, %v791
          %v793 = vrot.slane %v792, 2
          %v794 = vadd.f32 %v792, %v793
          %v795 = vrot.slane %v794, 1
          %v796 = vadd.f32 %v794, %v795
          %v797 = vrcp.pop 16.0
          %v798 = vmul.f32 %v789, %v797
          %v799 = vmul.f32 %v796, %v797
          %v800 = vpack.c.bf16 %v798, %v798
          %v801 = vpack.c.bf16 %v799, %v799
          %v802 = vld [vmem:[#allocation14] sm:$0xf]
          %v803 = vld [vmem:[#allocation14 + $0x4] sm:$0xf]
          %v804 = vld [vmem:[#allocation14 + $0x8] sm:$0xf]
          %v805 = vld [vmem:[#allocation14 + $0xc] sm:$0xf]
          %v806 = vld [vmem:[#allocation14 + $0x10] sm:$0xf]
          %v807 = vld [vmem:[#allocation14 + $0x14] sm:$0xf]
          %v808 = vld [vmem:[#allocation14 + $0x18] sm:$0xf]
          %v809 = vld [vmem:[#allocation14 + $0x1c] sm:$0xf]
          %v810 = vld [vmem:[#allocation14 + $0x20] sm:$0xf]
          %v811 = vld [vmem:[#allocation14 + $0x24] sm:$0xf]
          %v812 = vld [vmem:[#allocation14 + $0x28] sm:$0xf]
          %v813 = vld [vmem:[#allocation14 + $0x2c] sm:$0xf]
          %v814 = vld [vmem:[#allocation14 + $0x30] sm:$0xf]
          %v815 = vld [vmem:[#allocation14 + $0x34] sm:$0xf]
          %v816 = vld [vmem:[#allocation14 + $0x38] sm:$0xf]
          %v817 = vld [vmem:[#allocation14 + $0x3c] sm:$0xf]
          %v818 = vld [vmem:[#allocation15] sm:$0x1]
          %v820 = vlaneseq
          %v821 = vshrl.u32 %v820, 7
          %v822 = vsub.s32 0, %v821
          %v823 = vrot.slane %v818, %v822
          %v827 = vunpack.c.l.b16 %v800
          %v828 = vunpack.c.l.b16 %v801
          %vm829 = vcmask 1041409
          %v830 = vsel %vm829, %v828, %v827
          %v831 = vpack.c.b16 %v830, %v830
          %v849 = vunpack.c.l.b16 %v802
          %v850 = vunpack.c.l.b16 %v803
          %v851 = vunpack.c.l.b16 %v804
          %v852 = vunpack.c.l.b16 %v805
          %v853 = vunpack.c.l.b16 %v806
          %v854 = vunpack.c.l.b16 %v807
          %v855 = vunpack.c.l.b16 %v808
          %v856 = vunpack.c.l.b16 %v809
          %v857 = vunpack.c.l.b16 %v810
          %v858 = vunpack.c.l.b16 %v811
          %v859 = vunpack.c.l.b16 %v812
          %v860 = vunpack.c.l.b16 %v813
          %v861 = vunpack.c.l.b16 %v814
          %v862 = vunpack.c.l.b16 %v815
          %v863 = vunpack.c.l.b16 %v816
          %v864 = vunpack.c.l.b16 %v817
          %v865 = vpack.c.b16 %v850, %v849
          %v866 = vpack.c.b16 %v852, %v851
          %v867 = vpack.c.b16 %v854, %v853
          %v868 = vpack.c.b16 %v856, %v855
          %v869 = vpack.c.b16 %v858, %v857
          %v870 = vpack.c.b16 %v860, %v859
          %v871 = vpack.c.b16 %v862, %v861
          %v872 = vpack.c.b16 %v864, %v863
          %881 = vmatprep.subr.bf16.mxu0 0
          %882 = vmatpush1.bf16.msra.mxu0 %v872
          %883 = vmatprep.subr.bf16.mxu0 0
          %884 = vmatpush1.bf16.msra.mxu0 %v871
          %885 = vmatprep.subr.bf16.mxu0 0
          %886 = vmatpush1.bf16.msra.mxu0 %v870
          %887 = vmatprep.subr.bf16.mxu0 0
          %888 = vmatpush1.bf16.msra.mxu0 %v869
          %889 = vmatprep.subr.bf16.mxu0 0
          %890 = vmatpush1.bf16.msra.mxu0 %v868
          %891 = vmatprep.subr.bf16.mxu0 0
          %892 = vmatpush1.bf16.msra.mxu0 %v867
          %893 = vmatprep.subr.bf16.mxu0 0
          %894 = vmatpush1.bf16.msra.mxu0 %v866
          %895 = vmatprep.subr.bf16.mxu0 0
          %896 = vmatpush1.bf16.msra.mxu0 %v865
          %897 = vmatprep.subr.bf16.mxu0 0
          %898 = vmatpush2.bf16.msra.mxu0 0
          %899 = vmatprep.subr.bf16.mxu0 0
          %900 = vmatpush2.bf16.msra.mxu0 0
          %901 = vmatprep.subr.bf16.mxu0 0
          %902 = vmatpush2.bf16.msra.mxu0 0
          %903 = vmatprep.subr.bf16.mxu0 0
          %904 = vmatpush2.bf16.msra.mxu0 0
          %905 = vmatprep.subr.bf16.mxu0 0
          %906 = vmatpush2.bf16.msra.mxu0 0
          %907 = vmatprep.subr.bf16.mxu0 0
          %908 = vmatpush2.bf16.msra.mxu0 0
          %909 = vmatprep.subr.bf16.mxu0 0
          %910 = vmatpush2.bf16.msra.mxu0 0
          %911 = vmatprep.subr.bf16.mxu0 0
          %912 = vmatpush2.bf16.msra.mxu0 0
          %913 = vmatprep.mubr.bf16.mxu0 0
          %914 = vmatmul.mubr.bf16.gmra.mxu0 %v831
          %v915 = vpop.f32.mrf.mxu0
          %v916 = vadd.f32 %v823, %v915
          %v917 = vpop.f32.mrf.mxu0
          %v918 = vpop.f32.mrf.mxu0
          %v919 = vpop.f32.mrf.mxu0
          %920 = vdwg.mxu0
          %v921 = vmax.f32 %v916, 0.0
          %v922 = vpack.c.bf16 %v921, %v921
          %v923 = vld [vmem:[#allocation17] sm:$0xf]
          %v924 = vld [vmem:[#allocation17 + $0x4] sm:$0xf]
          %v925 = vld [vmem:[#allocation17 + $0x8] sm:$0xf]
          %v926 = vld [vmem:[#allocation17 + $0xc] sm:$0xf]
          %v927 = vld [vmem:[#allocation17 + $0x10] sm:$0xf]
          %v928 = vld [vmem:[#allocation17 + $0x14] sm:$0xf]
          %v929 = vld [vmem:[#allocation17 + $0x18] sm:$0xf]
          %v930 = vld [vmem:[#allocation17 + $0x1c] sm:$0xf]
          %v931 = vld [vmem:[#allocation17 + $0x20] sm:$0xf]
          %v932 = vld [vmem:[#allocation17 + $0x24] sm:$0xf]
          %v933 = vld [vmem:[#allocation17 + $0x28] sm:$0xf]
          %v934 = vld [vmem:[#allocation17 + $0x2c] sm:$0xf]
          %v935 = vld [vmem:[#allocation17 + $0x30] sm:$0xf]
          %v936 = vld [vmem:[#allocation17 + $0x34] sm:$0xf]
          %v937 = vld [vmem:[#allocation17 + $0x38] sm:$0xf]
          %v938 = vld [vmem:[#allocation17 + $0x3c] sm:$0xf]
          %v939 = vld [vmem:[#allocation18] sm:$0x1]
          %v941 = vlaneseq
          %v942 = vshrl.u32 %v941, 7
          %v943 = vsub.s32 0, %v942
          %v944 = vrot.slane %v939, %v943
          %v962 = vunpack.c.l.b16 %v923
          %v963 = vunpack.c.l.b16 %v924
          %v964 = vunpack.c.l.b16 %v925
          %v965 = vunpack.c.l.b16 %v926
          %v966 = vunpack.c.l.b16 %v927
          %v967 = vunpack.c.l.b16 %v928
          %v968 = vunpack.c.l.b16 %v929
          %v969 = vunpack.c.l.b16 %v930
          %v970 = vunpack.c.l.b16 %v931
          %v971 = vunpack.c.l.b16 %v932
          %v972 = vunpack.c.l.b16 %v933
          %v973 = vunpack.c.l.b16 %v934
          %v974 = vunpack.c.l.b16 %v935
          %v975 = vunpack.c.l.b16 %v936
          %v976 = vunpack.c.l.b16 %v937
          %v977 = vunpack.c.l.b16 %v938
          %v978 = vpack.c.b16 %v963, %v962
          %v979 = vpack.c.b16 %v965, %v964
          %v980 = vpack.c.b16 %v967, %v966
          %v981 = vpack.c.b16 %v969, %v968
          %v982 = vpack.c.b16 %v971, %v970
          %v983 = vpack.c.b16 %v973, %v972
          %v984 = vpack.c.b16 %v975, %v974
          %v985 = vpack.c.b16 %v977, %v976
          %994 = vmatprep.subr.bf16.mxu0 0
          %995 = vmatpush1.bf16.msra.mxu0 %v985
          %996 = vmatprep.subr.bf16.mxu0 0
          %997 = vmatpush1.bf16.msra.mxu0 %v984
          %998 = vmatprep.subr.bf16.mxu0 0
          %999 = vmatpush1.bf16.msra.mxu0 %v983
          %1000 = vmatprep.subr.bf16.mxu0 0
          %1001 = vmatpush1.bf16.msra.mxu0 %v982
          %1002 = vmatprep.subr.bf16.mxu0 0
          %1003 = vmatpush1.bf16.msra.mxu0 %v981
          %1004 = vmatprep.subr.bf16.mxu0 0
          %1005 = vmatpush1.bf16.msra.mxu0 %v980
          %1006 = vmatprep.subr.bf16.mxu0 0
          %1007 = vmatpush1.bf16.msra.mxu0 %v979
          %1008 = vmatprep.subr.bf16.mxu0 0
          %1009 = vmatpush1.bf16.msra.mxu0 %v978
          %1010 = vmatprep.subr.bf16.mxu0 0
          %1011 = vmatpush2.bf16.msra.mxu0 0
          %1012 = vmatprep.subr.bf16.mxu0 0
          %1013 = vmatpush2.bf16.msra.mxu0 0
          %1014 = vmatprep.subr.bf16.mxu0 0
          %1015 = vmatpush2.bf16.msra.mxu0 0
          %1016 = vmatprep.subr.bf16.mxu0 0
          %1017 = vmatpush2.bf16.msra.mxu0 0
          %1018 = vmatprep.subr.bf16.mxu0 0
          %1019 = vmatpush2.bf16.msra.mxu0 0
          %1020 = vmatprep.subr.bf16.mxu0 0
          %1021 = vmatpush2.bf16.msra.mxu0 0
          %1022 = vmatprep.subr.bf16.mxu0 0
          %1023 = vmatpush2.bf16.msra.mxu0 0
          %1024 = vmatprep.subr.bf16.mxu0 0
          %1025 = vmatpush2.bf16.msra.mxu0 0
          %1026 = vmatprep.mubr.bf16.mxu0 0
          %1027 = vmatmul.mubr.bf16.gmra.mxu0 %v922
          %v1028 = vpop.f32.mrf.mxu0
          %v1029 = vadd.f32 %v944, %v1028
          %v1030 = vpop.f32.mrf.mxu0
          %v1031 = vpop.f32.mrf.mxu0
          %v1032 = vpop.f32.mrf.mxu0
          %1033 = vdwg.mxu0
          %v1034 = vpack.c.bf16 %v780, %v779
          %v1035 = vpack.c.bf16 %v782, %v781
          %v1036 = vld [vmem:[#allocation20] sm:$0xf]
          %v1037 = vld [vmem:[#allocation20 + $0x4] sm:$0xf]
          %v1038 = vld [vmem:[#allocation20 + $0x8] sm:$0xf]
          %v1039 = vld [vmem:[#allocation20 + $0xc] sm:$0xf]
          %v1040 = vld [vmem:[#allocation20 + $0x10] sm:$0xf]
          %v1041 = vld [vmem:[#allocation20 + $0x14] sm:$0xf]
          %v1042 = vld [vmem:[#allocation20 + $0x18] sm:$0xf]
          %v1043 = vld [vmem:[#allocation20 + $0x1c] sm:$0xf]
          %v1044 = vld [vmem:[#allocation20 + $0x20] sm:$0xf]
          %v1045 = vld [vmem:[#allocation20 + $0x24] sm:$0xf]
          %v1046 = vld [vmem:[#allocation20 + $0x28] sm:$0xf]
          %v1047 = vld [vmem:[#allocation20 + $0x2c] sm:$0xf]
          %v1048 = vld [vmem:[#allocation20 + $0x30] sm:$0xf]
          %v1049 = vld [vmem:[#allocation20 + $0x34] sm:$0xf]
          %v1050 = vld [vmem:[#allocation20 + $0x38] sm:$0xf]
          %v1051 = vld [vmem:[#allocation20 + $0x3c] sm:$0xf]
          %v1052 = vld [vmem:[#allocation21] sm:$0x1]
          %v1054 = vlaneseq
          %v1055 = vshrl.u32 %v1054, 7
          %v1056 = vsub.s32 0, %v1055
          %v1057 = vrot.slane %v1052, %v1056
          %v1075 = vunpack.c.l.b16 %v1036
          %v1076 = vunpack.c.l.b16 %v1037
          %v1077 = vunpack.c.l.b16 %v1038
          %v1078 = vunpack.c.l.b16 %v1039
          %v1079 = vunpack.c.l.b16 %v1040
          %v1080 = vunpack.c.l.b16 %v1041
          %v1081 = vunpack.c.l.b16 %v1042
          %v1082 = vunpack.c.l.b16 %v1043
          %v1083 = vunpack.c.l.b16 %v1044
          %v1084 = vunpack.c.l.b16 %v1045
          %v1085 = vunpack.c.l.b16 %v1046
          %v1086 = vunpack.c.l.b16 %v1047
          %v1087 = vunpack.c.l.b16 %v1048
          %v1088 = vunpack.c.l.b16 %v1049
          %v1089 = vunpack.c.l.b16 %v1050
          %v1090 = vunpack.c.l.b16 %v1051
          %v1091 = vpack.c.b16 %v1076, %v1075
          %v1092 = vpack.c.b16 %v1078, %v1077
          %v1093 = vpack.c.b16 %v1080, %v1079
          %v1094 = vpack.c.b16 %v1082, %v1081
          %v1095 = vpack.c.b16 %v1084, %v1083
          %v1096 = vpack.c.b16 %v1086, %v1085
          %v1097 = vpack.c.b16 %v1088, %v1087
          %v1098 = vpack.c.b16 %v1090, %v1089
          %1107 = vmatprep.subr.bf16.mxu0 0
          %1108 = vmatpush1.bf16.msra.mxu0 %v1098
          %1109 = vmatprep.subr.bf16.mxu0 0
          %1110 = vmatpush1.bf16.msra.mxu0 %v1097
          %1111 = vmatprep.subr.bf16.mxu0 0
          %1112 = vmatpush1.bf16.msra.mxu0 %v1096
          %1113 = vmatprep.subr.bf16.mxu0 0
          %1114 = vmatpush1.bf16.msra.mxu0 %v1095
          %1115 = vmatprep.subr.bf16.mxu0 0
          %1116 = vmatpush1.bf16.msra.mxu0 %v1094
          %1117 = vmatprep.subr.bf16.mxu0 0
          %1118 = vmatpush1.bf16.msra.mxu0 %v1093
          %1119 = vmatprep.subr.bf16.mxu0 0
          %1120 = vmatpush1.bf16.msra.mxu0 %v1092
          %1121 = vmatprep.subr.bf16.mxu0 0
          %1122 = vmatpush1.bf16.msra.mxu0 %v1091
          %1123 = vmatprep.subr.bf16.mxu0 0
          %1124 = vmatpush2.bf16.msra.mxu0 0
          %1125 = vmatprep.subr.bf16.mxu0 0
          %1126 = vmatpush2.bf16.msra.mxu0 0
          %1127 = vmatprep.subr.bf16.mxu0 0
          %1128 = vmatpush2.bf16.msra.mxu0 0
          %1129 = vmatprep.subr.bf16.mxu0 0
          %1130 = vmatpush2.bf16.msra.mxu0 0
          %1131 = vmatprep.subr.bf16.mxu0 0
          %1132 = vmatpush2.bf16.msra.mxu0 0
          %1133 = vmatprep.subr.bf16.mxu0 0
          %1134 = vmatpush2.bf16.msra.mxu0 0
          %1135 = vmatprep.subr.bf16.mxu0 0
          %1136 = vmatpush2.bf16.msra.mxu0 0
          %1137 = vmatprep.subr.bf16.mxu0 0
          %1138 = vmatpush2.bf16.msra.mxu0 0
          %1139 = vmatprep.mubr.bf16.mxu0 0
          %1140 = vmatmul.mubr.bf16.gmra.mxu0 %v1034
          %v1141 = vpop.f32.mrf.mxu0
          %v1142 = vadd.f32 %v1057, %v1141
          %v1143 = vpop.f32.mrf.mxu0
          %v1144 = vpop.f32.mrf.mxu0
          %v1145 = vadd.f32 %v1057, %v1144
          %v1146 = vpop.f32.mrf.mxu0
          %1147 = vmatprep.mubr.bf16.mxu0 0
          %1148 = vmatmul.mubr.bf16.gmra.mxu0 %v1035
          %v1149 = vpop.f32.mrf.mxu0
          %v1150 = vadd.f32 %v1057, %v1149
          %v1151 = vpop.f32.mrf.mxu0
          %v1152 = vpop.f32.mrf.mxu0
          %v1153 = vadd.f32 %v1057, %v1152
          %v1154 = vpop.f32.mrf.mxu0
          %1155 = vdwg.mxu0
          %v1156 = vmax.f32 %v1142, 0.0
          %v1157 = vmax.f32 %v1145, 0.0
          %v1158 = vmax.f32 %v1150, 0.0
          %v1159 = vmax.f32 %v1153, 0.0
          %v1160 = vpack.c.bf16 %v1157, %v1156
          %v1161 = vpack.c.bf16 %v1159, %v1158
          %v1162 = vld [vmem:[#allocation23] sm:$0xf]
          %v1163 = vld [vmem:[#allocation23 + $0x4] sm:$0xf]
          %v1164 = vld [vmem:[#allocation23 + $0x8] sm:$0xf]
          %v1165 = vld [vmem:[#allocation23 + $0xc] sm:$0xf]
          %v1166 = vld [vmem:[#allocation23 + $0x10] sm:$0xf]
          %v1167 = vld [vmem:[#allocation23 + $0x14] sm:$0xf]
          %v1168 = vld [vmem:[#allocation23 + $0x18] sm:$0xf]
          %v1169 = vld [vmem:[#allocation23 + $0x1c] sm:$0xf]
          %v1170 = vld [vmem:[#allocation23 + $0x20] sm:$0xf]
          %v1171 = vld [vmem:[#allocation23 + $0x24] sm:$0xf]
          %v1172 = vld [vmem:[#allocation23 + $0x28] sm:$0xf]
          %v1173 = vld [vmem:[#allocation23 + $0x2c] sm:$0xf]
          %v1174 = vld [vmem:[#allocation23 + $0x30] sm:$0xf]
          %v1175 = vld [vmem:[#allocation23 + $0x34] sm:$0xf]
          %v1176 = vld [vmem:[#allocation23 + $0x38] sm:$0xf]
          %v1177 = vld [vmem:[#allocation23 + $0x3c] sm:$0xf]
          %v1178 = vld [vmem:[#allocation24] sm:$0x1]
          %v1180 = vlaneseq
          %v1181 = vshrl.u32 %v1180, 7
          %v1182 = vsub.s32 0, %v1181
          %v1183 = vrot.slane %v1178, %v1182
          %v1201 = vunpack.c.l.b16 %v1162
          %v1202 = vunpack.c.l.b16 %v1163
          %v1203 = vunpack.c.l.b16 %v1164
          %v1204 = vunpack.c.l.b16 %v1165
          %v1205 = vunpack.c.l.b16 %v1166
          %v1206 = vunpack.c.l.b16 %v1167
          %v1207 = vunpack.c.l.b16 %v1168
          %v1208 = vunpack.c.l.b16 %v1169
          %v1209 = vunpack.c.l.b16 %v1170
          %v1210 = vunpack.c.l.b16 %v1171
          %v1211 = vunpack.c.l.b16 %v1172
          %v1212 = vunpack.c.l.b16 %v1173
          %v1213 = vunpack.c.l.b16 %v1174
          %v1214 = vunpack.c.l.b16 %v1175
          %v1215 = vunpack.c.l.b16 %v1176
          %v1216 = vunpack.c.l.b16 %v1177
          %v1217 = vpack.c.b16 %v1202, %v1201
          %v1218 = vpack.c.b16 %v1204, %v1203
          %v1219 = vpack.c.b16 %v1206, %v1205
          %v1220 = vpack.c.b16 %v1208, %v1207
          %v1221 = vpack.c.b16 %v1210, %v1209
          %v1222 = vpack.c.b16 %v1212, %v1211
          %v1223 = vpack.c.b16 %v1214, %v1213
          %v1224 = vpack.c.b16 %v1216, %v1215
          %1233 = vmatprep.subr.bf16.mxu0 0
          %1234 = vmatpush1.bf16.msra.mxu0 %v1224
          %1235 = vmatprep.subr.bf16.mxu0 0
          %1236 = vmatpush1.bf16.msra.mxu0 %v1223
          %1237 = vmatprep.subr.bf16.mxu0 0
          %1238 = vmatpush1.bf16.msra.mxu0 %v1222
          %1239 = vmatprep.subr.bf16.mxu0 0
          %1240 = vmatpush1.bf16.msra.mxu0 %v1221
          %1241 = vmatprep.subr.bf16.mxu0 0
          %1242 = vmatpush1.bf16.msra.mxu0 %v1220
          %1243 = vmatprep.subr.bf16.mxu0 0
          %1244 = vmatpush1.bf16.msra.mxu0 %v1219
          %1245 = vmatprep.subr.bf16.mxu0 0
          %1246 = vmatpush1.bf16.msra.mxu0 %v1218
          %1247 = vmatprep.subr.bf16.mxu0 0
          %1248 = vmatpush1.bf16.msra.mxu0 %v1217
          %1249 = vmatprep.subr.bf16.mxu0 0
          %1250 = vmatpush2.bf16.msra.mxu0 0
          %1251 = vmatprep.subr.bf16.mxu0 0
          %1252 = vmatpush2.bf16.msra.mxu0 0
          %1253 = vmatprep.subr.bf16.mxu0 0
          %1254 = vmatpush2.bf16.msra.mxu0 0
          %1255 = vmatprep.subr.bf16.mxu0 0
          %1256 = vmatpush2.bf16.msra.mxu0 0
          %1257 = vmatprep.subr.bf16.mxu0 0
          %1258 = vmatpush2.bf16.msra.mxu0 0
          %1259 = vmatprep.subr.bf16.mxu0 0
          %1260 = vmatpush2.bf16.msra.mxu0 0
          %1261 = vmatprep.subr.bf16.mxu0 0
          %1262 = vmatpush2.bf16.msra.mxu0 0
          %1263 = vmatprep.subr.bf16.mxu0 0
          %1264 = vmatpush2.bf16.msra.mxu0 0
          %1265 = vmatprep.mubr.bf16.mxu0 0
          %1266 = vmatmul.mubr.bf16.gmra.mxu0 %v1160
          %v1267 = vpop.f32.mrf.mxu0
          %v1268 = vadd.f32 %v1183, %v1267
          %v1269 = vpop.f32.mrf.mxu0
          %v1270 = vpop.f32.mrf.mxu0
          %v1271 = vadd.f32 %v1183, %v1270
          %v1272 = vpop.f32.mrf.mxu0
          %1273 = vmatprep.mubr.bf16.mxu0 0
          %1274 = vmatmul.mubr.bf16.gmra.mxu0 %v1161
          %v1275 = vpop.f32.mrf.mxu0
          %v1276 = vadd.f32 %v1183, %v1275
          %v1277 = vpop.f32.mrf.mxu0
          %v1278 = vpop.f32.mrf.mxu0
          %v1279 = vadd.f32 %v1183, %v1278
          %v1280 = vpop.f32.mrf.mxu0
          %1281 = vdwg.mxu0
          %v1282 = vmul.f32 %v1029, %v1029
          %vm1283 = vcmask 1041408
          %v1284 = vsel %vm1283, %v1282, 0.0
          %1285 = vadd.xlane.f32.xlu0 %v1284
          %v1286 = vpop.xlane.xlu0 %1285
          %v1287 = vmax.f32 %v1286, 1e-24
          %v1288 = vrsqrt.pop %v1287
          %v1289 = vmul.f32 %v1029, %v1288
          %v1291 = vrot.slane %v1289, 1
          %v1293 = vmul.f32 %v1289, %v1291
          %vm1294 = vcmask 1040384
          %v1295 = vsel %vm1294, %v1293, 0.0
          %1296 = vadd.xlane.f32.xlu0 %v1295
          %v1297 = vpop.xlane.xlu0 %1296
          %v1298 = vmul.f32 %v1297, 5.0
          %v1299 = vmul.f32 %v779, %v779
          %v1300 = vmul.f32 %v780, %v780
          %v1301 = vmul.f32 %v781, %v781
          %v1302 = vmul.f32 %v782, %v782
          %1303 = vadd.xlane.f32.xlu0 %v1299
          %v1304 = vpop.xlane.xlu0 %1303
          %1305 = vadd.xlane.f32.xlu0 %v1300
          %v1306 = vpop.xlane.xlu0 %1305
          %1307 = vadd.xlane.f32.xlu0 %v1301
          %v1308 = vpop.xlane.xlu0 %1307
          %1309 = vadd.xlane.f32.xlu0 %v1302
          %v1310 = vpop.xlane.xlu0 %1309
          %v1311 = vmax.f32 %v1304, 1e-24
          %v1312 = vmax.f32 %v1306, 1e-24
          %v1313 = vmax.f32 %v1308, 1e-24
          %v1314 = vmax.f32 %v1310, 1e-24
          %v1315 = vrsqrt.pop %v1311
          %v1316 = vrsqrt.pop %v1312
          %v1317 = vrsqrt.pop %v1313
          %v1318 = vrsqrt.pop %v1314
          %v1319 = vmul.f32 %v779, %v1315
          %v1320 = vmul.f32 %v780, %v1316
          %v1321 = vmul.f32 %v781, %v1317
          %v1322 = vmul.f32 %v782, %v1318
          %v1323 = vmul.f32 %v1268, %v1268
          %v1324 = vmul.f32 %v1271, %v1271
          %v1325 = vmul.f32 %v1276, %v1276
          %v1326 = vmul.f32 %v1279, %v1279
          %1327 = vadd.xlane.f32.xlu0 %v1323
          %v1328 = vpop.xlane.xlu0 %1327
          %1329 = vadd.xlane.f32.xlu0 %v1324
          %v1330 = vpop.xlane.xlu0 %1329
          %1331 = vadd.xlane.f32.xlu0 %v1325
          %v1332 = vpop.xlane.xlu0 %1331
          %1333 = vadd.xlane.f32.xlu0 %v1326
          %v1334 = vpop.xlane.xlu0 %1333
          %v1335 = vmax.f32 %v1328, 1e-24
          %v1336 = vmax.f32 %v1330, 1e-24
          %v1337 = vmax.f32 %v1332, 1e-24
          %v1338 = vmax.f32 %v1334, 1e-24
          %v1339 = vrsqrt.pop %v1335
          %v1340 = vrsqrt.pop %v1336
          %v1341 = vrsqrt.pop %v1337
          %v1342 = vrsqrt.pop %v1338
          %v1343 = vmul.f32 %v1268, %v1339
          %v1344 = vmul.f32 %v1271, %v1340
          %v1345 = vmul.f32 %v1276, %v1341
          %v1346 = vmul.f32 %v1279, %v1342
          %1347 = vmatprep.subr.mxu0 0.0
          %1348 = vmatpush1.xpose.msra.mxu0 0.0
          %1349 = vmatprep.subr.mxu0 0.0
          %1350 = vmatpush1.xpose.msra.mxu0 0.0
          %1351 = vmatprep.subr.mxu0 0.0
          %1352 = vmatpush1.xpose.msra.mxu0 0.0
          %1353 = vmatprep.subr.mxu0 0.0
          %1354 = vmatpush1.xpose.msra.mxu0 0.0
          %1355 = vmatprep.subr.mxu0 0.0
          %1356 = vmatpush1.xpose.msra.mxu0 0.0
          %1357 = vmatprep.subr.mxu0 0.0
          %1358 = vmatpush1.xpose.msra.mxu0 0.0
          %1359 = vmatprep.subr.mxu0 0.0
          %1360 = vmatpush1.xpose.msra.mxu0 0.0
          %1361 = vmatprep.subr.mxu0 0.0
          %1362 = vmatpush1.xpose.msra.mxu0 0.0
          %1363 = vmatprep.subr.mxu0 0.0
          %1364 = vmatpush1.xpose.msra.mxu0 0.0
          %1365 = vmatprep.subr.mxu0 0.0
          %1366 = vmatpush1.xpose.msra.mxu0 0.0
          %1367 = vmatprep.subr.mxu0 0.0
          %1368 = vmatpush1.xpose.msra.mxu0 0.0
          %1369 = vmatprep.subr.mxu0 0.0
          %1370 = vmatpush1.xpose.msra.mxu0 0.0
          %1371 = vmatprep.subr.mxu0 0.0
          %1372 = vmatpush1.xpose.msra.mxu0 0.0
          %1373 = vmatprep.subr.mxu0 0.0
          %1374 = vmatpush1.xpose.msra.mxu0 0.0
          %1375 = vmatprep.subr.mxu0 0.0
          %1376 = vmatpush1.xpose.msra.mxu0 %v1322
          %1377 = vmatprep.subr.mxu0 0.0
          %1378 = vmatpush1.xpose.msra.mxu0 %v1321
          %1379 = vmatprep.subr.mxu0 0.0
          %1380 = vmatpush2.xpose.msra.mxu0 0.0
          %1381 = vmatprep.subr.mxu0 0.0
          %1382 = vmatpush2.xpose.msra.mxu0 0.0
          %1383 = vmatprep.subr.mxu0 0.0
          %1384 = vmatpush2.xpose.msra.mxu0 0.0
          %1385 = vmatprep.subr.mxu0 0.0
          %1386 = vmatpush2.xpose.msra.mxu0 0.0
          %1387 = vmatprep.subr.mxu0 0.0
          %1388 = vmatpush2.xpose.msra.mxu0 0.0
          %1389 = vmatprep.subr.mxu0 0.0
          %1390 = vmatpush2.xpose.msra.mxu0 0.0
          %1391 = vmatprep.subr.mxu0 0.0
          %1392 = vmatpush2.xpose.msra.mxu0 0.0
          %1393 = vmatprep.subr.mxu0 0.0
          %1394 = vmatpush2.xpose.msra.mxu0 0.0
          %1395 = vmatprep.subr.mxu0 0.0
          %1396 = vmatpush2.xpose.msra.mxu0 0.0
          %1397 = vmatprep.subr.mxu0 0.0
          %1398 = vmatpush2.xpose.msra.mxu0 0.0
          %1399 = vmatprep.subr.mxu0 0.0
          %1400 = vmatpush2.xpose.msra.mxu0 0.0
          %1401 = vmatprep.subr.mxu0 0.0
          %1402 = vmatpush2.xpose.msra.mxu0 0.0
          %1403 = vmatprep.subr.mxu0 0.0
          %1404 = vmatpush2.xpose.msra.mxu0 0.0
          %1405 = vmatprep.subr.mxu0 0.0
          %1406 = vmatpush2.xpose.msra.mxu0 0.0
          %1407 = vmatprep.subr.mxu0 0.0
          %1408 = vmatpush2.xpose.msra.mxu0 0.0
          %1409 = vmatprep.subr.mxu0 0.0
          %1410 = vmatpush2.xpose.msra.mxu0 0.0
          %1411 = vmatprep.mubr.f32.mxu0 0.0
          %1412 = vmatmul.mubr.f32.gmra.mxu0 %v1319
          %v1413 = vpop.f32.mrf.mxu0
          %v1414 = vadd.f32 0.0, %v1413
          %v1415 = vpop.f32.mrf.mxu0
          %1416 = vmatprep.mubr.f32.mxu0 0.0
          %1417 = vmatmul.mubr.f32.gmra.mxu0 %v1320
          %v1418 = vpop.f32.mrf.mxu0
          %v1419 = vadd.f32 0.0, %v1418
          %v1420 = vpop.f32.mrf.mxu0
          %1421 = vdwg.mxu0
          %v1422 = vlaneseq
          %v1423 = vand.u32 %v1422, 127
          %vm1424 = vcmask 130048
          %v1425 = vsel %vm1424, %v1414, -inf
          %1426 = vmax.xlane.f32.xlu0 %v1425
          %v1427 = vpop.xlane.xlu0 %1426
          %v1428 = vsel %vm1424, %v1419, -inf
          %1429 = vmax.xlane.f32.xlu0 %v1428
          %v1430 = vpop.xlane.xlu0 %1429
          %vm1431 = vcmp.ge.f32.partialorder %v1414, %v1427
          %vm1432 = vcmp.ge.f32.partialorder %v1419, %v1430
          %v1433 = vsel %vm1431, %v1423, 16
          %v1434 = vsel %vm1432, %v1423, 16
          %v1435 = vsel %vm1424, %v1433, 2147483647
          %v1436 = vand.u32 %v1435, 65535
          %v1437 = vshra.s32 %v1435, 16
          %v1438 = vcvt.s32.f32 %v1436
          %v1439 = vcvt.s32.f32 %v1437
          %1440 = vmin.xlane.f32.xlu0 %v1439
          %v1441 = vpop.xlane.xlu0 %1440
          %vm1442 = vcmp.eq.f32.partialorder %v1439, %v1441
          %v1443 = vsel %vm1442, %v1438, inf
          %1444 = vmin.xlane.f32.xlu0 %v1443
          %v1445 = vpop.xlane.xlu0 %1444
          %v1446 = vcvt.f32.s32 %v1445
          %v1447 = vcvt.f32.s32 %v1441
          %v1448 = vshll.u32 %v1447, 16
          %v1449 = vadd.s32 %v1448, %v1446
          %v1450 = vsel %vm1424, %v1434, 2147483647
          %v1451 = vand.u32 %v1450, 65535
          %v1452 = vshra.s32 %v1450, 16
          %v1453 = vcvt.s32.f32 %v1451
          %v1454 = vcvt.s32.f32 %v1452
          %1455 = vmin.xlane.f32.xlu0 %v1454
          %v1456 = vpop.xlane.xlu0 %1455
          %vm1457 = vcmp.eq.f32.partialorder %v1454, %v1456
          %v1458 = vsel %vm1457, %v1453, inf
          %1459 = vmin.xlane.f32.xlu0 %v1458
          %v1460 = vpop.xlane.xlu0 %1459
          %v1461 = vcvt.f32.s32 %v1460
          %v1462 = vcvt.f32.s32 %v1456
          %v1463 = vshll.u32 %v1462, 16
          %v1464 = vadd.s32 %v1463, %v1461
          %vm1465 = vcmp.eq.s32.totalorder %v1423, %v1449
          %vm1466 = vcmp.eq.s32.totalorder %v1423, %v1464
          %v1467 = vsel %vm1465, 1, 0
          %v1468 = vsel %vm1466, 1, 0
          %v1469 = vcvt.s32.f32 %v1467
          %v1470 = vcvt.s32.f32 %v1468
          %v1471 = vpack.c.bf16 %v1470, %v1469
          %v1472 = vpack.c.bf16 %v1346, %v1345
          %v1474 = vsel %vm1424, %v1471, 0
          %1476 = vmatprep.subr.bf16.mxu0 0
          %1477 = vmatpush1.bf16.msra.mxu0 0
          %1478 = vmatprep.subr.bf16.mxu0 0
          %1479 = vmatpush1.bf16.msra.mxu0 0
          %1480 = vmatprep.subr.bf16.mxu0 0
          %1481 = vmatpush1.bf16.msra.mxu0 0
          %1482 = vmatprep.subr.bf16.mxu0 0
          %1483 = vmatpush1.bf16.msra.mxu0 0
          %1484 = vmatprep.subr.bf16.mxu0 0
          %1485 = vmatpush1.bf16.msra.mxu0 0
          %1486 = vmatprep.subr.bf16.mxu0 0
          %1487 = vmatpush1.bf16.msra.mxu0 0
          %1488 = vmatprep.subr.bf16.mxu0 0
          %1489 = vmatpush1.bf16.msra.mxu0 0
          %1490 = vmatprep.subr.bf16.mxu0 0
          %1491 = vmatpush1.bf16.msra.mxu0 %v1472
          %1492 = vmatprep.subr.bf16.mxu0 0
          %1493 = vmatpush2.bf16.msra.mxu0 0
          %1494 = vmatprep.subr.bf16.mxu0 0
          %1495 = vmatpush2.bf16.msra.mxu0 0
          %1496 = vmatprep.subr.bf16.mxu0 0
          %1497 = vmatpush2.bf16.msra.mxu0 0
          %1498 = vmatprep.subr.bf16.mxu0 0
          %1499 = vmatpush2.bf16.msra.mxu0 0
          %1500 = vmatprep.subr.bf16.mxu0 0
          %1501 = vmatpush2.bf16.msra.mxu0 0
          %1502 = vmatprep.subr.bf16.mxu0 0
          %1503 = vmatpush2.bf16.msra.mxu0 0
          %1504 = vmatprep.subr.bf16.mxu0 0
          %1505 = vmatpush2.bf16.msra.mxu0 0
          %1506 = vmatprep.subr.bf16.mxu0 0
          %1507 = vmatpush2.bf16.msra.mxu0 0
          %1508 = vmatprep.mubr.bf16.mxu0 0
          %1509 = vmatmul.mubr.bf16.gmra.mxu0 %v1474
          %v1510 = vpop.f32.mrf.mxu0
          %v1511 = vadd.f32 0.0, %v1510
          %v1512 = vpop.f32.mrf.mxu0
          %v1513 = vpop.f32.mrf.mxu0
          %v1514 = vadd.f32 0.0, %v1513
          %v1515 = vpop.f32.mrf.mxu0
          %1516 = vdwg.mxu0
          %v1517 = vmul.f32 %v1343, %v1511
          %v1518 = vmul.f32 %v1344, %v1514
          %1519 = vadd.xlane.f32.xlu0 %v1517
          %v1520 = vpop.xlane.xlu0 %1519
          %1521 = vadd.xlane.f32.xlu0 %v1518
          %v1522 = vpop.xlane.xlu0 %1521
          %v1523 = vmul.f32 %v1520, 5.0
          %v1524 = vmul.f32 %v1522, 5.0
          %v1525 = vpack.c.bf16 %v1289, %v1289
          %vm1526 = vcmask 1040384
          %vm1527 = vsmask.f32 256
          %vm1528 = vmand %vm1526, %vm1527
          %v1529 = vld [vmem:[#allocation2] sm:$0x1]
          %v1530 = vsel %vm1528, %v1525, %v1529
          %1531 = vst [vmem:[#allocation2] sm:$0x1] %v1530
          %v1532 = vpack.c.bf16 %v1344, %v1343
          %v1534 = vunpack.c.l.b16 %v1532
          %v1535 = vunpack.c.h.b16 %v1532
          %v1536 = vpack.c.b16 %v1534, %v1534
          %v1537 = vpack.c.b16 %v1535, %v1535
          %1540 = vst [vmem:[#allocation3] sm:$0xf] %v1536
          %1541 = vst [vmem:[#allocation3 + $0x4] sm:$0xf] %v1537
          %vm1542 = vcmask 0
          %1543 = vst.msk [vmem:[#allocation4] sm:$0x1] %vm1542, %v1298
          %vm1544 = vcmask 7168
          %1545 = vst.msk [vmem:[#allocation7] sm:$0xff] %vm1544, %v1523
          %1546 = vst.msk [vmem:[#allocation7 + $0x8] sm:$0xff] %vm1544, %v1524
          %1547 = vst.msk [vmem:[#allocation5] sm:$0x1] %vm1542, %v1298
          %1548 = vst.msk [vmem:[#allocation6] sm:$0x1] %vm1542, 1.0
          %1549 = vst.msk [vmem:[#allocation8] sm:$0xff] %vm1544, %v1523
          %1550 = vst.msk [vmem:[#allocation8 + $0x8] sm:$0xff] %vm1544, %v1524
          %1551 = vst.msk [vmem:[#allocation9] sm:$0xff] %vm1544, 1.0
          %1552 = vst.msk [vmem:[#allocation9 + $0x8] sm:$0xff] %vm1544, 1.0
        $region124: #{dense_loss_forward.1} parent=71 // pred_fallthru
          _
        %v1553 = vld [vmem:[#allocation2] sm:$0x1]
        %v1554 = vld [vmem:[%s592] sm:$0xff]
        %v1555 = vld [vmem:[%s592 + $0x8] sm:$0xff]
        %v1556 = vld [vmem:[%s592 + $0x10] sm:$0xff]
        %v1557 = vld [vmem:[%s592 + $0x18] sm:$0xff]
        %v1558 = vld [vmem:[%s592 + $0x20] sm:$0xff]
        %v1559 = vld [vmem:[%s592 + $0x28] sm:$0xff]
        %v1560 = vld [vmem:[%s592 + $0x30] sm:$0xff]
        %v1561 = vld [vmem:[%s592 + $0x38] sm:$0xff]
        %v1562 = vld [vmem:[%s592 + $0x40] sm:$0xff]
        %v1563 = vld [vmem:[%s592 + $0x48] sm:$0xff]
        %v1564 = vld [vmem:[%s592 + $0x50] sm:$0xff]
        %v1565 = vld [vmem:[%s592 + $0x58] sm:$0xff]
        %v1566 = vld [vmem:[%s592 + $0x60] sm:$0xff]
        %v1567 = vld [vmem:[%s592 + $0x68] sm:$0xff]
        %v1568 = vld [vmem:[%s592 + $0x70] sm:$0xff]
        %v1569 = vld [vmem:[%s592 + $0x78] sm:$0xff]
        %v1570 = vld [vmem:[%s592 + $0x80] sm:$0xff]
        %v1571 = vld [vmem:[%s592 + $0x88] sm:$0xff]
        %v1572 = vld [vmem:[%s592 + $0x90] sm:$0xff]
        %v1573 = vld [vmem:[%s592 + $0x98] sm:$0xff]
        %v1574 = vld [vmem:[%s592 + $0xa0] sm:$0xff]
        %v1575 = vld [vmem:[%s592 + $0xa8] sm:$0xff]
        %v1576 = vld [vmem:[%s592 + $0xb0] sm:$0xff]
        %v1577 = vld [vmem:[%s592 + $0xb8] sm:$0xff]
        %v1578 = vld [vmem:[%s592 + $0xc0] sm:$0xff]
        %v1579 = vld [vmem:[%s592 + $0xc8] sm:$0xff]
        %v1580 = vld [vmem:[%s592 + $0xd0] sm:$0xff]
        %v1581 = vld [vmem:[%s592 + $0xd8] sm:$0xff]
        %v1582 = vld [vmem:[%s592 + $0xe0] sm:$0xff]
        %v1583 = vld [vmem:[%s592 + $0xe8] sm:$0xff]
        %v1584 = vld [vmem:[%s592 + $0xf0] sm:$0xff]
        %v1585 = vld [vmem:[%s592 + $0xf8] sm:$0xff]
        %v1586 = vld [vmem:[%s592 + $0x100] sm:$0xff]
        %v1587 = vld [vmem:[%s592 + $0x108] sm:$0xff]
        %v1588 = vld [vmem:[%s592 + $0x110] sm:$0xff]
        %v1589 = vld [vmem:[%s592 + $0x118] sm:$0xff]
        %v1590 = vld [vmem:[%s592 + $0x120] sm:$0xff]
        %v1591 = vld [vmem:[%s592 + $0x128] sm:$0xff]
        %v1592 = vld [vmem:[%s592 + $0x130] sm:$0xff]
        %v1593 = vld [vmem:[%s592 + $0x138] sm:$0xff]
        %v1594 = vld [vmem:[%s592 + $0x140] sm:$0xff]
        %v1595 = vld [vmem:[%s592 + $0x148] sm:$0xff]
        %v1596 = vld [vmem:[%s592 + $0x150] sm:$0xff]
        %v1597 = vld [vmem:[%s592 + $0x158] sm:$0xff]
        %v1598 = vld [vmem:[%s592 + $0x160] sm:$0xff]
        %v1599 = vld [vmem:[%s592 + $0x168] sm:$0xff]
        %v1600 = vld [vmem:[%s592 + $0x170] sm:$0xff]
        %v1601 = vld [vmem:[%s592 + $0x178] sm:$0xff]
        %v1602 = vld [vmem:[%s592 + $0x180] sm:$0xff]
        %v1603 = vld [vmem:[%s592 + $0x188] sm:$0xff]
        %v1604 = vld [vmem:[%s592 + $0x190] sm:$0xff]
        %v1605 = vld [vmem:[%s592 + $0x198] sm:$0xff]
        %v1606 = vld [vmem:[%s592 + $0x1a0] sm:$0xff]
        %v1607 = vld [vmem:[%s592 + $0x1a8] sm:$0xff]
        %v1608 = vld [vmem:[%s592 + $0x1b0] sm:$0xff]
        %v1609 = vld [vmem:[%s592 + $0x1b8] sm:$0xff]
        %v1610 = vld [vmem:[%s592 + $0x1c0] sm:$0xff]
        %v1611 = vld [vmem:[%s592 + $0x1c8] sm:$0xff]
        %v1612 = vld [vmem:[%s592 + $0x1d0] sm:$0xff]
        %v1613 = vld [vmem:[%s592 + $0x1d8] sm:$0xff]
        %v1614 = vld [vmem:[%s592 + $0x1e0] sm:$0xff]
        %v1615 = vld [vmem:[%s592 + $0x1e8] sm:$0xff]
        %v1616 = vld [vmem:[%s592 + $0x1f0] sm:$0xff]
        %v1617 = vld [vmem:[%s592 + $0x1f8] sm:$0xff]
        %v1618 = vld [vmem:[%s592 + $0x200] sm:$0xff]
        %v1619 = vld [vmem:[%s592 + $0x208] sm:$0xff]
        %v1620 = vld [vmem:[%s592 + $0x210] sm:$0xff]
        %v1621 = vld [vmem:[%s592 + $0x218] sm:$0xff]
        %v1622 = vld [vmem:[%s592 + $0x220] sm:$0xff]
        %v1623 = vld [vmem:[%s592 + $0x228] sm:$0xff]
        %v1624 = vld [vmem:[%s592 + $0x230] sm:$0xff]
        %v1625 = vld [vmem:[%s592 + $0x238] sm:$0xff]
        %v1626 = vld [vmem:[%s592 + $0x240] sm:$0xff]
        %v1627 = vld [vmem:[%s592 + $0x248] sm:$0xff]
        %v1628 = vld [vmem:[%s592 + $0x250] sm:$0xff]
        %v1629 = vld [vmem:[%s592 + $0x258] sm:$0xff]
        %v1630 = vld [vmem:[%s592 + $0x260] sm:$0xff]
        %v1631 = vld [vmem:[%s592 + $0x268] sm:$0xff]
        %v1632 = vld [vmem:[%s592 + $0x270] sm:$0xff]
        %v1633 = vld [vmem:[%s592 + $0x278] sm:$0xff]
        %v1634 = vld [vmem:[%s592 + $0x280] sm:$0xff]
        %v1635 = vld [vmem:[%s592 + $0x288] sm:$0xff]
        %v1636 = vld [vmem:[%s592 + $0x290] sm:$0xff]
        %v1637 = vld [vmem:[%s592 + $0x298] sm:$0xff]
        %v1638 = vld [vmem:[%s592 + $0x2a0] sm:$0xff]
        %v1639 = vld [vmem:[%s592 + $0x2a8] sm:$0xff]
        %v1640 = vld [vmem:[%s592 + $0x2b0] sm:$0xff]
        %v1641 = vld [vmem:[%s592 + $0x2b8] sm:$0xff]
        %v1642 = vld [vmem:[%s592 + $0x2c0] sm:$0xff]
        %v1643 = vld [vmem:[%s592 + $0x2c8] sm:$0xff]
        %v1644 = vld [vmem:[%s592 + $0x2d0] sm:$0xff]
        %v1645 = vld [vmem:[%s592 + $0x2d8] sm:$0xff]
        %v1646 = vld [vmem:[%s592 + $0x2e0] sm:$0xff]
        %v1647 = vld [vmem:[%s592 + $0x2e8] sm:$0xff]
        %v1648 = vld [vmem:[%s592 + $0x2f0] sm:$0xff]
        %v1649 = vld [vmem:[%s592 + $0x2f8] sm:$0xff]
        %v1650 = vld [vmem:[%s592 + $0x300] sm:$0xff]
        %v1651 = vld [vmem:[%s592 + $0x308] sm:$0xff]
        %v1652 = vld [vmem:[%s592 + $0x310] sm:$0xff]
        %v1653 = vld [vmem:[%s592 + $0x318] sm:$0xff]
        %v1654 = vld [vmem:[%s592 + $0x320] sm:$0xff]
        %v1655 = vld [vmem:[%s592 + $0x328] sm:$0xff]
        %v1656 = vld [vmem:[%s592 + $0x330] sm:$0xff]
        %v1657 = vld [vmem:[%s592 + $0x338] sm:$0xff]
        %v1658 = vld [vmem:[%s592 + $0x340] sm:$0xff]
        %v1659 = vld [vmem:[%s592 + $0x348] sm:$0xff]
        %v1660 = vld [vmem:[%s592 + $0x350] sm:$0xff]
        %v1661 = vld [vmem:[%s592 + $0x358] sm:$0xff]
        %v1662 = vld [vmem:[%s592 + $0x360] sm:$0xff]
        %v1663 = vld [vmem:[%s592 + $0x368] sm:$0xff]
        %v1664 = vld [vmem:[%s592 + $0x370] sm:$0xff]
        %v1665 = vld [vmem:[%s592 + $0x378] sm:$0xff]
        %v1666 = vld [vmem:[%s592 + $0x380] sm:$0xff]
        %v1667 = vld [vmem:[%s592 + $0x388] sm:$0xff]
        %v1668 = vld [vmem:[%s592 + $0x390] sm:$0xff]
        %v1669 = vld [vmem:[%s592 + $0x398] sm:$0xff]
        %v1670 = vld [vmem:[%s592 + $0x3a0] sm:$0xff]
        %v1671 = vld [vmem:[%s592 + $0x3a8] sm:$0xff]
        %v1672 = vld [vmem:[%s592 + $0x3b0] sm:$0xff]
        %v1673 = vld [vmem:[%s592 + $0x3b8] sm:$0xff]
        %v1674 = vld [vmem:[%s592 + $0x3c0] sm:$0xff]
        %v1675 = vld [vmem:[%s592 + $0x3c8] sm:$0xff]
        %v1676 = vld [vmem:[%s592 + $0x3d0] sm:$0xff]
        %v1677 = vld [vmem:[%s592 + $0x3d8] sm:$0xff]
        %v1678 = vld [vmem:[%s592 + $0x3e0] sm:$0xff]
        %v1679 = vld [vmem:[%s592 + $0x3e8] sm:$0xff]
        %v1680 = vld [vmem:[%s592 + $0x3f0] sm:$0xff]
        %v1681 = vld [vmem:[%s592 + $0x3f8] sm:$0xff]
        %v1682 = vld [vmem:[%s592 + $0x400] sm:$0xff]
        %v1683 = vld [vmem:[%s592 + $0x408] sm:$0xff]
        %v1684 = vld [vmem:[%s592 + $0x410] sm:$0xff]
        %v1685 = vld [vmem:[%s592 + $0x418] sm:$0xff]
        %v1686 = vld [vmem:[%s592 + $0x420] sm:$0xff]
        %v1687 = vld [vmem:[%s592 + $0x428] sm:$0xff]
        %v1688 = vld [vmem:[%s592 + $0x430] sm:$0xff]
        %v1689 = vld [vmem:[%s592 + $0x438] sm:$0xff]
        %v1690 = vld [vmem:[%s592 + $0x440] sm:$0xff]
        %v1691 = vld [vmem:[%s592 + $0x448] sm:$0xff]
        %v1692 = vld [vmem:[%s592 + $0x450] sm:$0xff]
        %v1693 = vld [vmem:[%s592 + $0x458] sm:$0xff]
        %v1694 = vld [vmem:[%s592 + $0x460] sm:$0xff]
        %v1695 = vld [vmem:[%s592 + $0x468] sm:$0xff]
        %v1696 = vld [vmem:[%s592 + $0x470] sm:$0xff]
        %v1697 = vld [vmem:[%s592 + $0x478] sm:$0xff]
        %v1698 = vld [vmem:[%s592 + $0x480] sm:$0xff]
        %v1699 = vld [vmem:[%s592 + $0x488] sm:$0xff]
        %v1700 = vld [vmem:[%s592 + $0x490] sm:$0xff]
        %v1701 = vld [vmem:[%s592 + $0x498] sm:$0xff]
        %v1702 = vld [vmem:[%s592 + $0x4a0] sm:$0xff]
        %v1703 = vld [vmem:[%s592 + $0x4a8] sm:$0xff]
        %v1704 = vld [vmem:[%s592 + $0x4b0] sm:$0xff]
        %v1705 = vld [vmem:[%s592 + $0x4b8] sm:$0xff]
        %v1706 = vld [vmem:[%s592 + $0x4c0] sm:$0xff]
        %v1707 = vld [vmem:[%s592 + $0x4c8] sm:$0xff]
        %v1708 = vld [vmem:[%s592 + $0x4d0] sm:$0xff]
        %v1709 = vld [vmem:[%s592 + $0x4d8] sm:$0xff]
        %v1710 = vld [vmem:[%s592 + $0x4e0] sm:$0xff]
        %v1711 = vld [vmem:[%s592 + $0x4e8] sm:$0xff]
        %v1712 = vld [vmem:[%s592 + $0x4f0] sm:$0xff]
        %v1713 = vld [vmem:[%s592 + $0x4f8] sm:$0xff]
        %v1714 = vld [vmem:[%s592 + $0x500] sm:$0xff]
        %v1715 = vld [vmem:[%s592 + $0x508] sm:$0xff]
        %v1716 = vld [vmem:[%s592 + $0x510] sm:$0xff]
        %v1717 = vld [vmem:[%s592 + $0x518] sm:$0xff]
        %v1718 = vld [vmem:[%s592 + $0x520] sm:$0xff]
        %v1719 = vld [vmem:[%s592 + $0x528] sm:$0xff]
        %v1720 = vld [vmem:[%s592 + $0x530] sm:$0xff]
        %v1721 = vld [vmem:[%s592 + $0x538] sm:$0xff]
        %v1722 = vld [vmem:[%s592 + $0x540] sm:$0xff]
        %v1723 = vld [vmem:[%s592 + $0x548] sm:$0xff]
        %v1724 = vld [vmem:[%s592 + $0x550] sm:$0xff]
        %v1725 = vld [vmem:[%s592 + $0x558] sm:$0xff]
        %v1726 = vld [vmem:[%s592 + $0x560] sm:$0xff]
        %v1727 = vld [vmem:[%s592 + $0x568] sm:$0xff]
        %v1728 = vld [vmem:[%s592 + $0x570] sm:$0xff]
        %v1729 = vld [vmem:[%s592 + $0x578] sm:$0xff]
        %v1730 = vld [vmem:[%s592 + $0x580] sm:$0xff]
        %v1731 = vld [vmem:[%s592 + $0x588] sm:$0xff]
        %v1732 = vld [vmem:[%s592 + $0x590] sm:$0xff]
        %v1733 = vld [vmem:[%s592 + $0x598] sm:$0xff]
        %v1734 = vld [vmem:[%s592 + $0x5a0] sm:$0xff]
        %v1735 = vld [vmem:[%s592 + $0x5a8] sm:$0xff]
        %v1736 = vld [vmem:[%s592 + $0x5b0] sm:$0xff]
        %v1737 = vld [vmem:[%s592 + $0x5b8] sm:$0xff]
        %v1738 = vld [vmem:[%s592 + $0x5c0] sm:$0xff]
        %v1739 = vld [vmem:[%s592 + $0x5c8] sm:$0xff]
        %v1740 = vld [vmem:[%s592 + $0x5d0] sm:$0xff]
        %v1741 = vld [vmem:[%s592 + $0x5d8] sm:$0xff]
        %v1742 = vld [vmem:[%s592 + $0x5e0] sm:$0xff]
        %v1743 = vld [vmem:[%s592 + $0x5e8] sm:$0xff]
        %v1744 = vld [vmem:[%s592 + $0x5f0] sm:$0xff]
        %v1745 = vld [vmem:[%s592 + $0x5f8] sm:$0xff]
        %v1746 = vld [vmem:[%s592 + $0x600] sm:$0xff]
        %v1747 = vld [vmem:[%s592 + $0x608] sm:$0xff]
        %v1748 = vld [vmem:[%s592 + $0x610] sm:$0xff]
        %v1749 = vld [vmem:[%s592 + $0x618] sm:$0xff]
        %v1750 = vld [vmem:[%s592 + $0x620] sm:$0xff]
        %v1751 = vld [vmem:[%s592 + $0x628] sm:$0xff]
        %v1752 = vld [vmem:[%s592 + $0x630] sm:$0xff]
        %v1753 = vld [vmem:[%s592 + $0x638] sm:$0xff]
        %v1754 = vld [vmem:[%s592 + $0x640] sm:$0xff]
        %v1755 = vld [vmem:[%s592 + $0x648] sm:$0xff]
        %v1756 = vld [vmem:[%s592 + $0x650] sm:$0xff]
        %v1757 = vld [vmem:[%s592 + $0x658] sm:$0xff]
        %v1758 = vld [vmem:[%s592 + $0x660] sm:$0xff]
        %v1759 = vld [vmem:[%s592 + $0x668] sm:$0xff]
        %v1760 = vld [vmem:[%s592 + $0x670] sm:$0xff]
        %v1761 = vld [vmem:[%s592 + $0x678] sm:$0xff]
        %v1762 = vld [vmem:[%s592 + $0x680] sm:$0xff]
        %v1763 = vld [vmem:[%s592 + $0x688] sm:$0xff]
        %v1764 = vld [vmem:[%s592 + $0x690] sm:$0xff]
        %v1765 = vld [vmem:[%s592 + $0x698] sm:$0xff]
        %v1766 = vld [vmem:[%s592 + $0x6a0] sm:$0xff]
        %v1767 = vld [vmem:[%s592 + $0x6a8] sm:$0xff]
        %v1768 = vld [vmem:[%s592 + $0x6b0] sm:$0xff]
        %v1769 = vld [vmem:[%s592 + $0x6b8] sm:$0xff]
        %v1770 = vld [vmem:[%s592 + $0x6c0] sm:$0xff]
        %v1771 = vld [vmem:[%s592 + $0x6c8] sm:$0xff]
        %v1772 = vld [vmem:[%s592 + $0x6d0] sm:$0xff]
        %v1773 = vld [vmem:[%s592 + $0x6d8] sm:$0xff]
        %v1774 = vld [vmem:[%s592 + $0x6e0] sm:$0xff]
        %v1775 = vld [vmem:[%s592 + $0x6e8] sm:$0xff]
        %v1776 = vld [vmem:[%s592 + $0x6f0] sm:$0xff]
        %v1777 = vld [vmem:[%s592 + $0x6f8] sm:$0xff]
        %v1778 = vld [vmem:[%s592 + $0x700] sm:$0xff]
        %v1779 = vld [vmem:[%s592 + $0x708] sm:$0xff]
        %v1780 = vld [vmem:[%s592 + $0x710] sm:$0xff]
        %v1781 = vld [vmem:[%s592 + $0x718] sm:$0xff]
        %v1782 = vld [vmem:[%s592 + $0x720] sm:$0xff]
        %v1783 = vld [vmem:[%s592 + $0x728] sm:$0xff]
        %v1784 = vld [vmem:[%s592 + $0x730] sm:$0xff]
        %v1785 = vld [vmem:[%s592 + $0x738] sm:$0xff]
        %v1786 = vld [vmem:[%s592 + $0x740] sm:$0xff]
        %v1787 = vld [vmem:[%s592 + $0x748] sm:$0xff]
        %v1788 = vld [vmem:[%s592 + $0x750] sm:$0xff]
        %v1789 = vld [vmem:[%s592 + $0x758] sm:$0xff]
        %v1790 = vld [vmem:[%s592 + $0x760] sm:$0xff]
        %v1791 = vld [vmem:[%s592 + $0x768] sm:$0xff]
        %v1792 = vld [vmem:[%s592 + $0x770] sm:$0xff]
        %v1793 = vld [vmem:[%s592 + $0x778] sm:$0xff]
        %v1794 = vld [vmem:[%s592 + $0x780] sm:$0xff]
        %v1795 = vld [vmem:[%s592 + $0x788] sm:$0xff]
        %v1796 = vld [vmem:[%s592 + $0x790] sm:$0xff]
        %v1797 = vld [vmem:[%s592 + $0x798] sm:$0xff]
        %v1798 = vld [vmem:[%s592 + $0x7a0] sm:$0xff]
        %v1799 = vld [vmem:[%s592 + $0x7a8] sm:$0xff]
        %v1800 = vld [vmem:[%s592 + $0x7b0] sm:$0xff]
        %v1801 = vld [vmem:[%s592 + $0x7b8] sm:$0xff]
        %v1802 = vld [vmem:[%s592 + $0x7c0] sm:$0xff]
        %v1803 = vld [vmem:[%s592 + $0x7c8] sm:$0xff]
        %v1804 = vld [vmem:[%s592 + $0x7d0] sm:$0xff]
        %v1805 = vld [vmem:[%s592 + $0x7d8] sm:$0xff]
        %v1806 = vld [vmem:[%s592 + $0x7e0] sm:$0xff]
        %v1807 = vld [vmem:[%s592 + $0x7e8] sm:$0xff]
        %v1808 = vld [vmem:[%s592 + $0x7f0] sm:$0xff]
        %v1809 = vld [vmem:[%s592 + $0x7f8] sm:$0xff]
        %v2066 = vunpack.c.l.b16 %v1554
        %v2067 = vunpack.c.h.b16 %v1554
        %v2068 = vunpack.c.l.b16 %v1555
        %v2069 = vunpack.c.h.b16 %v1555
        %v2070 = vunpack.c.l.b16 %v1556
        %v2071 = vunpack.c.h.b16 %v1556
        %v2072 = vunpack.c.l.b16 %v1557
        %v2073 = vunpack.c.h.b16 %v1557
        %v2074 = vunpack.c.l.b16 %v1558
        %v2075 = vunpack.c.h.b16 %v1558
        %v2076 = vunpack.c.l.b16 %v1559
        %v2077 = vunpack.c.h.b16 %v1559
        %v2078 = vunpack.c.l.b16 %v1560
        %v2079 = vunpack.c.h.b16 %v1560
        %v2080 = vunpack.c.l.b16 %v1561
        %v2081 = vunpack.c.h.b16 %v1561
        %v2082 = vunpack.c.l.b16 %v1562
        %v2083 = vunpack.c.h.b16 %v1562
        %v2084 = vunpack.c.l.b16 %v1563
        %v2085 = vunpack.c.h.b16 %v1563
        %v2086 = vunpack.c.l.b16 %v1564
        %v2087 = vunpack.c.h.b16 %v1564
        %v2088 = vunpack.c.l.b16 %v1565
        %v2089 = vunpack.c.h.b16 %v1565
        %v2090 = vunpack.c.l.b16 %v1566
        %v2091 = vunpack.c.h.b16 %v1566
        %v2092 = vunpack.c.l.b16 %v1567
        %v2093 = vunpack.c.h.b16 %v1567
        %v2094 = vunpack.c.l.b16 %v1568
        %v2095 = vunpack.c.h.b16 %v1568
        %v2096 = vunpack.c.l.b16 %v1569
        %v2097 = vunpack.c.h.b16 %v1569
        %v2098 = vunpack.c.l.b16 %v1570
        %v2099 = vunpack.c.h.b16 %v1570
        %v2100 = vunpack.c.l.b16 %v1571
        %v2101 = vunpack.c.h.b16 %v1571
        %v2102 = vunpack.c.l.b16 %v1572
        %v2103 = vunpack.c.h.b16 %v1572
        %v2104 = vunpack.c.l.b16 %v1573
        %v2105 = vunpack.c.h.b16 %v1573
        %v2106 = vunpack.c.l.b16 %v1574
        %v2107 = vunpack.c.h.b16 %v1574
        %v2108 = vunpack.c.l.b16 %v1575
        %v2109 = vunpack.c.h.b16 %v1575
        %v2110 = vunpack.c.l.b16 %v1576
        %v2111 = vunpack.c.h.b16 %v1576
        %v2112 = vunpack.c.l.b16 %v1577
        %v2113 = vunpack.c.h.b16 %v1577
        %v2114 = vunpack.c.l.b16 %v1578
        %v2115 = vunpack.c.h.b16 %v1578
        %v2116 = vunpack.c.l.b16 %v1579
        %v2117 = vunpack.c.h.b16 %v1579
        %v2118 = vunpack.c.l.b16 %v1580
        %v2119 = vunpack.c.h.b16 %v1580
        %v2120 = vunpack.c.l.b16 %v1581
        %v2121 = vunpack.c.h.b16 %v1581
        %v2122 = vunpack.c.l.b16 %v1582
        %v2123 = vunpack.c.h.b16 %v1582
        %v2124 = vunpack.c.l.b16 %v1583
        %v2125 = vunpack.c.h.b16 %v1583
        %v2126 = vunpack.c.l.b16 %v1584
        %v2127 = vunpack.c.h.b16 %v1584
        %v2128 = vunpack.c.l.b16 %v1585
        %v2129 = vunpack.c.h.b16 %v1585
        %v2130 = vunpack.c.l.b16 %v1586
        %v2131 = vunpack.c.h.b16 %v1586
        %v2132 = vunpack.c.l.b16 %v1587
        %v2133 = vunpack.c.h.b16 %v1587
        %v2134 = vunpack.c.l.b16 %v1588
        %v2135 = vunpack.c.h.b16 %v1588
        %v2136 = vunpack.c.l.b16 %v1589
        %v2137 = vunpack.c.h.b16 %v1589
        %v2138 = vunpack.c.l.b16 %v1590
        %v2139 = vunpack.c.h.b16 %v1590
        %v2140 = vunpack.c.l.b16 %v1591
        %v2141 = vunpack.c.h.b16 %v1591
        %v2142 = vunpack.c.l.b16 %v1592
        %v2143 = vunpack.c.h.b16 %v1592
        %v2144 = vunpack.c.l.b16 %v1593
        %v2145 = vunpack.c.h.b16 %v1593
        %v2146 = vunpack.c.l.b16 %v1594
        %v2147 = vunpack.c.h.b16 %v1594
        %v2148 = vunpack.c.l.b16 %v1595
        %v2149 = vunpack.c.h.b16 %v1595
        %v2150 = vunpack.c.l.b16 %v1596
        %v2151 = vunpack.c.h.b16 %v1596
        %v2152 = vunpack.c.l.b16 %v1597
        %v2153 = vunpack.c.h.b16 %v1597
        %v2154 = vunpack.c.l.b16 %v1598
        %v2155 = vunpack.c.h.b16 %v1598
        %v2156 = vunpack.c.l.b16 %v1599
        %v2157 = vunpack.c.h.b16 %v1599
        %v2158 = vunpack.c.l.b16 %v1600
        %v2159 = vunpack.c.h.b16 %v1600
        %v2160 = vunpack.c.l.b16 %v1601
        %v2161 = vunpack.c.h.b16 %v1601
        %v2162 = vunpack.c.l.b16 %v1602
        %v2163 = vunpack.c.h.b16 %v1602
        %v2164 = vunpack.c.l.b16 %v1603
        %v2165 = vunpack.c.h.b16 %v1603
        %v2166 = vunpack.c.l.b16 %v1604
        %v2167 = vunpack.c.h.b16 %v1604
        %v2168 = vunpack.c.l.b16 %v1605
        %v2169 = vunpack.c.h.b16 %v1605
        %v2170 = vunpack.c.l.b16 %v1606
        %v2171 = vunpack.c.h.b16 %v1606
        %v2172 = vunpack.c.l.b16 %v1607
        %v2173 = vunpack.c.h.b16 %v1607
        %v2174 = vunpack.c.l.b16 %v1608
        %v2175 = vunpack.c.h.b16 %v1608
        %v2176 = vunpack.c.l.b16 %v1609
        %v2177 = vunpack.c.h.b16 %v1609
        %v2178 = vunpack.c.l.b16 %v1610
        %v2179 = vunpack.c.h.b16 %v1610
        %v2180 = vunpack.c.l.b16 %v1611
        %v2181 = vunpack.c.h.b16 %v1611
        %v2182 = vunpack.c.l.b16 %v1612
        %v2183 = vunpack.c.h.b16 %v1612
        %v2184 = vunpack.c.l.b16 %v1613
        %v2185 = vunpack.c.h.b16 %v1613
        %v2186 = vunpack.c.l.b16 %v1614
        %v2187 = vunpack.c.h.b16 %v1614
        %v2188 = vunpack.c.l.b16 %v1615
        %v2189 = vunpack.c.h.b16 %v1615
        %v2190 = vunpack.c.l.b16 %v1616
        %v2191 = vunpack.c.h.b16 %v1616
        %v2192 = vunpack.c.l.b16 %v1617
        %v2193 = vunpack.c.h.b16 %v1617
        %v2194 = vunpack.c.l.b16 %v1618
        %v2195 = vunpack.c.h.b16 %v1618
        %v2196 = vunpack.c.l.b16 %v1619
        %v2197 = vunpack.c.h.b16 %v1619
        %v2198 = vunpack.c.l.b16 %v1620
        %v2199 = vunpack.c.h.b16 %v1620
        %v2200 = vunpack.c.l.b16 %v1621
        %v2201 = vunpack.c.h.b16 %v1621
        %v2202 = vunpack.c.l.b16 %v1622
        %v2203 = vunpack.c.h.b16 %v1622
        %v2204 = vunpack.c.l.b16 %v1623
        %v2205 = vunpack.c.h.b16 %v1623
        %v2206 = vunpack.c.l.b16 %v1624
        %v2207 = vunpack.c.h.b16 %v1624
        %v2208 = vunpack.c.l.b16 %v1625
        %v2209 = vunpack.c.h.b16 %v1625
        %v2210 = vunpack.c.l.b16 %v1626
        %v2211 = vunpack.c.h.b16 %v1626
        %v2212 = vunpack.c.l.b16 %v1627
        %v2213 = vunpack.c.h.b16 %v1627
        %v2214 = vunpack.c.l.b16 %v1628
        %v2215 = vunpack.c.h.b16 %v1628
        %v2216 = vunpack.c.l.b16 %v1629
        %v2217 = vunpack.c.h.b16 %v1629
        %v2218 = vunpack.c.l.b16 %v1630
        %v2219 = vunpack.c.h.b16 %v1630
        %v2220 = vunpack.c.l.b16 %v1631
        %v2221 = vunpack.c.h.b16 %v1631
        %v2222 = vunpack.c.l.b16 %v1632
        %v2223 = vunpack.c.h.b16 %v1632
        %v2224 = vunpack.c.l.b16 %v1633
        %v2225 = vunpack.c.h.b16 %v1633
        %v2226 = vunpack.c.l.b16 %v1634
        %v2227 = vunpack.c.h.b16 %v1634
        %v2228 = vunpack.c.l.b16 %v1635
        %v2229 = vunpack.c.h.b16 %v1635
        %v2230 = vunpack.c.l.b16 %v1636
        %v2231 = vunpack.c.h.b16 %v1636
        %v2232 = vunpack.c.l.b16 %v1637
        %v2233 = vunpack.c.h.b16 %v1637
        %v2234 = vunpack.c.l.b16 %v1638
        %v2235 = vunpack.c.h.b16 %v1638
        %v2236 = vunpack.c.l.b16 %v1639
        %v2237 = vunpack.c.h.b16 %v1639
        %v2238 = vunpack.c.l.b16 %v1640
        %v2239 = vunpack.c.h.b16 %v1640
        %v2240 = vunpack.c.l.b16 %v1641
        %v2241 = vunpack.c.h.b16 %v1641
        %v2242 = vunpack.c.l.b16 %v1642
        %v2243 = vunpack.c.h.b16 %v1642
        %v2244 = vunpack.c.l.b16 %v1643
        %v2245 = vunpack.c.h.b16 %v1643
        %v2246 = vunpack.c.l.b16 %v1644
        %v2247 = vunpack.c.h.b16 %v1644
        %v2248 = vunpack.c.l.b16 %v1645
        %v2249 = vunpack.c.h.b16 %v1645
        %v2250 = vunpack.c.l.b16 %v1646
        %v2251 = vunpack.c.h.b16 %v1646
        %v2252 = vunpack.c.l.b16 %v1647
        %v2253 = vunpack.c.h.b16 %v1647
        %v2254 = vunpack.c.l.b16 %v1648
        %v2255 = vunpack.c.h.b16 %v1648
        %v2256 = vunpack.c.l.b16 %v1649
        %v2257 = vunpack.c.h.b16 %v1649
        %v2258 = vunpack.c.l.b16 %v1650
        %v2259 = vunpack.c.h.b16 %v1650
        %v2260 = vunpack.c.l.b16 %v1651
        %v2261 = vunpack.c.h.b16 %v1651
        %v2262 = vunpack.c.l.b16 %v1652
        %v2263 = vunpack.c.h.b16 %v1652
        %v2264 = vunpack.c.l.b16 %v1653
        %v2265 = vunpack.c.h.b16 %v1653
        %v2266 = vunpack.c.l.b16 %v1654
        %v2267 = vunpack.c.h.b16 %v1654
        %v2268 = vunpack.c.l.b16 %v1655
        %v2269 = vunpack.c.h.b16 %v1655
        %v2270 = vunpack.c.l.b16 %v1656
        %v2271 = vunpack.c.h.b16 %v1656
        %v2272 = vunpack.c.l.b16 %v1657
        %v2273 = vunpack.c.h.b16 %v1657
        %v2274 = vunpack.c.l.b16 %v1658
        %v2275 = vunpack.c.h.b16 %v1658
        %v2276 = vunpack.c.l.b16 %v1659
        %v2277 = vunpack.c.h.b16 %v1659
        %v2278 = vunpack.c.l.b16 %v1660
        %v2279 = vunpack.c.h.b16 %v1660
        %v2280 = vunpack.c.l.b16 %v1661
        %v2281 = vunpack.c.h.b16 %v1661
        %v2282 = vunpack.c.l.b16 %v1662
        %v2283 = vunpack.c.h.b16 %v1662
        %v2284 = vunpack.c.l.b16 %v1663
        %v2285 = vunpack.c.h.b16 %v1663
        %v2286 = vunpack.c.l.b16 %v1664
        %v2287 = vunpack.c.h.b16 %v1664
        %v2288 = vunpack.c.l.b16 %v1665
        %v2289 = vunpack.c.h.b16 %v1665
        %v2290 = vunpack.c.l.b16 %v1666
        %v2291 = vunpack.c.h.b16 %v1666
        %v2292 = vunpack.c.l.b16 %v1667
        %v2293 = vunpack.c.h.b16 %v1667
        %v2294 = vunpack.c.l.b16 %v1668
        %v2295 = vunpack.c.h.b16 %v1668
        %v2296 = vunpack.c.l.b16 %v1669
        %v2297 = vunpack.c.h.b16 %v1669
        %v2298 = vunpack.c.l.b16 %v1670
        %v2299 = vunpack.c.h.b16 %v1670
        %v2300 = vunpack.c.l.b16 %v1671
        %v2301 = vunpack.c.h.b16 %v1671
        %v2302 = vunpack.c.l.b16 %v1672
        %v2303 = vunpack.c.h.b16 %v1672
        %v2304 = vunpack.c.l.b16 %v1673
        %v2305 = vunpack.c.h.b16 %v1673
        %v2306 = vunpack.c.l.b16 %v1674
        %v2307 = vunpack.c.h.b16 %v1674
        %v2308 = vunpack.c.l.b16 %v1675
        %v2309 = vunpack.c.h.b16 %v1675
        %v2310 = vunpack.c.l.b16 %v1676
        %v2311 = vunpack.c.h.b16 %v1676
        %v2312 = vunpack.c.l.b16 %v1677
        %v2313 = vunpack.c.h.b16 %v1677
        %v2314 = vunpack.c.l.b16 %v1678
        %v2315 = vunpack.c.h.b16 %v1678
        %v2316 = vunpack.c.l.b16 %v1679
        %v2317 = vunpack.c.h.b16 %v1679
        %v2318 = vunpack.c.l.b16 %v1680
        %v2319 = vunpack.c.h.b16 %v1680
        %v2320 = vunpack.c.l.b16 %v1681
        %v2321 = vunpack.c.h.b16 %v1681
        %v2322 = vunpack.c.l.b16 %v1682
        %v2323 = vunpack.c.h.b16 %v1682
        %v2324 = vunpack.c.l.b16 %v1683
        %v2325 = vunpack.c.h.b16 %v1683
        %v2326 = vunpack.c.l.b16 %v1684
        %v2327 = vunpack.c.h.b16 %v1684
        %v2328 = vunpack.c.l.b16 %v1685
        %v2329 = vunpack.c.h.b16 %v1685
        %v2330 = vunpack.c.l.b16 %v1686
        %v2331 = vunpack.c.h.b16 %v1686
        %v2332 = vunpack.c.l.b16 %v1687
        %v2333 = vunpack.c.h.b16 %v1687
        %v2334 = vunpack.c.l.b16 %v1688
        %v2335 = vunpack.c.h.b16 %v1688
        %v2336 = vunpack.c.l.b16 %v1689
        %v2337 = vunpack.c.h.b16 %v1689
        %v2338 = vunpack.c.l.b16 %v1690
        %v2339 = vunpack.c.h.b16 %v1690
        %v2340 = vunpack.c.l.b16 %v1691
        %v2341 = vunpack.c.h.b16 %v1691
        %v2342 = vunpack.c.l.b16 %v1692
        %v2343 = vunpack.c.h.b16 %v1692
        %v2344 = vunpack.c.l.b16 %v1693
        %v2345 = vunpack.c.h.b16 %v1693
        %v2346 = vunpack.c.l.b16 %v1694
        %v2347 = vunpack.c.h.b16 %v1694
        %v2348 = vunpack.c.l.b16 %v1695
        %v2349 = vunpack.c.h.b16 %v1695
        %v2350 = vunpack.c.l.b16 %v1696
        %v2351 = vunpack.c.h.b16 %v1696
        %v2352 = vunpack.c.l.b16 %v1697
        %v2353 = vunpack.c.h.b16 %v1697
        %v2354 = vunpack.c.l.b16 %v1698
        %v2355 = vunpack.c.h.b16 %v1698
        %v2356 = vunpack.c.l.b16 %v1699
        %v2357 = vunpack.c.h.b16 %v1699
        %v2358 = vunpack.c.l.b16 %v1700
        %v2359 = vunpack.c.h.b16 %v1700
        %v2360 = vunpack.c.l.b16 %v1701
        %v2361 = vunpack.c.h.b16 %v1701
        %v2362 = vunpack.c.l.b16 %v1702
        %v2363 = vunpack.c.h.b16 %v1702
        %v2364 = vunpack.c.l.b16 %v1703
        %v2365 = vunpack.c.h.b16 %v1703
        %v2366 = vunpack.c.l.b16 %v1704
        %v2367 = vunpack.c.h.b16 %v1704
        %v2368 = vunpack.c.l.b16 %v1705
        %v2369 = vunpack.c.h.b16 %v1705
        %v2370 = vunpack.c.l.b16 %v1706
        %v2371 = vunpack.c.h.b16 %v1706
        %v2372 = vunpack.c.l.b16 %v1707
        %v2373 = vunpack.c.h.b16 %v1707
        %v2374 = vunpack.c.l.b16 %v1708
        %v2375 = vunpack.c.h.b16 %v1708
        %v2376 = vunpack.c.l.b16 %v1709
        %v2377 = vunpack.c.h.b16 %v1709
        %v2378 = vunpack.c.l.b16 %v1710
        %v2379 = vunpack.c.h.b16 %v1710
        %v2380 = vunpack.c.l.b16 %v1711
        %v2381 = vunpack.c.h.b16 %v1711
        %v2382 = vunpack.c.l.b16 %v1712
        %v2383 = vunpack.c.h.b16 %v1712
        %v2384 = vunpack.c.l.b16 %v1713
        %v2385 = vunpack.c.h.b16 %v1713
        %v2386 = vunpack.c.l.b16 %v1714
        %v2387 = vunpack.c.h.b16 %v1714
        %v2388 = vunpack.c.l.b16 %v1715
        %v2389 = vunpack.c.h.b16 %v1715
        %v2390 = vunpack.c.l.b16 %v1716
        %v2391 = vunpack.c.h.b16 %v1716
        %v2392 = vunpack.c.l.b16 %v1717
        %v2393 = vunpack.c.h.b16 %v1717
        %v2394 = vunpack.c.l.b16 %v1718
        %v2395 = vunpack.c.h.b16 %v1718
        %v2396 = vunpack.c.l.b16 %v1719
        %v2397 = vunpack.c.h.b16 %v1719
        %v2398 = vunpack.c.l.b16 %v1720
        %v2399 = vunpack.c.h.b16 %v1720
        %v2400 = vunpack.c.l.b16 %v1721
        %v2401 = vunpack.c.h.b16 %v1721
        %v2402 = vunpack.c.l.b16 %v1722
        %v2403 = vunpack.c.h.b16 %v1722
        %v2404 = vunpack.c.l.b16 %v1723
        %v2405 = vunpack.c.h.b16 %v1723
        %v2406 = vunpack.c.l.b16 %v1724
        %v2407 = vunpack.c.h.b16 %v1724
        %v2408 = vunpack.c.l.b16 %v1725
        %v2409 = vunpack.c.h.b16 %v1725
        %v2410 = vunpack.c.l.b16 %v1726
        %v2411 = vunpack.c.h.b16 %v1726
        %v2412 = vunpack.c.l.b16 %v1727
        %v2413 = vunpack.c.h.b16 %v1727
        %v2414 = vunpack.c.l.b16 %v1728
        %v2415 = vunpack.c.h.b16 %v1728
        %v2416 = vunpack.c.l.b16 %v1729
        %v2417 = vunpack.c.h.b16 %v1729
        %v2418 = vunpack.c.l.b16 %v1730
        %v2419 = vunpack.c.h.b16 %v1730
        %v2420 = vunpack.c.l.b16 %v1731
        %v2421 = vunpack.c.h.b16 %v1731
        %v2422 = vunpack.c.l.b16 %v1732
        %v2423 = vunpack.c.h.b16 %v1732
        %v2424 = vunpack.c.l.b16 %v1733
        %v2425 = vunpack.c.h.b16 %v1733
        %v2426 = vunpack.c.l.b16 %v1734
        %v2427 = vunpack.c.h.b16 %v1734
        %v2428 = vunpack.c.l.b16 %v1735
        %v2429 = vunpack.c.h.b16 %v1735
        %v2430 = vunpack.c.l.b16 %v1736
        %v2431 = vunpack.c.h.b16 %v1736
        %v2432 = vunpack.c.l.b16 %v1737
        %v2433 = vunpack.c.h.b16 %v1737
        %v2434 = vunpack.c.l.b16 %v1738
        %v2435 = vunpack.c.h.b16 %v1738
        %v2436 = vunpack.c.l.b16 %v1739
        %v2437 = vunpack.c.h.b16 %v1739
        %v2438 = vunpack.c.l.b16 %v1740
        %v2439 = vunpack.c.h.b16 %v1740
        %v2440 = vunpack.c.l.b16 %v1741
        %v2441 = vunpack.c.h.b16 %v1741
        %v2442 = vunpack.c.l.b16 %v1742
        %v2443 = vunpack.c.h.b16 %v1742
        %v2444 = vunpack.c.l.b16 %v1743
        %v2445 = vunpack.c.h.b16 %v1743
        %v2446 = vunpack.c.l.b16 %v1744
        %v2447 = vunpack.c.h.b16 %v1744
        %v2448 = vunpack.c.l.b16 %v1745
        %v2449 = vunpack.c.h.b16 %v1745
        %v2450 = vunpack.c.l.b16 %v1746
        %v2451 = vunpack.c.h.b16 %v1746
        %v2452 = vunpack.c.l.b16 %v1747
        %v2453 = vunpack.c.h.b16 %v1747
        %v2454 = vunpack.c.l.b16 %v1748
        %v2455 = vunpack.c.h.b16 %v1748
        %v2456 = vunpack.c.l.b16 %v1749
        %v2457 = vunpack.c.h.b16 %v1749
        %v2458 = vunpack.c.l.b16 %v1750
        %v2459 = vunpack.c.h.b16 %v1750
        %v2460 = vunpack.c.l.b16 %v1751
        %v2461 = vunpack.c.h.b16 %v1751
        %v2462 = vunpack.c.l.b16 %v1752
        %v2463 = vunpack.c.h.b16 %v1752
        %v2464 = vunpack.c.l.b16 %v1753
        %v2465 = vunpack.c.h.b16 %v1753
        %v2466 = vunpack.c.l.b16 %v1754
        %v2467 = vunpack.c.h.b16 %v1754
        %v2468 = vunpack.c.l.b16 %v1755
        %v2469 = vunpack.c.h.b16 %v1755
        %v2470 = vunpack.c.l.b16 %v1756
        %v2471 = vunpack.c.h.b16 %v1756
        %v2472 = vunpack.c.l.b16 %v1757
        %v2473 = vunpack.c.h.b16 %v1757
        %v2474 = vunpack.c.l.b16 %v1758
        %v2475 = vunpack.c.h.b16 %v1758
        %v2476 = vunpack.c.l.b16 %v1759
        %v2477 = vunpack.c.h.b16 %v1759
        %v2478 = vunpack.c.l.b16 %v1760
        %v2479 = vunpack.c.h.b16 %v1760
        %v2480 = vunpack.c.l.b16 %v1761
        %v2481 = vunpack.c.h.b16 %v1761
        %v2482 = vunpack.c.l.b16 %v1762
        %v2483 = vunpack.c.h.b16 %v1762
        %v2484 = vunpack.c.l.b16 %v1763
        %v2485 = vunpack.c.h.b16 %v1763
        %v2486 = vunpack.c.l.b16 %v1764
        %v2487 = vunpack.c.h.b16 %v1764
        %v2488 = vunpack.c.l.b16 %v1765
        %v2489 = vunpack.c.h.b16 %v1765
        %v2490 = vunpack.c.l.b16 %v1766
        %v2491 = vunpack.c.h.b16 %v1766
        %v2492 = vunpack.c.l.b16 %v1767
        %v2493 = vunpack.c.h.b16 %v1767
        %v2494 = vunpack.c.l.b16 %v1768
        %v2495 = vunpack.c.h.b16 %v1768
        %v2496 = vunpack.c.l.b16 %v1769
        %v2497 = vunpack.c.h.b16 %v1769
        %v2498 = vunpack.c.l.b16 %v1770
        %v2499 = vunpack.c.h.b16 %v1770
        %v2500 = vunpack.c.l.b16 %v1771
        %v2501 = vunpack.c.h.b16 %v1771
        %v2502 = vunpack.c.l.b16 %v1772
        %v2503 = vunpack.c.h.b16 %v1772
        %v2504 = vunpack.c.l.b16 %v1773
        %v2505 = vunpack.c.h.b16 %v1773
        %v2506 = vunpack.c.l.b16 %v1774
        %v2507 = vunpack.c.h.b16 %v1774
        %v2508 = vunpack.c.l.b16 %v1775
        %v2509 = vunpack.c.h.b16 %v1775
        %v2510 = vunpack.c.l.b16 %v1776
        %v2511 = vunpack.c.h.b16 %v1776
        %v2512 = vunpack.c.l.b16 %v1777
        %v2513 = vunpack.c.h.b16 %v1777
        %v2514 = vunpack.c.l.b16 %v1778
        %v2515 = vunpack.c.h.b16 %v1778
        %v2516 = vunpack.c.l.b16 %v1779
        %v2517 = vunpack.c.h.b16 %v1779
        %v2518 = vunpack.c.l.b16 %v1780
        %v2519 = vunpack.c.h.b16 %v1780
        %v2520 = vunpack.c.l.b16 %v1781
        %v2521 = vunpack.c.h.b16 %v1781
        %v2522 = vunpack.c.l.b16 %v1782
        %v2523 = vunpack.c.h.b16 %v1782
        %v2524 = vunpack.c.l.b16 %v1783
        %v2525 = vunpack.c.h.b16 %v1783
        %v2526 = vunpack.c.l.b16 %v1784
        %v2527 = vunpack.c.h.b16 %v1784
        %v2528 = vunpack.c.l.b16 %v1785
        %v2529 = vunpack.c.h.b16 %v1785
        %v2530 = vunpack.c.l.b16 %v1786
        %v2531 = vunpack.c.h.b16 %v1786
        %v2532 = vunpack.c.l.b16 %v1787
        %v2533 = vunpack.c.h.b16 %v1787
        %v2534 = vunpack.c.l.b16 %v1788
        %v2535 = vunpack.c.h.b16 %v1788
        %v2536 = vunpack.c.l.b16 %v1789
        %v2537 = vunpack.c.h.b16 %v1789
        %v2538 = vunpack.c.l.b16 %v1790
        %v2539 = vunpack.c.h.b16 %v1790
        %v2540 = vunpack.c.l.b16 %v1791
        %v2541 = vunpack.c.h.b16 %v1791
        %v2542 = vunpack.c.l.b16 %v1792
        %v2543 = vunpack.c.h.b16 %v1792
        %v2544 = vunpack.c.l.b16 %v1793
        %v2545 = vunpack.c.h.b16 %v1793
        %v2546 = vunpack.c.l.b16 %v1794
        %v2547 = vunpack.c.h.b16 %v1794
        %v2548 = vunpack.c.l.b16 %v1795
        %v2549 = vunpack.c.h.b16 %v1795
        %v2550 = vunpack.c.l.b16 %v1796
        %v2551 = vunpack.c.h.b16 %v1796
        %v2552 = vunpack.c.l.b16 %v1797
        %v2553 = vunpack.c.h.b16 %v1797
        %v2554 = vunpack.c.l.b16 %v1798
        %v2555 = vunpack.c.h.b16 %v1798
        %v2556 = vunpack.c.l.b16 %v1799
        %v2557 = vunpack.c.h.b16 %v1799
        %v2558 = vunpack.c.l.b16 %v1800
        %v2559 = vunpack.c.h.b16 %v1800
        %v2560 = vunpack.c.l.b16 %v1801
        %v2561 = vunpack.c.h.b16 %v1801
        %v2562 = vunpack.c.l.b16 %v1802
        %v2563 = vunpack.c.h.b16 %v1802
        %v2564 = vunpack.c.l.b16 %v1803
        %v2565 = vunpack.c.h.b16 %v1803
        %v2566 = vunpack.c.l.b16 %v1804
        %v2567 = vunpack.c.h.b16 %v1804
        %v2568 = vunpack.c.l.b16 %v1805
        %v2569 = vunpack.c.h.b16 %v1805
        %v2570 = vunpack.c.l.b16 %v1806
        %v2571 = vunpack.c.h.b16 %v1806
        %v2572 = vunpack.c.l.b16 %v1807
        %v2573 = vunpack.c.h.b16 %v1807
        %v2574 = vunpack.c.l.b16 %v1808
        %v2575 = vunpack.c.h.b16 %v1808
        %v2576 = vunpack.c.l.b16 %v1809
        %v2577 = vunpack.c.h.b16 %v1809
        %v2578 = vpack.c.b16 %v2098, %v2066
        %v2579 = vpack.c.b16 %v2099, %v2067
        %v2580 = vpack.c.b16 %v2100, %v2068
        %v2581 = vpack.c.b16 %v2101, %v2069
        %v2582 = vpack.c.b16 %v2102, %v2070
        %v2583 = vpack.c.b16 %v2103, %v2071
        %v2584 = vpack.c.b16 %v2104, %v2072
        %v2585 = vpack.c.b16 %v2105, %v2073
        %v2586 = vpack.c.b16 %v2106, %v2074
        %v2587 = vpack.c.b16 %v2107, %v2075
        %v2588 = vpack.c.b16 %v2108, %v2076
        %v2589 = vpack.c.b16 %v2109, %v2077
        %v2590 = vpack.c.b16 %v2110, %v2078
        %v2591 = vpack.c.b16 %v2111, %v2079
        %v2592 = vpack.c.b16 %v2112, %v2080
        %v2593 = vpack.c.b16 %v2113, %v2081
        %v2594 = vpack.c.b16 %v2114, %v2082
        %v2595 = vpack.c.b16 %v2115, %v2083
        %v2596 = vpack.c.b16 %v2116, %v2084
        %v2597 = vpack.c.b16 %v2117, %v2085
        %v2598 = vpack.c.b16 %v2118, %v2086
        %v2599 = vpack.c.b16 %v2119, %v2087
        %v2600 = vpack.c.b16 %v2120, %v2088
        %v2601 = vpack.c.b16 %v2121, %v2089
        %v2602 = vpack.c.b16 %v2122, %v2090
        %v2603 = vpack.c.b16 %v2123, %v2091
        %v2604 = vpack.c.b16 %v2124, %v2092
        %v2605 = vpack.c.b16 %v2125, %v2093
        %v2606 = vpack.c.b16 %v2126, %v2094
        %v2607 = vpack.c.b16 %v2127, %v2095
        %v2608 = vpack.c.b16 %v2128, %v2096
        %v2609 = vpack.c.b16 %v2129, %v2097
        %v2610 = vpack.c.b16 %v2162, %v2130
        %v2611 = vpack.c.b16 %v2163, %v2131
        %v2612 = vpack.c.b16 %v2164, %v2132
        %v2613 = vpack.c.b16 %v2165, %v2133
        %v2614 = vpack.c.b16 %v2166, %v2134
        %v2615 = vpack.c.b16 %v2167, %v2135
        %v2616 = vpack.c.b16 %v2168, %v2136
        %v2617 = vpack.c.b16 %v2169, %v2137
        %v2618 = vpack.c.b16 %v2170, %v2138
        %v2619 = vpack.c.b16 %v2171, %v2139
        %v2620 = vpack.c.b16 %v2172, %v2140
        %v2621 = vpack.c.b16 %v2173, %v2141
        %v2622 = vpack.c.b16 %v2174, %v2142
        %v2623 = vpack.c.b16 %v2175, %v2143
        %v2624 = vpack.c.b16 %v2176, %v2144
        %v2625 = vpack.c.b16 %v2177, %v2145
        %v2626 = vpack.c.b16 %v2178, %v2146
        %v2627 = vpack.c.b16 %v2179, %v2147
        %v2628 = vpack.c.b16 %v2180, %v2148
        %v2629 = vpack.c.b16 %v2181, %v2149
        %v2630 = vpack.c.b16 %v2182, %v2150
        %v2631 = vpack.c.b16 %v2183, %v2151
        %v2632 = vpack.c.b16 %v2184, %v2152
        %v2633 = vpack.c.b16 %v2185, %v2153
        %v2634 = vpack.c.b16 %v2186, %v2154
        %v2635 = vpack.c.b16 %v2187, %v2155
        %v2636 = vpack.c.b16 %v2188, %v2156
        %v2637 = vpack.c.b16 %v2189, %v2157
        %v2638 = vpack.c.b16 %v2190, %v2158
        %v2639 = vpack.c.b16 %v2191, %v2159
        %v2640 = vpack.c.b16 %v2192, %v2160
        %v2641 = vpack.c.b16 %v2193, %v2161
        %v2642 = vpack.c.b16 %v2226, %v2194
        %v2643 = vpack.c.b16 %v2227, %v2195
        %v2644 = vpack.c.b16 %v2228, %v2196
        %v2645 = vpack.c.b16 %v2229, %v2197
        %v2646 = vpack.c.b16 %v2230, %v2198
        %v2647 = vpack.c.b16 %v2231, %v2199
        %v2648 = vpack.c.b16 %v2232, %v2200
        %v2649 = vpack.c.b16 %v2233, %v2201
        %v2650 = vpack.c.b16 %v2234, %v2202
        %v2651 = vpack.c.b16 %v2235, %v2203
        %v2652 = vpack.c.b16 %v2236, %v2204
        %v2653 = vpack.c.b16 %v2237, %v2205
        %v2654 = vpack.c.b16 %v2238, %v2206
        %v2655 = vpack.c.b16 %v2239, %v2207
        %v2656 = vpack.c.b16 %v2240, %v2208
        %v2657 = vpack.c.b16 %v2241, %v2209
        %v2658 = vpack.c.b16 %v2242, %v2210
        %v2659 = vpack.c.b16 %v2243, %v2211
        %v2660 = vpack.c.b16 %v2244, %v2212
        %v2661 = vpack.c.b16 %v2245, %v2213
        %v2662 = vpack.c.b16 %v2246, %v2214
        %v2663 = vpack.c.b16 %v2247, %v2215
        %v2664 = vpack.c.b16 %v2248, %v2216
        %v2665 = vpack.c.b16 %v2249, %v2217
        %v2666 = vpack.c.b16 %v2250, %v2218
        %v2667 = vpack.c.b16 %v2251, %v2219
        %v2668 = vpack.c.b16 %v2252, %v2220
        %v2669 = vpack.c.b16 %v2253, %v2221
        %v2670 = vpack.c.b16 %v2254, %v2222
        %v2671 = vpack.c.b16 %v2255, %v2223
        %v2672 = vpack.c.b16 %v2256, %v2224
        %v2673 = vpack.c.b16 %v2257, %v2225
        %v2674 = vpack.c.b16 %v2290, %v2258
        %v2675 = vpack.c.b16 %v2291, %v2259
        %v2676 = vpack.c.b16 %v2292, %v2260
        %v2677 = vpack.c.b16 %v2293, %v2261
        %v2678 = vpack.c.b16 %v2294, %v2262
        %v2679 = vpack.c.b16 %v2295, %v2263
        %v2680 = vpack.c.b16 %v2296, %v2264
        %v2681 = vpack.c.b16 %v2297, %v2265
        %v2682 = vpack.c.b16 %v2298, %v2266
        %v2683 = vpack.c.b16 %v2299, %v2267
        %v2684 = vpack.c.b16 %v2300, %v2268
        %v2685 = vpack.c.b16 %v2301, %v2269
        %v2686 = vpack.c.b16 %v2302, %v2270
        %v2687 = vpack.c.b16 %v2303, %v2271
        %v2688 = vpack.c.b16 %v2304, %v2272
        %v2689 = vpack.c.b16 %v2305, %v2273
        %v2690 = vpack.c.b16 %v2306, %v2274
        %v2691 = vpack.c.b16 %v2307, %v2275
        %v2692 = vpack.c.b16 %v2308, %v2276
        %v2693 = vpack.c.b16 %v2309, %v2277
        %v2694 = vpack.c.b16 %v2310, %v2278
        %v2695 = vpack.c.b16 %v2311, %v2279
        %v2696 = vpack.c.b16 %v2312, %v2280
        %v2697 = vpack.c.b16 %v2313, %v2281
        %v2698 = vpack.c.b16 %v2314, %v2282
        %v2699 = vpack.c.b16 %v2315, %v2283
        %v2700 = vpack.c.b16 %v2316, %v2284
        %v2701 = vpack.c.b16 %v2317, %v2285
        %v2702 = vpack.c.b16 %v2318, %v2286
        %v2703 = vpack.c.b16 %v2319, %v2287
        %v2704 = vpack.c.b16 %v2320, %v2288
        %v2705 = vpack.c.b16 %v2321, %v2289
        %v2706 = vpack.c.b16 %v2354, %v2322
        %v2707 = vpack.c.b16 %v2355, %v2323
        %v2708 = vpack.c.b16 %v2356, %v2324
        %v2709 = vpack.c.b16 %v2357, %v2325
        %v2710 = vpack.c.b16 %v2358, %v2326
        %v2711 = vpack.c.b16 %v2359, %v2327
        %v2712 = vpack.c.b16 %v2360, %v2328
        %v2713 = vpack.c.b16 %v2361, %v2329
        %v2714 = vpack.c.b16 %v2362, %v2330
        %v2715 = vpack.c.b16 %v2363, %v2331
        %v2716 = vpack.c.b16 %v2364, %v2332
        %v2717 = vpack.c.b16 %v2365, %v2333
        %v2718 = vpack.c.b16 %v2366, %v2334
        %v2719 = vpack.c.b16 %v2367, %v2335
        %v2720 = vpack.c.b16 %v2368, %v2336
        %v2721 = vpack.c.b16 %v2369, %v2337
        %v2722 = vpack.c.b16 %v2370, %v2338
        %v2723 = vpack.c.b16 %v2371, %v2339
        %v2724 = vpack.c.b16 %v2372, %v2340
        %v2725 = vpack.c.b16 %v2373, %v2341
        %v2726 = vpack.c.b16 %v2374, %v2342
        %v2727 = vpack.c.b16 %v2375, %v2343
        %v2728 = vpack.c.b16 %v2376, %v2344
        %v2729 = vpack.c.b16 %v2377, %v2345
        %v2730 = vpack.c.b16 %v2378, %v2346
        %v2731 = vpack.c.b16 %v2379, %v2347
        %v2732 = vpack.c.b16 %v2380, %v2348
        %v2733 = vpack.c.b16 %v2381, %v2349
        %v2734 = vpack.c.b16 %v2382, %v2350
        %v2735 = vpack.c.b16 %v2383, %v2351
        %v2736 = vpack.c.b16 %v2384, %v2352
        %v2737 = vpack.c.b16 %v2385, %v2353
        %v2738 = vpack.c.b16 %v2418, %v2386
        %v2739 = vpack.c.b16 %v2419, %v2387
        %v2740 = vpack.c.b16 %v2420, %v2388
        %v2741 = vpack.c.b16 %v2421, %v2389
        %v2742 = vpack.c.b16 %v2422, %v2390
        %v2743 = vpack.c.b16 %v2423, %v2391
        %v2744 = vpack.c.b16 %v2424, %v2392
        %v2745 = vpack.c.b16 %v2425, %v2393
        %v2746 = vpack.c.b16 %v2426, %v2394
        %v2747 = vpack.c.b16 %v2427, %v2395
        %v2748 = vpack.c.b16 %v2428, %v2396
        %v2749 = vpack.c.b16 %v2429, %v2397
        %v2750 = vpack.c.b16 %v2430, %v2398
        %v2751 = vpack.c.b16 %v2431, %v2399
        %v2752 = vpack.c.b16 %v2432, %v2400
        %v2753 = vpack.c.b16 %v2433, %v2401
        %v2754 = vpack.c.b16 %v2434, %v2402
        %v2755 = vpack.c.b16 %v2435, %v2403
        %v2756 = vpack.c.b16 %v2436, %v2404
        %v2757 = vpack.c.b16 %v2437, %v2405
        %v2758 = vpack.c.b16 %v2438, %v2406
        %v2759 = vpack.c.b16 %v2439, %v2407
        %v2760 = vpack.c.b16 %v2440, %v2408
        %v2761 = vpack.c.b16 %v2441, %v2409
        %v2762 = vpack.c.b16 %v2442, %v2410
        %v2763 = vpack.c.b16 %v2443, %v2411
        %v2764 = vpack.c.b16 %v2444, %v2412
        %v2765 = vpack.c.b16 %v2445, %v2413
        %v2766 = vpack.c.b16 %v2446, %v2414
        %v2767 = vpack.c.b16 %v2447, %v2415
        %v2768 = vpack.c.b16 %v2448, %v2416
        %v2769 = vpack.c.b16 %v2449, %v2417
        %v2770 = vpack.c.b16 %v2482, %v2450
        %v2771 = vpack.c.b16 %v2483, %v2451
        %v2772 = vpack.c.b16 %v2484, %v2452
        %v2773 = vpack.c.b16 %v2485, %v2453
        %v2774 = vpack.c.b16 %v2486, %v2454
        %v2775 = vpack.c.b16 %v2487, %v2455
        %v2776 = vpack.c.b16 %v2488, %v2456
        %v2777 = vpack.c.b16 %v2489, %v2457
        %v2778 = vpack.c.b16 %v2490, %v2458
        %v2779 = vpack.c.b16 %v2491, %v2459
        %v2780 = vpack.c.b16 %v2492, %v2460
        %v2781 = vpack.c.b16 %v2493, %v2461
        %v2782 = vpack.c.b16 %v2494, %v2462
        %v2783 = vpack.c.b16 %v2495, %v2463
        %v2784 = vpack.c.b16 %v2496, %v2464
        %v2785 = vpack.c.b16 %v2497, %v2465
        %v2786 = vpack.c.b16 %v2498, %v2466
        %v2787 = vpack.c.b16 %v2499, %v2467
        %v2788 = vpack.c.b16 %v2500, %v2468
        %v2789 = vpack.c.b16 %v2501, %v2469
        %v2790 = vpack.c.b16 %v2502, %v2470
        %v2791 = vpack.c.b16 %v2503, %v2471
        %v2792 = vpack.c.b16 %v2504, %v2472
        %v2793 = vpack.c.b16 %v2505, %v2473
        %v2794 = vpack.c.b16 %v2506, %v2474
        %v2795 = vpack.c.b16 %v2507, %v2475
        %v2796 = vpack.c.b16 %v2508, %v2476
        %v2797 = vpack.c.b16 %v2509, %v2477
        %v2798 = vpack.c.b16 %v2510, %v2478
        %v2799 = vpack.c.b16 %v2511, %v2479
        %v2800 = vpack.c.b16 %v2512, %v2480
        %v2801 = vpack.c.b16 %v2513, %v2481
        %v2802 = vpack.c.b16 %v2546, %v2514
        %v2803 = vpack.c.b16 %v2547, %v2515
        %v2804 = vpack.c.b16 %v2548, %v2516
        %v2805 = vpack.c.b16 %v2549, %v2517
        %v2806 = vpack.c.b16 %v2550, %v2518
        %v2807 = vpack.c.b16 %v2551, %v2519
        %v2808 = vpack.c.b16 %v2552, %v2520
        %v2809 = vpack.c.b16 %v2553, %v2521
        %v2810 = vpack.c.b16 %v2554, %v2522
        %v2811 = vpack.c.b16 %v2555, %v2523
        %v2812 = vpack.c.b16 %v2556, %v2524
        %v2813 = vpack.c.b16 %v2557, %v2525
        %v2814 = vpack.c.b16 %v2558, %v2526
        %v2815 = vpack.c.b16 %v2559, %v2527
        %v2816 = vpack.c.b16 %v2560, %v2528
        %v2817 = vpack.c.b16 %v2561, %v2529
        %v2818 = vpack.c.b16 %v2562, %v2530
        %v2819 = vpack.c.b16 %v2563, %v2531
        %v2820 = vpack.c.b16 %v2564, %v2532
        %v2821 = vpack.c.b16 %v2565, %v2533
        %v2822 = vpack.c.b16 %v2566, %v2534
        %v2823 = vpack.c.b16 %v2567, %v2535
        %v2824 = vpack.c.b16 %v2568, %v2536
        %v2825 = vpack.c.b16 %v2569, %v2537
        %v2826 = vpack.c.b16 %v2570, %v2538
        %v2827 = vpack.c.b16 %v2571, %v2539
        %v2828 = vpack.c.b16 %v2572, %v2540
        %v2829 = vpack.c.b16 %v2573, %v2541
        %v2830 = vpack.c.b16 %v2574, %v2542
        %v2831 = vpack.c.b16 %v2575, %v2543
        %v2832 = vpack.c.b16 %v2576, %v2544
        %v2833 = vpack.c.b16 %v2577, %v2545
        %3090 = vmatprep.subr.bf16.mxu0 %v2803
        %3091 = vmatpush1.bf16.msra.mxu0 %v2802
        %3092 = vmatprep.subr.bf16.mxu0 %v2771
        %3093 = vmatpush1.bf16.msra.mxu0 %v2770
        %3094 = vmatprep.subr.bf16.mxu0 %v2739
        %3095 = vmatpush1.bf16.msra.mxu0 %v2738
        %3096 = vmatprep.subr.bf16.mxu0 %v2707
        %3097 = vmatpush1.bf16.msra.mxu0 %v2706
        %3098 = vmatprep.subr.bf16.mxu0 %v2675
        %3099 = vmatpush1.bf16.msra.mxu0 %v2674
        %3100 = vmatprep.subr.bf16.mxu0 %v2643
        %3101 = vmatpush1.bf16.msra.mxu0 %v2642
        %3102 = vmatprep.subr.bf16.mxu0 %v2611
        %3103 = vmatpush1.bf16.msra.mxu0 %v2610
        %3104 = vmatprep.subr.bf16.mxu0 %v2579
        %3105 = vmatpush1.bf16.msra.mxu0 %v2578
        %3106 = vmatprep.subr.bf16.mxu0 0
        %3107 = vmatpush2.bf16.msra.mxu0 0
        %3108 = vmatprep.subr.bf16.mxu0 0
        %3109 = vmatpush2.bf16.msra.mxu0 0
        %3110 = vmatprep.subr.bf16.mxu0 0
        %3111 = vmatpush2.bf16.msra.mxu0 0
        %3112 = vmatprep.subr.bf16.mxu0 0
        %3113 = vmatpush2.bf16.msra.mxu0 0
        %3114 = vmatprep.subr.bf16.mxu0 0
        %3115 = vmatpush2.bf16.msra.mxu0 0
        %3116 = vmatprep.subr.bf16.mxu0 0
        %3117 = vmatpush2.bf16.msra.mxu0 0
        %3118 = vmatprep.subr.bf16.mxu0 0
        %3119 = vmatpush2.bf16.msra.mxu0 0
        %3120 = vmatprep.subr.bf16.mxu0 0
        %3121 = vmatpush2.bf16.msra.mxu0 0
        %3122 = vmatprep.mubr.bf16.mxu0 0
        %3123 = vmatmul.mubr.bf16.gmra.mxu0 %v1553
        %v3124 = vpop.f32.mrf.mxu0
        %v3125 = vadd.f32 0.0, %v3124
        %v3126 = vpop.f32.mrf.mxu0
        %v3127 = vadd.f32 0.0, %v3126
        %v3128 = vpop.f32.mrf.mxu0
        %v3129 = vpop.f32.mrf.mxu0
        %3130 = vdwg.mxu0
        %3131 = vmatprep.subr.bf16.mxu0 %v2805
        %3132 = vmatpush1.bf16.msra.mxu0 %v2804
        %3133 = vmatprep.subr.bf16.mxu0 %v2773
        %3134 = vmatpush1.bf16.msra.mxu0 %v2772
        %3135 = vmatprep.subr.bf16.mxu0 %v2741
        %3136 = vmatpush1.bf16.msra.mxu0 %v2740
        %3137 = vmatprep.subr.bf16.mxu0 %v2709
        %3138 = vmatpush1.bf16.msra.mxu0 %v2708
        %3139 = vmatprep.subr.bf16.mxu0 %v2677
        %3140 = vmatpush1.bf16.msra.mxu0 %v2676
        %3141 = vmatprep.subr.bf16.mxu0 %v2645
        %3142 = vmatpush1.bf16.msra.mxu0 %v2644
        %3143 = vmatprep.subr.bf16.mxu0 %v2613
        %3144 = vmatpush1.bf16.msra.mxu0 %v2612
        %3145 = vmatprep.subr.bf16.mxu0 %v2581
        %3146 = vmatpush1.bf16.msra.mxu0 %v2580
        %3147 = vmatprep.subr.bf16.mxu0 0
        %3148 = vmatpush2.bf16.msra.mxu0 0
        %3149 = vmatprep.subr.bf16.mxu0 0
        %3150 = vmatpush2.bf16.msra.mxu0 0
        %3151 = vmatprep.subr.bf16.mxu0 0
        %3152 = vmatpush2.bf16.msra.mxu0 0
        %3153 = vmatprep.subr.bf16.mxu0 0
        %3154 = vmatpush2.bf16.msra.mxu0 0
        %3155 = vmatprep.subr.bf16.mxu0 0
        %3156 = vmatpush2.bf16.msra.mxu0 0
        %3157 = vmatprep.subr.bf16.mxu0 0
        %3158 = vmatpush2.bf16.msra.mxu0 0
        %3159 = vmatprep.subr.bf16.mxu0 0
        %3160 = vmatpush2.bf16.msra.mxu0 0
        %3161 = vmatprep.subr.bf16.mxu0 0
        %3162 = vmatpush2.bf16.msra.mxu0 0
        %3163 = vmatprep.mubr.bf16.mxu0 0
        %3164 = vmatmul.mubr.bf16.gmra.mxu0 %v1553
        %v3165 = vpop.f32.mrf.mxu0
        %v3166 = vadd.f32 0.0, %v3165
        %v3167 = vpop.f32.mrf.mxu0
        %v3168 = vadd.f32 0.0, %v3167
        %v3169 = vpop.f32.mrf.mxu0
        %v3170 = vpop.f32.mrf.mxu0
        %3171 = vdwg.mxu0
        %3172 = vmatprep.subr.bf16.mxu0 %v2807
        %3173 = vmatpush1.bf16.msra.mxu0 %v2806
        %3174 = vmatprep.subr.bf16.mxu0 %v2775
        %3175 = vmatpush1.bf16.msra.mxu0 %v2774
        %3176 = vmatprep.subr.bf16.mxu0 %v2743
        %3177 = vmatpush1.bf16.msra.mxu0 %v2742
        %3178 = vmatprep.subr.bf16.mxu0 %v2711
        %3179 = vmatpush1.bf16.msra.mxu0 %v2710
        %3180 = vmatprep.subr.bf16.mxu0 %v2679
        %3181 = vmatpush1.bf16.msra.mxu0 %v2678
        %3182 = vmatprep.subr.bf16.mxu0 %v2647
        %3183 = vmatpush1.bf16.msra.mxu0 %v2646
        %3184 = vmatprep.subr.bf16.mxu0 %v2615
        %3185 = vmatpush1.bf16.msra.mxu0 %v2614
        %3186 = vmatprep.subr.bf16.mxu0 %v2583
        %3187 = vmatpush1.bf16.msra.mxu0 %v2582
        %3188 = vmatprep.subr.bf16.mxu0 0
        %3189 = vmatpush2.bf16.msra.mxu0 0
        %3190 = vmatprep.subr.bf16.mxu0 0
        %3191 = vmatpush2.bf16.msra.mxu0 0
        %3192 = vmatprep.subr.bf16.mxu0 0
        %3193 = vmatpush2.bf16.msra.mxu0 0
        %3194 = vmatprep.subr.bf16.mxu0 0
        %3195 = vmatpush2.bf16.msra.mxu0 0
        %3196 = vmatprep.subr.bf16.mxu0 0
        %3197 = vmatpush2.bf16.msra.mxu0 0
        %3198 = vmatprep.subr.bf16.mxu0 0
        %3199 = vmatpush2.bf16.msra.mxu0 0
        %3200 = vmatprep.subr.bf16.mxu0 0
        %3201 = vmatpush2.bf16.msra.mxu0 0
        %3202 = vmatprep.subr.bf16.mxu0 0
        %3203 = vmatpush2.bf16.msra.mxu0 0
        %3204 = vmatprep.mubr.bf16.mxu0 0
        %3205 = vmatmul.mubr.bf16.gmra.mxu0 %v1553
        %v3206 = vpop.f32.mrf.mxu0
        %v3207 = vadd.f32 0.0, %v3206
        %v3208 = vpop.f32.mrf.mxu0
        %v3209 = vadd.f32 0.0, %v3208
        %v3210 = vpop.f32.mrf.mxu0
        %v3211 = vpop.f32.mrf.mxu0
        %3212 = vdwg.mxu0
        %3213 = vmatprep.subr.bf16.mxu0 %v2809
        %3214 = vmatpush1.bf16.msra.mxu0 %v2808
        %3215 = vmatprep.subr.bf16.mxu0 %v2777
        %3216 = vmatpush1.bf16.msra.mxu0 %v2776
        %3217 = vmatprep.subr.bf16.mxu0 %v2745
        %3218 = vmatpush1.bf16.msra.mxu0 %v2744
        %3219 = vmatprep.subr.bf16.mxu0 %v2713
        %3220 = vmatpush1.bf16.msra.mxu0 %v2712
        %3221 = vmatprep.subr.bf16.mxu0 %v2681
        %3222 = vmatpush1.bf16.msra.mxu0 %v2680
        %3223 = vmatprep.subr.bf16.mxu0 %v2649
        %3224 = vmatpush1.bf16.msra.mxu0 %v2648
        %3225 = vmatprep.subr.bf16.mxu0 %v2617
        %3226 = vmatpush1.bf16.msra.mxu0 %v2616
        %3227 = vmatprep.subr.bf16.mxu0 %v2585
        %3228 = vmatpush1.bf16.msra.mxu0 %v2584
        %3229 = vmatprep.subr.bf16.mxu0 0
        %3230 = vmatpush2.bf16.msra.mxu0 0
        %3231 = vmatprep.subr.bf16.mxu0 0
        %3232 = vmatpush2.bf16.msra.mxu0 0
        %3233 = vmatprep.subr.bf16.mxu0 0
        %3234 = vmatpush2.bf16.msra.mxu0 0
        %3235 = vmatprep.subr.bf16.mxu0 0
        %3236 = vmatpush2.bf16.msra.mxu0 0
        %3237 = vmatprep.subr.bf16.mxu0 0
        %3238 = vmatpush2.bf16.msra.mxu0 0
        %3239 = vmatprep.subr.bf16.mxu0 0
        %3240 = vmatpush2.bf16.msra.mxu0 0
        %3241 = vmatprep.subr.bf16.mxu0 0
        %3242 = vmatpush2.bf16.msra.mxu0 0
        %3243 = vmatprep.subr.bf16.mxu0 0
        %3244 = vmatpush2.bf16.msra.mxu0 0
        %3245 = vmatprep.mubr.bf16.mxu0 0
        %3246 = vmatmul.mubr.bf16.gmra.mxu0 %v1553
        %v3247 = vpop.f32.mrf.mxu0
        %v3248 = vadd.f32 0.0, %v3247
        %v3249 = vpop.f32.mrf.mxu0
        %v3250 = vadd.f32 0.0, %v3249
        %v3251 = vpop.f32.mrf.mxu0
        %v3252 = vpop.f32.mrf.mxu0
        %3253 = vdwg.mxu0
        %3254 = vmatprep.subr.bf16.mxu0 %v2811
        %3255 = vmatpush1.bf16.msra.mxu0 %v2810
        %3256 = vmatprep.subr.bf16.mxu0 %v2779
        %3257 = vmatpush1.bf16.msra.mxu0 %v2778
        %3258 = vmatprep.subr.bf16.mxu0 %v2747
        %3259 = vmatpush1.bf16.msra.mxu0 %v2746
        %3260 = vmatprep.subr.bf16.mxu0 %v2715
        %3261 = vmatpush1.bf16.msra.mxu0 %v2714
        %3262 = vmatprep.subr.bf16.mxu0 %v2683
        %3263 = vmatpush1.bf16.msra.mxu0 %v2682
        %3264 = vmatprep.subr.bf16.mxu0 %v2651
        %3265 = vmatpush1.bf16.msra.mxu0 %v2650
        %3266 = vmatprep.subr.bf16.mxu0 %v2619
        %3267 = vmatpush1.bf16.msra.mxu0 %v2618
        %3268 = vmatprep.subr.bf16.mxu0 %v2587
        %3269 = vmatpush1.bf16.msra.mxu0 %v2586
        %3270 = vmatprep.subr.bf16.mxu0 0
        %3271 = vmatpush2.bf16.msra.mxu0 0
        %3272 = vmatprep.subr.bf16.mxu0 0
        %3273 = vmatpush2.bf16.msra.mxu0 0
        %3274 = vmatprep.subr.bf16.mxu0 0
        %3275 = vmatpush2.bf16.msra.mxu0 0
        %3276 = vmatprep.subr.bf16.mxu0 0
        %3277 = vmatpush2.bf16.msra.mxu0 0
        %3278 = vmatprep.subr.bf16.mxu0 0
        %3279 = vmatpush2.bf16.msra.mxu0 0
        %3280 = vmatprep.subr.bf16.mxu0 0
        %3281 = vmatpush2.bf16.msra.mxu0 0
        %3282 = vmatprep.subr.bf16.mxu0 0
        %3283 = vmatpush2.bf16.msra.mxu0 0
        %3284 = vmatprep.subr.bf16.mxu0 0
        %3285 = vmatpush2.bf16.msra.mxu0 0
        %3286 = vmatprep.mubr.bf16.mxu0 0
        %3287 = vmatmul.mubr.bf16.gmra.mxu0 %v1553
        %v3288 = vpop.f32.mrf.mxu0
        %v3289 = vadd.f32 0.0, %v3288
        %v3290 = vpop.f32.mrf.mxu0
        %v3291 = vadd.f32 0.0, %v3290
        %v3292 = vpop.f32.mrf.mxu0
        %v3293 = vpop.f32.mrf.mxu0
        %3294 = vdwg.mxu0
        %3295 = vmatprep.subr.bf16.mxu0 %v2813
        %3296 = vmatpush1.bf16.msra.mxu0 %v2812
        %3297 = vmatprep.subr.bf16.mxu0 %v2781
        %3298 = vmatpush1.bf16.msra.mxu0 %v2780
        %3299 = vmatprep.subr.bf16.mxu0 %v2749
        %3300 = vmatpush1.bf16.msra.mxu0 %v2748
        %3301 = vmatprep.subr.bf16.mxu0 %v2717
        %3302 = vmatpush1.bf16.msra.mxu0 %v2716
        %3303 = vmatprep.subr.bf16.mxu0 %v2685
        %3304 = vmatpush1.bf16.msra.mxu0 %v2684
        %3305 = vmatprep.subr.bf16.mxu0 %v2653
        %3306 = vmatpush1.bf16.msra.mxu0 %v2652
        %3307 = vmatprep.subr.bf16.mxu0 %v2621
        %3308 = vmatpush1.bf16.msra.mxu0 %v2620
        %3309 = vmatprep.subr.bf16.mxu0 %v2589
        %3310 = vmatpush1.bf16.msra.mxu0 %v2588
        %3311 = vmatprep.subr.bf16.mxu0 0
        %3312 = vmatpush2.bf16.msra.mxu0 0
        %3313 = vmatprep.subr.bf16.mxu0 0
        %3314 = vmatpush2.bf16.msra.mxu0 0
        %3315 = vmatprep.subr.bf16.mxu0 0
        %3316 = vmatpush2.bf16.msra.mxu0 0
        %3317 = vmatprep.subr.bf16.mxu0 0
        %3318 = vmatpush2.bf16.msra.mxu0 0
        %3319 = vmatprep.subr.bf16.mxu0 0
        %3320 = vmatpush2.bf16.msra.mxu0 0
        %3321 = vmatprep.subr.bf16.mxu0 0
        %3322 = vmatpush2.bf16.msra.mxu0 0
        %3323 = vmatprep.subr.bf16.mxu0 0
        %3324 = vmatpush2.bf16.msra.mxu0 0
        %3325 = vmatprep.subr.bf16.mxu0 0
        %3326 = vmatpush2.bf16.msra.mxu0 0
        %3327 = vmatprep.mubr.bf16.mxu0 0
        %3328 = vmatmul.mubr.bf16.gmra.mxu0 %v1553
        %v3329 = vpop.f32.mrf.mxu0
        %v3330 = vadd.f32 0.0, %v3329
        %v3331 = vpop.f32.mrf.mxu0
        %v3332 = vadd.f32 0.0, %v3331
        %v3333 = vpop.f32.mrf.mxu0
        %v3334 = vpop.f32.mrf.mxu0
        %3335 = vdwg.mxu0
        %3336 = vmatprep.subr.bf16.mxu0 %v2815
        %3337 = vmatpush1.bf16.msra.mxu0 %v2814
        %3338 = vmatprep.subr.bf16.mxu0 %v2783
        %3339 = vmatpush1.bf16.msra.mxu0 %v2782
        %3340 = vmatprep.subr.bf16.mxu0 %v2751
        %3341 = vmatpush1.bf16.msra.mxu0 %v2750
        %3342 = vmatprep.subr.bf16.mxu0 %v2719
        %3343 = vmatpush1.bf16.msra.mxu0 %v2718
        %3344 = vmatprep.subr.bf16.mxu0 %v2687
        %3345 = vmatpush1.bf16.msra.mxu0 %v2686
        %3346 = vmatprep.subr.bf16.mxu0 %v2655
        %3347 = vmatpush1.bf16.msra.mxu0 %v2654
        %3348 = vmatprep.subr.bf16.mxu0 %v2623
        %3349 = vmatpush1.bf16.msra.mxu0 %v2622
        %3350 = vmatprep.subr.bf16.mxu0 %v2591
        %3351 = vmatpush1.bf16.msra.mxu0 %v2590
        %3352 = vmatprep.subr.bf16.mxu0 0
        %3353 = vmatpush2.bf16.msra.mxu0 0
        %3354 = vmatprep.subr.bf16.mxu0 0
        %3355 = vmatpush2.bf16.msra.mxu0 0
        %3356 = vmatprep.subr.bf16.mxu0 0
        %3357 = vmatpush2.bf16.msra.mxu0 0
        %3358 = vmatprep.subr.bf16.mxu0 0
        %3359 = vmatpush2.bf16.msra.mxu0 0
        %3360 = vmatprep.subr.bf16.mxu0 0
        %3361 = vmatpush2.bf16.msra.mxu0 0
        %3362 = vmatprep.subr.bf16.mxu0 0
        %3363 = vmatpush2.bf16.msra.mxu0 0
        %3364 = vmatprep.subr.bf16.mxu0 0
        %3365 = vmatpush2.bf16.msra.mxu0 0
        %3366 = vmatprep.subr.bf16.mxu0 0
        %3367 = vmatpush2.bf16.msra.mxu0 0
        %3368 = vmatprep.mubr.bf16.mxu0 0
        %3369 = vmatmul.mubr.bf16.gmra.mxu0 %v1553
        %v3370 = vpop.f32.mrf.mxu0
        %v3371 = vadd.f32 0.0, %v3370
        %v3372 = vpop.f32.mrf.mxu0
        %v3373 = vadd.f32 0.0, %v3372
        %v3374 = vpop.f32.mrf.mxu0
        %v3375 = vpop.f32.mrf.mxu0
        %3376 = vdwg.mxu0
        %3377 = vmatprep.subr.bf16.mxu0 %v2817
        %3378 = vmatpush1.bf16.msra.mxu0 %v2816
        %3379 = vmatprep.subr.bf16.mxu0 %v2785
        %3380 = vmatpush1.bf16.msra.mxu0 %v2784
        %3381 = vmatprep.subr.bf16.mxu0 %v2753
        %3382 = vmatpush1.bf16.msra.mxu0 %v2752
        %3383 = vmatprep.subr.bf16.mxu0 %v2721
        %3384 = vmatpush1.bf16.msra.mxu0 %v2720
        %3385 = vmatprep.subr.bf16.mxu0 %v2689
        %3386 = vmatpush1.bf16.msra.mxu0 %v2688
        %3387 = vmatprep.subr.bf16.mxu0 %v2657
        %3388 = vmatpush1.bf16.msra.mxu0 %v2656
        %3389 = vmatprep.subr.bf16.mxu0 %v2625
        %3390 = vmatpush1.bf16.msra.mxu0 %v2624
        %3391 = vmatprep.subr.bf16.mxu0 %v2593
        %3392 = vmatpush1.bf16.msra.mxu0 %v2592
        %3393 = vmatprep.subr.bf16.mxu0 0
        %3394 = vmatpush2.bf16.msra.mxu0 0
        %3395 = vmatprep.subr.bf16.mxu0 0
        %3396 = vmatpush2.bf16.msra.mxu0 0
        %3397 = vmatprep.subr.bf16.mxu0 0
        %3398 = vmatpush2.bf16.msra.mxu0 0
        %3399 = vmatprep.subr.bf16.mxu0 0
        %3400 = vmatpush2.bf16.msra.mxu0 0
        %3401 = vmatprep.subr.bf16.mxu0 0
        %3402 = vmatpush2.bf16.msra.mxu0 0
        %3403 = vmatprep.subr.bf16.mxu0 0
        %3404 = vmatpush2.bf16.msra.mxu0 0
        %3405 = vmatprep.subr.bf16.mxu0 0
        %3406 = vmatpush2.bf16.msra.mxu0 0
        %3407 = vmatprep.subr.bf16.mxu0 0
        %3408 = vmatpush2.bf16.msra.mxu0 0
        %3409 = vmatprep.mubr.bf16.mxu0 0
        %3410 = vmatmul.mubr.bf16.gmra.mxu0 %v1553
        %v3411 = vpop.f32.mrf.mxu0
        %v3412 = vadd.f32 0.0, %v3411
        %v3413 = vpop.f32.mrf.mxu0
        %v3414 = vadd.f32 0.0, %v3413
        %v3415 = vpop.f32.mrf.mxu0
        %v3416 = vpop.f32.mrf.mxu0
        %3417 = vdwg.mxu0
        %3418 = vmatprep.subr.bf16.mxu0 %v2819
        %3419 = vmatpush1.bf16.msra.mxu0 %v2818
        %3420 = vmatprep.subr.bf16.mxu0 %v2787
        %3421 = vmatpush1.bf16.msra.mxu0 %v2786
        %3422 = vmatprep.subr.bf16.mxu0 %v2755
        %3423 = vmatpush1.bf16.msra.mxu0 %v2754
        %3424 = vmatprep.subr.bf16.mxu0 %v2723
        %3425 = vmatpush1.bf16.msra.mxu0 %v2722
        %3426 = vmatprep.subr.bf16.mxu0 %v2691
        %3427 = vmatpush1.bf16.msra.mxu0 %v2690
        %3428 = vmatprep.subr.bf16.mxu0 %v2659
        %3429 = vmatpush1.bf16.msra.mxu0 %v2658
        %3430 = vmatprep.subr.bf16.mxu0 %v2627
        %3431 = vmatpush1.bf16.msra.mxu0 %v2626
        %3432 = vmatprep.subr.bf16.mxu0 %v2595
        %3433 = vmatpush1.bf16.msra.mxu0 %v2594
        %3434 = vmatprep.subr.bf16.mxu0 0
        %3435 = vmatpush2.bf16.msra.mxu0 0
        %3436 = vmatprep.subr.bf16.mxu0 0
        %3437 = vmatpush2.bf16.msra.mxu0 0
        %3438 = vmatprep.subr.bf16.mxu0 0
        %3439 = vmatpush2.bf16.msra.mxu0 0
        %3440 = vmatprep.subr.bf16.mxu0 0
        %3441 = vmatpush2.bf16.msra.mxu0 0
        %3442 = vmatprep.subr.bf16.mxu0 0
        %3443 = vmatpush2.bf16.msra.mxu0 0
        %3444 = vmatprep.subr.bf16.mxu0 0
        %3445 = vmatpush2.bf16.msra.mxu0 0
        %3446 = vmatprep.subr.bf16.mxu0 0
        %3447 = vmatpush2.bf16.msra.mxu0 0
        %3448 = vmatprep.subr.bf16.mxu0 0
        %3449 = vmatpush2.bf16.msra.mxu0 0
        %3450 = vmatprep.mubr.bf16.mxu0 0
        %3451 = vmatmul.mubr.bf16.gmra.mxu0 %v1553
        %v3452 = vpop.f32.mrf.mxu0
        %v3453 = vadd.f32 0.0, %v3452
        %v3454 = vpop.f32.mrf.mxu0
        %v3455 = vadd.f32 0.0, %v3454
        %v3456 = vpop.f32.mrf.mxu0
        %v3457 = vpop.f32.mrf.mxu0
        %3458 = vdwg.mxu0
        %3459 = vmatprep.subr.bf16.mxu0 %v2821
        %3460 = vmatpush1.bf16.msra.mxu0 %v2820
        %3461 = vmatprep.subr.bf16.mxu0 %v2789
        %3462 = vmatpush1.bf16.msra.mxu0 %v2788
        %3463 = vmatprep.subr.bf16.mxu0 %v2757
        %3464 = vmatpush1.bf16.msra.mxu0 %v2756
        %3465 = vmatprep.subr.bf16.mxu0 %v2725
        %3466 = vmatpush1.bf16.msra.mxu0 %v2724
        %3467 = vmatprep.subr.bf16.mxu0 %v2693
        %3468 = vmatpush1.bf16.msra.mxu0 %v2692
        %3469 = vmatprep.subr.bf16.mxu0 %v2661
        %3470 = vmatpush1.bf16.msra.mxu0 %v2660
        %3471 = vmatprep.subr.bf16.mxu0 %v2629
        %3472 = vmatpush1.bf16.msra.mxu0 %v2628
        %3473 = vmatprep.subr.bf16.mxu0 %v2597
        %3474 = vmatpush1.bf16.msra.mxu0 %v2596
        %3475 = vmatprep.subr.bf16.mxu0 0
        %3476 = vmatpush2.bf16.msra.mxu0 0
        %3477 = vmatprep.subr.bf16.mxu0 0
        %3478 = vmatpush2.bf16.msra.mxu0 0
        %3479 = vmatprep.subr.bf16.mxu0 0
        %3480 = vmatpush2.bf16.msra.mxu0 0
        %3481 = vmatprep.subr.bf16.mxu0 0
        %3482 = vmatpush2.bf16.msra.mxu0 0
        %3483 = vmatprep.subr.bf16.mxu0 0
        %3484 = vmatpush2.bf16.msra.mxu0 0
        %3485 = vmatprep.subr.bf16.mxu0 0
        %3486 = vmatpush2.bf16.msra.mxu0 0
        %3487 = vmatprep.subr.bf16.mxu0 0
        %3488 = vmatpush2.bf16.msra.mxu0 0
        %3489 = vmatprep.subr.bf16.mxu0 0
        %3490 = vmatpush2.bf16.msra.mxu0 0
        %3491 = vmatprep.mubr.bf16.mxu0 0
        %3492 = vmatmul.mubr.bf16.gmra.mxu0 %v1553
        %v3493 = vpop.f32.mrf.mxu0
        %v3494 = vadd.f32 0.0, %v3493
        %v3495 = vpop.f32.mrf.mxu0
        %v3496 = vadd.f32 0.0, %v3495
        %v3497 = vpop.f32.mrf.mxu0
        %v3498 = vpop.f32.mrf.mxu0
        %3499 = vdwg.mxu0
        %3500 = vmatprep.subr.bf16.mxu0 %v2823
        %3501 = vmatpush1.bf16.msra.mxu0 %v2822
        %3502 = vmatprep.subr.bf16.mxu0 %v2791
        %3503 = vmatpush1.bf16.msra.mxu0 %v2790
        %3504 = vmatprep.subr.bf16.mxu0 %v2759
        %3505 = vmatpush1.bf16.msra.mxu0 %v2758
        %3506 = vmatprep.subr.bf16.mxu0 %v2727
        %3507 = vmatpush1.bf16.msra.mxu0 %v2726
        %3508 = vmatprep.subr.bf16.mxu0 %v2695
        %3509 = vmatpush1.bf16.msra.mxu0 %v2694
        %3510 = vmatprep.subr.bf16.mxu0 %v2663
        %3511 = vmatpush1.bf16.msra.mxu0 %v2662
        %3512 = vmatprep.subr.bf16.mxu0 %v2631
        %3513 = vmatpush1.bf16.msra.mxu0 %v2630
        %3514 = vmatprep.subr.bf16.mxu0 %v2599
        %3515 = vmatpush1.bf16.msra.mxu0 %v2598
        %3516 = vmatprep.subr.bf16.mxu0 0
        %3517 = vmatpush2.bf16.msra.mxu0 0
        %3518 = vmatprep.subr.bf16.mxu0 0
        %3519 = vmatpush2.bf16.msra.mxu0 0
        %3520 = vmatprep.subr.bf16.mxu0 0
        %3521 = vmatpush2.bf16.msra.mxu0 0
        %3522 = vmatprep.subr.bf16.mxu0 0
        %3523 = vmatpush2.bf16.msra.mxu0 0
        %3524 = vmatprep.subr.bf16.mxu0 0
        %3525 = vmatpush2.bf16.msra.mxu0 0
        %3526 = vmatprep.subr.bf16.mxu0 0
        %3527 = vmatpush2.bf16.msra.mxu0 0
        %3528 = vmatprep.subr.bf16.mxu0 0
        %3529 = vmatpush2.bf16.msra.mxu0 0
        %3530 = vmatprep.subr.bf16.mxu0 0
        %3531 = vmatpush2.bf16.msra.mxu0 0
        %3532 = vmatprep.mubr.bf16.mxu0 0
        %3533 = vmatmul.mubr.bf16.gmra.mxu0 %v1553
        %v3534 = vpop.f32.mrf.mxu0
        %v3535 = vadd.f32 0.0, %v3534
        %v3536 = vpop.f32.mrf.mxu0
        %v3537 = vadd.f32 0.0, %v3536
        %v3538 = vpop.f32.mrf.mxu0
        %v3539 = vpop.f32.mrf.mxu0
        %3540 = vdwg.mxu0
        %3541 = vmatprep.subr.bf16.mxu0 %v2825
        %3542 = vmatpush1.bf16.msra.mxu0 %v2824
        %3543 = vmatprep.subr.bf16.mxu0 %v2793
        %3544 = vmatpush1.bf16.msra.mxu0 %v2792
        %3545 = vmatprep.subr.bf16.mxu0 %v2761
        %3546 = vmatpush1.bf16.msra.mxu0 %v2760
        %3547 = vmatprep.subr.bf16.mxu0 %v2729
        %3548 = vmatpush1.bf16.msra.mxu0 %v2728
        %3549 = vmatprep.subr.bf16.mxu0 %v2697
        %3550 = vmatpush1.bf16.msra.mxu0 %v2696
        %3551 = vmatprep.subr.bf16.mxu0 %v2665
        %3552 = vmatpush1.bf16.msra.mxu0 %v2664
        %3553 = vmatprep.subr.bf16.mxu0 %v2633
        %3554 = vmatpush1.bf16.msra.mxu0 %v2632
        %3555 = vmatprep.subr.bf16.mxu0 %v2601
        %3556 = vmatpush1.bf16.msra.mxu0 %v2600
        %3557 = vmatprep.subr.bf16.mxu0 0
        %3558 = vmatpush2.bf16.msra.mxu0 0
        %3559 = vmatprep.subr.bf16.mxu0 0
        %3560 = vmatpush2.bf16.msra.mxu0 0
        %3561 = vmatprep.subr.bf16.mxu0 0
        %3562 = vmatpush2.bf16.msra.mxu0 0
        %3563 = vmatprep.subr.bf16.mxu0 0
        %3564 = vmatpush2.bf16.msra.mxu0 0
        %3565 = vmatprep.subr.bf16.mxu0 0
        %3566 = vmatpush2.bf16.msra.mxu0 0
        %3567 = vmatprep.subr.bf16.mxu0 0
        %3568 = vmatpush2.bf16.msra.mxu0 0
        %3569 = vmatprep.subr.bf16.mxu0 0
        %3570 = vmatpush2.bf16.msra.mxu0 0
        %3571 = vmatprep.subr.bf16.mxu0 0
        %3572 = vmatpush2.bf16.msra.mxu0 0
        %3573 = vmatprep.mubr.bf16.mxu0 0
        %3574 = vmatmul.mubr.bf16.gmra.mxu0 %v1553
        %v3575 = vpop.f32.mrf.mxu0
        %v3576 = vadd.f32 0.0, %v3575
        %v3577 = vpop.f32.mrf.mxu0
        %v3578 = vadd.f32 0.0, %v3577
        %v3579 = vpop.f32.mrf.mxu0
        %v3580 = vpop.f32.mrf.mxu0
        %3581 = vdwg.mxu0
        %3582 = vmatprep.subr.bf16.mxu0 %v2827
        %3583 = vmatpush1.bf16.msra.mxu0 %v2826
        %3584 = vmatprep.subr.bf16.mxu0 %v2795
        %3585 = vmatpush1.bf16.msra.mxu0 %v2794
        %3586 = vmatprep.subr.bf16.mxu0 %v2763
        %3587 = vmatpush1.bf16.msra.mxu0 %v2762
        %3588 = vmatprep.subr.bf16.mxu0 %v2731
        %3589 = vmatpush1.bf16.msra.mxu0 %v2730
        %3590 = vmatprep.subr.bf16.mxu0 %v2699
        %3591 = vmatpush1.bf16.msra.mxu0 %v2698
        %3592 = vmatprep.subr.bf16.mxu0 %v2667
        %3593 = vmatpush1.bf16.msra.mxu0 %v2666
        %3594 = vmatprep.subr.bf16.mxu0 %v2635
        %3595 = vmatpush1.bf16.msra.mxu0 %v2634
        %3596 = vmatprep.subr.bf16.mxu0 %v2603
        %3597 = vmatpush1.bf16.msra.mxu0 %v2602
        %3598 = vmatprep.subr.bf16.mxu0 0
        %3599 = vmatpush2.bf16.msra.mxu0 0
        %3600 = vmatprep.subr.bf16.mxu0 0
        %3601 = vmatpush2.bf16.msra.mxu0 0
        %3602 = vmatprep.subr.bf16.mxu0 0
        %3603 = vmatpush2.bf16.msra.mxu0 0
        %3604 = vmatprep.subr.bf16.mxu0 0
        %3605 = vmatpush2.bf16.msra.mxu0 0
        %3606 = vmatprep.subr.bf16.mxu0 0
        %3607 = vmatpush2.bf16.msra.mxu0 0
        %3608 = vmatprep.subr.bf16.mxu0 0
        %3609 = vmatpush2.bf16.msra.mxu0 0
        %3610 = vmatprep.subr.bf16.mxu0 0
        %3611 = vmatpush2.bf16.msra.mxu0 0
        %3612 = vmatprep.subr.bf16.mxu0 0
        %3613 = vmatpush2.bf16.msra.mxu0 0
        %3614 = vmatprep.mubr.bf16.mxu0 0
        %3615 = vmatmul.mubr.bf16.gmra.mxu0 %v1553
        %v3616 = vpop.f32.mrf.mxu0
        %v3617 = vadd.f32 0.0, %v3616
        %v3618 = vpop.f32.mrf.mxu0
        %v3619 = vadd.f32 0.0, %v3618
        %v3620 = vpop.f32.mrf.mxu0
        %v3621 = vpop.f32.mrf.mxu0
        %3622 = vdwg.mxu0
        %3623 = vmatprep.subr.bf16.mxu0 %v2829
        %3624 = vmatpush1.bf16.msra.mxu0 %v2828
        %3625 = vmatprep.subr.bf16.mxu0 %v2797
        %3626 = vmatpush1.bf16.msra.mxu0 %v2796
        %3627 = vmatprep.subr.bf16.mxu0 %v2765
        %3628 = vmatpush1.bf16.msra.mxu0 %v2764
        %3629 = vmatprep.subr.bf16.mxu0 %v2733
        %3630 = vmatpush1.bf16.msra.mxu0 %v2732
        %3631 = vmatprep.subr.bf16.mxu0 %v2701
        %3632 = vmatpush1.bf16.msra.mxu0 %v2700
        %3633 = vmatprep.subr.bf16.mxu0 %v2669
        %3634 = vmatpush1.bf16.msra.mxu0 %v2668
        %3635 = vmatprep.subr.bf16.mxu0 %v2637
        %3636 = vmatpush1.bf16.msra.mxu0 %v2636
        %3637 = vmatprep.subr.bf16.mxu0 %v2605
        %3638 = vmatpush1.bf16.msra.mxu0 %v2604
        %3639 = vmatprep.subr.bf16.mxu0 0
        %3640 = vmatpush2.bf16.msra.mxu0 0
        %3641 = vmatprep.subr.bf16.mxu0 0
        %3642 = vmatpush2.bf16.msra.mxu0 0
        %3643 = vmatprep.subr.bf16.mxu0 0
        %3644 = vmatpush2.bf16.msra.mxu0 0
        %3645 = vmatprep.subr.bf16.mxu0 0
        %3646 = vmatpush2.bf16.msra.mxu0 0
        %3647 = vmatprep.subr.bf16.mxu0 0
        %3648 = vmatpush2.bf16.msra.mxu0 0
        %3649 = vmatprep.subr.bf16.mxu0 0
        %3650 = vmatpush2.bf16.msra.mxu0 0
        %3651 = vmatprep.subr.bf16.mxu0 0
        %3652 = vmatpush2.bf16.msra.mxu0 0
        %3653 = vmatprep.subr.bf16.mxu0 0
        %3654 = vmatpush2.bf16.msra.mxu0 0
        %3655 = vmatprep.mubr.bf16.mxu0 0
        %3656 = vmatmul.mubr.bf16.gmra.mxu0 %v1553
        %v3657 = vpop.f32.mrf.mxu0
        %v3658 = vadd.f32 0.0, %v3657
        %v3659 = vpop.f32.mrf.mxu0
        %v3660 = vadd.f32 0.0, %v3659
        %v3661 = vpop.f32.mrf.mxu0
        %v3662 = vpop.f32.mrf.mxu0
        %3663 = vdwg.mxu0
        %3664 = vmatprep.subr.bf16.mxu0 %v2831
        %3665 = vmatpush1.bf16.msra.mxu0 %v2830
        %3666 = vmatprep.subr.bf16.mxu0 %v2799
        %3667 = vmatpush1.bf16.msra.mxu0 %v2798
        %3668 = vmatprep.subr.bf16.mxu0 %v2767
        %3669 = vmatpush1.bf16.msra.mxu0 %v2766
        %3670 = vmatprep.subr.bf16.mxu0 %v2735
        %3671 = vmatpush1.bf16.msra.mxu0 %v2734
        %3672 = vmatprep.subr.bf16.mxu0 %v2703
        %3673 = vmatpush1.bf16.msra.mxu0 %v2702
        %3674 = vmatprep.subr.bf16.mxu0 %v2671
        %3675 = vmatpush1.bf16.msra.mxu0 %v2670
        %3676 = vmatprep.subr.bf16.mxu0 %v2639
        %3677 = vmatpush1.bf16.msra.mxu0 %v2638
        %3678 = vmatprep.subr.bf16.mxu0 %v2607
        %3679 = vmatpush1.bf16.msra.mxu0 %v2606
        %3680 = vmatprep.subr.bf16.mxu0 0
        %3681 = vmatpush2.bf16.msra.mxu0 0
        %3682 = vmatprep.subr.bf16.mxu0 0
        %3683 = vmatpush2.bf16.msra.mxu0 0
        %3684 = vmatprep.subr.bf16.mxu0 0
        %3685 = vmatpush2.bf16.msra.mxu0 0
        %3686 = vmatprep.subr.bf16.mxu0 0
        %3687 = vmatpush2.bf16.msra.mxu0 0
        %3688 = vmatprep.subr.bf16.mxu0 0
        %3689 = vmatpush2.bf16.msra.mxu0 0
        %3690 = vmatprep.subr.bf16.mxu0 0
        %3691 = vmatpush2.bf16.msra.mxu0 0
        %3692 = vmatprep.subr.bf16.mxu0 0
        %3693 = vmatpush2.bf16.msra.mxu0 0
        %3694 = vmatprep.subr.bf16.mxu0 0
        %3695 = vmatpush2.bf16.msra.mxu0 0
        %3696 = vmatprep.mubr.bf16.mxu0 0
        %3697 = vmatmul.mubr.bf16.gmra.mxu0 %v1553
        %v3698 = vpop.f32.mrf.mxu0
        %v3699 = vadd.f32 0.0, %v3698
        %v3700 = vpop.f32.mrf.mxu0
        %v3701 = vadd.f32 0.0, %v3700
        %v3702 = vpop.f32.mrf.mxu0
        %v3703 = vpop.f32.mrf.mxu0
        %3704 = vdwg.mxu0
        %3705 = vmatprep.subr.bf16.mxu0 %v2833
        %3706 = vmatpush1.bf16.msra.mxu0 %v2832
        %3707 = vmatprep.subr.bf16.mxu0 %v2801
        %3708 = vmatpush1.bf16.msra.mxu0 %v2800
        %3709 = vmatprep.subr.bf16.mxu0 %v2769
        %3710 = vmatpush1.bf16.msra.mxu0 %v2768
        %3711 = vmatprep.subr.bf16.mxu0 %v2737
        %3712 = vmatpush1.bf16.msra.mxu0 %v2736
        %3713 = vmatprep.subr.bf16.mxu0 %v2705
        %3714 = vmatpush1.bf16.msra.mxu0 %v2704
        %3715 = vmatprep.subr.bf16.mxu0 %v2673
        %3716 = vmatpush1.bf16.msra.mxu0 %v2672
        %3717 = vmatprep.subr.bf16.mxu0 %v2641
        %3718 = vmatpush1.bf16.msra.mxu0 %v2640
        %3719 = vmatprep.subr.bf16.mxu0 %v2609
        %3720 = vmatpush1.bf16.msra.mxu0 %v2608
        %3721 = vmatprep.subr.bf16.mxu0 0
        %3722 = vmatpush2.bf16.msra.mxu0 0
        %3723 = vmatprep.subr.bf16.mxu0 0
        %3724 = vmatpush2.bf16.msra.mxu0 0
        %3725 = vmatprep.subr.bf16.mxu0 0
        %3726 = vmatpush2.bf16.msra.mxu0 0
        %3727 = vmatprep.subr.bf16.mxu0 0
        %3728 = vmatpush2.bf16.msra.mxu0 0
        %3729 = vmatprep.subr.bf16.mxu0 0
        %3730 = vmatpush2.bf16.msra.mxu0 0
        %3731 = vmatprep.subr.bf16.mxu0 0
        %3732 = vmatpush2.bf16.msra.mxu0 0
        %3733 = vmatprep.subr.bf16.mxu0 0
        %3734 = vmatpush2.bf16.msra.mxu0 0
        %3735 = vmatprep.subr.bf16.mxu0 0
        %3736 = vmatpush2.bf16.msra.mxu0 0
        %3737 = vmatprep.mubr.bf16.mxu0 0
        %3738 = vmatmul.mubr.bf16.gmra.mxu0 %v1553
        %v3739 = vpop.f32.mrf.mxu0
        %v3740 = vadd.f32 0.0, %v3739
        %v3741 = vpop.f32.mrf.mxu0
        %v3742 = vadd.f32 0.0, %v3741
        %v3743 = vpop.f32.mrf.mxu0
        %v3744 = vpop.f32.mrf.mxu0
        %3745 = vdwg.mxu0
        %v3746 = vmul.f32 %v3125, 5.0
        %v3747 = vmul.f32 %v3127, 5.0
        %v3748 = vmul.f32 %v3166, 5.0
        %v3749 = vmul.f32 %v3168, 5.0
        %v3750 = vmul.f32 %v3207, 5.0
        %v3751 = vmul.f32 %v3209, 5.0
        %v3752 = vmul.f32 %v3248, 5.0
        %v3753 = vmul.f32 %v3250, 5.0
        %v3754 = vmul.f32 %v3289, 5.0
        %v3755 = vmul.f32 %v3291, 5.0
        %v3756 = vmul.f32 %v3330, 5.0
        %v3757 = vmul.f32 %v3332, 5.0
        %v3758 = vmul.f32 %v3371, 5.0
        %v3759 = vmul.f32 %v3373, 5.0
        %v3760 = vmul.f32 %v3412, 5.0
        %v3761 = vmul.f32 %v3414, 5.0
        %v3762 = vmul.f32 %v3453, 5.0
        %v3763 = vmul.f32 %v3455, 5.0
        %v3764 = vmul.f32 %v3494, 5.0
        %v3765 = vmul.f32 %v3496, 5.0
        %v3766 = vmul.f32 %v3535, 5.0
        %v3767 = vmul.f32 %v3537, 5.0
        %v3768 = vmul.f32 %v3576, 5.0
        %v3769 = vmul.f32 %v3578, 5.0
        %v3770 = vmul.f32 %v3617, 5.0
        %v3771 = vmul.f32 %v3619, 5.0
        %v3772 = vmul.f32 %v3658, 5.0
        %v3773 = vmul.f32 %v3660, 5.0
        %v3774 = vmul.f32 %v3699, 5.0
        %v3775 = vmul.f32 %v3701, 5.0
        %v3776 = vmul.f32 %v3740, 5.0
        %v3777 = vmul.f32 %v3742, 5.0
        %v3778 = vld [vmem:[#allocation5] sm:$0x1]
        %vm3779 = vcmask 1040384
        %v3780 = vsel %vm3779, %v3746, -inf
        %v3781 = vsel %vm3779, %v3747, -inf
        %v3782 = vsel %vm3779, %v3748, -inf
        %v3783 = vsel %vm3779, %v3749, -inf
        %v3784 = vsel %vm3779, %v3750, -inf
        %v3785 = vmax.f32 %v3780, %v3784
        %v3786 = vsel %vm3779, %v3751, -inf
        %v3787 = vmax.f32 %v3781, %v3786
        %v3788 = vsel %vm3779, %v3752, -inf
        %v3789 = vmax.f32 %v3782, %v3788
        %v3790 = vsel %vm3779, %v3753, -inf
        %v3791 = vmax.f32 %v3783, %v3790
        %v3792 = vsel %vm3779, %v3754, -inf
        %v3793 = vmax.f32 %v3785, %v3792
        %v3794 = vsel %vm3779, %v3755, -inf
        %v3795 = vmax.f32 %v3787, %v3794
        %v3796 = vsel %vm3779, %v3756, -inf
        %v3797 = vmax.f32 %v3789, %v3796
        %v3798 = vsel %vm3779, %v3757, -inf
        %v3799 = vmax.f32 %v3791, %v3798
        %v3800 = vsel %vm3779, %v3758, -inf
        %v3801 = vmax.f32 %v3793, %v3800
        %v3802 = vsel %vm3779, %v3759, -inf
        %v3803 = vmax.f32 %v3795, %v3802
        %v3804 = vsel %vm3779, %v3760, -inf
        %v3805 = vmax.f32 %v3797, %v3804
        %v3806 = vsel %vm3779, %v3761, -inf
        %v3807 = vmax.f32 %v3799, %v3806
        %v3808 = vsel %vm3779, %v3762, -inf
        %v3809 = vmax.f32 %v3801, %v3808
        %v3810 = vsel %vm3779, %v3763, -inf
        %v3811 = vmax.f32 %v3803, %v3810
        %v3812 = vsel %vm3779, %v3764, -inf
        %v3813 = vmax.f32 %v3805, %v3812
        %v3814 = vsel %vm3779, %v3765, -inf
        %v3815 = vmax.f32 %v3807, %v3814
        %v3816 = vsel %vm3779, %v3766, -inf
        %v3817 = vmax.f32 %v3809, %v3816
        %v3818 = vsel %vm3779, %v3767, -inf
        %v3819 = vmax.f32 %v3811, %v3818
        %v3820 = vsel %vm3779, %v3768, -inf
        %v3821 = vmax.f32 %v3813, %v3820
        %v3822 = vsel %vm3779, %v3769, -inf
        %v3823 = vmax.f32 %v3815, %v3822
        %v3824 = vsel %vm3779, %v3770, -inf
        %v3825 = vmax.f32 %v3817, %v3824
        %v3826 = vsel %vm3779, %v3771, -inf
        %v3827 = vmax.f32 %v3819, %v3826
        %v3828 = vsel %vm3779, %v3772, -inf
        %v3829 = vmax.f32 %v3821, %v3828
        %v3830 = vsel %vm3779, %v3773, -inf
        %v3831 = vmax.f32 %v3823, %v3830
        %v3832 = vsel %vm3779, %v3774, -inf
        %v3833 = vmax.f32 %v3825, %v3832
        %v3834 = vsel %vm3779, %v3775, -inf
        %v3835 = vmax.f32 %v3827, %v3834
        %v3836 = vsel %vm3779, %v3776, -inf
        %v3837 = vmax.f32 %v3829, %v3836
        %v3838 = vsel %vm3779, %v3777, -inf
        %v3839 = vmax.f32 %v3831, %v3838
        %v3840 = vmax.f32 %v3833, %v3835
        %v3841 = vmax.f32 %v3837, %v3839
        %v3842 = vmax.f32 %v3840, %v3841
        %3843 = vmax.xlane.f32.xlu0 %v3842
        %v3844 = vpop.xlane.xlu0 %3843
        %v3845 = vmax.f32 %v3778, %v3844
        %v3846 = vld [vmem:[#allocation6] sm:$0x1]
        %v3847 = vsub.f32 %v3778, %v3845
        %v3848 = vmul.f32 %v3847, 1.442695
        %v3849 = vpow.pop %v3848
        %v3850 = vmul.f32 %v3846, %v3849
        %3852 = vset.pattern.permute.xlu0 0
        %3853 = vperm.xlu0 %3852, %v3845
        %v3854 = vpop.permute.xlu0 %3853
        %v3856 = vlaneseq
        %v3857 = vshrl.u32 %v3856, 7
        %v3858 = vsub.s32 0, %v3857
        %v3859 = vrot.slane %v3854, %v3858
        %v3860 = vsub.f32 %v3746, %v3859
        %v3861 = vsub.f32 %v3747, %v3859
        %v3862 = vsub.f32 %v3748, %v3859
        %v3863 = vsub.f32 %v3749, %v3859
        %v3864 = vsub.f32 %v3750, %v3859
        %v3865 = vsub.f32 %v3751, %v3859
        %v3866 = vsub.f32 %v3752, %v3859
        %v3867 = vsub.f32 %v3753, %v3859
        %v3868 = vsub.f32 %v3754, %v3859
        %v3869 = vsub.f32 %v3755, %v3859
        %v3870 = vsub.f32 %v3756, %v3859
        %v3871 = vsub.f32 %v3757, %v3859
        %v3872 = vsub.f32 %v3758, %v3859
        %v3873 = vsub.f32 %v3759, %v3859
        %v3874 = vsub.f32 %v3760, %v3859
        %v3875 = vsub.f32 %v3761, %v3859
        %v3876 = vsub.f32 %v3762, %v3859
        %v3877 = vsub.f32 %v3763, %v3859
        %v3878 = vsub.f32 %v3764, %v3859
        %v3879 = vsub.f32 %v3765, %v3859
        %v3880 = vsub.f32 %v3766, %v3859
        %v3881 = vsub.f32 %v3767, %v3859
        %v3882 = vsub.f32 %v3768, %v3859
        %v3883 = vsub.f32 %v3769, %v3859
        %v3884 = vsub.f32 %v3770, %v3859
        %v3885 = vsub.f32 %v3771, %v3859
        %v3886 = vsub.f32 %v3772, %v3859
        %v3887 = vsub.f32 %v3773, %v3859
        %v3888 = vsub.f32 %v3774, %v3859
        %v3889 = vsub.f32 %v3775, %v3859
        %v3890 = vsub.f32 %v3776, %v3859
        %v3891 = vsub.f32 %v3777, %v3859
        %v3892 = vmul.f32 %v3860, 1.442695
        %v3893 = vpow.pop %v3892
        %v3894 = vmul.f32 %v3861, 1.442695
        %v3895 = vpow.pop %v3894
        %v3896 = vmul.f32 %v3862, 1.442695
        %v3897 = vpow.pop %v3896
        %v3898 = vmul.f32 %v3863, 1.442695
        %v3899 = vpow.pop %v3898
        %v3900 = vmul.f32 %v3864, 1.442695
        %v3901 = vpow.pop %v3900
        %v3902 = vmul.f32 %v3865, 1.442695
        %v3903 = vpow.pop %v3902
        %v3904 = vmul.f32 %v3866, 1.442695
        %v3905 = vpow.pop %v3904
        %v3906 = vmul.f32 %v3867, 1.442695
        %v3907 = vpow.pop %v3906
        %v3908 = vmul.f32 %v3868, 1.442695
        %v3909 = vpow.pop %v3908
        %v3910 = vmul.f32 %v3869, 1.442695
        %v3911 = vpow.pop %v3910
        %v3912 = vmul.f32 %v3870, 1.442695
        %v3913 = vpow.pop %v3912
        %v3914 = vmul.f32 %v3871, 1.442695
        %v3915 = vpow.pop %v3914
        %v3916 = vmul.f32 %v3872, 1.442695
        %v3917 = vpow.pop %v3916
        %v3918 = vmul.f32 %v3873, 1.442695
        %v3919 = vpow.pop %v3918
        %v3920 = vmul.f32 %v3874, 1.442695
        %v3921 = vpow.pop %v3920
        %v3922 = vmul.f32 %v3875, 1.442695
        %v3923 = vpow.pop %v3922
        %v3924 = vmul.f32 %v3876, 1.442695
        %v3925 = vpow.pop %v3924
        %v3926 = vmul.f32 %v3877, 1.442695
        %v3927 = vpow.pop %v3926
        %v3928 = vmul.f32 %v3878, 1.442695
        %v3929 = vpow.pop %v3928
        %v3930 = vmul.f32 %v3879, 1.442695
        %v3931 = vpow.pop %v3930
        %v3932 = vmul.f32 %v3880, 1.442695
        %v3933 = vpow.pop %v3932
        %v3934 = vmul.f32 %v3881, 1.442695
        %v3935 = vpow.pop %v3934
        %v3936 = vmul.f32 %v3882, 1.442695
        %v3937 = vpow.pop %v3936
        %v3938 = vmul.f32 %v3883, 1.442695
        %v3939 = vpow.pop %v3938
        %v3940 = vmul.f32 %v3884, 1.442695
        %v3941 = vpow.pop %v3940
        %v3942 = vmul.f32 %v3885, 1.442695
        %v3943 = vpow.pop %v3942
        %v3944 = vmul.f32 %v3886, 1.442695
        %v3945 = vpow.pop %v3944
        %v3946 = vmul.f32 %v3887, 1.442695
        %v3947 = vpow.pop %v3946
        %v3948 = vmul.f32 %v3888, 1.442695
        %v3949 = vpow.pop %v3948
        %v3950 = vmul.f32 %v3889, 1.442695
        %v3951 = vpow.pop %v3950
        %v3952 = vmul.f32 %v3890, 1.442695
        %v3953 = vpow.pop %v3952
        %v3954 = vmul.f32 %v3891, 1.442695
        %v3955 = vpow.pop %v3954
        %v3956 = vsel %vm3779, %v3893, 0.0
        %v3957 = vsel %vm3779, %v3895, 0.0
        %v3958 = vadd.f32 %v3956, %v3957
        %v3959 = vsel %vm3779, %v3897, 0.0
        %v3960 = vadd.f32 %v3958, %v3959
        %v3961 = vsel %vm3779, %v3899, 0.0
        %v3962 = vadd.f32 %v3960, %v3961
        %v3963 = vsel %vm3779, %v3901, 0.0
        %v3964 = vadd.f32 %v3962, %v3963
        %v3965 = vsel %vm3779, %v3903, 0.0
        %v3966 = vadd.f32 %v3964, %v3965
        %v3967 = vsel %vm3779, %v3905, 0.0
        %v3968 = vadd.f32 %v3966, %v3967
        %v3969 = vsel %vm3779, %v3907, 0.0
        %v3970 = vadd.f32 %v3968, %v3969
        %v3971 = vsel %vm3779, %v3909, 0.0
        %v3972 = vadd.f32 %v3970, %v3971
        %v3973 = vsel %vm3779, %v3911, 0.0
        %v3974 = vadd.f32 %v3972, %v3973
        %v3975 = vsel %vm3779, %v3913, 0.0
        %v3976 = vadd.f32 %v3974, %v3975
        %v3977 = vsel %vm3779, %v3915, 0.0
        %v3978 = vadd.f32 %v3976, %v3977
        %v3979 = vsel %vm3779, %v3917, 0.0
        %v3980 = vadd.f32 %v3978, %v3979
        %v3981 = vsel %vm3779, %v3919, 0.0
        %v3982 = vadd.f32 %v3980, %v3981
        %v3983 = vsel %vm3779, %v3921, 0.0
        %v3984 = vadd.f32 %v3982, %v3983
        %v3985 = vsel %vm3779, %v3923, 0.0
        %v3986 = vadd.f32 %v3984, %v3985
        %v3987 = vsel %vm3779, %v3925, 0.0
        %v3988 = vadd.f32 %v3986, %v3987
        %v3989 = vsel %vm3779, %v3927, 0.0
        %v3990 = vadd.f32 %v3988, %v3989
        %v3991 = vsel %vm3779, %v3929, 0.0
        %v3992 = vadd.f32 %v3990, %v3991
        %v3993 = vsel %vm3779, %v3931, 0.0
        %v3994 = vadd.f32 %v3992, %v3993
        %v3995 = vsel %vm3779, %v3933, 0.0
        %v3996 = vadd.f32 %v3994, %v3995
        %v3997 = vsel %vm3779, %v3935, 0.0
        %v3998 = vadd.f32 %v3996, %v3997
        %v3999 = vsel %vm3779, %v3937, 0.0
        %v4000 = vadd.f32 %v3998, %v3999
        %v4001 = vsel %vm3779, %v3939, 0.0
        %v4002 = vadd.f32 %v4000, %v4001
        %v4003 = vsel %vm3779, %v3941, 0.0
        %v4004 = vadd.f32 %v4002, %v4003
        %v4005 = vsel %vm3779, %v3943, 0.0
        %v4006 = vadd.f32 %v4004, %v4005
        %v4007 = vsel %vm3779, %v3945, 0.0
        %v4008 = vadd.f32 %v4006, %v4007
        %v4009 = vsel %vm3779, %v3947, 0.0
        %v4010 = vadd.f32 %v4008, %v4009
        %v4011 = vsel %vm3779, %v3949, 0.0
        %v4012 = vadd.f32 %v4010, %v4011
        %v4013 = vsel %vm3779, %v3951, 0.0
        %v4014 = vadd.f32 %v4012, %v4013
        %v4015 = vsel %vm3779, %v3953, 0.0
        %v4016 = vadd.f32 %v4014, %v4015
        %v4017 = vsel %vm3779, %v3955, 0.0
        %v4018 = vadd.f32 %v4016, %v4017
        %4019 = vadd.xlane.f32.xlu0 %v4018
        %v4020 = vpop.xlane.xlu0 %4019
        %v4021 = vadd.f32 %v3850, %v4020
        %vm4022 = vcmask 0
        %4023 = vst.msk [vmem:[#allocation6] sm:$0x1] %vm4022, %v4021
        %4024 = vst.msk [vmem:[#allocation5] sm:$0x1] %vm4022, %v3845
        %v4025 = vld [vmem:[#allocation3] sm:$0xf]
        %v4026 = vld [vmem:[#allocation3 + $0x4] sm:$0xf]
        %v4027 = vld [vmem:[%s601] sm:$0xff]
        %v4028 = vld [vmem:[%s601 + $0x8] sm:$0xff]
        %v4029 = vld [vmem:[%s601 + $0x10] sm:$0xff]
        %v4030 = vld [vmem:[%s601 + $0x18] sm:$0xff]
        %v4031 = vld [vmem:[%s601 + $0x20] sm:$0xff]
        %v4032 = vld [vmem:[%s601 + $0x28] sm:$0xff]
        %v4033 = vld [vmem:[%s601 + $0x30] sm:$0xff]
        %v4034 = vld [vmem:[%s601 + $0x38] sm:$0xff]
        %v4035 = vld [vmem:[%s601 + $0x40] sm:$0xff]
        %v4036 = vld [vmem:[%s601 + $0x48] sm:$0xff]
        %v4037 = vld [vmem:[%s601 + $0x50] sm:$0xff]
        %v4038 = vld [vmem:[%s601 + $0x58] sm:$0xff]
        %v4039 = vld [vmem:[%s601 + $0x60] sm:$0xff]
        %v4040 = vld [vmem:[%s601 + $0x68] sm:$0xff]
        %v4041 = vld [vmem:[%s601 + $0x70] sm:$0xff]
        %v4042 = vld [vmem:[%s601 + $0x78] sm:$0xff]
        %v4043 = vld [vmem:[%s601 + $0x80] sm:$0xff]
        %v4044 = vld [vmem:[%s601 + $0x88] sm:$0xff]
        %v4045 = vld [vmem:[%s601 + $0x90] sm:$0xff]
        %v4046 = vld [vmem:[%s601 + $0x98] sm:$0xff]
        %v4047 = vld [vmem:[%s601 + $0xa0] sm:$0xff]
        %v4048 = vld [vmem:[%s601 + $0xa8] sm:$0xff]
        %v4049 = vld [vmem:[%s601 + $0xb0] sm:$0xff]
        %v4050 = vld [vmem:[%s601 + $0xb8] sm:$0xff]
        %v4051 = vld [vmem:[%s601 + $0xc0] sm:$0xff]
        %v4052 = vld [vmem:[%s601 + $0xc8] sm:$0xff]
        %v4053 = vld [vmem:[%s601 + $0xd0] sm:$0xff]
        %v4054 = vld [vmem:[%s601 + $0xd8] sm:$0xff]
        %v4055 = vld [vmem:[%s601 + $0xe0] sm:$0xff]
        %v4056 = vld [vmem:[%s601 + $0xe8] sm:$0xff]
        %v4057 = vld [vmem:[%s601 + $0xf0] sm:$0xff]
        %v4058 = vld [vmem:[%s601 + $0xf8] sm:$0xff]
        %v4059 = vld [vmem:[%s601 + $0x100] sm:$0xff]
        %v4060 = vld [vmem:[%s601 + $0x108] sm:$0xff]
        %v4061 = vld [vmem:[%s601 + $0x110] sm:$0xff]
        %v4062 = vld [vmem:[%s601 + $0x118] sm:$0xff]
        %v4063 = vld [vmem:[%s601 + $0x120] sm:$0xff]
        %v4064 = vld [vmem:[%s601 + $0x128] sm:$0xff]
        %v4065 = vld [vmem:[%s601 + $0x130] sm:$0xff]
        %v4066 = vld [vmem:[%s601 + $0x138] sm:$0xff]
        %v4067 = vld [vmem:[%s601 + $0x140] sm:$0xff]
        %v4068 = vld [vmem:[%s601 + $0x148] sm:$0xff]
        %v4069 = vld [vmem:[%s601 + $0x150] sm:$0xff]
        %v4070 = vld [vmem:[%s601 + $0x158] sm:$0xff]
        %v4071 = vld [vmem:[%s601 + $0x160] sm:$0xff]
        %v4072 = vld [vmem:[%s601 + $0x168] sm:$0xff]
        %v4073 = vld [vmem:[%s601 + $0x170] sm:$0xff]
        %v4074 = vld [vmem:[%s601 + $0x178] sm:$0xff]
        %v4075 = vld [vmem:[%s601 + $0x180] sm:$0xff]
        %v4076 = vld [vmem:[%s601 + $0x188] sm:$0xff]
        %v4077 = vld [vmem:[%s601 + $0x190] sm:$0xff]
        %v4078 = vld [vmem:[%s601 + $0x198] sm:$0xff]
        %v4079 = vld [vmem:[%s601 + $0x1a0] sm:$0xff]
        %v4080 = vld [vmem:[%s601 + $0x1a8] sm:$0xff]
        %v4081 = vld [vmem:[%s601 + $0x1b0] sm:$0xff]
        %v4082 = vld [vmem:[%s601 + $0x1b8] sm:$0xff]
        %v4083 = vld [vmem:[%s601 + $0x1c0] sm:$0xff]
        %v4084 = vld [vmem:[%s601 + $0x1c8] sm:$0xff]
        %v4085 = vld [vmem:[%s601 + $0x1d0] sm:$0xff]
        %v4086 = vld [vmem:[%s601 + $0x1d8] sm:$0xff]
        %v4087 = vld [vmem:[%s601 + $0x1e0] sm:$0xff]
        %v4088 = vld [vmem:[%s601 + $0x1e8] sm:$0xff]
        %v4089 = vld [vmem:[%s601 + $0x1f0] sm:$0xff]
        %v4090 = vld [vmem:[%s601 + $0x1f8] sm:$0xff]
        %v4091 = vld [vmem:[%s601 + $0x200] sm:$0xff]
        %v4092 = vld [vmem:[%s601 + $0x208] sm:$0xff]
        %v4093 = vld [vmem:[%s601 + $0x210] sm:$0xff]
        %v4094 = vld [vmem:[%s601 + $0x218] sm:$0xff]
        %v4095 = vld [vmem:[%s601 + $0x220] sm:$0xff]
        %v4096 = vld [vmem:[%s601 + $0x228] sm:$0xff]
        %v4097 = vld [vmem:[%s601 + $0x230] sm:$0xff]
        %v4098 = vld [vmem:[%s601 + $0x238] sm:$0xff]
        %v4099 = vld [vmem:[%s601 + $0x240] sm:$0xff]
        %v4100 = vld [vmem:[%s601 + $0x248] sm:$0xff]
        %v4101 = vld [vmem:[%s601 + $0x250] sm:$0xff]
        %v4102 = vld [vmem:[%s601 + $0x258] sm:$0xff]
        %v4103 = vld [vmem:[%s601 + $0x260] sm:$0xff]
        %v4104 = vld [vmem:[%s601 + $0x268] sm:$0xff]
        %v4105 = vld [vmem:[%s601 + $0x270] sm:$0xff]
        %v4106 = vld [vmem:[%s601 + $0x278] sm:$0xff]
        %v4107 = vld [vmem:[%s601 + $0x280] sm:$0xff]
        %v4108 = vld [vmem:[%s601 + $0x288] sm:$0xff]
        %v4109 = vld [vmem:[%s601 + $0x290] sm:$0xff]
        %v4110 = vld [vmem:[%s601 + $0x298] sm:$0xff]
        %v4111 = vld [vmem:[%s601 + $0x2a0] sm:$0xff]
        %v4112 = vld [vmem:[%s601 + $0x2a8] sm:$0xff]
        %v4113 = vld [vmem:[%s601 + $0x2b0] sm:$0xff]
        %v4114 = vld [vmem:[%s601 + $0x2b8] sm:$0xff]
        %v4115 = vld [vmem:[%s601 + $0x2c0] sm:$0xff]
        %v4116 = vld [vmem:[%s601 + $0x2c8] sm:$0xff]
        %v4117 = vld [vmem:[%s601 + $0x2d0] sm:$0xff]
        %v4118 = vld [vmem:[%s601 + $0x2d8] sm:$0xff]
        %v4119 = vld [vmem:[%s601 + $0x2e0] sm:$0xff]
        %v4120 = vld [vmem:[%s601 + $0x2e8] sm:$0xff]
        %v4121 = vld [vmem:[%s601 + $0x2f0] sm:$0xff]
        %v4122 = vld [vmem:[%s601 + $0x2f8] sm:$0xff]
        %v4123 = vld [vmem:[%s601 + $0x300] sm:$0xff]
        %v4124 = vld [vmem:[%s601 + $0x308] sm:$0xff]
        %v4125 = vld [vmem:[%s601 + $0x310] sm:$0xff]
        %v4126 = vld [vmem:[%s601 + $0x318] sm:$0xff]
        %v4127 = vld [vmem:[%s601 + $0x320] sm:$0xff]
        %v4128 = vld [vmem:[%s601 + $0x328] sm:$0xff]
        %v4129 = vld [vmem:[%s601 + $0x330] sm:$0xff]
        %v4130 = vld [vmem:[%s601 + $0x338] sm:$0xff]
        %v4131 = vld [vmem:[%s601 + $0x340] sm:$0xff]
        %v4132 = vld [vmem:[%s601 + $0x348] sm:$0xff]
        %v4133 = vld [vmem:[%s601 + $0x350] sm:$0xff]
        %v4134 = vld [vmem:[%s601 + $0x358] sm:$0xff]
        %v4135 = vld [vmem:[%s601 + $0x360] sm:$0xff]
        %v4136 = vld [vmem:[%s601 + $0x368] sm:$0xff]
        %v4137 = vld [vmem:[%s601 + $0x370] sm:$0xff]
        %v4138 = vld [vmem:[%s601 + $0x378] sm:$0xff]
        %v4139 = vld [vmem:[%s601 + $0x380] sm:$0xff]
        %v4140 = vld [vmem:[%s601 + $0x388] sm:$0xff]
        %v4141 = vld [vmem:[%s601 + $0x390] sm:$0xff]
        %v4142 = vld [vmem:[%s601 + $0x398] sm:$0xff]
        %v4143 = vld [vmem:[%s601 + $0x3a0] sm:$0xff]
        %v4144 = vld [vmem:[%s601 + $0x3a8] sm:$0xff]
        %v4145 = vld [vmem:[%s601 + $0x3b0] sm:$0xff]
        %v4146 = vld [vmem:[%s601 + $0x3b8] sm:$0xff]
        %v4147 = vld [vmem:[%s601 + $0x3c0] sm:$0xff]
        %v4148 = vld [vmem:[%s601 + $0x3c8] sm:$0xff]
        %v4149 = vld [vmem:[%s601 + $0x3d0] sm:$0xff]
        %v4150 = vld [vmem:[%s601 + $0x3d8] sm:$0xff]
        %v4151 = vld [vmem:[%s601 + $0x3e0] sm:$0xff]
        %v4152 = vld [vmem:[%s601 + $0x3e8] sm:$0xff]
        %v4153 = vld [vmem:[%s601 + $0x3f0] sm:$0xff]
        %v4154 = vld [vmem:[%s601 + $0x3f8] sm:$0xff]
        %v4155 = vld [vmem:[%s601 + $0x400] sm:$0xff]
        %v4156 = vld [vmem:[%s601 + $0x408] sm:$0xff]
        %v4157 = vld [vmem:[%s601 + $0x410] sm:$0xff]
        %v4158 = vld [vmem:[%s601 + $0x418] sm:$0xff]
        %v4159 = vld [vmem:[%s601 + $0x420] sm:$0xff]
        %v4160 = vld [vmem:[%s601 + $0x428] sm:$0xff]
        %v4161 = vld [vmem:[%s601 + $0x430] sm:$0xff]
        %v4162 = vld [vmem:[%s601 + $0x438] sm:$0xff]
        %v4163 = vld [vmem:[%s601 + $0x440] sm:$0xff]
        %v4164 = vld [vmem:[%s601 + $0x448] sm:$0xff]
        %v4165 = vld [vmem:[%s601 + $0x450] sm:$0xff]
        %v4166 = vld [vmem:[%s601 + $0x458] sm:$0xff]
        %v4167 = vld [vmem:[%s601 + $0x460] sm:$0xff]
        %v4168 = vld [vmem:[%s601 + $0x468] sm:$0xff]
        %v4169 = vld [vmem:[%s601 + $0x470] sm:$0xff]
        %v4170 = vld [vmem:[%s601 + $0x478] sm:$0xff]
        %v4171 = vld [vmem:[%s601 + $0x480] sm:$0xff]
        %v4172 = vld [vmem:[%s601 + $0x488] sm:$0xff]
        %v4173 = vld [vmem:[%s601 + $0x490] sm:$0xff]
        %v4174 = vld [vmem:[%s601 + $0x498] sm:$0xff]
        %v4175 = vld [vmem:[%s601 + $0x4a0] sm:$0xff]
        %v4176 = vld [vmem:[%s601 + $0x4a8] sm:$0xff]
        %v4177 = vld [vmem:[%s601 + $0x4b0] sm:$0xff]
        %v4178 = vld [vmem:[%s601 + $0x4b8] sm:$0xff]
        %v4179 = vld [vmem:[%s601 + $0x4c0] sm:$0xff]
        %v4180 = vld [vmem:[%s601 + $0x4c8] sm:$0xff]
        %v4181 = vld [vmem:[%s601 + $0x4d0] sm:$0xff]
        %v4182 = vld [vmem:[%s601 + $0x4d8] sm:$0xff]
        %v4183 = vld [vmem:[%s601 + $0x4e0] sm:$0xff]
        %v4184 = vld [vmem:[%s601 + $0x4e8] sm:$0xff]
        %v4185 = vld [vmem:[%s601 + $0x4f0] sm:$0xff]
        %v4186 = vld [vmem:[%s601 + $0x4f8] sm:$0xff]
        %v4187 = vld [vmem:[%s601 + $0x500] sm:$0xff]
        %v4188 = vld [vmem:[%s601 + $0x508] sm:$0xff]
        %v4189 = vld [vmem:[%s601 + $0x510] sm:$0xff]
        %v4190 = vld [vmem:[%s601 + $0x518] sm:$0xff]
        %v4191 = vld [vmem:[%s601 + $0x520] sm:$0xff]
        %v4192 = vld [vmem:[%s601 + $0x528] sm:$0xff]
        %v4193 = vld [vmem:[%s601 + $0x530] sm:$0xff]
        %v4194 = vld [vmem:[%s601 + $0x538] sm:$0xff]
        %v4195 = vld [vmem:[%s601 + $0x540] sm:$0xff]
        %v4196 = vld [vmem:[%s601 + $0x548] sm:$0xff]
        %v4197 = vld [vmem:[%s601 + $0x550] sm:$0xff]
        %v4198 = vld [vmem:[%s601 + $0x558] sm:$0xff]
        %v4199 = vld [vmem:[%s601 + $0x560] sm:$0xff]
        %v4200 = vld [vmem:[%s601 + $0x568] sm:$0xff]
        %v4201 = vld [vmem:[%s601 + $0x570] sm:$0xff]
        %v4202 = vld [vmem:[%s601 + $0x578] sm:$0xff]
        %v4203 = vld [vmem:[%s601 + $0x580] sm:$0xff]
        %v4204 = vld [vmem:[%s601 + $0x588] sm:$0xff]
        %v4205 = vld [vmem:[%s601 + $0x590] sm:$0xff]
        %v4206 = vld [vmem:[%s601 + $0x598] sm:$0xff]
        %v4207 = vld [vmem:[%s601 + $0x5a0] sm:$0xff]
        %v4208 = vld [vmem:[%s601 + $0x5a8] sm:$0xff]
        %v4209 = vld [vmem:[%s601 + $0x5b0] sm:$0xff]
        %v4210 = vld [vmem:[%s601 + $0x5b8] sm:$0xff]
        %v4211 = vld [vmem:[%s601 + $0x5c0] sm:$0xff]
        %v4212 = vld [vmem:[%s601 + $0x5c8] sm:$0xff]
        %v4213 = vld [vmem:[%s601 + $0x5d0] sm:$0xff]
        %v4214 = vld [vmem:[%s601 + $0x5d8] sm:$0xff]
        %v4215 = vld [vmem:[%s601 + $0x5e0] sm:$0xff]
        %v4216 = vld [vmem:[%s601 + $0x5e8] sm:$0xff]
        %v4217 = vld [vmem:[%s601 + $0x5f0] sm:$0xff]
        %v4218 = vld [vmem:[%s601 + $0x5f8] sm:$0xff]
        %v4219 = vld [vmem:[%s601 + $0x600] sm:$0xff]
        %v4220 = vld [vmem:[%s601 + $0x608] sm:$0xff]
        %v4221 = vld [vmem:[%s601 + $0x610] sm:$0xff]
        %v4222 = vld [vmem:[%s601 + $0x618] sm:$0xff]
        %v4223 = vld [vmem:[%s601 + $0x620] sm:$0xff]
        %v4224 = vld [vmem:[%s601 + $0x628] sm:$0xff]
        %v4225 = vld [vmem:[%s601 + $0x630] sm:$0xff]
        %v4226 = vld [vmem:[%s601 + $0x638] sm:$0xff]
        %v4227 = vld [vmem:[%s601 + $0x640] sm:$0xff]
        %v4228 = vld [vmem:[%s601 + $0x648] sm:$0xff]
        %v4229 = vld [vmem:[%s601 + $0x650] sm:$0xff]
        %v4230 = vld [vmem:[%s601 + $0x658] sm:$0xff]
        %v4231 = vld [vmem:[%s601 + $0x660] sm:$0xff]
        %v4232 = vld [vmem:[%s601 + $0x668] sm:$0xff]
        %v4233 = vld [vmem:[%s601 + $0x670] sm:$0xff]
        %v4234 = vld [vmem:[%s601 + $0x678] sm:$0xff]
        %v4235 = vld [vmem:[%s601 + $0x680] sm:$0xff]
        %v4236 = vld [vmem:[%s601 + $0x688] sm:$0xff]
        %v4237 = vld [vmem:[%s601 + $0x690] sm:$0xff]
        %v4238 = vld [vmem:[%s601 + $0x698] sm:$0xff]
        %v4239 = vld [vmem:[%s601 + $0x6a0] sm:$0xff]
        %v4240 = vld [vmem:[%s601 + $0x6a8] sm:$0xff]
        %v4241 = vld [vmem:[%s601 + $0x6b0] sm:$0xff]
        %v4242 = vld [vmem:[%s601 + $0x6b8] sm:$0xff]
        %v4243 = vld [vmem:[%s601 + $0x6c0] sm:$0xff]
        %v4244 = vld [vmem:[%s601 + $0x6c8] sm:$0xff]
        %v4245 = vld [vmem:[%s601 + $0x6d0] sm:$0xff]
        %v4246 = vld [vmem:[%s601 + $0x6d8] sm:$0xff]
        %v4247 = vld [vmem:[%s601 + $0x6e0] sm:$0xff]
        %v4248 = vld [vmem:[%s601 + $0x6e8] sm:$0xff]
        %v4249 = vld [vmem:[%s601 + $0x6f0] sm:$0xff]
        %v4250 = vld [vmem:[%s601 + $0x6f8] sm:$0xff]
        %v4251 = vld [vmem:[%s601 + $0x700] sm:$0xff]
        %v4252 = vld [vmem:[%s601 + $0x708] sm:$0xff]
        %v4253 = vld [vmem:[%s601 + $0x710] sm:$0xff]
        %v4254 = vld [vmem:[%s601 + $0x718] sm:$0xff]
        %v4255 = vld [vmem:[%s601 + $0x720] sm:$0xff]
        %v4256 = vld [vmem:[%s601 + $0x728] sm:$0xff]
        %v4257 = vld [vmem:[%s601 + $0x730] sm:$0xff]
        %v4258 = vld [vmem:[%s601 + $0x738] sm:$0xff]
        %v4259 = vld [vmem:[%s601 + $0x740] sm:$0xff]
        %v4260 = vld [vmem:[%s601 + $0x748] sm:$0xff]
        %v4261 = vld [vmem:[%s601 + $0x750] sm:$0xff]
        %v4262 = vld [vmem:[%s601 + $0x758] sm:$0xff]
        %v4263 = vld [vmem:[%s601 + $0x760] sm:$0xff]
        %v4264 = vld [vmem:[%s601 + $0x768] sm:$0xff]
        %v4265 = vld [vmem:[%s601 + $0x770] sm:$0xff]
        %v4266 = vld [vmem:[%s601 + $0x778] sm:$0xff]
        %v4267 = vld [vmem:[%s601 + $0x780] sm:$0xff]
        %v4268 = vld [vmem:[%s601 + $0x788] sm:$0xff]
        %v4269 = vld [vmem:[%s601 + $0x790] sm:$0xff]
        %v4270 = vld [vmem:[%s601 + $0x798] sm:$0xff]
        %v4271 = vld [vmem:[%s601 + $0x7a0] sm:$0xff]
        %v4272 = vld [vmem:[%s601 + $0x7a8] sm:$0xff]
        %v4273 = vld [vmem:[%s601 + $0x7b0] sm:$0xff]
        %v4274 = vld [vmem:[%s601 + $0x7b8] sm:$0xff]
        %v4275 = vld [vmem:[%s601 + $0x7c0] sm:$0xff]
        %v4276 = vld [vmem:[%s601 + $0x7c8] sm:$0xff]
        %v4277 = vld [vmem:[%s601 + $0x7d0] sm:$0xff]
        %v4278 = vld [vmem:[%s601 + $0x7d8] sm:$0xff]
        %v4279 = vld [vmem:[%s601 + $0x7e0] sm:$0xff]
        %v4280 = vld [vmem:[%s601 + $0x7e8] sm:$0xff]
        %v4281 = vld [vmem:[%s601 + $0x7f0] sm:$0xff]
        %v4282 = vld [vmem:[%s601 + $0x7f8] sm:$0xff]
        %v4285 = vunpack.c.l.b16 %v4025
        %v4286 = vunpack.c.l.b16 %v4026
        %v4287 = vpack.c.b16 %v4286, %v4285
        %v4545 = vunpack.c.l.b16 %v4027
        %v4546 = vunpack.c.h.b16 %v4027
        %v4547 = vunpack.c.l.b16 %v4028
        %v4548 = vunpack.c.h.b16 %v4028
        %v4549 = vunpack.c.l.b16 %v4029
        %v4550 = vunpack.c.h.b16 %v4029
        %v4551 = vunpack.c.l.b16 %v4030
        %v4552 = vunpack.c.h.b16 %v4030
        %v4553 = vunpack.c.l.b16 %v4031
        %v4554 = vunpack.c.h.b16 %v4031
        %v4555 = vunpack.c.l.b16 %v4032
        %v4556 = vunpack.c.h.b16 %v4032
        %v4557 = vunpack.c.l.b16 %v4033
        %v4558 = vunpack.c.h.b16 %v4033
        %v4559 = vunpack.c.l.b16 %v4034
        %v4560 = vunpack.c.h.b16 %v4034
        %v4561 = vunpack.c.l.b16 %v4035
        %v4562 = vunpack.c.h.b16 %v4035
        %v4563 = vunpack.c.l.b16 %v4036
        %v4564 = vunpack.c.h.b16 %v4036
        %v4565 = vunpack.c.l.b16 %v4037
        %v4566 = vunpack.c.h.b16 %v4037
        %v4567 = vunpack.c.l.b16 %v4038
        %v4568 = vunpack.c.h.b16 %v4038
        %v4569 = vunpack.c.l.b16 %v4039
        %v4570 = vunpack.c.h.b16 %v4039
        %v4571 = vunpack.c.l.b16 %v4040
        %v4572 = vunpack.c.h.b16 %v4040
        %v4573 = vunpack.c.l.b16 %v4041
        %v4574 = vunpack.c.h.b16 %v4041
        %v4575 = vunpack.c.l.b16 %v4042
        %v4576 = vunpack.c.h.b16 %v4042
        %v4577 = vunpack.c.l.b16 %v4043
        %v4578 = vunpack.c.h.b16 %v4043
        %v4579 = vunpack.c.l.b16 %v4044
        %v4580 = vunpack.c.h.b16 %v4044
        %v4581 = vunpack.c.l.b16 %v4045
        %v4582 = vunpack.c.h.b16 %v4045
        %v4583 = vunpack.c.l.b16 %v4046
        %v4584 = vunpack.c.h.b16 %v4046
        %v4585 = vunpack.c.l.b16 %v4047
        %v4586 = vunpack.c.h.b16 %v4047
        %v4587 = vunpack.c.l.b16 %v4048
        %v4588 = vunpack.c.h.b16 %v4048
        %v4589 = vunpack.c.l.b16 %v4049
        %v4590 = vunpack.c.h.b16 %v4049
        %v4591 = vunpack.c.l.b16 %v4050
        %v4592 = vunpack.c.h.b16 %v4050
        %v4593 = vunpack.c.l.b16 %v4051
        %v4594 = vunpack.c.h.b16 %v4051
        %v4595 = vunpack.c.l.b16 %v4052
        %v4596 = vunpack.c.h.b16 %v4052
        %v4597 = vunpack.c.l.b16 %v4053
        %v4598 = vunpack.c.h.b16 %v4053
        %v4599 = vunpack.c.l.b16 %v4054
        %v4600 = vunpack.c.h.b16 %v4054
        %v4601 = vunpack.c.l.b16 %v4055
        %v4602 = vunpack.c.h.b16 %v4055
        %v4603 = vunpack.c.l.b16 %v4056
        %v4604 = vunpack.c.h.b16 %v4056
        %v4605 = vunpack.c.l.b16 %v4057
        %v4606 = vunpack.c.h.b16 %v4057
        %v4607 = vunpack.c.l.b16 %v4058
        %v4608 = vunpack.c.h.b16 %v4058
        %v4609 = vunpack.c.l.b16 %v4059
        %v4610 = vunpack.c.h.b16 %v4059
        %v4611 = vunpack.c.l.b16 %v4060
        %v4612 = vunpack.c.h.b16 %v4060
        %v4613 = vunpack.c.l.b16 %v4061
        %v4614 = vunpack.c.h.b16 %v4061
        %v4615 = vunpack.c.l.b16 %v4062
        %v4616 = vunpack.c.h.b16 %v4062
        %v4617 = vunpack.c.l.b16 %v4063
        %v4618 = vunpack.c.h.b16 %v4063
        %v4619 = vunpack.c.l.b16 %v4064
        %v4620 = vunpack.c.h.b16 %v4064
        %v4621 = vunpack.c.l.b16 %v4065
        %v4622 = vunpack.c.h.b16 %v4065
        %v4623 = vunpack.c.l.b16 %v4066
        %v4624 = vunpack.c.h.b16 %v4066
        %v4625 = vunpack.c.l.b16 %v4067
        %v4626 = vunpack.c.h.b16 %v4067
        %v4627 = vunpack.c.l.b16 %v4068
        %v4628 = vunpack.c.h.b16 %v4068
        %v4629 = vunpack.c.l.b16 %v4069
        %v4630 = vunpack.c.h.b16 %v4069
        %v4631 = vunpack.c.l.b16 %v4070
        %v4632 = vunpack.c.h.b16 %v4070
        %v4633 = vunpack.c.l.b16 %v4071
        %v4634 = vunpack.c.h.b16 %v4071
        %v4635 = vunpack.c.l.b16 %v4072
        %v4636 = vunpack.c.h.b16 %v4072
        %v4637 = vunpack.c.l.b16 %v4073
        %v4638 = vunpack.c.h.b16 %v4073
        %v4639 = vunpack.c.l.b16 %v4074
        %v4640 = vunpack.c.h.b16 %v4074
        %v4641 = vunpack.c.l.b16 %v4075
        %v4642 = vunpack.c.h.b16 %v4075
        %v4643 = vunpack.c.l.b16 %v4076
        %v4644 = vunpack.c.h.b16 %v4076
        %v4645 = vunpack.c.l.b16 %v4077
        %v4646 = vunpack.c.h.b16 %v4077
        %v4647 = vunpack.c.l.b16 %v4078
        %v4648 = vunpack.c.h.b16 %v4078
        %v4649 = vunpack.c.l.b16 %v4079
        %v4650 = vunpack.c.h.b16 %v4079
        %v4651 = vunpack.c.l.b16 %v4080
        %v4652 = vunpack.c.h.b16 %v4080
        %v4653 = vunpack.c.l.b16 %v4081
        %v4654 = vunpack.c.h.b16 %v4081
        %v4655 = vunpack.c.l.b16 %v4082
        %v4656 = vunpack.c.h.b16 %v4082
        %v4657 = vunpack.c.l.b16 %v4083
        %v4658 = vunpack.c.h.b16 %v4083
        %v4659 = vunpack.c.l.b16 %v4084
        %v4660 = vunpack.c.h.b16 %v4084
        %v4661 = vunpack.c.l.b16 %v4085
        %v4662 = vunpack.c.h.b16 %v4085
        %v4663 = vunpack.c.l.b16 %v4086
        %v4664 = vunpack.c.h.b16 %v4086
        %v4665 = vunpack.c.l.b16 %v4087
        %v4666 = vunpack.c.h.b16 %v4087
        %v4667 = vunpack.c.l.b16 %v4088
        %v4668 = vunpack.c.h.b16 %v4088
        %v4669 = vunpack.c.l.b16 %v4089
        %v4670 = vunpack.c.h.b16 %v4089
        %v4671 = vunpack.c.l.b16 %v4090
        %v4672 = vunpack.c.h.b16 %v4090
        %v4673 = vunpack.c.l.b16 %v4091
        %v4674 = vunpack.c.h.b16 %v4091
        %v4675 = vunpack.c.l.b16 %v4092
        %v4676 = vunpack.c.h.b16 %v4092
        %v4677 = vunpack.c.l.b16 %v4093
        %v4678 = vunpack.c.h.b16 %v4093
        %v4679 = vunpack.c.l.b16 %v4094
        %v4680 = vunpack.c.h.b16 %v4094
        %v4681 = vunpack.c.l.b16 %v4095
        %v4682 = vunpack.c.h.b16 %v4095
        %v4683 = vunpack.c.l.b16 %v4096
        %v4684 = vunpack.c.h.b16 %v4096
        %v4685 = vunpack.c.l.b16 %v4097
        %v4686 = vunpack.c.h.b16 %v4097
        %v4687 = vunpack.c.l.b16 %v4098
        %v4688 = vunpack.c.h.b16 %v4098
        %v4689 = vunpack.c.l.b16 %v4099
        %v4690 = vunpack.c.h.b16 %v4099
        %v4691 = vunpack.c.l.b16 %v4100
        %v4692 = vunpack.c.h.b16 %v4100
        %v4693 = vunpack.c.l.b16 %v4101
        %v4694 = vunpack.c.h.b16 %v4101
        %v4695 = vunpack.c.l.b16 %v4102
        %v4696 = vunpack.c.h.b16 %v4102
        %v4697 = vunpack.c.l.b16 %v4103
        %v4698 = vunpack.c.h.b16 %v4103
        %v4699 = vunpack.c.l.b16 %v4104
        %v4700 = vunpack.c.h.b16 %v4104
        %v4701 = vunpack.c.l.b16 %v4105
        %v4702 = vunpack.c.h.b16 %v4105
        %v4703 = vunpack.c.l.b16 %v4106
        %v4704 = vunpack.c.h.b16 %v4106
        %v4705 = vunpack.c.l.b16 %v4107
        %v4706 = vunpack.c.h.b16 %v4107
        %v4707 = vunpack.c.l.b16 %v4108
        %v4708 = vunpack.c.h.b16 %v4108
        %v4709 = vunpack.c.l.b16 %v4109
        %v4710 = vunpack.c.h.b16 %v4109
        %v4711 = vunpack.c.l.b16 %v4110
        %v4712 = vunpack.c.h.b16 %v4110
        %v4713 = vunpack.c.l.b16 %v4111
        %v4714 = vunpack.c.h.b16 %v4111
        %v4715 = vunpack.c.l.b16 %v4112
        %v4716 = vunpack.c.h.b16 %v4112
        %v4717 = vunpack.c.l.b16 %v4113
        %v4718 = vunpack.c.h.b16 %v4113
        %v4719 = vunpack.c.l.b16 %v4114
        %v4720 = vunpack.c.h.b16 %v4114
        %v4721 = vunpack.c.l.b16 %v4115
        %v4722 = vunpack.c.h.b16 %v4115
        %v4723 = vunpack.c.l.b16 %v4116
        %v4724 = vunpack.c.h.b16 %v4116
        %v4725 = vunpack.c.l.b16 %v4117
        %v4726 = vunpack.c.h.b16 %v4117
        %v4727 = vunpack.c.l.b16 %v4118
        %v4728 = vunpack.c.h.b16 %v4118
        %v4729 = vunpack.c.l.b16 %v4119
        %v4730 = vunpack.c.h.b16 %v4119
        %v4731 = vunpack.c.l.b16 %v4120
        %v4732 = vunpack.c.h.b16 %v4120
        %v4733 = vunpack.c.l.b16 %v4121
        %v4734 = vunpack.c.h.b16 %v4121
        %v4735 = vunpack.c.l.b16 %v4122
        %v4736 = vunpack.c.h.b16 %v4122
        %v4737 = vunpack.c.l.b16 %v4123
        %v4738 = vunpack.c.h.b16 %v4123
        %v4739 = vunpack.c.l.b16 %v4124
        %v4740 = vunpack.c.h.b16 %v4124
        %v4741 = vunpack.c.l.b16 %v4125
        %v4742 = vunpack.c.h.b16 %v4125
        %v4743 = vunpack.c.l.b16 %v4126
        %v4744 = vunpack.c.h.b16 %v4126
        %v4745 = vunpack.c.l.b16 %v4127
        %v4746 = vunpack.c.h.b16 %v4127
        %v4747 = vunpack.c.l.b16 %v4128
        %v4748 = vunpack.c.h.b16 %v4128
        %v4749 = vunpack.c.l.b16 %v4129
        %v4750 = vunpack.c.h.b16 %v4129
        %v4751 = vunpack.c.l.b16 %v4130
        %v4752 = vunpack.c.h.b16 %v4130
        %v4753 = vunpack.c.l.b16 %v4131
        %v4754 = vunpack.c.h.b16 %v4131
        %v4755 = vunpack.c.l.b16 %v4132
        %v4756 = vunpack.c.h.b16 %v4132
        %v4757 = vunpack.c.l.b16 %v4133
        %v4758 = vunpack.c.h.b16 %v4133
        %v4759 = vunpack.c.l.b16 %v4134
        %v4760 = vunpack.c.h.b16 %v4134
        %v4761 = vunpack.c.l.b16 %v4135
        %v4762 = vunpack.c.h.b16 %v4135
        %v4763 = vunpack.c.l.b16 %v4136
        %v4764 = vunpack.c.h.b16 %v4136
        %v4765 = vunpack.c.l.b16 %v4137
        %v4766 = vunpack.c.h.b16 %v4137
        %v4767 = vunpack.c.l.b16 %v4138
        %v4768 = vunpack.c.h.b16 %v4138
        %v4769 = vunpack.c.l.b16 %v4139
        %v4770 = vunpack.c.h.b16 %v4139
        %v4771 = vunpack.c.l.b16 %v4140
        %v4772 = vunpack.c.h.b16 %v4140
        %v4773 = vunpack.c.l.b16 %v4141
        %v4774 = vunpack.c.h.b16 %v4141
        %v4775 = vunpack.c.l.b16 %v4142
        %v4776 = vunpack.c.h.b16 %v4142
        %v4777 = vunpack.c.l.b16 %v4143
        %v4778 = vunpack.c.h.b16 %v4143
        %v4779 = vunpack.c.l.b16 %v4144
        %v4780 = vunpack.c.h.b16 %v4144
        %v4781 = vunpack.c.l.b16 %v4145
        %v4782 = vunpack.c.h.b16 %v4145
        %v4783 = vunpack.c.l.b16 %v4146
        %v4784 = vunpack.c.h.b16 %v4146
        %v4785 = vunpack.c.l.b16 %v4147
        %v4786 = vunpack.c.h.b16 %v4147
        %v4787 = vunpack.c.l.b16 %v4148
        %v4788 = vunpack.c.h.b16 %v4148
        %v4789 = vunpack.c.l.b16 %v4149
        %v4790 = vunpack.c.h.b16 %v4149
        %v4791 = vunpack.c.l.b16 %v4150
        %v4792 = vunpack.c.h.b16 %v4150
        %v4793 = vunpack.c.l.b16 %v4151
        %v4794 = vunpack.c.h.b16 %v4151
        %v4795 = vunpack.c.l.b16 %v4152
        %v4796 = vunpack.c.h.b16 %v4152
        %v4797 = vunpack.c.l.b16 %v4153
        %v4798 = vunpack.c.h.b16 %v4153
        %v4799 = vunpack.c.l.b16 %v4154
        %v4800 = vunpack.c.h.b16 %v4154
        %v4801 = vunpack.c.l.b16 %v4155
        %v4802 = vunpack.c.h.b16 %v4155
        %v4803 = vunpack.c.l.b16 %v4156
        %v4804 = vunpack.c.h.b16 %v4156
        %v4805 = vunpack.c.l.b16 %v4157
        %v4806 = vunpack.c.h.b16 %v4157
        %v4807 = vunpack.c.l.b16 %v4158
        %v4808 = vunpack.c.h.b16 %v4158
        %v4809 = vunpack.c.l.b16 %v4159
        %v4810 = vunpack.c.h.b16 %v4159
        %v4811 = vunpack.c.l.b16 %v4160
        %v4812 = vunpack.c.h.b16 %v4160
        %v4813 = vunpack.c.l.b16 %v4161
        %v4814 = vunpack.c.h.b16 %v4161
        %v4815 = vunpack.c.l.b16 %v4162
        %v4816 = vunpack.c.h.b16 %v4162
        %v4817 = vunpack.c.l.b16 %v4163
        %v4818 = vunpack.c.h.b16 %v4163
        %v4819 = vunpack.c.l.b16 %v4164
        %v4820 = vunpack.c.h.b16 %v4164
        %v4821 = vunpack.c.l.b16 %v4165
        %v4822 = vunpack.c.h.b16 %v4165
        %v4823 = vunpack.c.l.b16 %v4166
        %v4824 = vunpack.c.h.b16 %v4166
        %v4825 = vunpack.c.l.b16 %v4167
        %v4826 = vunpack.c.h.b16 %v4167
        %v4827 = vunpack.c.l.b16 %v4168
        %v4828 = vunpack.c.h.b16 %v4168
        %v4829 = vunpack.c.l.b16 %v4169
        %v4830 = vunpack.c.h.b16 %v4169
        %v4831 = vunpack.c.l.b16 %v4170
        %v4832 = vunpack.c.h.b16 %v4170
        %v4833 = vunpack.c.l.b16 %v4171
        %v4834 = vunpack.c.h.b16 %v4171
        %v4835 = vunpack.c.l.b16 %v4172
        %v4836 = vunpack.c.h.b16 %v4172
        %v4837 = vunpack.c.l.b16 %v4173
        %v4838 = vunpack.c.h.b16 %v4173
        %v4839 = vunpack.c.l.b16 %v4174
        %v4840 = vunpack.c.h.b16 %v4174
        %v4841 = vunpack.c.l.b16 %v4175
        %v4842 = vunpack.c.h.b16 %v4175
        %v4843 = vunpack.c.l.b16 %v4176
        %v4844 = vunpack.c.h.b16 %v4176
        %v4845 = vunpack.c.l.b16 %v4177
        %v4846 = vunpack.c.h.b16 %v4177
        %v4847 = vunpack.c.l.b16 %v4178
        %v4848 = vunpack.c.h.b16 %v4178
        %v4849 = vunpack.c.l.b16 %v4179
        %v4850 = vunpack.c.h.b16 %v4179
        %v4851 = vunpack.c.l.b16 %v4180
        %v4852 = vunpack.c.h.b16 %v4180
        %v4853 = vunpack.c.l.b16 %v4181
        %v4854 = vunpack.c.h.b16 %v4181
        %v4855 = vunpack.c.l.b16 %v4182
        %v4856 = vunpack.c.h.b16 %v4182
        %v4857 = vunpack.c.l.b16 %v4183
        %v4858 = vunpack.c.h.b16 %v4183
        %v4859 = vunpack.c.l.b16 %v4184
        %v4860 = vunpack.c.h.b16 %v4184
        %v4861 = vunpack.c.l.b16 %v4185
        %v4862 = vunpack.c.h.b16 %v4185
        %v4863 = vunpack.c.l.b16 %v4186
        %v4864 = vunpack.c.h.b16 %v4186
        %v4865 = vunpack.c.l.b16 %v4187
        %v4866 = vunpack.c.h.b16 %v4187
        %v4867 = vunpack.c.l.b16 %v4188
        %v4868 = vunpack.c.h.b16 %v4188
        %v4869 = vunpack.c.l.b16 %v4189
        %v4870 = vunpack.c.h.b16 %v4189
        %v4871 = vunpack.c.l.b16 %v4190
        %v4872 = vunpack.c.h.b16 %v4190
        %v4873 = vunpack.c.l.b16 %v4191
        %v4874 = vunpack.c.h.b16 %v4191
        %v4875 = vunpack.c.l.b16 %v4192
        %v4876 = vunpack.c.h.b16 %v4192
        %v4877 = vunpack.c.l.b16 %v4193
        %v4878 = vunpack.c.h.b16 %v4193
        %v4879 = vunpack.c.l.b16 %v4194
        %v4880 = vunpack.c.h.b16 %v4194
        %v4881 = vunpack.c.l.b16 %v4195
        %v4882 = vunpack.c.h.b16 %v4195
        %v4883 = vunpack.c.l.b16 %v4196
        %v4884 = vunpack.c.h.b16 %v4196
        %v4885 = vunpack.c.l.b16 %v4197
        %v4886 = vunpack.c.h.b16 %v4197
        %v4887 = vunpack.c.l.b16 %v4198
        %v4888 = vunpack.c.h.b16 %v4198
        %v4889 = vunpack.c.l.b16 %v4199
        %v4890 = vunpack.c.h.b16 %v4199
        %v4891 = vunpack.c.l.b16 %v4200
        %v4892 = vunpack.c.h.b16 %v4200
        %v4893 = vunpack.c.l.b16 %v4201
        %v4894 = vunpack.c.h.b16 %v4201
        %v4895 = vunpack.c.l.b16 %v4202
        %v4896 = vunpack.c.h.b16 %v4202
        %v4897 = vunpack.c.l.b16 %v4203
        %v4898 = vunpack.c.h.b16 %v4203
        %v4899 = vunpack.c.l.b16 %v4204
        %v4900 = vunpack.c.h.b16 %v4204
        %v4901 = vunpack.c.l.b16 %v4205
        %v4902 = vunpack.c.h.b16 %v4205
        %v4903 = vunpack.c.l.b16 %v4206
        %v4904 = vunpack.c.h.b16 %v4206
        %v4905 = vunpack.c.l.b16 %v4207
        %v4906 = vunpack.c.h.b16 %v4207
        %v4907 = vunpack.c.l.b16 %v4208
        %v4908 = vunpack.c.h.b16 %v4208
        %v4909 = vunpack.c.l.b16 %v4209
        %v4910 = vunpack.c.h.b16 %v4209
        %v4911 = vunpack.c.l.b16 %v4210
        %v4912 = vunpack.c.h.b16 %v4210
        %v4913 = vunpack.c.l.b16 %v4211
        %v4914 = vunpack.c.h.b16 %v4211
        %v4915 = vunpack.c.l.b16 %v4212
        %v4916 = vunpack.c.h.b16 %v4212
        %v4917 = vunpack.c.l.b16 %v4213
        %v4918 = vunpack.c.h.b16 %v4213
        %v4919 = vunpack.c.l.b16 %v4214
        %v4920 = vunpack.c.h.b16 %v4214
        %v4921 = vunpack.c.l.b16 %v4215
        %v4922 = vunpack.c.h.b16 %v4215
        %v4923 = vunpack.c.l.b16 %v4216
        %v4924 = vunpack.c.h.b16 %v4216
        %v4925 = vunpack.c.l.b16 %v4217
        %v4926 = vunpack.c.h.b16 %v4217
        %v4927 = vunpack.c.l.b16 %v4218
        %v4928 = vunpack.c.h.b16 %v4218
        %v4929 = vunpack.c.l.b16 %v4219
        %v4930 = vunpack.c.h.b16 %v4219
        %v4931 = vunpack.c.l.b16 %v4220
        %v4932 = vunpack.c.h.b16 %v4220
        %v4933 = vunpack.c.l.b16 %v4221
        %v4934 = vunpack.c.h.b16 %v4221
        %v4935 = vunpack.c.l.b16 %v4222
        %v4936 = vunpack.c.h.b16 %v4222
        %v4937 = vunpack.c.l.b16 %v4223
        %v4938 = vunpack.c.h.b16 %v4223
        %v4939 = vunpack.c.l.b16 %v4224
        %v4940 = vunpack.c.h.b16 %v4224
        %v4941 = vunpack.c.l.b16 %v4225
        %v4942 = vunpack.c.h.b16 %v4225
        %v4943 = vunpack.c.l.b16 %v4226
        %v4944 = vunpack.c.h.b16 %v4226
        %v4945 = vunpack.c.l.b16 %v4227
        %v4946 = vunpack.c.h.b16 %v4227
        %v4947 = vunpack.c.l.b16 %v4228
        %v4948 = vunpack.c.h.b16 %v4228
        %v4949 = vunpack.c.l.b16 %v4229
        %v4950 = vunpack.c.h.b16 %v4229
        %v4951 = vunpack.c.l.b16 %v4230
        %v4952 = vunpack.c.h.b16 %v4230
        %v4953 = vunpack.c.l.b16 %v4231
        %v4954 = vunpack.c.h.b16 %v4231
        %v4955 = vunpack.c.l.b16 %v4232
        %v4956 = vunpack.c.h.b16 %v4232
        %v4957 = vunpack.c.l.b16 %v4233
        %v4958 = vunpack.c.h.b16 %v4233
        %v4959 = vunpack.c.l.b16 %v4234
        %v4960 = vunpack.c.h.b16 %v4234
        %v4961 = vunpack.c.l.b16 %v4235
        %v4962 = vunpack.c.h.b16 %v4235
        %v4963 = vunpack.c.l.b16 %v4236
        %v4964 = vunpack.c.h.b16 %v4236
        %v4965 = vunpack.c.l.b16 %v4237
        %v4966 = vunpack.c.h.b16 %v4237
        %v4967 = vunpack.c.l.b16 %v4238
        %v4968 = vunpack.c.h.b16 %v4238
        %v4969 = vunpack.c.l.b16 %v4239
        %v4970 = vunpack.c.h.b16 %v4239
        %v4971 = vunpack.c.l.b16 %v4240
        %v4972 = vunpack.c.h.b16 %v4240
        %v4973 = vunpack.c.l.b16 %v4241
        %v4974 = vunpack.c.h.b16 %v4241
        %v4975 = vunpack.c.l.b16 %v4242
        %v4976 = vunpack.c.h.b16 %v4242
        %v4977 = vunpack.c.l.b16 %v4243
        %v4978 = vunpack.c.h.b16 %v4243
        %v4979 = vunpack.c.l.b16 %v4244
        %v4980 = vunpack.c.h.b16 %v4244
        %v4981 = vunpack.c.l.b16 %v4245
        %v4982 = vunpack.c.h.b16 %v4245
        %v4983 = vunpack.c.l.b16 %v4246
        %v4984 = vunpack.c.h.b16 %v4246
        %v4985 = vunpack.c.l.b16 %v4247
        %v4986 = vunpack.c.h.b16 %v4247
        %v4987 = vunpack.c.l.b16 %v4248
        %v4988 = vunpack.c.h.b16 %v4248
        %v4989 = vunpack.c.l.b16 %v4249
        %v4990 = vunpack.c.h.b16 %v4249
        %v4991 = vunpack.c.l.b16 %v4250
        %v4992 = vunpack.c.h.b16 %v4250
        %v4993 = vunpack.c.l.b16 %v4251
        %v4994 = vunpack.c.h.b16 %v4251
        %v4995 = vunpack.c.l.b16 %v4252
        %v4996 = vunpack.c.h.b16 %v4252
        %v4997 = vunpack.c.l.b16 %v4253
        %v4998 = vunpack.c.h.b16 %v4253
        %v4999 = vunpack.c.l.b16 %v4254
        %v5000 = vunpack.c.h.b16 %v4254
        %v5001 = vunpack.c.l.b16 %v4255
        %v5002 = vunpack.c.h.b16 %v4255
        %v5003 = vunpack.c.l.b16 %v4256
        %v5004 = vunpack.c.h.b16 %v4256
        %v5005 = vunpack.c.l.b16 %v4257
        %v5006 = vunpack.c.h.b16 %v4257
        %v5007 = vunpack.c.l.b16 %v4258
        %v5008 = vunpack.c.h.b16 %v4258
        %v5009 = vunpack.c.l.b16 %v4259
        %v5010 = vunpack.c.h.b16 %v4259
        %v5011 = vunpack.c.l.b16 %v4260
        %v5012 = vunpack.c.h.b16 %v4260
        %v5013 = vunpack.c.l.b16 %v4261
        %v5014 = vunpack.c.h.b16 %v4261
        %v5015 = vunpack.c.l.b16 %v4262
        %v5016 = vunpack.c.h.b16 %v4262
        %v5017 = vunpack.c.l.b16 %v4263
        %v5018 = vunpack.c.h.b16 %v4263
        %v5019 = vunpack.c.l.b16 %v4264
        %v5020 = vunpack.c.h.b16 %v4264
        %v5021 = vunpack.c.l.b16 %v4265
        %v5022 = vunpack.c.h.b16 %v4265
        %v5023 = vunpack.c.l.b16 %v4266
        %v5024 = vunpack.c.h.b16 %v4266
        %v5025 = vunpack.c.l.b16 %v4267
        %v5026 = vunpack.c.h.b16 %v4267
        %v5027 = vunpack.c.l.b16 %v4268
        %v5028 = vunpack.c.h.b16 %v4268
        %v5029 = vunpack.c.l.b16 %v4269
        %v5030 = vunpack.c.h.b16 %v4269
        %v5031 = vunpack.c.l.b16 %v4270
        %v5032 = vunpack.c.h.b16 %v4270
        %v5033 = vunpack.c.l.b16 %v4271
        %v5034 = vunpack.c.h.b16 %v4271
        %v5035 = vunpack.c.l.b16 %v4272
        %v5036 = vunpack.c.h.b16 %v4272
        %v5037 = vunpack.c.l.b16 %v4273
        %v5038 = vunpack.c.h.b16 %v4273
        %v5039 = vunpack.c.l.b16 %v4274
        %v5040 = vunpack.c.h.b16 %v4274
        %v5041 = vunpack.c.l.b16 %v4275
        %v5042 = vunpack.c.h.b16 %v4275
        %v5043 = vunpack.c.l.b16 %v4276
        %v5044 = vunpack.c.h.b16 %v4276
        %v5045 = vunpack.c.l.b16 %v4277
        %v5046 = vunpack.c.h.b16 %v4277
        %v5047 = vunpack.c.l.b16 %v4278
        %v5048 = vunpack.c.h.b16 %v4278
        %v5049 = vunpack.c.l.b16 %v4279
        %v5050 = vunpack.c.h.b16 %v4279
        %v5051 = vunpack.c.l.b16 %v4280
        %v5052 = vunpack.c.h.b16 %v4280
        %v5053 = vunpack.c.l.b16 %v4281
        %v5054 = vunpack.c.h.b16 %v4281
        %v5055 = vunpack.c.l.b16 %v4282
        %v5056 = vunpack.c.h.b16 %v4282
        %v5057 = vpack.c.b16 %v4577, %v4545
        %v5058 = vpack.c.b16 %v4578, %v4546
        %v5059 = vpack.c.b16 %v4579, %v4547
        %v5060 = vpack.c.b16 %v4580, %v4548
        %v5061 = vpack.c.b16 %v4581, %v4549
        %v5062 = vpack.c.b16 %v4582, %v4550
        %v5063 = vpack.c.b16 %v4583, %v4551
        %v5064 = vpack.c.b16 %v4584, %v4552
        %v5065 = vpack.c.b16 %v4585, %v4553
        %v5066 = vpack.c.b16 %v4586, %v4554
        %v5067 = vpack.c.b16 %v4587, %v4555
        %v5068 = vpack.c.b16 %v4588, %v4556
        %v5069 = vpack.c.b16 %v4589, %v4557
        %v5070 = vpack.c.b16 %v4590, %v4558
        %v5071 = vpack.c.b16 %v4591, %v4559
        %v5072 = vpack.c.b16 %v4592, %v4560
        %v5073 = vpack.c.b16 %v4593, %v4561
        %v5074 = vpack.c.b16 %v4594, %v4562
        %v5075 = vpack.c.b16 %v4595, %v4563
        %v5076 = vpack.c.b16 %v4596, %v4564
        %v5077 = vpack.c.b16 %v4597, %v4565
        %v5078 = vpack.c.b16 %v4598, %v4566
        %v5079 = vpack.c.b16 %v4599, %v4567
        %v5080 = vpack.c.b16 %v4600, %v4568
        %v5081 = vpack.c.b16 %v4601, %v4569
        %v5082 = vpack.c.b16 %v4602, %v4570
        %v5083 = vpack.c.b16 %v4603, %v4571
        %v5084 = vpack.c.b16 %v4604, %v4572
        %v5085 = vpack.c.b16 %v4605, %v4573
        %v5086 = vpack.c.b16 %v4606, %v4574
        %v5087 = vpack.c.b16 %v4607, %v4575
        %v5088 = vpack.c.b16 %v4608, %v4576
        %v5089 = vpack.c.b16 %v4641, %v4609
        %v5090 = vpack.c.b16 %v4642, %v4610
        %v5091 = vpack.c.b16 %v4643, %v4611
        %v5092 = vpack.c.b16 %v4644, %v4612
        %v5093 = vpack.c.b16 %v4645, %v4613
        %v5094 = vpack.c.b16 %v4646, %v4614
        %v5095 = vpack.c.b16 %v4647, %v4615
        %v5096 = vpack.c.b16 %v4648, %v4616
        %v5097 = vpack.c.b16 %v4649, %v4617
        %v5098 = vpack.c.b16 %v4650, %v4618
        %v5099 = vpack.c.b16 %v4651, %v4619
        %v5100 = vpack.c.b16 %v4652, %v4620
        %v5101 = vpack.c.b16 %v4653, %v4621
        %v5102 = vpack.c.b16 %v4654, %v4622
        %v5103 = vpack.c.b16 %v4655, %v4623
        %v5104 = vpack.c.b16 %v4656, %v4624
        %v5105 = vpack.c.b16 %v4657, %v4625
        %v5106 = vpack.c.b16 %v4658, %v4626
        %v5107 = vpack.c.b16 %v4659, %v4627
        %v5108 = vpack.c.b16 %v4660, %v4628
        %v5109 = vpack.c.b16 %v4661, %v4629
        %v5110 = vpack.c.b16 %v4662, %v4630
        %v5111 = vpack.c.b16 %v4663, %v4631
        %v5112 = vpack.c.b16 %v4664, %v4632
        %v5113 = vpack.c.b16 %v4665, %v4633
        %v5114 = vpack.c.b16 %v4666, %v4634
        %v5115 = vpack.c.b16 %v4667, %v4635
        %v5116 = vpack.c.b16 %v4668, %v4636
        %v5117 = vpack.c.b16 %v4669, %v4637
        %v5118 = vpack.c.b16 %v4670, %v4638
        %v5119 = vpack.c.b16 %v4671, %v4639
        %v5120 = vpack.c.b16 %v4672, %v4640
        %v5121 = vpack.c.b16 %v4705, %v4673
        %v5122 = vpack.c.b16 %v4706, %v4674
        %v5123 = vpack.c.b16 %v4707, %v4675
        %v5124 = vpack.c.b16 %v4708, %v4676
        %v5125 = vpack.c.b16 %v4709, %v4677
        %v5126 = vpack.c.b16 %v4710, %v4678
        %v5127 = vpack.c.b16 %v4711, %v4679
        %v5128 = vpack.c.b16 %v4712, %v4680
        %v5129 = vpack.c.b16 %v4713, %v4681
        %v5130 = vpack.c.b16 %v4714, %v4682
        %v5131 = vpack.c.b16 %v4715, %v4683
        %v5132 = vpack.c.b16 %v4716, %v4684
        %v5133 = vpack.c.b16 %v4717, %v4685
        %v5134 = vpack.c.b16 %v4718, %v4686
        %v5135 = vpack.c.b16 %v4719, %v4687
        %v5136 = vpack.c.b16 %v4720, %v4688
        %v5137 = vpack.c.b16 %v4721, %v4689
        %v5138 = vpack.c.b16 %v4722, %v4690
        %v5139 = vpack.c.b16 %v4723, %v4691
        %v5140 = vpack.c.b16 %v4724, %v4692
        %v5141 = vpack.c.b16 %v4725, %v4693
        %v5142 = vpack.c.b16 %v4726, %v4694
        %v5143 = vpack.c.b16 %v4727, %v4695
        %v5144 = vpack.c.b16 %v4728, %v4696
        %v5145 = vpack.c.b16 %v4729, %v4697
        %v5146 = vpack.c.b16 %v4730, %v4698
        %v5147 = vpack.c.b16 %v4731, %v4699
        %v5148 = vpack.c.b16 %v4732, %v4700
        %v5149 = vpack.c.b16 %v4733, %v4701
        %v5150 = vpack.c.b16 %v4734, %v4702
        %v5151 = vpack.c.b16 %v4735, %v4703
        %v5152 = vpack.c.b16 %v4736, %v4704
        %v5153 = vpack.c.b16 %v4769, %v4737
        %v5154 = vpack.c.b16 %v4770, %v4738
        %v5155 = vpack.c.b16 %v4771, %v4739
        %v5156 = vpack.c.b16 %v4772, %v4740
        %v5157 = vpack.c.b16 %v4773, %v4741
        %v5158 = vpack.c.b16 %v4774, %v4742
        %v5159 = vpack.c.b16 %v4775, %v4743
        %v5160 = vpack.c.b16 %v4776, %v4744
        %v5161 = vpack.c.b16 %v4777, %v4745
        %v5162 = vpack.c.b16 %v4778, %v4746
        %v5163 = vpack.c.b16 %v4779, %v4747
        %v5164 = vpack.c.b16 %v4780, %v4748
        %v5165 = vpack.c.b16 %v4781, %v4749
        %v5166 = vpack.c.b16 %v4782, %v4750
        %v5167 = vpack.c.b16 %v4783, %v4751
        %v5168 = vpack.c.b16 %v4784, %v4752
        %v5169 = vpack.c.b16 %v4785, %v4753
        %v5170 = vpack.c.b16 %v4786, %v4754
        %v5171 = vpack.c.b16 %v4787, %v4755
        %v5172 = vpack.c.b16 %v4788, %v4756
        %v5173 = vpack.c.b16 %v4789, %v4757
        %v5174 = vpack.c.b16 %v4790, %v4758
        %v5175 = vpack.c.b16 %v4791, %v4759
        %v5176 = vpack.c.b16 %v4792, %v4760
        %v5177 = vpack.c.b16 %v4793, %v4761
        %v5178 = vpack.c.b16 %v4794, %v4762
        %v5179 = vpack.c.b16 %v4795, %v4763
        %v5180 = vpack.c.b16 %v4796, %v4764
        %v5181 = vpack.c.b16 %v4797, %v4765
        %v5182 = vpack.c.b16 %v4798, %v4766
        %v5183 = vpack.c.b16 %v4799, %v4767
        %v5184 = vpack.c.b16 %v4800, %v4768
        %v5185 = vpack.c.b16 %v4833, %v4801
        %v5186 = vpack.c.b16 %v4834, %v4802
        %v5187 = vpack.c.b16 %v4835, %v4803
        %v5188 = vpack.c.b16 %v4836, %v4804
        %v5189 = vpack.c.b16 %v4837, %v4805
        %v5190 = vpack.c.b16 %v4838, %v4806
        %v5191 = vpack.c.b16 %v4839, %v4807
        %v5192 = vpack.c.b16 %v4840, %v4808
        %v5193 = vpack.c.b16 %v4841, %v4809
        %v5194 = vpack.c.b16 %v4842, %v4810
        %v5195 = vpack.c.b16 %v4843, %v4811
        %v5196 = vpack.c.b16 %v4844, %v4812
        %v5197 = vpack.c.b16 %v4845, %v4813
        %v5198 = vpack.c.b16 %v4846, %v4814
        %v5199 = vpack.c.b16 %v4847, %v4815
        %v5200 = vpack.c.b16 %v4848, %v4816
        %v5201 = vpack.c.b16 %v4849, %v4817
        %v5202 = vpack.c.b16 %v4850, %v4818
        %v5203 = vpack.c.b16 %v4851, %v4819
        %v5204 = vpack.c.b16 %v4852, %v4820
        %v5205 = vpack.c.b16 %v4853, %v4821
        %v5206 = vpack.c.b16 %v4854, %v4822
        %v5207 = vpack.c.b16 %v4855, %v4823
        %v5208 = vpack.c.b16 %v4856, %v4824
        %v5209 = vpack.c.b16 %v4857, %v4825
        %v5210 = vpack.c.b16 %v4858, %v4826
        %v5211 = vpack.c.b16 %v4859, %v4827
        %v5212 = vpack.c.b16 %v4860, %v4828
        %v5213 = vpack.c.b16 %v4861, %v4829
        %v5214 = vpack.c.b16 %v4862, %v4830
        %v5215 = vpack.c.b16 %v4863, %v4831
        %v5216 = vpack.c.b16 %v4864, %v4832
        %v5217 = vpack.c.b16 %v4897, %v4865
        %v5218 = vpack.c.b16 %v4898, %v4866
        %v5219 = vpack.c.b16 %v4899, %v4867
        %v5220 = vpack.c.b16 %v4900, %v4868
        %v5221 = vpack.c.b16 %v4901, %v4869
        %v5222 = vpack.c.b16 %v4902, %v4870
        %v5223 = vpack.c.b16 %v4903, %v4871
        %v5224 = vpack.c.b16 %v4904, %v4872
        %v5225 = vpack.c.b16 %v4905, %v4873
        %v5226 = vpack.c.b16 %v4906, %v4874
        %v5227 = vpack.c.b16 %v4907, %v4875
        %v5228 = vpack.c.b16 %v4908, %v4876
        %v5229 = vpack.c.b16 %v4909, %v4877
        %v5230 = vpack.c.b16 %v4910, %v4878
        %v5231 = vpack.c.b16 %v4911, %v4879
        %v5232 = vpack.c.b16 %v4912, %v4880
        %v5233 = vpack.c.b16 %v4913, %v4881
        %v5234 = vpack.c.b16 %v4914, %v4882
        %v5235 = vpack.c.b16 %v4915, %v4883
        %v5236 = vpack.c.b16 %v4916, %v4884
        %v5237 = vpack.c.b16 %v4917, %v4885
        %v5238 = vpack.c.b16 %v4918, %v4886
        %v5239 = vpack.c.b16 %v4919, %v4887
        %v5240 = vpack.c.b16 %v4920, %v4888
        %v5241 = vpack.c.b16 %v4921, %v4889
        %v5242 = vpack.c.b16 %v4922, %v4890
        %v5243 = vpack.c.b16 %v4923, %v4891
        %v5244 = vpack.c.b16 %v4924, %v4892
        %v5245 = vpack.c.b16 %v4925, %v4893
        %v5246 = vpack.c.b16 %v4926, %v4894
        %v5247 = vpack.c.b16 %v4927, %v4895
        %v5248 = vpack.c.b16 %v4928, %v4896
        %v5249 = vpack.c.b16 %v4961, %v4929
        %v5250 = vpack.c.b16 %v4962, %v4930
        %v5251 = vpack.c.b16 %v4963, %v4931
        %v5252 = vpack.c.b16 %v4964, %v4932
        %v5253 = vpack.c.b16 %v4965, %v4933
        %v5254 = vpack.c.b16 %v4966, %v4934
        %v5255 = vpack.c.b16 %v4967, %v4935
        %v5256 = vpack.c.b16 %v4968, %v4936
        %v5257 = vpack.c.b16 %v4969, %v4937
        %v5258 = vpack.c.b16 %v4970, %v4938
        %v5259 = vpack.c.b16 %v4971, %v4939
        %v5260 = vpack.c.b16 %v4972, %v4940
        %v5261 = vpack.c.b16 %v4973, %v4941
        %v5262 = vpack.c.b16 %v4974, %v4942
        %v5263 = vpack.c.b16 %v4975, %v4943
        %v5264 = vpack.c.b16 %v4976, %v4944
        %v5265 = vpack.c.b16 %v4977, %v4945
        %v5266 = vpack.c.b16 %v4978, %v4946
        %v5267 = vpack.c.b16 %v4979, %v4947
        %v5268 = vpack.c.b16 %v4980, %v4948
        %v5269 = vpack.c.b16 %v4981, %v4949
        %v5270 = vpack.c.b16 %v4982, %v4950
        %v5271 = vpack.c.b16 %v4983, %v4951
        %v5272 = vpack.c.b16 %v4984, %v4952
        %v5273 = vpack.c.b16 %v4985, %v4953
        %v5274 = vpack.c.b16 %v4986, %v4954
        %v5275 = vpack.c.b16 %v4987, %v4955
        %v5276 = vpack.c.b16 %v4988, %v4956
        %v5277 = vpack.c.b16 %v4989, %v4957
        %v5278 = vpack.c.b16 %v4990, %v4958
        %v5279 = vpack.c.b16 %v4991, %v4959
        %v5280 = vpack.c.b16 %v4992, %v4960
        %v5281 = vpack.c.b16 %v5025, %v4993
        %v5282 = vpack.c.b16 %v5026, %v4994
        %v5283 = vpack.c.b16 %v5027, %v4995
        %v5284 = vpack.c.b16 %v5028, %v4996
        %v5285 = vpack.c.b16 %v5029, %v4997
        %v5286 = vpack.c.b16 %v5030, %v4998
        %v5287 = vpack.c.b16 %v5031, %v4999
        %v5288 = vpack.c.b16 %v5032, %v5000
        %v5289 = vpack.c.b16 %v5033, %v5001
        %v5290 = vpack.c.b16 %v5034, %v5002
        %v5291 = vpack.c.b16 %v5035, %v5003
        %v5292 = vpack.c.b16 %v5036, %v5004
        %v5293 = vpack.c.b16 %v5037, %v5005
        %v5294 = vpack.c.b16 %v5038, %v5006
        %v5295 = vpack.c.b16 %v5039, %v5007
        %v5296 = vpack.c.b16 %v5040, %v5008
        %v5297 = vpack.c.b16 %v5041, %v5009
        %v5298 = vpack.c.b16 %v5042, %v5010
        %v5299 = vpack.c.b16 %v5043, %v5011
        %v5300 = vpack.c.b16 %v5044, %v5012
        %v5301 = vpack.c.b16 %v5045, %v5013
        %v5302 = vpack.c.b16 %v5046, %v5014
        %v5303 = vpack.c.b16 %v5047, %v5015
        %v5304 = vpack.c.b16 %v5048, %v5016
        %v5305 = vpack.c.b16 %v5049, %v5017
        %v5306 = vpack.c.b16 %v5050, %v5018
        %v5307 = vpack.c.b16 %v5051, %v5019
        %v5308 = vpack.c.b16 %v5052, %v5020
        %v5309 = vpack.c.b16 %v5053, %v5021
        %v5310 = vpack.c.b16 %v5054, %v5022
        %v5311 = vpack.c.b16 %v5055, %v5023
        %v5312 = vpack.c.b16 %v5056, %v5024
        %5569 = vmatprep.subr.bf16.mxu0 %v5282
        %5570 = vmatpush1.bf16.msra.mxu0 %v5281
        %5571 = vmatprep.subr.bf16.mxu0 %v5250
        %5572 = vmatpush1.bf16.msra.mxu0 %v5249
        %5573 = vmatprep.subr.bf16.mxu0 %v5218
        %5574 = vmatpush1.bf16.msra.mxu0 %v5217
        %5575 = vmatprep.subr.bf16.mxu0 %v5186
        %5576 = vmatpush1.bf16.msra.mxu0 %v5185
        %5577 = vmatprep.subr.bf16.mxu0 %v5154
        %5578 = vmatpush1.bf16.msra.mxu0 %v5153
        %5579 = vmatprep.subr.bf16.mxu0 %v5122
        %5580 = vmatpush1.bf16.msra.mxu0 %v5121
        %5581 = vmatprep.subr.bf16.mxu0 %v5090
        %5582 = vmatpush1.bf16.msra.mxu0 %v5089
        %5583 = vmatprep.subr.bf16.mxu0 %v5058
        %5584 = vmatpush1.bf16.msra.mxu0 %v5057
        %5585 = vmatprep.subr.bf16.mxu0 0
        %5586 = vmatpush2.bf16.msra.mxu0 0
        %5587 = vmatprep.subr.bf16.mxu0 0
        %5588 = vmatpush2.bf16.msra.mxu0 0
        %5589 = vmatprep.subr.bf16.mxu0 0
        %5590 = vmatpush2.bf16.msra.mxu0 0
        %5591 = vmatprep.subr.bf16.mxu0 0
        %5592 = vmatpush2.bf16.msra.mxu0 0
        %5593 = vmatprep.subr.bf16.mxu0 0
        %5594 = vmatpush2.bf16.msra.mxu0 0
        %5595 = vmatprep.subr.bf16.mxu0 0
        %5596 = vmatpush2.bf16.msra.mxu0 0
        %5597 = vmatprep.subr.bf16.mxu0 0
        %5598 = vmatpush2.bf16.msra.mxu0 0
        %5599 = vmatprep.subr.bf16.mxu0 0
        %5600 = vmatpush2.bf16.msra.mxu0 0
        %5601 = vmatprep.mubr.bf16.mxu0 0
        %5602 = vmatmul.mubr.bf16.gmra.mxu0 %v4287
        %v5603 = vpop.f32.mrf.mxu0
        %v5604 = vadd.f32 0.0, %v5603
        %v5605 = vpop.f32.mrf.mxu0
        %v5606 = vadd.f32 0.0, %v5605
        %v5607 = vpop.f32.mrf.mxu0
        %v5608 = vadd.f32 0.0, %v5607
        %v5609 = vpop.f32.mrf.mxu0
        %v5610 = vadd.f32 0.0, %v5609
        %5611 = vdwg.mxu0
        %5612 = vmatprep.subr.bf16.mxu0 %v5284
        %5613 = vmatpush1.bf16.msra.mxu0 %v5283
        %5614 = vmatprep.subr.bf16.mxu0 %v5252
        %5615 = vmatpush1.bf16.msra.mxu0 %v5251
        %5616 = vmatprep.subr.bf16.mxu0 %v5220
        %5617 = vmatpush1.bf16.msra.mxu0 %v5219
        %5618 = vmatprep.subr.bf16.mxu0 %v5188
        %5619 = vmatpush1.bf16.msra.mxu0 %v5187
        %5620 = vmatprep.subr.bf16.mxu0 %v5156
        %5621 = vmatpush1.bf16.msra.mxu0 %v5155
        %5622 = vmatprep.subr.bf16.mxu0 %v5124
        %5623 = vmatpush1.bf16.msra.mxu0 %v5123
        %5624 = vmatprep.subr.bf16.mxu0 %v5092
        %5625 = vmatpush1.bf16.msra.mxu0 %v5091
        %5626 = vmatprep.subr.bf16.mxu0 %v5060
        %5627 = vmatpush1.bf16.msra.mxu0 %v5059
        %5628 = vmatprep.subr.bf16.mxu0 0
        %5629 = vmatpush2.bf16.msra.mxu0 0
        %5630 = vmatprep.subr.bf16.mxu0 0
        %5631 = vmatpush2.bf16.msra.mxu0 0
        %5632 = vmatprep.subr.bf16.mxu0 0
        %5633 = vmatpush2.bf16.msra.mxu0 0
        %5634 = vmatprep.subr.bf16.mxu0 0
        %5635 = vmatpush2.bf16.msra.mxu0 0
        %5636 = vmatprep.subr.bf16.mxu0 0
        %5637 = vmatpush2.bf16.msra.mxu0 0
        %5638 = vmatprep.subr.bf16.mxu0 0
        %5639 = vmatpush2.bf16.msra.mxu0 0
        %5640 = vmatprep.subr.bf16.mxu0 0
        %5641 = vmatpush2.bf16.msra.mxu0 0
        %5642 = vmatprep.subr.bf16.mxu0 0
        %5643 = vmatpush2.bf16.msra.mxu0 0
        %5644 = vmatprep.mubr.bf16.mxu0 0
        %5645 = vmatmul.mubr.bf16.gmra.mxu0 %v4287
        %v5646 = vpop.f32.mrf.mxu0
        %v5647 = vadd.f32 0.0, %v5646
        %v5648 = vpop.f32.mrf.mxu0
        %v5649 = vadd.f32 0.0, %v5648
        %v5650 = vpop.f32.mrf.mxu0
        %v5651 = vadd.f32 0.0, %v5650
        %v5652 = vpop.f32.mrf.mxu0
        %v5653 = vadd.f32 0.0, %v5652
        %5654 = vdwg.mxu0
        %5655 = vmatprep.subr.bf16.mxu0 %v5286
        %5656 = vmatpush1.bf16.msra.mxu0 %v5285
        %5657 = vmatprep.subr.bf16.mxu0 %v5254
        %5658 = vmatpush1.bf16.msra.mxu0 %v5253
        %5659 = vmatprep.subr.bf16.mxu0 %v5222
        %5660 = vmatpush1.bf16.msra.mxu0 %v5221
        %5661 = vmatprep.subr.bf16.mxu0 %v5190
        %5662 = vmatpush1.bf16.msra.mxu0 %v5189
        %5663 = vmatprep.subr.bf16.mxu0 %v5158
        %5664 = vmatpush1.bf16.msra.mxu0 %v5157
        %5665 = vmatprep.subr.bf16.mxu0 %v5126
        %5666 = vmatpush1.bf16.msra.mxu0 %v5125
        %5667 = vmatprep.subr.bf16.mxu0 %v5094
        %5668 = vmatpush1.bf16.msra.mxu0 %v5093
        %5669 = vmatprep.subr.bf16.mxu0 %v5062
        %5670 = vmatpush1.bf16.msra.mxu0 %v5061
        %5671 = vmatprep.subr.bf16.mxu0 0
        %5672 = vmatpush2.bf16.msra.mxu0 0
        %5673 = vmatprep.subr.bf16.mxu0 0
        %5674 = vmatpush2.bf16.msra.mxu0 0
        %5675 = vmatprep.subr.bf16.mxu0 0
        %5676 = vmatpush2.bf16.msra.mxu0 0
        %5677 = vmatprep.subr.bf16.mxu0 0
        %5678 = vmatpush2.bf16.msra.mxu0 0
        %5679 = vmatprep.subr.bf16.mxu0 0
        %5680 = vmatpush2.bf16.msra.mxu0 0
        %5681 = vmatprep.subr.bf16.mxu0 0
        %5682 = vmatpush2.bf16.msra.mxu0 0
        %5683 = vmatprep.subr.bf16.mxu0 0
        %5684 = vmatpush2.bf16.msra.mxu0 0
        %5685 = vmatprep.subr.bf16.mxu0 0
        %5686 = vmatpush2.bf16.msra.mxu0 0
        %5687 = vmatprep.mubr.bf16.mxu0 0
        %5688 = vmatmul.mubr.bf16.gmra.mxu0 %v4287
        %v5689 = vpop.f32.mrf.mxu0
        %v5690 = vadd.f32 0.0, %v5689
        %v5691 = vpop.f32.mrf.mxu0
        %v5692 = vadd.f32 0.0, %v5691
        %v5693 = vpop.f32.mrf.mxu0
        %v5694 = vadd.f32 0.0, %v5693
        %v5695 = vpop.f32.mrf.mxu0
        %v5696 = vadd.f32 0.0, %v5695
        %5697 = vdwg.mxu0
        %5698 = vmatprep.subr.bf16.mxu0 %v5288
        %5699 = vmatpush1.bf16.msra.mxu0 %v5287
        %5700 = vmatprep.subr.bf16.mxu0 %v5256
        %5701 = vmatpush1.bf16.msra.mxu0 %v5255
        %5702 = vmatprep.subr.bf16.mxu0 %v5224
        %5703 = vmatpush1.bf16.msra.mxu0 %v5223
        %5704 = vmatprep.subr.bf16.mxu0 %v5192
        %5705 = vmatpush1.bf16.msra.mxu0 %v5191
        %5706 = vmatprep.subr.bf16.mxu0 %v5160
        %5707 = vmatpush1.bf16.msra.mxu0 %v5159
        %5708 = vmatprep.subr.bf16.mxu0 %v5128
        %5709 = vmatpush1.bf16.msra.mxu0 %v5127
        %5710 = vmatprep.subr.bf16.mxu0 %v5096
        %5711 = vmatpush1.bf16.msra.mxu0 %v5095
        %5712 = vmatprep.subr.bf16.mxu0 %v5064
        %5713 = vmatpush1.bf16.msra.mxu0 %v5063
        %5714 = vmatprep.subr.bf16.mxu0 0
        %5715 = vmatpush2.bf16.msra.mxu0 0
        %5716 = vmatprep.subr.bf16.mxu0 0
        %5717 = vmatpush2.bf16.msra.mxu0 0
        %5718 = vmatprep.subr.bf16.mxu0 0
        %5719 = vmatpush2.bf16.msra.mxu0 0
        %5720 = vmatprep.subr.bf16.mxu0 0
        %5721 = vmatpush2.bf16.msra.mxu0 0
        %5722 = vmatprep.subr.bf16.mxu0 0
        %5723 = vmatpush2.bf16.msra.mxu0 0
        %5724 = vmatprep.subr.bf16.mxu0 0
        %5725 = vmatpush2.bf16.msra.mxu0 0
        %5726 = vmatprep.subr.bf16.mxu0 0
        %5727 = vmatpush2.bf16.msra.mxu0 0
        %5728 = vmatprep.subr.bf16.mxu0 0
        %5729 = vmatpush2.bf16.msra.mxu0 0
        %5730 = vmatprep.mubr.bf16.mxu0 0
        %5731 = vmatmul.mubr.bf16.gmra.mxu0 %v4287
        %v5732 = vpop.f32.mrf.mxu0
        %v5733 = vadd.f32 0.0, %v5732
        %v5734 = vpop.f32.mrf.mxu0
        %v5735 = vadd.f32 0.0, %v5734
        %v5736 = vpop.f32.mrf.mxu0
        %v5737 = vadd.f32 0.0, %v5736
        %v5738 = vpop.f32.mrf.mxu0
        %v5739 = vadd.f32 0.0, %v5738
        %5740 = vdwg.mxu0
        %5741 = vmatprep.subr.bf16.mxu0 %v5290
        %5742 = vmatpush1.bf16.msra.mxu0 %v5289
        %5743 = vmatprep.subr.bf16.mxu0 %v5258
        %5744 = vmatpush1.bf16.msra.mxu0 %v5257
        %5745 = vmatprep.subr.bf16.mxu0 %v5226
        %5746 = vmatpush1.bf16.msra.mxu0 %v5225
        %5747 = vmatprep.subr.bf16.mxu0 %v5194
        %5748 = vmatpush1.bf16.msra.mxu0 %v5193
        %5749 = vmatprep.subr.bf16.mxu0 %v5162
        %5750 = vmatpush1.bf16.msra.mxu0 %v5161
        %5751 = vmatprep.subr.bf16.mxu0 %v5130
        %5752 = vmatpush1.bf16.msra.mxu0 %v5129
        %5753 = vmatprep.subr.bf16.mxu0 %v5098
        %5754 = vmatpush1.bf16.msra.mxu0 %v5097
        %5755 = vmatprep.subr.bf16.mxu0 %v5066
        %5756 = vmatpush1.bf16.msra.mxu0 %v5065
        %5757 = vmatprep.subr.bf16.mxu0 0
        %5758 = vmatpush2.bf16.msra.mxu0 0
        %5759 = vmatprep.subr.bf16.mxu0 0
        %5760 = vmatpush2.bf16.msra.mxu0 0
        %5761 = vmatprep.subr.bf16.mxu0 0
        %5762 = vmatpush2.bf16.msra.mxu0 0
        %5763 = vmatprep.subr.bf16.mxu0 0
        %5764 = vmatpush2.bf16.msra.mxu0 0
        %5765 = vmatprep.subr.bf16.mxu0 0
        %5766 = vmatpush2.bf16.msra.mxu0 0
        %5767 = vmatprep.subr.bf16.mxu0 0
        %5768 = vmatpush2.bf16.msra.mxu0 0
        %5769 = vmatprep.subr.bf16.mxu0 0
        %5770 = vmatpush2.bf16.msra.mxu0 0
        %5771 = vmatprep.subr.bf16.mxu0 0
        %5772 = vmatpush2.bf16.msra.mxu0 0
        %5773 = vmatprep.mubr.bf16.mxu0 0
        %5774 = vmatmul.mubr.bf16.gmra.mxu0 %v4287
        %v5775 = vpop.f32.mrf.mxu0
        %v5776 = vadd.f32 0.0, %v5775
        %v5777 = vpop.f32.mrf.mxu0
        %v5778 = vadd.f32 0.0, %v5777
        %v5779 = vpop.f32.mrf.mxu0
        %v5780 = vadd.f32 0.0, %v5779
        %v5781 = vpop.f32.mrf.mxu0
        %v5782 = vadd.f32 0.0, %v5781
        %5783 = vdwg.mxu0
        %5784 = vmatprep.subr.bf16.mxu0 %v5292
        %5785 = vmatpush1.bf16.msra.mxu0 %v5291
        %5786 = vmatprep.subr.bf16.mxu0 %v5260
        %5787 = vmatpush1.bf16.msra.mxu0 %v5259
        %5788 = vmatprep.subr.bf16.mxu0 %v5228
        %5789 = vmatpush1.bf16.msra.mxu0 %v5227
        %5790 = vmatprep.subr.bf16.mxu0 %v5196
        %5791 = vmatpush1.bf16.msra.mxu0 %v5195
        %5792 = vmatprep.subr.bf16.mxu0 %v5164
        %5793 = vmatpush1.bf16.msra.mxu0 %v5163
        %5794 = vmatprep.subr.bf16.mxu0 %v5132
        %5795 = vmatpush1.bf16.msra.mxu0 %v5131
        %5796 = vmatprep.subr.bf16.mxu0 %v5100
        %5797 = vmatpush1.bf16.msra.mxu0 %v5099
        %5798 = vmatprep.subr.bf16.mxu0 %v5068
        %5799 = vmatpush1.bf16.msra.mxu0 %v5067
        %5800 = vmatprep.subr.bf16.mxu0 0
        %5801 = vmatpush2.bf16.msra.mxu0 0
        %5802 = vmatprep.subr.bf16.mxu0 0
        %5803 = vmatpush2.bf16.msra.mxu0 0
        %5804 = vmatprep.subr.bf16.mxu0 0
        %5805 = vmatpush2.bf16.msra.mxu0 0
        %5806 = vmatprep.subr.bf16.mxu0 0
        %5807 = vmatpush2.bf16.msra.mxu0 0
        %5808 = vmatprep.subr.bf16.mxu0 0
        %5809 = vmatpush2.bf16.msra.mxu0 0
        %5810 = vmatprep.subr.bf16.mxu0 0
        %5811 = vmatpush2.bf16.msra.mxu0 0
        %5812 = vmatprep.subr.bf16.mxu0 0
        %5813 = vmatpush2.bf16.msra.mxu0 0
        %5814 = vmatprep.subr.bf16.mxu0 0
        %5815 = vmatpush2.bf16.msra.mxu0 0
        %5816 = vmatprep.mubr.bf16.mxu0 0
        %5817 = vmatmul.mubr.bf16.gmra.mxu0 %v4287
        %v5818 = vpop.f32.mrf.mxu0
        %v5819 = vadd.f32 0.0, %v5818
        %v5820 = vpop.f32.mrf.mxu0
        %v5821 = vadd.f32 0.0, %v5820
        %v5822 = vpop.f32.mrf.mxu0
        %v5823 = vadd.f32 0.0, %v5822
        %v5824 = vpop.f32.mrf.mxu0
        %v5825 = vadd.f32 0.0, %v5824
        %5826 = vdwg.mxu0
        %5827 = vmatprep.subr.bf16.mxu0 %v5294
        %5828 = vmatpush1.bf16.msra.mxu0 %v5293
        %5829 = vmatprep.subr.bf16.mxu0 %v5262
        %5830 = vmatpush1.bf16.msra.mxu0 %v5261
        %5831 = vmatprep.subr.bf16.mxu0 %v5230
        %5832 = vmatpush1.bf16.msra.mxu0 %v5229
        %5833 = vmatprep.subr.bf16.mxu0 %v5198
        %5834 = vmatpush1.bf16.msra.mxu0 %v5197
        %5835 = vmatprep.subr.bf16.mxu0 %v5166
        %5836 = vmatpush1.bf16.msra.mxu0 %v5165
        %5837 = vmatprep.subr.bf16.mxu0 %v5134
        %5838 = vmatpush1.bf16.msra.mxu0 %v5133
        %5839 = vmatprep.subr.bf16.mxu0 %v5102
        %5840 = vmatpush1.bf16.msra.mxu0 %v5101
        %5841 = vmatprep.subr.bf16.mxu0 %v5070
        %5842 = vmatpush1.bf16.msra.mxu0 %v5069
        %5843 = vmatprep.subr.bf16.mxu0 0
        %5844 = vmatpush2.bf16.msra.mxu0 0
        %5845 = vmatprep.subr.bf16.mxu0 0
        %5846 = vmatpush2.bf16.msra.mxu0 0
        %5847 = vmatprep.subr.bf16.mxu0 0
        %5848 = vmatpush2.bf16.msra.mxu0 0
        %5849 = vmatprep.subr.bf16.mxu0 0
        %5850 = vmatpush2.bf16.msra.mxu0 0
        %5851 = vmatprep.subr.bf16.mxu0 0
        %5852 = vmatpush2.bf16.msra.mxu0 0
        %5853 = vmatprep.subr.bf16.mxu0 0
        %5854 = vmatpush2.bf16.msra.mxu0 0
        %5855 = vmatprep.subr.bf16.mxu0 0
        %5856 = vmatpush2.bf16.msra.mxu0 0
        %5857 = vmatprep.subr.bf16.mxu0 0
        %5858 = vmatpush2.bf16.msra.mxu0 0
        %5859 = vmatprep.mubr.bf16.mxu0 0
        %5860 = vmatmul.mubr.bf16.gmra.mxu0 %v4287
        %v5861 = vpop.f32.mrf.mxu0
        %v5862 = vadd.f32 0.0, %v5861
        %v5863 = vpop.f32.mrf.mxu0
        %v5864 = vadd.f32 0.0, %v5863
        %v5865 = vpop.f32.mrf.mxu0
        %v5866 = vadd.f32 0.0, %v5865
        %v5867 = vpop.f32.mrf.mxu0
        %v5868 = vadd.f32 0.0, %v5867
        %5869 = vdwg.mxu0
        %5870 = vmatprep.subr.bf16.mxu0 %v5296
        %5871 = vmatpush1.bf16.msra.mxu0 %v5295
        %5872 = vmatprep.subr.bf16.mxu0 %v5264
        %5873 = vmatpush1.bf16.msra.mxu0 %v5263
        %5874 = vmatprep.subr.bf16.mxu0 %v5232
        %5875 = vmatpush1.bf16.msra.mxu0 %v5231
        %5876 = vmatprep.subr.bf16.mxu0 %v5200
        %5877 = vmatpush1.bf16.msra.mxu0 %v5199
        %5878 = vmatprep.subr.bf16.mxu0 %v5168
        %5879 = vmatpush1.bf16.msra.mxu0 %v5167
        %5880 = vmatprep.subr.bf16.mxu0 %v5136
        %5881 = vmatpush1.bf16.msra.mxu0 %v5135
        %5882 = vmatprep.subr.bf16.mxu0 %v5104
        %5883 = vmatpush1.bf16.msra.mxu0 %v5103
        %5884 = vmatprep.subr.bf16.mxu0 %v5072
        %5885 = vmatpush1.bf16.msra.mxu0 %v5071
        %5886 = vmatprep.subr.bf16.mxu0 0
        %5887 = vmatpush2.bf16.msra.mxu0 0
        %5888 = vmatprep.subr.bf16.mxu0 0
        %5889 = vmatpush2.bf16.msra.mxu0 0
        %5890 = vmatprep.subr.bf16.mxu0 0
        %5891 = vmatpush2.bf16.msra.mxu0 0
        %5892 = vmatprep.subr.bf16.mxu0 0
        %5893 = vmatpush2.bf16.msra.mxu0 0
        %5894 = vmatprep.subr.bf16.mxu0 0
        %5895 = vmatpush2.bf16.msra.mxu0 0
        %5896 = vmatprep.subr.bf16.mxu0 0
        %5897 = vmatpush2.bf16.msra.mxu0 0
        %5898 = vmatprep.subr.bf16.mxu0 0
        %5899 = vmatpush2.bf16.msra.mxu0 0
        %5900 = vmatprep.subr.bf16.mxu0 0
        %5901 = vmatpush2.bf16.msra.mxu0 0
        %5902 = vmatprep.mubr.bf16.mxu0 0
        %5903 = vmatmul.mubr.bf16.gmra.mxu0 %v4287
        %v5904 = vpop.f32.mrf.mxu0
        %v5905 = vadd.f32 0.0, %v5904
        %v5906 = vpop.f32.mrf.mxu0
        %v5907 = vadd.f32 0.0, %v5906
        %v5908 = vpop.f32.mrf.mxu0
        %v5909 = vadd.f32 0.0, %v5908
        %v5910 = vpop.f32.mrf.mxu0
        %v5911 = vadd.f32 0.0, %v5910
        %5912 = vdwg.mxu0
        %5913 = vmatprep.subr.bf16.mxu0 %v5298
        %5914 = vmatpush1.bf16.msra.mxu0 %v5297
        %5915 = vmatprep.subr.bf16.mxu0 %v5266
        %5916 = vmatpush1.bf16.msra.mxu0 %v5265
        %5917 = vmatprep.subr.bf16.mxu0 %v5234
        %5918 = vmatpush1.bf16.msra.mxu0 %v5233
        %5919 = vmatprep.subr.bf16.mxu0 %v5202
        %5920 = vmatpush1.bf16.msra.mxu0 %v5201
        %5921 = vmatprep.subr.bf16.mxu0 %v5170
        %5922 = vmatpush1.bf16.msra.mxu0 %v5169
        %5923 = vmatprep.subr.bf16.mxu0 %v5138
        %5924 = vmatpush1.bf16.msra.mxu0 %v5137
        %5925 = vmatprep.subr.bf16.mxu0 %v5106
        %5926 = vmatpush1.bf16.msra.mxu0 %v5105
        %5927 = vmatprep.subr.bf16.mxu0 %v5074
        %5928 = vmatpush1.bf16.msra.mxu0 %v5073
        %5929 = vmatprep.subr.bf16.mxu0 0
        %5930 = vmatpush2.bf16.msra.mxu0 0
        %5931 = vmatprep.subr.bf16.mxu0 0
        %5932 = vmatpush2.bf16.msra.mxu0 0
        %5933 = vmatprep.subr.bf16.mxu0 0
        %5934 = vmatpush2.bf16.msra.mxu0 0
        %5935 = vmatprep.subr.bf16.mxu0 0
        %5936 = vmatpush2.bf16.msra.mxu0 0
        %5937 = vmatprep.subr.bf16.mxu0 0
        %5938 = vmatpush2.bf16.msra.mxu0 0
        %5939 = vmatprep.subr.bf16.mxu0 0
        %5940 = vmatpush2.bf16.msra.mxu0 0
        %5941 = vmatprep.subr.bf16.mxu0 0
        %5942 = vmatpush2.bf16.msra.mxu0 0
        %5943 = vmatprep.subr.bf16.mxu0 0
        %5944 = vmatpush2.bf16.msra.mxu0 0
        %5945 = vmatprep.mubr.bf16.mxu0 0
        %5946 = vmatmul.mubr.bf16.gmra.mxu0 %v4287
        %v5947 = vpop.f32.mrf.mxu0
        %v5948 = vadd.f32 0.0, %v5947
        %v5949 = vpop.f32.mrf.mxu0
        %v5950 = vadd.f32 0.0, %v5949
        %v5951 = vpop.f32.mrf.mxu0
        %v5952 = vadd.f32 0.0, %v5951
        %v5953 = vpop.f32.mrf.mxu0
        %v5954 = vadd.f32 0.0, %v5953
        %5955 = vdwg.mxu0
        %5956 = vmatprep.subr.bf16.mxu0 %v5300
        %5957 = vmatpush1.bf16.msra.mxu0 %v5299
        %5958 = vmatprep.subr.bf16.mxu0 %v5268
        %5959 = vmatpush1.bf16.msra.mxu0 %v5267
        %5960 = vmatprep.subr.bf16.mxu0 %v5236
        %5961 = vmatpush1.bf16.msra.mxu0 %v5235
        %5962 = vmatprep.subr.bf16.mxu0 %v5204
        %5963 = vmatpush1.bf16.msra.mxu0 %v5203
        %5964 = vmatprep.subr.bf16.mxu0 %v5172
        %5965 = vmatpush1.bf16.msra.mxu0 %v5171
        %5966 = vmatprep.subr.bf16.mxu0 %v5140
        %5967 = vmatpush1.bf16.msra.mxu0 %v5139
        %5968 = vmatprep.subr.bf16.mxu0 %v5108
        %5969 = vmatpush1.bf16.msra.mxu0 %v5107
        %5970 = vmatprep.subr.bf16.mxu0 %v5076
        %5971 = vmatpush1.bf16.msra.mxu0 %v5075
        %5972 = vmatprep.subr.bf16.mxu0 0
        %5973 = vmatpush2.bf16.msra.mxu0 0
        %5974 = vmatprep.subr.bf16.mxu0 0
        %5975 = vmatpush2.bf16.msra.mxu0 0
        %5976 = vmatprep.subr.bf16.mxu0 0
        %5977 = vmatpush2.bf16.msra.mxu0 0
        %5978 = vmatprep.subr.bf16.mxu0 0
        %5979 = vmatpush2.bf16.msra.mxu0 0
        %5980 = vmatprep.subr.bf16.mxu0 0
        %5981 = vmatpush2.bf16.msra.mxu0 0
        %5982 = vmatprep.subr.bf16.mxu0 0
        %5983 = vmatpush2.bf16.msra.mxu0 0
        %5984 = vmatprep.subr.bf16.mxu0 0
        %5985 = vmatpush2.bf16.msra.mxu0 0
        %5986 = vmatprep.subr.bf16.mxu0 0
        %5987 = vmatpush2.bf16.msra.mxu0 0
        %5988 = vmatprep.mubr.bf16.mxu0 0
        %5989 = vmatmul.mubr.bf16.gmra.mxu0 %v4287
        %v5990 = vpop.f32.mrf.mxu0
        %v5991 = vadd.f32 0.0, %v5990
        %v5992 = vpop.f32.mrf.mxu0
        %v5993 = vadd.f32 0.0, %v5992
        %v5994 = vpop.f32.mrf.mxu0
        %v5995 = vadd.f32 0.0, %v5994
        %v5996 = vpop.f32.mrf.mxu0
        %v5997 = vadd.f32 0.0, %v5996
        %5998 = vdwg.mxu0
        %5999 = vmatprep.subr.bf16.mxu0 %v5302
        %6000 = vmatpush1.bf16.msra.mxu0 %v5301
        %6001 = vmatprep.subr.bf16.mxu0 %v5270
        %6002 = vmatpush1.bf16.msra.mxu0 %v5269
        %6003 = vmatprep.subr.bf16.mxu0 %v5238
        %6004 = vmatpush1.bf16.msra.mxu0 %v5237
        %6005 = vmatprep.subr.bf16.mxu0 %v5206
        %6006 = vmatpush1.bf16.msra.mxu0 %v5205
        %6007 = vmatprep.subr.bf16.mxu0 %v5174
        %6008 = vmatpush1.bf16.msra.mxu0 %v5173
        %6009 = vmatprep.subr.bf16.mxu0 %v5142
        %6010 = vmatpush1.bf16.msra.mxu0 %v5141
        %6011 = vmatprep.subr.bf16.mxu0 %v5110
        %6012 = vmatpush1.bf16.msra.mxu0 %v5109
        %6013 = vmatprep.subr.bf16.mxu0 %v5078
        %6014 = vmatpush1.bf16.msra.mxu0 %v5077
        %6015 = vmatprep.subr.bf16.mxu0 0
        %6016 = vmatpush2.bf16.msra.mxu0 0
        %6017 = vmatprep.subr.bf16.mxu0 0
        %6018 = vmatpush2.bf16.msra.mxu0 0
        %6019 = vmatprep.subr.bf16.mxu0 0
        %6020 = vmatpush2.bf16.msra.mxu0 0
        %6021 = vmatprep.subr.bf16.mxu0 0
        %6022 = vmatpush2.bf16.msra.mxu0 0
        %6023 = vmatprep.subr.bf16.mxu0 0
        %6024 = vmatpush2.bf16.msra.mxu0 0
        %6025 = vmatprep.subr.bf16.mxu0 0
        %6026 = vmatpush2.bf16.msra.mxu0 0
        %6027 = vmatprep.subr.bf16.mxu0 0
        %6028 = vmatpush2.bf16.msra.mxu0 0
        %6029 = vmatprep.subr.bf16.mxu0 0
        %6030 = vmatpush2.bf16.msra.mxu0 0
        %6031 = vmatprep.mubr.bf16.mxu0 0
        %6032 = vmatmul.mubr.bf16.gmra.mxu0 %v4287
        %v6033 = vpop.f32.mrf.mxu0
        %v6034 = vadd.f32 0.0, %v6033
        %v6035 = vpop.f32.mrf.mxu0
        %v6036 = vadd.f32 0.0, %v6035
        %v6037 = vpop.f32.mrf.mxu0
        %v6038 = vadd.f32 0.0, %v6037
        %v6039 = vpop.f32.mrf.mxu0
        %v6040 = vadd.f32 0.0, %v6039
        %6041 = vdwg.mxu0
        %6042 = vmatprep.subr.bf16.mxu0 %v5304
        %6043 = vmatpush1.bf16.msra.mxu0 %v5303
        %6044 = vmatprep.subr.bf16.mxu0 %v5272
        %6045 = vmatpush1.bf16.msra.mxu0 %v5271
        %6046 = vmatprep.subr.bf16.mxu0 %v5240
        %6047 = vmatpush1.bf16.msra.mxu0 %v5239
        %6048 = vmatprep.subr.bf16.mxu0 %v5208
        %6049 = vmatpush1.bf16.msra.mxu0 %v5207
        %6050 = vmatprep.subr.bf16.mxu0 %v5176
        %6051 = vmatpush1.bf16.msra.mxu0 %v5175
        %6052 = vmatprep.subr.bf16.mxu0 %v5144
        %6053 = vmatpush1.bf16.msra.mxu0 %v5143
        %6054 = vmatprep.subr.bf16.mxu0 %v5112
        %6055 = vmatpush1.bf16.msra.mxu0 %v5111
        %6056 = vmatprep.subr.bf16.mxu0 %v5080
        %6057 = vmatpush1.bf16.msra.mxu0 %v5079
        %6058 = vmatprep.subr.bf16.mxu0 0
        %6059 = vmatpush2.bf16.msra.mxu0 0
        %6060 = vmatprep.subr.bf16.mxu0 0
        %6061 = vmatpush2.bf16.msra.mxu0 0
        %6062 = vmatprep.subr.bf16.mxu0 0
        %6063 = vmatpush2.bf16.msra.mxu0 0
        %6064 = vmatprep.subr.bf16.mxu0 0
        %6065 = vmatpush2.bf16.msra.mxu0 0
        %6066 = vmatprep.subr.bf16.mxu0 0
        %6067 = vmatpush2.bf16.msra.mxu0 0
        %6068 = vmatprep.subr.bf16.mxu0 0
        %6069 = vmatpush2.bf16.msra.mxu0 0
        %6070 = vmatprep.subr.bf16.mxu0 0
        %6071 = vmatpush2.bf16.msra.mxu0 0
        %6072 = vmatprep.subr.bf16.mxu0 0
        %6073 = vmatpush2.bf16.msra.mxu0 0
        %6074 = vmatprep.mubr.bf16.mxu0 0
        %6075 = vmatmul.mubr.bf16.gmra.mxu0 %v4287
        %v6076 = vpop.f32.mrf.mxu0
        %v6077 = vadd.f32 0.0, %v6076
        %v6078 = vpop.f32.mrf.mxu0
        %v6079 = vadd.f32 0.0, %v6078
        %v6080 = vpop.f32.mrf.mxu0
        %v6081 = vadd.f32 0.0, %v6080
        %v6082 = vpop.f32.mrf.mxu0
        %v6083 = vadd.f32 0.0, %v6082
        %6084 = vdwg.mxu0
        %6085 = vmatprep.subr.bf16.mxu0 %v5306
        %6086 = vmatpush1.bf16.msra.mxu0 %v5305
        %6087 = vmatprep.subr.bf16.mxu0 %v5274
        %6088 = vmatpush1.bf16.msra.mxu0 %v5273
        %6089 = vmatprep.subr.bf16.mxu0 %v5242
        %6090 = vmatpush1.bf16.msra.mxu0 %v5241
        %6091 = vmatprep.subr.bf16.mxu0 %v5210
        %6092 = vmatpush1.bf16.msra.mxu0 %v5209
        %6093 = vmatprep.subr.bf16.mxu0 %v5178
        %6094 = vmatpush1.bf16.msra.mxu0 %v5177
        %6095 = vmatprep.subr.bf16.mxu0 %v5146
        %6096 = vmatpush1.bf16.msra.mxu0 %v5145
        %6097 = vmatprep.subr.bf16.mxu0 %v5114
        %6098 = vmatpush1.bf16.msra.mxu0 %v5113
        %6099 = vmatprep.subr.bf16.mxu0 %v5082
        %6100 = vmatpush1.bf16.msra.mxu0 %v5081
        %6101 = vmatprep.subr.bf16.mxu0 0
        %6102 = vmatpush2.bf16.msra.mxu0 0
        %6103 = vmatprep.subr.bf16.mxu0 0
        %6104 = vmatpush2.bf16.msra.mxu0 0
        %6105 = vmatprep.subr.bf16.mxu0 0
        %6106 = vmatpush2.bf16.msra.mxu0 0
        %6107 = vmatprep.subr.bf16.mxu0 0
        %6108 = vmatpush2.bf16.msra.mxu0 0
        %6109 = vmatprep.subr.bf16.mxu0 0
        %6110 = vmatpush2.bf16.msra.mxu0 0
        %6111 = vmatprep.subr.bf16.mxu0 0
        %6112 = vmatpush2.bf16.msra.mxu0 0
        %6113 = vmatprep.subr.bf16.mxu0 0
        %6114 = vmatpush2.bf16.msra.mxu0 0
        %6115 = vmatprep.subr.bf16.mxu0 0
        %6116 = vmatpush2.bf16.msra.mxu0 0
        %6117 = vmatprep.mubr.bf16.mxu0 0
        %6118 = vmatmul.mubr.bf16.gmra.mxu0 %v4287
        %v6119 = vpop.f32.mrf.mxu0
        %v6120 = vadd.f32 0.0, %v6119
        %v6121 = vpop.f32.mrf.mxu0
        %v6122 = vadd.f32 0.0, %v6121
        %v6123 = vpop.f32.mrf.mxu0
        %v6124 = vadd.f32 0.0, %v6123
        %v6125 = vpop.f32.mrf.mxu0
        %v6126 = vadd.f32 0.0, %v6125
        %6127 = vdwg.mxu0
        %6128 = vmatprep.subr.bf16.mxu0 %v5308
        %6129 = vmatpush1.bf16.msra.mxu0 %v5307
        %6130 = vmatprep.subr.bf16.mxu0 %v5276
        %6131 = vmatpush1.bf16.msra.mxu0 %v5275
        %6132 = vmatprep.subr.bf16.mxu0 %v5244
        %6133 = vmatpush1.bf16.msra.mxu0 %v5243
        %6134 = vmatprep.subr.bf16.mxu0 %v5212
        %6135 = vmatpush1.bf16.msra.mxu0 %v5211
        %6136 = vmatprep.subr.bf16.mxu0 %v5180
        %6137 = vmatpush1.bf16.msra.mxu0 %v5179
        %6138 = vmatprep.subr.bf16.mxu0 %v5148
        %6139 = vmatpush1.bf16.msra.mxu0 %v5147
        %6140 = vmatprep.subr.bf16.mxu0 %v5116
        %6141 = vmatpush1.bf16.msra.mxu0 %v5115
        %6142 = vmatprep.subr.bf16.mxu0 %v5084
        %6143 = vmatpush1.bf16.msra.mxu0 %v5083
        %6144 = vmatprep.subr.bf16.mxu0 0
        %6145 = vmatpush2.bf16.msra.mxu0 0
        %6146 = vmatprep.subr.bf16.mxu0 0
        %6147 = vmatpush2.bf16.msra.mxu0 0
        %6148 = vmatprep.subr.bf16.mxu0 0
        %6149 = vmatpush2.bf16.msra.mxu0 0
        %6150 = vmatprep.subr.bf16.mxu0 0
        %6151 = vmatpush2.bf16.msra.mxu0 0
        %6152 = vmatprep.subr.bf16.mxu0 0
        %6153 = vmatpush2.bf16.msra.mxu0 0
        %6154 = vmatprep.subr.bf16.mxu0 0
        %6155 = vmatpush2.bf16.msra.mxu0 0
        %6156 = vmatprep.subr.bf16.mxu0 0
        %6157 = vmatpush2.bf16.msra.mxu0 0
        %6158 = vmatprep.subr.bf16.mxu0 0
        %6159 = vmatpush2.bf16.msra.mxu0 0
        %6160 = vmatprep.mubr.bf16.mxu0 0
        %6161 = vmatmul.mubr.bf16.gmra.mxu0 %v4287
        %v6162 = vpop.f32.mrf.mxu0
        %v6163 = vadd.f32 0.0, %v6162
        %v6164 = vpop.f32.mrf.mxu0
        %v6165 = vadd.f32 0.0, %v6164
        %v6166 = vpop.f32.mrf.mxu0
        %v6167 = vadd.f32 0.0, %v6166
        %v6168 = vpop.f32.mrf.mxu0
        %v6169 = vadd.f32 0.0, %v6168
        %6170 = vdwg.mxu0
        %6171 = vmatprep.subr.bf16.mxu0 %v5310
        %6172 = vmatpush1.bf16.msra.mxu0 %v5309
        %6173 = vmatprep.subr.bf16.mxu0 %v5278
        %6174 = vmatpush1.bf16.msra.mxu0 %v5277
        %6175 = vmatprep.subr.bf16.mxu0 %v5246
        %6176 = vmatpush1.bf16.msra.mxu0 %v5245
        %6177 = vmatprep.subr.bf16.mxu0 %v5214
        %6178 = vmatpush1.bf16.msra.mxu0 %v5213
        %6179 = vmatprep.subr.bf16.mxu0 %v5182
        %6180 = vmatpush1.bf16.msra.mxu0 %v5181
        %6181 = vmatprep.subr.bf16.mxu0 %v5150
        %6182 = vmatpush1.bf16.msra.mxu0 %v5149
        %6183 = vmatprep.subr.bf16.mxu0 %v5118
        %6184 = vmatpush1.bf16.msra.mxu0 %v5117
        %6185 = vmatprep.subr.bf16.mxu0 %v5086
        %6186 = vmatpush1.bf16.msra.mxu0 %v5085
        %6187 = vmatprep.subr.bf16.mxu0 0
        %6188 = vmatpush2.bf16.msra.mxu0 0
        %6189 = vmatprep.subr.bf16.mxu0 0
        %6190 = vmatpush2.bf16.msra.mxu0 0
        %6191 = vmatprep.subr.bf16.mxu0 0
        %6192 = vmatpush2.bf16.msra.mxu0 0
        %6193 = vmatprep.subr.bf16.mxu0 0
        %6194 = vmatpush2.bf16.msra.mxu0 0
        %6195 = vmatprep.subr.bf16.mxu0 0
        %6196 = vmatpush2.bf16.msra.mxu0 0
        %6197 = vmatprep.subr.bf16.mxu0 0
        %6198 = vmatpush2.bf16.msra.mxu0 0
        %6199 = vmatprep.subr.bf16.mxu0 0
        %6200 = vmatpush2.bf16.msra.mxu0 0
        %6201 = vmatprep.subr.bf16.mxu0 0
        %6202 = vmatpush2.bf16.msra.mxu0 0
        %6203 = vmatprep.mubr.bf16.mxu0 0
        %6204 = vmatmul.mubr.bf16.gmra.mxu0 %v4287
        %v6205 = vpop.f32.mrf.mxu0
        %v6206 = vadd.f32 0.0, %v6205
        %v6207 = vpop.f32.mrf.mxu0
        %v6208 = vadd.f32 0.0, %v6207
        %v6209 = vpop.f32.mrf.mxu0
        %v6210 = vadd.f32 0.0, %v6209
        %v6211 = vpop.f32.mrf.mxu0
        %v6212 = vadd.f32 0.0, %v6211
        %6213 = vdwg.mxu0
        %6214 = vmatprep.subr.bf16.mxu0 %v5312
        %6215 = vmatpush1.bf16.msra.mxu0 %v5311
        %6216 = vmatprep.subr.bf16.mxu0 %v5280
        %6217 = vmatpush1.bf16.msra.mxu0 %v5279
        %6218 = vmatprep.subr.bf16.mxu0 %v5248
        %6219 = vmatpush1.bf16.msra.mxu0 %v5247
        %6220 = vmatprep.subr.bf16.mxu0 %v5216
        %6221 = vmatpush1.bf16.msra.mxu0 %v5215
        %6222 = vmatprep.subr.bf16.mxu0 %v5184
        %6223 = vmatpush1.bf16.msra.mxu0 %v5183
        %6224 = vmatprep.subr.bf16.mxu0 %v5152
        %6225 = vmatpush1.bf16.msra.mxu0 %v5151
        %6226 = vmatprep.subr.bf16.mxu0 %v5120
        %6227 = vmatpush1.bf16.msra.mxu0 %v5119
        %6228 = vmatprep.subr.bf16.mxu0 %v5088
        %6229 = vmatpush1.bf16.msra.mxu0 %v5087
        %6230 = vmatprep.subr.bf16.mxu0 0
        %6231 = vmatpush2.bf16.msra.mxu0 0
        %6232 = vmatprep.subr.bf16.mxu0 0
        %6233 = vmatpush2.bf16.msra.mxu0 0
        %6234 = vmatprep.subr.bf16.mxu0 0
        %6235 = vmatpush2.bf16.msra.mxu0 0
        %6236 = vmatprep.subr.bf16.mxu0 0
        %6237 = vmatpush2.bf16.msra.mxu0 0
        %6238 = vmatprep.subr.bf16.mxu0 0
        %6239 = vmatpush2.bf16.msra.mxu0 0
        %6240 = vmatprep.subr.bf16.mxu0 0
        %6241 = vmatpush2.bf16.msra.mxu0 0
        %6242 = vmatprep.subr.bf16.mxu0 0
        %6243 = vmatpush2.bf16.msra.mxu0 0
        %6244 = vmatprep.subr.bf16.mxu0 0
        %6245 = vmatpush2.bf16.msra.mxu0 0
        %6246 = vmatprep.mubr.bf16.mxu0 0
        %6247 = vmatmul.mubr.bf16.gmra.mxu0 %v4287
        %v6248 = vpop.f32.mrf.mxu0
        %v6249 = vadd.f32 0.0, %v6248
        %v6250 = vpop.f32.mrf.mxu0
        %v6251 = vadd.f32 0.0, %v6250
        %v6252 = vpop.f32.mrf.mxu0
        %v6253 = vadd.f32 0.0, %v6252
        %v6254 = vpop.f32.mrf.mxu0
        %v6255 = vadd.f32 0.0, %v6254
        %6256 = vdwg.mxu0
        %v6257 = vmul.f32 %v5604, 5.0
        %v6258 = vmul.f32 %v5606, 5.0
        %v6259 = vmul.f32 %v5647, 5.0
        %v6260 = vmul.f32 %v5649, 5.0
        %v6261 = vmul.f32 %v5690, 5.0
        %v6262 = vmul.f32 %v5692, 5.0
        %v6263 = vmul.f32 %v5733, 5.0
        %v6264 = vmul.f32 %v5735, 5.0
        %v6265 = vmul.f32 %v5776, 5.0
        %v6266 = vmul.f32 %v5778, 5.0
        %v6267 = vmul.f32 %v5819, 5.0
        %v6268 = vmul.f32 %v5821, 5.0
        %v6269 = vmul.f32 %v5862, 5.0
        %v6270 = vmul.f32 %v5864, 5.0
        %v6271 = vmul.f32 %v5905, 5.0
        %v6272 = vmul.f32 %v5907, 5.0
        %v6273 = vmul.f32 %v5948, 5.0
        %v6274 = vmul.f32 %v5950, 5.0
        %v6275 = vmul.f32 %v5991, 5.0
        %v6276 = vmul.f32 %v5993, 5.0
        %v6277 = vmul.f32 %v6034, 5.0
        %v6278 = vmul.f32 %v6036, 5.0
        %v6279 = vmul.f32 %v6077, 5.0
        %v6280 = vmul.f32 %v6079, 5.0
        %v6281 = vmul.f32 %v6120, 5.0
        %v6282 = vmul.f32 %v6122, 5.0
        %v6283 = vmul.f32 %v6163, 5.0
        %v6284 = vmul.f32 %v6165, 5.0
        %v6285 = vmul.f32 %v6206, 5.0
        %v6286 = vmul.f32 %v6208, 5.0
        %v6287 = vmul.f32 %v6249, 5.0
        %v6288 = vmul.f32 %v6251, 5.0
        %v6289 = vmul.f32 %v5608, 5.0
        %v6290 = vmul.f32 %v5610, 5.0
        %v6291 = vmul.f32 %v5651, 5.0
        %v6292 = vmul.f32 %v5653, 5.0
        %v6293 = vmul.f32 %v5694, 5.0
        %v6294 = vmul.f32 %v5696, 5.0
        %v6295 = vmul.f32 %v5737, 5.0
        %v6296 = vmul.f32 %v5739, 5.0
        %v6297 = vmul.f32 %v5780, 5.0
        %v6298 = vmul.f32 %v5782, 5.0
        %v6299 = vmul.f32 %v5823, 5.0
        %v6300 = vmul.f32 %v5825, 5.0
        %v6301 = vmul.f32 %v5866, 5.0
        %v6302 = vmul.f32 %v5868, 5.0
        %v6303 = vmul.f32 %v5909, 5.0
        %v6304 = vmul.f32 %v5911, 5.0
        %v6305 = vmul.f32 %v5952, 5.0
        %v6306 = vmul.f32 %v5954, 5.0
        %v6307 = vmul.f32 %v5995, 5.0
        %v6308 = vmul.f32 %v5997, 5.0
        %v6309 = vmul.f32 %v6038, 5.0
        %v6310 = vmul.f32 %v6040, 5.0
        %v6311 = vmul.f32 %v6081, 5.0
        %v6312 = vmul.f32 %v6083, 5.0
        %v6313 = vmul.f32 %v6124, 5.0
        %v6314 = vmul.f32 %v6126, 5.0
        %v6315 = vmul.f32 %v6167, 5.0
        %v6316 = vmul.f32 %v6169, 5.0
        %v6317 = vmul.f32 %v6210, 5.0
        %v6318 = vmul.f32 %v6212, 5.0
        %v6319 = vmul.f32 %v6253, 5.0
        %v6320 = vmul.f32 %v6255, 5.0
        %v6321 = vld [vmem:[#allocation8] sm:$0xff]
        %v6322 = vld [vmem:[#allocation8 + $0x8] sm:$0xff]
        %v6323 = vmax.f32 %v6257, %v6259
        %v6324 = vmax.f32 %v6258, %v6260
        %v6325 = vmax.f32 %v6323, %v6261
        %v6326 = vmax.f32 %v6324, %v6262
        %v6327 = vmax.f32 %v6325, %v6263
        %v6328 = vmax.f32 %v6326, %v6264
        %v6329 = vmax.f32 %v6327, %v6265
        %v6330 = vmax.f32 %v6328, %v6266
        %v6331 = vmax.f32 %v6329, %v6267
        %v6332 = vmax.f32 %v6330, %v6268
        %v6333 = vmax.f32 %v6331, %v6269
        %v6334 = vmax.f32 %v6332, %v6270
        %v6335 = vmax.f32 %v6333, %v6271
        %v6336 = vmax.f32 %v6334, %v6272
        %v6337 = vmax.f32 %v6335, %v6273
        %v6338 = vmax.f32 %v6336, %v6274
        %v6339 = vmax.f32 %v6337, %v6275
        %v6340 = vmax.f32 %v6338, %v6276
        %v6341 = vmax.f32 %v6339, %v6277
        %v6342 = vmax.f32 %v6340, %v6278
        %v6343 = vmax.f32 %v6341, %v6279
        %v6344 = vmax.f32 %v6342, %v6280
        %v6345 = vmax.f32 %v6343, %v6281
        %v6346 = vmax.f32 %v6344, %v6282
        %v6347 = vmax.f32 %v6345, %v6283
        %v6348 = vmax.f32 %v6346, %v6284
        %v6349 = vmax.f32 %v6347, %v6285
        %v6350 = vmax.f32 %v6348, %v6286
        %v6351 = vmax.f32 %v6349, %v6287
        %v6352 = vmax.f32 %v6350, %v6288
        %v6353 = vmax.f32 %v6351, %v6352
        %6354 = vmax.xlane.f32.xlu0 %v6353
        %v6355 = vpop.xlane.xlu0 %6354
        %v6356 = vmax.f32 %v6289, %v6291
        %v6357 = vmax.f32 %v6290, %v6292
        %v6358 = vmax.f32 %v6356, %v6293
        %v6359 = vmax.f32 %v6357, %v6294
        %v6360 = vmax.f32 %v6358, %v6295
        %v6361 = vmax.f32 %v6359, %v6296
        %v6362 = vmax.f32 %v6360, %v6297
        %v6363 = vmax.f32 %v6361, %v6298
        %v6364 = vmax.f32 %v6362, %v6299
        %v6365 = vmax.f32 %v6363, %v6300
        %v6366 = vmax.f32 %v6364, %v6301
        %v6367 = vmax.f32 %v6365, %v6302
        %v6368 = vmax.f32 %v6366, %v6303
        %v6369 = vmax.f32 %v6367, %v6304
        %v6370 = vmax.f32 %v6368, %v6305
        %v6371 = vmax.f32 %v6369, %v6306
        %v6372 = vmax.f32 %v6370, %v6307
        %v6373 = vmax.f32 %v6371, %v6308
        %v6374 = vmax.f32 %v6372, %v6309
        %v6375 = vmax.f32 %v6373, %v6310
        %v6376 = vmax.f32 %v6374, %v6311
        %v6377 = vmax.f32 %v6375, %v6312
        %v6378 = vmax.f32 %v6376, %v6313
        %v6379 = vmax.f32 %v6377, %v6314
        %v6380 = vmax.f32 %v6378, %v6315
        %v6381 = vmax.f32 %v6379, %v6316
        %v6382 = vmax.f32 %v6380, %v6317
        %v6383 = vmax.f32 %v6381, %v6318
        %v6384 = vmax.f32 %v6382, %v6319
        %v6385 = vmax.f32 %v6383, %v6320
        %v6386 = vmax.f32 %v6384, %v6385
        %6387 = vmax.xlane.f32.xlu0 %v6386
        %v6388 = vpop.xlane.xlu0 %6387
        %v6389 = vmax.f32 %v6321, %v6355
        %v6390 = vmax.f32 %v6322, %v6388
        %v6391 = vld [vmem:[#allocation9] sm:$0xff]
        %v6392 = vld [vmem:[#allocation9 + $0x8] sm:$0xff]
        %v6393 = vsub.f32 %v6321, %v6389
        %v6394 = vsub.f32 %v6322, %v6390
        %v6395 = vmul.f32 %v6393, 1.442695
        %v6396 = vpow.pop %v6395
        %v6397 = vmul.f32 %v6394, 1.442695
        %v6398 = vpow.pop %v6397
        %v6399 = vmul.f32 %v6391, %v6396
        %v6400 = vmul.f32 %v6392, %v6398
        %6402 = vset.pattern.permute.xlu0 0
        %6403 = vperm.xlu0 %6402, %v6389
        %v6404 = vpop.permute.xlu0 %6403
        %6407 = vset.pattern.permute.xlu0 0
        %6408 = vperm.xlu0 %6407, %v6390
        %v6409 = vpop.permute.xlu0 %6408
        %v6411 = vsub.f32 %v6257, %v6404
        %v6412 = vsub.f32 %v6258, %v6404
        %v6413 = vsub.f32 %v6259, %v6404
        %v6414 = vsub.f32 %v6260, %v6404
        %v6415 = vsub.f32 %v6261, %v6404
        %v6416 = vsub.f32 %v6262, %v6404
        %v6417 = vsub.f32 %v6263, %v6404
        %v6418 = vsub.f32 %v6264, %v6404
        %v6419 = vsub.f32 %v6265, %v6404
        %v6420 = vsub.f32 %v6266, %v6404
        %v6421 = vsub.f32 %v6267, %v6404
        %v6422 = vsub.f32 %v6268, %v6404
        %v6423 = vsub.f32 %v6269, %v6404
        %v6424 = vsub.f32 %v6270, %v6404
        %v6425 = vsub.f32 %v6271, %v6404
        %v6426 = vsub.f32 %v6272, %v6404
        %v6427 = vsub.f32 %v6273, %v6404
        %v6428 = vsub.f32 %v6274, %v6404
        %v6429 = vsub.f32 %v6275, %v6404
        %v6430 = vsub.f32 %v6276, %v6404
        %v6431 = vsub.f32 %v6277, %v6404
        %v6432 = vsub.f32 %v6278, %v6404
        %v6433 = vsub.f32 %v6279, %v6404
        %v6434 = vsub.f32 %v6280, %v6404
        %v6435 = vsub.f32 %v6281, %v6404
        %v6436 = vsub.f32 %v6282, %v6404
        %v6437 = vsub.f32 %v6283, %v6404
        %v6438 = vsub.f32 %v6284, %v6404
        %v6439 = vsub.f32 %v6285, %v6404
        %v6440 = vsub.f32 %v6286, %v6404
        %v6441 = vsub.f32 %v6287, %v6404
        %v6442 = vsub.f32 %v6288, %v6404
        %v6443 = vsub.f32 %v6289, %v6409
        %v6444 = vsub.f32 %v6290, %v6409
        %v6445 = vsub.f32 %v6291, %v6409
        %v6446 = vsub.f32 %v6292, %v6409
        %v6447 = vsub.f32 %v6293, %v6409
        %v6448 = vsub.f32 %v6294, %v6409
        %v6449 = vsub.f32 %v6295, %v6409
        %v6450 = vsub.f32 %v6296, %v6409
        %v6451 = vsub.f32 %v6297, %v6409
        %v6452 = vsub.f32 %v6298, %v6409
        %v6453 = vsub.f32 %v6299, %v6409
        %v6454 = vsub.f32 %v6300, %v6409
        %v6455 = vsub.f32 %v6301, %v6409
        %v6456 = vsub.f32 %v6302, %v6409
        %v6457 = vsub.f32 %v6303, %v6409
        %v6458 = vsub.f32 %v6304, %v6409
        %v6459 = vsub.f32 %v6305, %v6409
        %v6460 = vsub.f32 %v6306, %v6409
        %v6461 = vsub.f32 %v6307, %v6409
        %v6462 = vsub.f32 %v6308, %v6409
        %v6463 = vsub.f32 %v6309, %v6409
        %v6464 = vsub.f32 %v6310, %v6409
        %v6465 = vsub.f32 %v6311, %v6409
        %v6466 = vsub.f32 %v6312, %v6409
        %v6467 = vsub.f32 %v6313, %v6409
        %v6468 = vsub.f32 %v6314, %v6409
        %v6469 = vsub.f32 %v6315, %v6409
        %v6470 = vsub.f32 %v6316, %v6409
        %v6471 = vsub.f32 %v6317, %v6409
        %v6472 = vsub.f32 %v6318, %v6409
        %v6473 = vsub.f32 %v6319, %v6409
        %v6474 = vsub.f32 %v6320, %v6409
        %v6475 = vmul.f32 %v6411, 1.442695
        %v6476 = vpow.pop %v6475
        %v6477 = vmul.f32 %v6412, 1.442695
        %v6478 = vpow.pop %v6477
        %v6479 = vmul.f32 %v6413, 1.442695
        %v6480 = vpow.pop %v6479
        %v6481 = vmul.f32 %v6414, 1.442695
        %v6482 = vpow.pop %v6481
        %v6483 = vmul.f32 %v6415, 1.442695
        %v6484 = vpow.pop %v6483
        %v6485 = vmul.f32 %v6416, 1.442695
        %v6486 = vpow.pop %v6485
        %v6487 = vmul.f32 %v6417, 1.442695
        %v6488 = vpow.pop %v6487
        %v6489 = vmul.f32 %v6418, 1.442695
        %v6490 = vpow.pop %v6489
        %v6491 = vmul.f32 %v6419, 1.442695
        %v6492 = vpow.pop %v6491
        %v6493 = vmul.f32 %v6420, 1.442695
        %v6494 = vpow.pop %v6493
        %v6495 = vmul.f32 %v6421, 1.442695
        %v6496 = vpow.pop %v6495
        %v6497 = vmul.f32 %v6422, 1.442695
        %v6498 = vpow.pop %v6497
        %v6499 = vmul.f32 %v6423, 1.442695
        %v6500 = vpow.pop %v6499
        %v6501 = vmul.f32 %v6424, 1.442695
        %v6502 = vpow.pop %v6501
        %v6503 = vmul.f32 %v6425, 1.442695
        %v6504 = vpow.pop %v6503
        %v6505 = vmul.f32 %v6426, 1.442695
        %v6506 = vpow.pop %v6505
        %v6507 = vmul.f32 %v6427, 1.442695
        %v6508 = vpow.pop %v6507
        %v6509 = vmul.f32 %v6428, 1.442695
        %v6510 = vpow.pop %v6509
        %v6511 = vmul.f32 %v6429, 1.442695
        %v6512 = vpow.pop %v6511
        %v6513 = vmul.f32 %v6430, 1.442695
        %v6514 = vpow.pop %v6513
        %v6515 = vmul.f32 %v6431, 1.442695
        %v6516 = vpow.pop %v6515
        %v6517 = vmul.f32 %v6432, 1.442695
        %v6518 = vpow.pop %v6517
        %v6519 = vmul.f32 %v6433, 1.442695
        %v6520 = vpow.pop %v6519
        %v6521 = vmul.f32 %v6434, 1.442695
        %v6522 = vpow.pop %v6521
        %v6523 = vmul.f32 %v6435, 1.442695
        %v6524 = vpow.pop %v6523
        %v6525 = vmul.f32 %v6436, 1.442695
        %v6526 = vpow.pop %v6525
        %v6527 = vmul.f32 %v6437, 1.442695
        %v6528 = vpow.pop %v6527
        %v6529 = vmul.f32 %v6438, 1.442695
        %v6530 = vpow.pop %v6529
        %v6531 = vmul.f32 %v6439, 1.442695
        %v6532 = vpow.pop %v6531
        %v6533 = vmul.f32 %v6440, 1.442695
        %v6534 = vpow.pop %v6533
        %v6535 = vmul.f32 %v6441, 1.442695
        %v6536 = vpow.pop %v6535
        %v6537 = vmul.f32 %v6442, 1.442695
        %v6538 = vpow.pop %v6537
        %v6539 = vmul.f32 %v6443, 1.442695
        %v6540 = vpow.pop %v6539
        %v6541 = vmul.f32 %v6444, 1.442695
        %v6542 = vpow.pop %v6541
        %v6543 = vmul.f32 %v6445, 1.442695
        %v6544 = vpow.pop %v6543
        %v6545 = vmul.f32 %v6446, 1.442695
        %v6546 = vpow.pop %v6545
        %v6547 = vmul.f32 %v6447, 1.442695
        %v6548 = vpow.pop %v6547
        %v6549 = vmul.f32 %v6448, 1.442695
        %v6550 = vpow.pop %v6549
        %v6551 = vmul.f32 %v6449, 1.442695
        %v6552 = vpow.pop %v6551
        %v6553 = vmul.f32 %v6450, 1.442695
        %v6554 = vpow.pop %v6553
        %v6555 = vmul.f32 %v6451, 1.442695
        %v6556 = vpow.pop %v6555
        %v6557 = vmul.f32 %v6452, 1.442695
        %v6558 = vpow.pop %v6557
        %v6559 = vmul.f32 %v6453, 1.442695
        %v6560 = vpow.pop %v6559
        %v6561 = vmul.f32 %v6454, 1.442695
        %v6562 = vpow.pop %v6561
        %v6563 = vmul.f32 %v6455, 1.442695
        %v6564 = vpow.pop %v6563
        %v6565 = vmul.f32 %v6456, 1.442695
        %v6566 = vpow.pop %v6565
        %v6567 = vmul.f32 %v6457, 1.442695
        %v6568 = vpow.pop %v6567
        %v6569 = vmul.f32 %v6458, 1.442695
        %v6570 = vpow.pop %v6569
        %v6571 = vmul.f32 %v6459, 1.442695
        %v6572 = vpow.pop %v6571
        %v6573 = vmul.f32 %v6460, 1.442695
        %v6574 = vpow.pop %v6573
        %v6575 = vmul.f32 %v6461, 1.442695
        %v6576 = vpow.pop %v6575
        %v6577 = vmul.f32 %v6462, 1.442695
        %v6578 = vpow.pop %v6577
        %v6579 = vmul.f32 %v6463, 1.442695
        %v6580 = vpow.pop %v6579
        %v6581 = vmul.f32 %v6464, 1.442695
        %v6582 = vpow.pop %v6581
        %v6583 = vmul.f32 %v6465, 1.442695
        %v6584 = vpow.pop %v6583
        %v6585 = vmul.f32 %v6466, 1.442695
        %v6586 = vpow.pop %v6585
        %v6587 = vmul.f32 %v6467, 1.442695
        %v6588 = vpow.pop %v6587
        %v6589 = vmul.f32 %v6468, 1.442695
        %v6590 = vpow.pop %v6589
        %v6591 = vmul.f32 %v6469, 1.442695
        %v6592 = vpow.pop %v6591
        %v6593 = vmul.f32 %v6470, 1.442695
        %v6594 = vpow.pop %v6593
        %v6595 = vmul.f32 %v6471, 1.442695
        %v6596 = vpow.pop %v6595
        %v6597 = vmul.f32 %v6472, 1.442695
        %v6598 = vpow.pop %v6597
        %v6599 = vmul.f32 %v6473, 1.442695
        %v6600 = vpow.pop %v6599
        %v6601 = vmul.f32 %v6474, 1.442695
        %v6602 = vpow.pop %v6601
        %v6603 = vadd.f32 %v6476, %v6478
        %v6604 = vadd.f32 %v6603, %v6480
        %v6605 = vadd.f32 %v6604, %v6482
        %v6606 = vadd.f32 %v6605, %v6484
        %v6607 = vadd.f32 %v6606, %v6486
        %v6608 = vadd.f32 %v6607, %v6488
        %v6609 = vadd.f32 %v6608, %v6490
        %v6610 = vadd.f32 %v6609, %v6492
        %v6611 = vadd.f32 %v6610, %v6494
        %v6612 = vadd.f32 %v6611, %v6496
        %v6613 = vadd.f32 %v6612, %v6498
        %v6614 = vadd.f32 %v6613, %v6500
        %v6615 = vadd.f32 %v6614, %v6502
        %v6616 = vadd.f32 %v6615, %v6504
        %v6617 = vadd.f32 %v6616, %v6506
        %v6618 = vadd.f32 %v6617, %v6508
        %v6619 = vadd.f32 %v6618, %v6510
        %v6620 = vadd.f32 %v6619, %v6512
        %v6621 = vadd.f32 %v6620, %v6514
        %v6622 = vadd.f32 %v6621, %v6516
        %v6623 = vadd.f32 %v6622, %v6518
        %v6624 = vadd.f32 %v6623, %v6520
        %v6625 = vadd.f32 %v6624, %v6522
        %v6626 = vadd.f32 %v6625, %v6524
        %v6627 = vadd.f32 %v6626, %v6526
        %v6628 = vadd.f32 %v6627, %v6528
        %v6629 = vadd.f32 %v6628, %v6530
        %v6630 = vadd.f32 %v6629, %v6532
        %v6631 = vadd.f32 %v6630, %v6534
        %v6632 = vadd.f32 %v6631, %v6536
        %v6633 = vadd.f32 %v6632, %v6538
        %6634 = vadd.xlane.f32.xlu0 %v6633
        %v6635 = vpop.xlane.xlu0 %6634
        %v6636 = vadd.f32 %v6540, %v6542
        %v6637 = vadd.f32 %v6636, %v6544
        %v6638 = vadd.f32 %v6637, %v6546
        %v6639 = vadd.f32 %v6638, %v6548
        %v6640 = vadd.f32 %v6639, %v6550
        %v6641 = vadd.f32 %v6640, %v6552
        %v6642 = vadd.f32 %v6641, %v6554
        %v6643 = vadd.f32 %v6642, %v6556
        %v6644 = vadd.f32 %v6643, %v6558
        %v6645 = vadd.f32 %v6644, %v6560
        %v6646 = vadd.f32 %v6645, %v6562
        %v6647 = vadd.f32 %v6646, %v6564
        %v6648 = vadd.f32 %v6647, %v6566
        %v6649 = vadd.f32 %v6648, %v6568
        %v6650 = vadd.f32 %v6649, %v6570
        %v6651 = vadd.f32 %v6650, %v6572
        %v6652 = vadd.f32 %v6651, %v6574
        %v6653 = vadd.f32 %v6652, %v6576
        %v6654 = vadd.f32 %v6653, %v6578
        %v6655 = vadd.f32 %v6654, %v6580
        %v6656 = vadd.f32 %v6655, %v6582
        %v6657 = vadd.f32 %v6656, %v6584
        %v6658 = vadd.f32 %v6657, %v6586
        %v6659 = vadd.f32 %v6658, %v6588
        %v6660 = vadd.f32 %v6659, %v6590
        %v6661 = vadd.f32 %v6660, %v6592
        %v6662 = vadd.f32 %v6661, %v6594
        %v6663 = vadd.f32 %v6662, %v6596
        %v6664 = vadd.f32 %v6663, %v6598
        %v6665 = vadd.f32 %v6664, %v6600
        %v6666 = vadd.f32 %v6665, %v6602
        %6667 = vadd.xlane.f32.xlu0 %v6666
        %v6668 = vpop.xlane.xlu0 %6667
        %v6669 = vadd.f32 %v6399, %v6635
        %v6670 = vadd.f32 %v6400, %v6668
        %vm6671 = vcmask 7168
        %6672 = vst.msk [vmem:[#allocation9] sm:$0xff] %vm6671, %v6669
        %6673 = vst.msk [vmem:[#allocation9 + $0x8] sm:$0xff] %vm6671, %v6670
        %6674 = vst.msk [vmem:[#allocation8] sm:$0xff] %vm6671, %v6389
        %6675 = vst.msk [vmem:[#allocation8 + $0x8] sm:$0xff] %vm6671, %v6390
        %p6676 = scmp.eq.s32.totalorder %s35, 1
        // Predicated region
        $region125: #{dense_loss_forward.1} parent=71 // pred_check
          %p6677 = pneg %p6676
        $region126: #{dense_loss_forward.1} parent=71 // pred_check_branch
          %6679 = sbr.rel (%p6677) target = $region128
        $region127: #{dense_loss_forward.1} parent=71 // pred_region
          %v6680 = vld [vmem:[#allocation5] sm:$0x1]
          %v6681 = vld [vmem:[#allocation6] sm:$0x1]
          %v6682 = vlog2.pop %v6681
          %v6683 = vmul.f32 %v6682, 0.6931472
          %v6684 = vadd.f32 %v6680, %v6683
          %v6685 = vld [vmem:[#allocation8] sm:$0xff]
          %v6686 = vld [vmem:[#allocation8 + $0x8] sm:$0xff]
          %v6687 = vld [vmem:[#allocation9] sm:$0xff]
          %v6688 = vld [vmem:[#allocation9 + $0x8] sm:$0xff]
          %v6689 = vlog2.pop %v6687
          %v6690 = vmul.f32 %v6689, 0.6931472
          %v6691 = vlog2.pop %v6688
          %v6692 = vmul.f32 %v6691, 0.6931472
          %v6693 = vadd.f32 %v6685, %v6690
          %v6694 = vadd.f32 %v6686, %v6692
          %v6695 = vld [vmem:[#allocation4] sm:$0x1]
          %v6696 = vsub.f32 %v6684, %v6695
          %v6697 = vadd.f32 %v6696, 0.0
          %s6698 = vtos %v6697
          %v6699 = vld [vmem:[#allocation7] sm:$0xff]
          %v6700 = vld [vmem:[#allocation7 + $0x8] sm:$0xff]
          %v6701 = vsub.f32 %v6693, %v6699
          %v6702 = vsub.f32 %v6694, %v6700
          %v6703 = vsel %vm6671, %v6701, 0.0
          %v6704 = vsel %vm6671, %v6702, 0.0
          %v6705 = vadd.f32 %v6703, %v6704
          %6706 = vadd.xlane.f32.xlu0 %v6705
          %v6707 = vpop.xlane.xlu0 %6706
          %v6708 = vrot.slane %v6707, 4
          %v6709 = vadd.f32 %v6707, %v6708
          %v6710 = vrot.slane %v6709, 2
          %v6711 = vadd.f32 %v6709, %v6710
          %v6712 = vrot.slane %v6711, 1
          %v6713 = vadd.f32 %v6711, %v6712
          %s6714 = vtos %v6713
          %s6715 = smul.f32 %s6698, 0.25
          %s6716 = smul.f32 %s6714, 0.015625
          %s6717 = sadd.f32 %s6715, %s6716
          %v6718 = vstv %s6717
          %6719 = vst [vmem:[%s664] sm:$0xff] %v6718
        $region128: #{dense_loss_forward.1} parent=71 // pred_fallthru
          _
        %p6720 = scmp.lt.s32.totalorder %s34, 1
        %s6721 = scalar_select %p6720, %s34, 1
        %s6722 = smul.addr %s6721, 8
        %s6723 = scalar_lea.vmem %s13, %s6722
        // Predicated region
        $region129: #{dense_loss_forward.1} parent=71 // pred_check
          %p6724 = pneg %p348
        $region130: #{dense_loss_forward.1} parent=71 // pred_check_branch
          %6726 = sbr.rel (%p6724) target = $region132
        $region131: #{dense_loss_forward.1} parent=71 // pred_region
          _
        $region132: #{dense_loss_forward.1} parent=71 // pred_fallthru
          _
      $region72: #{dense_loss_forward.1} parent=5 // pred_fallthru
        _
      %p6727 = scmp.le.s32.totalorder 2, %s25
      // Predicated region
      $region133: #{dense_loss_forward.1} parent=5 // pred_check
        %p6728 = pneg %p6727
      $region134: #{dense_loss_forward.1} parent=5 // pred_check_branch
        %6730 = sbr.rel (%p6728) target = $region136
      $region135: #{dense_loss_forward.1} parent=5 // pred_region
        %s6731 = ssub.s32 %s25, 2
        // Predicated region
        $region137: #{dense_loss_forward.1} parent=135 // pred_check
          %p6732 = pneg %p354
        $region138: #{dense_loss_forward.1} parent=135 // pred_check_branch
          %6734 = sbr.rel (%p6732) target = $region140
        $region139: #{dense_loss_forward.1} parent=135 // pred_region
          %p6735 = scmp.lt.s32.totalorder %s36, 1
          %s6736 = scalar_select %p6735, %s36, 1
          %s6737 = smul.addr %s6736, 8
          %s6738 = scalar_lea.vmem %s13, %s6737
        $region140: #{dense_loss_forward.1} parent=135 // pred_fallthru
          _
      $region136: #{dense_loss_forward.1} parent=5 // pred_fallthru
        _
    $region6: #{dense_loss_forward.1} parent=1 // loop_footer
      %s29 = sadd.s32 1, %s25
    $region7: #{dense_loss_forward.1} parent=1 // loop_footer_branch
      %24 = sbr.rel target = $region3
    $region8: #{dense_loss_forward.1} parent=1 // loop_exit
      _
    %6739 = vsyncpa [#allocation11], 1
    %s6740 = scalar_lea.sflag [#allocation11], 1
    %6741 = vsyncpa %s6740, 1
    %6742 = vsyncpa [#allocation13], 1
    %6743 = vsyncpa [#allocation16], 1
    %6744 = vsyncpa [#allocation19], 1
    %6745 = vsyncpa [#allocation22], 1
    %6746 = vsyncpa [#allocation25], 1

</llo_original>
